<compile_context>
chip_gen: v7x
topology: tpu7x:2x2x1
jax: 0.10.0
libtpu: 0.0.40
codegen_flags: <defaults>
</compile_context>

<pallas_src>
import math
import functools

import jax
import jax.numpy as jnp
from jax import lax
from jax.experimental import pallas as pl
from jax.experimental.pallas import tpu as pltpu


def _layer_norm(x, gamma, beta, eps=1e-6):
    mu = jnp.mean(x, axis=-1, keepdims=True)
    var = jnp.mean((x - mu) ** 2, axis=-1, keepdims=True)
    return (x - mu) * lax.rsqrt(var + eps) * gamma + beta


def transformer_block_kernel(*refs, num_heads, head_dim, batch_block, seq_len, causal):
    if causal:
        (q_ref, k_ref, v_ref,
         wq_ref, bq_ref, wk_ref, bk_ref, wv_ref, bv_ref, wo_ref, bo_ref,
         g1_ref, be1_ref, w1_ref, fb1_ref, w2_ref, fb2_ref, g2_ref, be2_ref,
         o_ref) = refs
        mask_ref = None
    else:
        (q_ref, k_ref, v_ref, mask_ref,
         wq_ref, bq_ref, wk_ref, bk_ref, wv_ref, bv_ref, wo_ref, bo_ref,
         g1_ref, be1_ref, w1_ref, fb1_ref, w2_ref, fb2_ref, g2_ref, be2_ref,
         o_ref) = refs

    Bt, S, H, Dh = batch_block, seq_len, num_heads, head_dim
    E = H * Dh
    cdt = wq_ref.dtype  # matmul operand dtype (f32 or bf16); accumulation always f32

    # Fold the Bt batch elements of this grid step into the matmul M dimension.
    xq = q_ref[...].reshape(Bt * S, E)
    xk = k_ref[...].reshape(Bt * S, E)
    xv = v_ref[...].reshape(Bt * S, E)

    def dense(x, w_ref, b_ref):
        return jnp.dot(x.astype(cdt), w_ref[...],
                       preferred_element_type=jnp.float32) + b_ref[...]

    # --- fused QKV projections over all Bt*S rows (softmax scale folded into Q) ---
    q = dense(xq, wq_ref, bq_ref) * (1.0 / math.sqrt(Dh))
    k = dense(xk, wk_ref, bk_ref)
    v = dense(xv, wv_ref, bv_ref)

    # --- head split: (Bt*S, E) -> (H*Bt, S, Dh).  Heads and batch become ONE
    #     leading batch dim, so the attention runs as fully-batched leading-batch
    #     3-D einsums (the layout Mosaic lowers without relayouting the big
    #     operands); only one 3-D transpose per tensor, independent of Bt. ---
    def split_heads(x):
        # (Bt*S, E) -> (Bt*S, H, Dh) -> (H, Bt*S, Dh) -> (H*Bt, S, Dh)
        return (x.reshape(Bt * S, H, Dh)
                 .transpose(1, 0, 2)
                 .reshape(H * Bt, S, Dh)
                 .astype(cdt))

    qh, kh, vh = split_heads(q), split_heads(k), split_heads(v)

    # --- attention scores, batched over (head, batch) ---
    s = jnp.einsum("bqd,bkd->bqk", qh, kh,
                   preferred_element_type=jnp.float32)            # (H*Bt, S, S)

    if causal:
        row = lax.broadcasted_iota(jnp.int32, (S, S), 0)
        col = lax.broadcasted_iota(jnp.int32, (S, S), 1)
        s = jnp.where((row >= col)[None], s, -jnp.inf)
    else:
        keep = mask_ref[...][:, 0] != 0                           # (Bt, S, S)
        s = jnp.where(keep[None],                                 # bcast over heads
                      s.reshape(H, Bt, S, S),                     # free reshape
                      -jnp.inf).reshape(H * Bt, S, S)

    # NOTE: matches PyTorch masked_fill(-inf); a fully-masked row yields NaN in
    # both this kernel and the reference.
    m = jnp.max(s, axis=-1, keepdims=True)
    e = jnp.exp(s - m)
    # EUP reciprocal, applied to the (S, Dh)-sized context rather than dividing
    # the (H*Bt, S, S) weights.
    inv = pl.reciprocal(jnp.sum(e, axis=-1, keepdims=True), approx=True)

    # On v5e (no bf16 VPU) keeping `e` in f32 here can beat the bf16 pack of the
    # largest intermediate; on v6e/v7x the bf16 cast is the right call.
    ctx = jnp.einsum("bqk,bkd->bqd", e.astype(cdt), vh,
                     preferred_element_type=jnp.float32) * inv    # (H*Bt, S, Dh)

    # --- merge heads: (H*Bt, S, Dh) -> (Bt*S, E), one 3-D transpose ---
    attn = (ctx.reshape(H, Bt * S, Dh)
               .transpose(1, 0, 2)
               .reshape(Bt * S, E))
    attn_out = dense(attn, wo_ref, bo_ref)

    # --- residual + LayerNorm 1 (dropout == identity); LN/softmax math in f32 ---
    x1 = _layer_norm(xq.astype(jnp.float32) + attn_out, g1_ref[...], be1_ref[...])

    # --- FFN: Linear -> ReLU -> Linear ---
    h1 = jnp.maximum(dense(x1, w1_ref, fb1_ref), 0.0)
    ffn = dense(h1, w2_ref, fb2_ref)

    # --- residual + LayerNorm 2 (dropout == identity) ---
    out = _layer_norm(x1 + ffn, g2_ref[...], be2_ref[...])
    o_ref[...] = out.reshape(Bt, S, E).astype(o_ref.dtype)


def _tpu_generation():
    """Best-effort TPU info: (device_kind, physical_vmem_bytes, two_cores, prefer_bf16)."""
    kind = ""
    try:
        kind = jax.devices()[0].device_kind.lower()
    except Exception:
        pass
    vmem = None
    try:
        vmem = int(getattr(pltpu.get_tpu_info(), "vmem_capacity_bytes", 0)) or None
    except Exception:
        vmem = None
    is_v7 = ("v7" in kind) or ("7x" in kind)
    if vmem is None:
        vmem = (64 if is_v7 else 128) * 1024 * 1024
    # v7x has 2 TensorCores per chip (and v4/v5p megacore): prefer >=2 grid steps.
    two_cores = is_v7 or ("v4" in kind) or ("v5p" in kind)
    prefer_bf16 = is_v7 or ("v6" in kind)
    return kind, vmem, two_cores, prefer_bf16


def _pick_batch_block(B, S, E, F, H, vmem_budget_bytes, weight_bytes, two_cores,
                      act_itemsize):
    """Largest divisor Bt of B whose per-step working set fits the VMEM budget.
    Dual-TensorCore chips keep >= 2 (preferably even) grid steps; single-core
    chips maximize Bt (bigger matmul M, fewer ~0.35us grid-step overheads)."""
    per_b = (
        2 * H * S * S * 4               # f32 scores + exp
        + 2 * 3 * S * E * act_itemsize  # q/k/v input blocks (double-buffered)
        + 8 * S * E * 4                 # f32 projections / heads / attn / x1 / out
        + 2 * S * F * 4                 # FFN hidden (+ReLU)
        + 2 * S * S                     # int8 mask block (double-buffered)
    )
    budget = max(vmem_budget_bytes - weight_bytes, per_b)
    max_bt = max(1, int(budget // per_b))
    divisors = [d for d in range(1, B + 1) if B % d == 0 and d <= max_bt] or [1]
    if two_cores:
        even = [d for d in divisors if (B // d) >= 2 and (B // d) % 2 == 0]
        if even:
            return max(even)
        geq2 = [d for d in divisors if (B // d) >= 2]
        if geq2:
            return max(geq2)
    return max(divisors)


def transformer_block(q, k, v, mask, params, *, num_heads,
                      batch_block=None, use_bf16_matmul=None, causal=False):
    B, S, E = q.shape
    head_dim = E // num_heads
    out_dtype = q.dtype
    F = params["w1"].shape[1]

    kind, phys_vmem, two_cores, prefer_bf16 = _tpu_generation()
    if use_bf16_matmul is None:
        use_bf16_matmul = prefer_bf16   # bf16 MXU operands by default on v6e/v7x

    # Generation-aware scoped-VMEM limit: ~3/4 of physical VMEM
    # (96 MiB on v5e/v6e's 128 MiB, 48 MiB on v7x's 64 MiB) -> headroom for
    # compiler scratch while not capping tiling unnecessarily.
    vmem_limit = int(phys_vmem * 3 // 4)

    mat_dtype = jnp.bfloat16 if use_bf16_matmul else jnp.float32
    act_dtype = jnp.bfloat16 if use_bf16_matmul else q.dtype
    big_weights = ("wq", "wk", "wv", "wo", "w1", "w2")
    weight_order = ["wq", "bq", "wk", "bk", "wv", "bv", "wo", "bo",
                    "g1", "be1", "w1", "fb1", "w2", "fb2", "g2", "be2"]
    weights = [params[n].astype(mat_dtype if n in big_weights else jnp.float32)
               for n in weight_order]
    weight_bytes = sum(int(w.size) * w.dtype.itemsize for w in weights)

    if batch_block is None:
        Bt = _pick_batch_block(B, S, E, F, num_heads, vmem_limit, weight_bytes,
                               two_cores, jnp.dtype(act_dtype).itemsize)
    else:
        Bt = batch_block
    assert B % Bt == 0, "batch_block must divide batch size"

    # bf16 activations halve the HBM->VMEM DMA for the (Bt,S,E) blocks.
    inputs = [q.astype(act_dtype), k.astype(act_dtype), v.astype(act_dtype)]
    if not causal:
        # int8 keep-mask: 4x less HBM traffic than int32 (scales as S^2 per step).
        inputs.append((mask != 0).astype(jnp.int8))
    inputs.extend(weights)

    kernel = functools.partial(
        transformer_block_kernel,
        num_heads=num_heads, head_dim=head_dim, batch_block=Bt, seq_len=S,
        causal=causal)

    def seq_spec():
        return pl.BlockSpec((Bt, S, E), lambda i: (i, 0, 0))

    def build(single_buffer_weights):
        def weight_spec(arr):
            nd = arr.ndim
            kw = {}
            if single_buffer_weights:
                # Grid-invariant weights: one VMEM buffer is enough (the default
                # pipeline double-buffers every input; weights dominate VMEM).
                kw = dict(pipeline_mode=pl.Buffered(1))
            return pl.BlockSpec(arr.shape, lambda i, _nd=nd: (0,) * _nd, **kw)

        in_specs = [seq_spec(), seq_spec(), seq_spec()]
        if not causal:
            in_specs.append(pl.BlockSpec((Bt, 1, S, S), lambda i: (i, 0, 0, 0)))
        in_specs += [weight_spec(w) for w in weights]

        return pl.pallas_call(
            kernel,
            out_shape=jax.ShapeDtypeStruct((B, S, E), out_dtype),
            grid_spec=pltpu.PrefetchScalarGridSpec(
                num_scalar_prefetch=0,
                grid=(B // Bt,),
                in_specs=in_specs,
                out_specs=pl.BlockSpec((Bt, S, E), lambda i: (i, 0, 0)),
            ),
            compiler_params=pltpu.CompilerParams(
                dimension_semantics=("parallel",),
                vmem_limit_bytes=vmem_limit,
            ),
        )

    try:
        return build(True)(*inputs)
    except Exception:
        # Fallback for JAX versions without BlockSpec(pipeline_mode=...) support:
        # default double-buffered weights.
        return build(False)(*inputs)


def _reference(q, k, v, mask, params, *, num_heads):
    """Pure-JAX reference matching the PyTorch forward (dropout = identity)."""
    B, S, E = q.shape
    Dh = E // num_heads

    def proj(x, w, b):
        return x @ w + b

    def split(x):
        return x.reshape(B, S, num_heads, Dh).transpose(0, 2, 1, 3)

    qh = split(proj(q, params["wq"], params["bq"]))
    kh = split(proj(k, params["wk"], params["bk"]))
    vh = split(proj(v, params["wv"], params["bv"]))
    s = jnp.einsum("bhqd,bhkd->bhqk", qh, kh) / math.sqrt(Dh)
    s = jnp.where(mask != 0, s, -jnp.inf)
    w = jax.nn.softmax(s, axis=-1)
    a = jnp.einsum("bhqk,bhkd->bhqd", w, vh)
    a = a.transpose(0, 2, 1, 3).reshape(B, S, E)
    attn_out = proj(a, params["wo"], params["bo"])

    def ln(x, g, b):
        mu = jnp.mean(x, axis=-1, keepdims=True)
        var = jnp.mean((x - mu) ** 2, axis=-1, keepdims=True)
        return (x - mu) / jnp.sqrt(var + 1e-6) * g + b

    x1 = ln(q + attn_out, params["g1"], params["be1"])
    h = jnp.maximum(x1 @ params["w1"] + params["fb1"], 0.0)
    ffn = h @ params["w2"] + params["fb2"]
    return ln(x1 + ffn, params["g2"], params["be2"])


if __name__ == "__main__":
    B, S, E = 2, 8, 32
    num_heads = 4
    forward_dim = 64

    key = jax.random.PRNGKey(0)
    keys = jax.random.split(key, 16)

    def lin_w(kk, fan_in, fan_out):
        bound = 1.0 / math.sqrt(fan_in)
        return jax.random.uniform(kk, (fan_in, fan_out), jnp.float32, -bound, bound)

    def lin_b(kk, fan_in, fan_out):
        bound = 1.0 / math.sqrt(fan_in)
        return jax.random.uniform(kk, (1, fan_out), jnp.float32, -bound, bound)

    params = {
        "wq": lin_w(keys[0], E, E), "bq": lin_b(keys[1], E, E),
        "wk": lin_w(keys[2], E, E), "bk": lin_b(keys[3], E, E),
        "wv": lin_w(keys[4], E, E), "bv": lin_b(keys[5], E, E),
        "wo": lin_w(keys[6], E, E), "bo": lin_b(keys[7], E, E),
        "g1": jnp.ones((1, E), jnp.float32), "be1": jnp.zeros((1, E), jnp.float32),
        "w1": lin_w(keys[8], E, forward_dim), "fb1": lin_b(keys[9], E, forward_dim),
        "w2": lin_w(keys[10], forward_dim, E), "fb2": lin_b(keys[11], forward_dim, E),
        "g2": jnp.ones((1, E), jnp.float32), "be2": jnp.zeros((1, E), jnp.float32),
    }

    q = jax.random.normal(keys[12], (B, S, E), jnp.float32)
    k = jax.random.normal(keys[13], (B, S, E), jnp.float32)
    v = jax.random.normal(keys[14], (B, S, E), jnp.float32)
    # causal mask, shape (B, 1, S, S), 1 = keep, 0 = masked
    mask = jnp.broadcast_to(
        jnp.tril(jnp.ones((S, S), jnp.int32))[None, None], (B, 1, S, S))

    ref = _reference(q, k, v, mask, params, num_heads=num_heads)

    # 1) f32 path, explicit (B,1,S,S) mask, generation-aware batch block
    out = jax.block_until_ready(
        transformer_block(q, k, v, mask, params, num_heads=num_heads,
                          use_bf16_matmul=False))
    assert out.shape == (B, S, E)
    assert jnp.allclose(out, ref, atol=1e-2, rtol=1e-2), "f32 masked path mismatch"

    # 2) f32 path, in-kernel causal mask (no mask DMA at all)
    out_causal = jax.block_until_ready(
        transformer_block(q, k, v, None, params, num_heads=num_heads,
                          use_bf16_matmul=False, causal=True))
    assert jnp.allclose(out_causal, ref, atol=1e-2, rtol=1e-2), "causal path mismatch"

    # 3) bf16-MXU path (default on v6e/v7x), both batch elements folded into one step
    out_bf16 = jax.block_until_ready(
        transformer_block(q, k, v, mask, params, num_heads=num_heads,
                          use_bf16_matmul=True, batch_block=2))
    assert jnp.allclose(out_bf16, ref, atol=1e-1, rtol=1e-1), "bf16 path mismatch"

    print("KERNEL_OK")
</pallas_src>

<mosaic_0001>
module attributes {stable_mosaic.version = 11 : i64} {
  func.func @transformer_block_kernel(%arg0: i32, %arg1: memref<2x8x32xf32, #tpu.memory_space<vmem>>, %arg2: memref<2x8x32xf32, #tpu.memory_space<vmem>>, %arg3: memref<2x8x32xf32, #tpu.memory_space<vmem>>, %arg4: memref<2x1x8x8xi8, #tpu.memory_space<vmem>>, %arg5: memref<32x32xf32, #tpu.memory_space<vmem>>, %arg6: memref<1x32xf32, #tpu.memory_space<vmem>>, %arg7: memref<32x32xf32, #tpu.memory_space<vmem>>, %arg8: memref<1x32xf32, #tpu.memory_space<vmem>>, %arg9: memref<32x32xf32, #tpu.memory_space<vmem>>, %arg10: memref<1x32xf32, #tpu.memory_space<vmem>>, %arg11: memref<32x32xf32, #tpu.memory_space<vmem>>, %arg12: memref<1x32xf32, #tpu.memory_space<vmem>>, %arg13: memref<1x32xf32, #tpu.memory_space<vmem>>, %arg14: memref<1x32xf32, #tpu.memory_space<vmem>>, %arg15: memref<32x64xf32, #tpu.memory_space<vmem>>, %arg16: memref<1x64xf32, #tpu.memory_space<vmem>>, %arg17: memref<64x32xf32, #tpu.memory_space<vmem>>, %arg18: memref<1x32xf32, #tpu.memory_space<vmem>>, %arg19: memref<1x32xf32, #tpu.memory_space<vmem>>, %arg20: memref<1x32xf32, #tpu.memory_space<vmem>>, %arg21: memref<2x8x32xf32, #tpu.memory_space<vmem>>) attributes {dimension_semantics = [#tpu.dimension_semantics<parallel>], iteration_bounds = array<i64: 1>, scalar_prefetch = 0 : i64, scratch_operands = 0 : i64, tpu.core_type = #tpu.core_type<tc>, window_params = [{transform_indices = @transform_0, window_bounds = array<i64: 2, 8, 32>}, {transform_indices = @transform_1, window_bounds = array<i64: 2, 8, 32>}, {transform_indices = @transform_2, window_bounds = array<i64: 2, 8, 32>}, {transform_indices = @transform_3, window_bounds = array<i64: 2, 1, 8, 8>}, {pipeline_mode = #tpu.pipeline_mode<synchronous>, transform_indices = @transform_4, window_bounds = array<i64: 32, 32>}, {pipeline_mode = #tpu.pipeline_mode<synchronous>, transform_indices = @transform_5, window_bounds = array<i64: 1, 32>}, {pipeline_mode = #tpu.pipeline_mode<synchronous>, transform_indices = @transform_6, window_bounds = array<i64: 32, 32>}, {pipeline_mode = #tpu.pipeline_mode<synchronous>, transform_indices = @transform_7, window_bounds = array<i64: 1, 32>}, {pipeline_mode = #tpu.pipeline_mode<synchronous>, transform_indices = @transform_8, window_bounds = array<i64: 32, 32>}, {pipeline_mode = #tpu.pipeline_mode<synchronous>, transform_indices = @transform_9, window_bounds = array<i64: 1, 32>}, {pipeline_mode = #tpu.pipeline_mode<synchronous>, transform_indices = @transform_10, window_bounds = array<i64: 32, 32>}, {pipeline_mode = #tpu.pipeline_mode<synchronous>, transform_indices = @transform_11, window_bounds = array<i64: 1, 32>}, {pipeline_mode = #tpu.pipeline_mode<synchronous>, transform_indices = @transform_12, window_bounds = array<i64: 1, 32>}, {pipeline_mode = #tpu.pipeline_mode<synchronous>, transform_indices = @transform_13, window_bounds = array<i64: 1, 32>}, {pipeline_mode = #tpu.pipeline_mode<synchronous>, transform_indices = @transform_14, window_bounds = array<i64: 32, 64>}, {pipeline_mode = #tpu.pipeline_mode<synchronous>, transform_indices = @transform_15, window_bounds = array<i64: 1, 64>}, {pipeline_mode = #tpu.pipeline_mode<synchronous>, transform_indices = @transform_16, window_bounds = array<i64: 64, 32>}, {pipeline_mode = #tpu.pipeline_mode<synchronous>, transform_indices = @transform_17, window_bounds = array<i64: 1, 32>}, {pipeline_mode = #tpu.pipeline_mode<synchronous>, transform_indices = @transform_18, window_bounds = array<i64: 1, 32>}, {pipeline_mode = #tpu.pipeline_mode<synchronous>, transform_indices = @transform_19, window_bounds = array<i64: 1, 32>}, {transform_indices = @transform_20, window_bounds = array<i64: 2, 8, 32>}]} {
    %c0 = arith.constant 0 : index
    %c0_0 = arith.constant 0 : index
    %c0_1 = arith.constant 0 : index
    %0 = vector.load %arg1[%c0, %c0_0, %c0_1] : memref<2x8x32xf32, #tpu.memory_space<vmem>>, vector<2x8x32xf32>
    %1 = vector.shape_cast %0 : vector<2x8x32xf32> to vector<16x32xf32>
    %c0_2 = arith.constant 0 : index
    %c0_3 = arith.constant 0 : index
    %c0_4 = arith.constant 0 : index
    %2 = vector.load %arg2[%c0_2, %c0_3, %c0_4] : memref<2x8x32xf32, #tpu.memory_space<vmem>>, vector<2x8x32xf32>
    %3 = vector.shape_cast %2 : vector<2x8x32xf32> to vector<16x32xf32>
    %c0_5 = arith.constant 0 : index
    %c0_6 = arith.constant 0 : index
    %c0_7 = arith.constant 0 : index
    %4 = vector.load %arg3[%c0_5, %c0_6, %c0_7] : memref<2x8x32xf32, #tpu.memory_space<vmem>>, vector<2x8x32xf32>
    %5 = vector.shape_cast %4 : vector<2x8x32xf32> to vector<16x32xf32>
    %c0_8 = arith.constant 0 : index
    %c0_9 = arith.constant 0 : index
    %6 = vector.load %arg5[%c0_8, %c0_9] : memref<32x32xf32, #tpu.memory_space<vmem>>, vector<32x32xf32>
    %cst = arith.constant dense<0.000000e+00> : vector<16x32xf32>
    %7 = tpu.matmul %1, %6, %cst {dimension_numbers = #tpu.dot_dimension_numbers<[1], [0], [0], [1], [0, 0, 1, 1], [], []>} : vector<16x32xf32>, vector<32x32xf32>, vector<16x32xf32> -> vector<16x32xf32>
    %c0_10 = arith.constant 0 : index
    %c0_11 = arith.constant 0 : index
    %8 = vector.load %arg6[%c0_10, %c0_11] : memref<1x32xf32, #tpu.memory_space<vmem>>, vector<1x32xf32>
    %9 = vector.broadcast %8 : vector<1x32xf32> to vector<16x32xf32>
    %10 = arith.addf %7, %9 : vector<16x32xf32>
    %cst_12 = arith.constant 0.353553385 : f32
    %11 = vector.broadcast %cst_12 : f32 to vector<16x32xf32>
    %12 = arith.mulf %10, %11 : vector<16x32xf32>
    %c0_13 = arith.constant 0 : index
    %c0_14 = arith.constant 0 : index
    %13 = vector.load %arg7[%c0_13, %c0_14] : memref<32x32xf32, #tpu.memory_space<vmem>>, vector<32x32xf32>
    %cst_15 = arith.constant dense<0.000000e+00> : vector<16x32xf32>
    %14 = tpu.matmul %3, %13, %cst_15 {dimension_numbers = #tpu.dot_dimension_numbers<[1], [0], [0], [1], [0, 0, 1, 1], [], []>} : vector<16x32xf32>, vector<32x32xf32>, vector<16x32xf32> -> vector<16x32xf32>
    %c0_16 = arith.constant 0 : index
    %c0_17 = arith.constant 0 : index
    %15 = vector.load %arg8[%c0_16, %c0_17] : memref<1x32xf32, #tpu.memory_space<vmem>>, vector<1x32xf32>
    %16 = vector.broadcast %15 : vector<1x32xf32> to vector<16x32xf32>
    %17 = arith.addf %14, %16 : vector<16x32xf32>
    %c0_18 = arith.constant 0 : index
    %c0_19 = arith.constant 0 : index
    %18 = vector.load %arg9[%c0_18, %c0_19] : memref<32x32xf32, #tpu.memory_space<vmem>>, vector<32x32xf32>
    %cst_20 = arith.constant dense<0.000000e+00> : vector<16x32xf32>
    %19 = tpu.matmul %5, %18, %cst_20 {dimension_numbers = #tpu.dot_dimension_numbers<[1], [0], [0], [1], [0, 0, 1, 1], [], []>} : vector<16x32xf32>, vector<32x32xf32>, vector<16x32xf32> -> vector<16x32xf32>
    %c0_21 = arith.constant 0 : index
    %c0_22 = arith.constant 0 : index
    %20 = vector.load %arg10[%c0_21, %c0_22] : memref<1x32xf32, #tpu.memory_space<vmem>>, vector<1x32xf32>
    %21 = vector.broadcast %20 : vector<1x32xf32> to vector<16x32xf32>
    %22 = arith.addf %19, %21 : vector<16x32xf32>
    %23 = vector.shape_cast %12 : vector<16x32xf32> to vector<16x4x8xf32>
    %24 = tpu.transpose %23, [1, 0, 2] : vector<16x4x8xf32> -> vector<4x16x8xf32>
    %25 = vector.shape_cast %24 : vector<4x16x8xf32> to vector<8x8x8xf32>
    %26 = vector.shape_cast %17 : vector<16x32xf32> to vector<16x4x8xf32>
    %27 = tpu.transpose %26, [1, 0, 2] : vector<16x4x8xf32> -> vector<4x16x8xf32>
    %28 = vector.shape_cast %27 : vector<4x16x8xf32> to vector<8x8x8xf32>
    %29 = vector.shape_cast %22 : vector<16x32xf32> to vector<16x4x8xf32>
    %30 = tpu.transpose %29, [1, 0, 2] : vector<16x4x8xf32> -> vector<4x16x8xf32>
    %31 = vector.shape_cast %30 : vector<4x16x8xf32> to vector<8x8x8xf32>
    "tpu.trace_start"() <{level = 10 : i32, message = "bqd,bkd->bqk"}> : () -> ()
    %cst_23 = arith.constant dense<0.000000e+00> : vector<8x8x8xf32>
    %32 = tpu.matmul %25, %28, %cst_23 {dimension_numbers = #tpu.dot_dimension_numbers<[2], [2], [1], [1], [0, 0, 0, 1, 1, 1], [0], [0]>} : vector<8x8x8xf32>, vector<8x8x8xf32>, vector<8x8x8xf32> -> vector<8x8x8xf32>
    "tpu.trace_stop"() : () -> ()
    %c0_24 = arith.constant 0 : index
    %c0_25 = arith.constant 0 : index
    %c0_26 = arith.constant 0 : index
    %c0_27 = arith.constant 0 : index
    %33 = vector.load %arg4[%c0_24, %c0_25, %c0_26, %c0_27] : memref<2x1x8x8xi8, #tpu.memory_space<vmem>>, vector<2x1x8x8xi8>
    %34 = vector.shape_cast %33 : vector<2x1x8x8xi8> to vector<2x8x8xi8>
    %c0_i8 = arith.constant 0 : i8
    %35 = vector.broadcast %c0_i8 : i8 to vector<2x8x8xi8>
    %36 = arith.cmpi ne, %34, %35 : vector<2x8x8xi8>
    %37 = vector.shape_cast %36 : vector<2x8x8xi1> to vector<1x2x8x8xi1>
    %38 = vector.shape_cast %32 : vector<8x8x8xf32> to vector<4x2x8x8xf32>
    %cst_28 = arith.constant 0xFF800000 : f32
    %39 = vector.shape_cast %37 : vector<1x2x8x8xi1> to vector<1x2x8x8xi1>
    %40 = vector.broadcast %39 : vector<1x2x8x8xi1> to vector<4x2x8x8xi1>
    %41 = vector.broadcast %cst_28 : f32 to vector<4x2x8x8xf32>
    %42 = arith.select %40, %38, %41 : vector<4x2x8x8xi1>, vector<4x2x8x8xf32>
    %43 = vector.shape_cast %42 : vector<4x2x8x8xf32> to vector<8x8x8xf32>
    %cst_29 = arith.constant dense<0xFF800000> : vector<8x8xf32>
    %44 = vector.multi_reduction <maximumf>, %43, %cst_29 [2] : vector<8x8x8xf32> to vector<8x8xf32>
    %45 = vector.shape_cast %44 : vector<8x8xf32> to vector<8x8x1xf32>
    %46 = vector.broadcast %45 : vector<8x8x1xf32> to vector<8x8x8xf32>
    %47 = arith.subf %43, %46 : vector<8x8x8xf32>
    %48 = math.exp %47 : vector<8x8x8xf32>
    %cst_30 = arith.constant dense<0.000000e+00> : vector<8x8xf32>
    %49 = vector.multi_reduction <add>, %48, %cst_30 [2] : vector<8x8x8xf32> to vector<8x8xf32>
    %50 = vector.shape_cast %49 : vector<8x8xf32> to vector<8x8x1xf32>
    %51 = tpu.reciprocal %50 {approx = true} : vector<8x8x1xf32> -> vector<8x8x1xf32>
    "tpu.trace_start"() <{level = 10 : i32, message = "bqk,bkd->bqd"}> : () -> ()
    %cst_31 = arith.constant dense<0.000000e+00> : vector<8x8x8xf32>
    %52 = tpu.matmul %48, %31, %cst_31 {dimension_numbers = #tpu.dot_dimension_numbers<[2], [1], [1], [2], [0, 0, 0, 1, 1, 2], [0], [0]>} : vector<8x8x8xf32>, vector<8x8x8xf32>, vector<8x8x8xf32> -> vector<8x8x8xf32>
    "tpu.trace_stop"() : () -> ()
    %53 = vector.broadcast %51 : vector<8x8x1xf32> to vector<8x8x8xf32>
    %54 = arith.mulf %52, %53 : vector<8x8x8xf32>
    %55 = vector.shape_cast %54 : vector<8x8x8xf32> to vector<4x16x8xf32>
    %56 = tpu.transpose %55, [1, 0, 2] : vector<4x16x8xf32> -> vector<16x4x8xf32>
    %57 = vector.shape_cast %56 : vector<16x4x8xf32> to vector<16x32xf32>
    %c0_32 = arith.constant 0 : index
    %c0_33 = arith.constant 0 : index
    %58 = vector.load %arg11[%c0_32, %c0_33] : memref<32x32xf32, #tpu.memory_space<vmem>>, vector<32x32xf32>
    %cst_34 = arith.constant dense<0.000000e+00> : vector<16x32xf32>
    %59 = tpu.matmul %57, %58, %cst_34 {dimension_numbers = #tpu.dot_dimension_numbers<[1], [0], [0], [1], [0, 0, 1, 1], [], []>} : vector<16x32xf32>, vector<32x32xf32>, vector<16x32xf32> -> vector<16x32xf32>
    %c0_35 = arith.constant 0 : index
    %c0_36 = arith.constant 0 : index
    %60 = vector.load %arg12[%c0_35, %c0_36] : memref<1x32xf32, #tpu.memory_space<vmem>>, vector<1x32xf32>
    %61 = vector.broadcast %60 : vector<1x32xf32> to vector<16x32xf32>
    %62 = arith.addf %59, %61 : vector<16x32xf32>
    %63 = arith.addf %1, %62 : vector<16x32xf32>
    %c0_37 = arith.constant 0 : index
    %c0_38 = arith.constant 0 : index
    %64 = vector.load %arg13[%c0_37, %c0_38] : memref<1x32xf32, #tpu.memory_space<vmem>>, vector<1x32xf32>
    %c0_39 = arith.constant 0 : index
    %c0_40 = arith.constant 0 : index
    %65 = vector.load %arg14[%c0_39, %c0_40] : memref<1x32xf32, #tpu.memory_space<vmem>>, vector<1x32xf32>
    %cst_41 = arith.constant dense<0.000000e+00> : vector<16xf32>
    %66 = vector.multi_reduction <add>, %63, %cst_41 [1] : vector<16x32xf32> to vector<16xf32>
    %67 = vector.shape_cast %66 : vector<16xf32> to vector<16x1xf32>
    %cst_42 = arith.constant 3.200000e+01 : f32
    %68 = vector.broadcast %cst_42 : f32 to vector<16x1xf32>
    %69 = arith.divf %67, %68 : vector<16x1xf32>
    %70 = vector.broadcast %69 : vector<16x1xf32> to vector<16x32xf32>
    %71 = arith.subf %63, %70 : vector<16x32xf32>
    %72 = arith.mulf %71, %71 : vector<16x32xf32>
    %cst_43 = arith.constant dense<0.000000e+00> : vector<16xf32>
    %73 = vector.multi_reduction <add>, %72, %cst_43 [1] : vector<16x32xf32> to vector<16xf32>
    %74 = vector.shape_cast %73 : vector<16xf32> to vector<16x1xf32>
    %cst_44 = arith.constant 3.200000e+01 : f32
    %75 = vector.broadcast %cst_44 : f32 to vector<16x1xf32>
    %76 = arith.divf %74, %75 : vector<16x1xf32>
    %77 = vector.broadcast %69 : vector<16x1xf32> to vector<16x32xf32>
    %78 = arith.subf %63, %77 : vector<16x32xf32>
    %cst_45 = arith.constant 9.99999997E-7 : f32
    %79 = vector.broadcast %cst_45 : f32 to vector<16x1xf32>
    %80 = arith.addf %76, %79 : vector<16x1xf32>
    %81 = math.rsqrt %80 : vector<16x1xf32>
    %82 = vector.broadcast %81 : vector<16x1xf32> to vector<16x32xf32>
    %83 = arith.mulf %78, %82 : vector<16x32xf32>
    %84 = vector.broadcast %64 : vector<1x32xf32> to vector<16x32xf32>
    %85 = arith.mulf %83, %84 : vector<16x32xf32>
    %86 = vector.broadcast %65 : vector<1x32xf32> to vector<16x32xf32>
    %87 = arith.addf %85, %86 : vector<16x32xf32>
    %c0_46 = arith.constant 0 : index
    %c0_47 = arith.constant 0 : index
    %88 = vector.load %arg15[%c0_46, %c0_47] : memref<32x64xf32, #tpu.memory_space<vmem>>, vector<32x64xf32>
    %cst_48 = arith.constant dense<0.000000e+00> : vector<16x64xf32>
    %89 = tpu.matmul %87, %88, %cst_48 {dimension_numbers = #tpu.dot_dimension_numbers<[1], [0], [0], [1], [0, 0, 1, 1], [], []>} : vector<16x32xf32>, vector<32x64xf32>, vector<16x64xf32> -> vector<16x64xf32>
    %c0_49 = arith.constant 0 : index
    %c0_50 = arith.constant 0 : index
    %90 = vector.load %arg16[%c0_49, %c0_50] : memref<1x64xf32, #tpu.memory_space<vmem>>, vector<1x64xf32>
    %91 = vector.broadcast %90 : vector<1x64xf32> to vector<16x64xf32>
    %92 = arith.addf %89, %91 : vector<16x64xf32>
    %cst_51 = arith.constant 0.000000e+00 : f32
    %93 = vector.broadcast %cst_51 : f32 to vector<16x64xf32>
    %94 = arith.maximumf %92, %93 : vector<16x64xf32>
    %c0_52 = arith.constant 0 : index
    %c0_53 = arith.constant 0 : index
    %95 = vector.load %arg17[%c0_52, %c0_53] : memref<64x32xf32, #tpu.memory_space<vmem>>, vector<64x32xf32>
    %cst_54 = arith.constant dense<0.000000e+00> : vector<16x32xf32>
    %96 = tpu.matmul %94, %95, %cst_54 {dimension_numbers = #tpu.dot_dimension_numbers<[1], [0], [0], [1], [0, 0, 1, 1], [], []>} : vector<16x64xf32>, vector<64x32xf32>, vector<16x32xf32> -> vector<16x32xf32>
    %c0_55 = arith.constant 0 : index
    %c0_56 = arith.constant 0 : index
    %97 = vector.load %arg18[%c0_55, %c0_56] : memref<1x32xf32, #tpu.memory_space<vmem>>, vector<1x32xf32>
    %98 = vector.broadcast %97 : vector<1x32xf32> to vector<16x32xf32>
    %99 = arith.addf %96, %98 : vector<16x32xf32>
    %100 = arith.addf %87, %99 : vector<16x32xf32>
    %c0_57 = arith.constant 0 : index
    %c0_58 = arith.constant 0 : index
    %101 = vector.load %arg19[%c0_57, %c0_58] : memref<1x32xf32, #tpu.memory_space<vmem>>, vector<1x32xf32>
    %c0_59 = arith.constant 0 : index
    %c0_60 = arith.constant 0 : index
    %102 = vector.load %arg20[%c0_59, %c0_60] : memref<1x32xf32, #tpu.memory_space<vmem>>, vector<1x32xf32>
    %cst_61 = arith.constant dense<0.000000e+00> : vector<16xf32>
    %103 = vector.multi_reduction <add>, %100, %cst_61 [1] : vector<16x32xf32> to vector<16xf32>
    %104 = vector.shape_cast %103 : vector<16xf32> to vector<16x1xf32>
    %cst_62 = arith.constant 3.200000e+01 : f32
    %105 = vector.broadcast %cst_62 : f32 to vector<16x1xf32>
    %106 = arith.divf %104, %105 : vector<16x1xf32>
    %107 = vector.broadcast %106 : vector<16x1xf32> to vector<16x32xf32>
    %108 = arith.subf %100, %107 : vector<16x32xf32>
    %109 = arith.mulf %108, %108 : vector<16x32xf32>
    %cst_63 = arith.constant dense<0.000000e+00> : vector<16xf32>
    %110 = vector.multi_reduction <add>, %109, %cst_63 [1] : vector<16x32xf32> to vector<16xf32>
    %111 = vector.shape_cast %110 : vector<16xf32> to vector<16x1xf32>
    %cst_64 = arith.constant 3.200000e+01 : f32
    %112 = vector.broadcast %cst_64 : f32 to vector<16x1xf32>
    %113 = arith.divf %111, %112 : vector<16x1xf32>
    %114 = vector.broadcast %106 : vector<16x1xf32> to vector<16x32xf32>
    %115 = arith.subf %100, %114 : vector<16x32xf32>
    %cst_65 = arith.constant 9.99999997E-7 : f32
    %116 = vector.broadcast %cst_65 : f32 to vector<16x1xf32>
    %117 = arith.addf %113, %116 : vector<16x1xf32>
    %118 = math.rsqrt %117 : vector<16x1xf32>
    %119 = vector.broadcast %118 : vector<16x1xf32> to vector<16x32xf32>
    %120 = arith.mulf %115, %119 : vector<16x32xf32>
    %121 = vector.broadcast %101 : vector<1x32xf32> to vector<16x32xf32>
    %122 = arith.mulf %120, %121 : vector<16x32xf32>
    %123 = vector.broadcast %102 : vector<1x32xf32> to vector<16x32xf32>
    %124 = arith.addf %122, %123 : vector<16x32xf32>
    %125 = vector.shape_cast %124 : vector<16x32xf32> to vector<2x8x32xf32>
    %c0_66 = arith.constant 0 : index
    %c0_67 = arith.constant 0 : index
    %c0_68 = arith.constant 0 : index
    %126 = vector.load %arg21[%c0_66, %c0_67, %c0_68] : memref<2x8x32xf32, #tpu.memory_space<vmem>>, vector<2x8x32xf32>
    tpu.vector_store %arg21[%c0_66, %c0_67, %c0_68], %125 {strides = array<i32>} : memref<2x8x32xf32, #tpu.memory_space<vmem>>, vector<2x8x32xf32>,
    return
  }
  func.func @transform_0(%arg0: i32) -> (i32, i32, i32) {
    %c0_i32 = arith.constant 0 : i32
    %c0_i32_0 = arith.constant 0 : i32
    %c0_i32_1 = arith.constant 0 : i32
    return %arg0, %c0_i32, %c0_i32_0 : i32, i32, i32
  }
  func.func @transform_1(%arg0: i32) -> (i32, i32, i32) {
    %c0_i32 = arith.constant 0 : i32
    %c0_i32_0 = arith.constant 0 : i32
    %c0_i32_1 = arith.constant 0 : i32
    return %arg0, %c0_i32, %c0_i32_0 : i32, i32, i32
  }
  func.func @transform_2(%arg0: i32) -> (i32, i32, i32) {
    %c0_i32 = arith.constant 0 : i32
    %c0_i32_0 = arith.constant 0 : i32
    %c0_i32_1 = arith.constant 0 : i32
    return %arg0, %c0_i32, %c0_i32_0 : i32, i32, i32
  }
  func.func @transform_3(%arg0: i32) -> (i32, i32, i32, i32) {
    %c0_i32 = arith.constant 0 : i32
    %c0_i32_0 = arith.constant 0 : i32
    %c0_i32_1 = arith.constant 0 : i32
    %c0_i32_2 = arith.constant 0 : i32
    return %arg0, %c0_i32, %c0_i32_0, %c0_i32_1 : i32, i32, i32, i32
  }
  func.func @transform_4(%arg0: i32) -> (i32, i32) {
    %c0_i32 = arith.constant 0 : i32
    %c0_i32_0 = arith.constant 0 : i32
    %c0_i32_1 = arith.constant 0 : i32
    return %c0_i32, %c0_i32_0 : i32, i32
  }
  func.func @transform_5(%arg0: i32) -> (i32, i32) {
    %c0_i32 = arith.constant 0 : i32
    %c0_i32_0 = arith.constant 0 : i32
    %c0_i32_1 = arith.constant 0 : i32
    return %c0_i32, %c0_i32_0 : i32, i32
  }
  func.func @transform_6(%arg0: i32) -> (i32, i32) {
    %c0_i32 = arith.constant 0 : i32
    %c0_i32_0 = arith.constant 0 : i32
    %c0_i32_1 = arith.constant 0 : i32
    return %c0_i32, %c0_i32_0 : i32, i32
  }
  func.func @transform_7(%arg0: i32) -> (i32, i32) {
    %c0_i32 = arith.constant 0 : i32
    %c0_i32_0 = arith.constant 0 : i32
    %c0_i32_1 = arith.constant 0 : i32
    return %c0_i32, %c0_i32_0 : i32, i32
  }
  func.func @transform_8(%arg0: i32) -> (i32, i32) {
    %c0_i32 = arith.constant 0 : i32
    %c0_i32_0 = arith.constant 0 : i32
    %c0_i32_1 = arith.constant 0 : i32
    return %c0_i32, %c0_i32_0 : i32, i32
  }
  func.func @transform_9(%arg0: i32) -> (i32, i32) {
    %c0_i32 = arith.constant 0 : i32
    %c0_i32_0 = arith.constant 0 : i32
    %c0_i32_1 = arith.constant 0 : i32
    return %c0_i32, %c0_i32_0 : i32, i32
  }
  func.func @transform_10(%arg0: i32) -> (i32, i32) {
    %c0_i32 = arith.constant 0 : i32
    %c0_i32_0 = arith.constant 0 : i32
    %c0_i32_1 = arith.constant 0 : i32
    return %c0_i32, %c0_i32_0 : i32, i32
  }
  func.func @transform_11(%arg0: i32) -> (i32, i32) {
    %c0_i32 = arith.constant 0 : i32
    %c0_i32_0 = arith.constant 0 : i32
    %c0_i32_1 = arith.constant 0 : i32
    return %c0_i32, %c0_i32_0 : i32, i32
  }
  func.func @transform_12(%arg0: i32) -> (i32, i32) {
    %c0_i32 = arith.constant 0 : i32
    %c0_i32_0 = arith.constant 0 : i32
    %c0_i32_1 = arith.constant 0 : i32
    return %c0_i32, %c0_i32_0 : i32, i32
  }
  func.func @transform_13(%arg0: i32) -> (i32, i32) {
    %c0_i32 = arith.constant 0 : i32
    %c0_i32_0 = arith.constant 0 : i32
    %c0_i32_1 = arith.constant 0 : i32
    return %c0_i32, %c0_i32_0 : i32, i32
  }
  func.func @transform_14(%arg0: i32) -> (i32, i32) {
    %c0_i32 = arith.constant 0 : i32
    %c0_i32_0 = arith.constant 0 : i32
    %c0_i32_1 = arith.constant 0 : i32
    return %c0_i32, %c0_i32_0 : i32, i32
  }
  func.func @transform_15(%arg0: i32) -> (i32, i32) {
    %c0_i32 = arith.constant 0 : i32
    %c0_i32_0 = arith.constant 0 : i32
    %c0_i32_1 = arith.constant 0 : i32
    return %c0_i32, %c0_i32_0 : i32, i32
  }
  func.func @transform_16(%arg0: i32) -> (i32, i32) {
    %c0_i32 = arith.constant 0 : i32
    %c0_i32_0 = arith.constant 0 : i32
    %c0_i32_1 = arith.constant 0 : i32
    return %c0_i32, %c0_i32_0 : i32, i32
  }
  func.func @transform_17(%arg0: i32) -> (i32, i32) {
    %c0_i32 = arith.constant 0 : i32
    %c0_i32_0 = arith.constant 0 : i32
    %c0_i32_1 = arith.constant 0 : i32
    return %c0_i32, %c0_i32_0 : i32, i32
  }
  func.func @transform_18(%arg0: i32) -> (i32, i32) {
    %c0_i32 = arith.constant 0 : i32
    %c0_i32_0 = arith.constant 0 : i32
    %c0_i32_1 = arith.constant 0 : i32
    return %c0_i32, %c0_i32_0 : i32, i32
  }
  func.func @transform_19(%arg0: i32) -> (i32, i32) {
    %c0_i32 = arith.constant 0 : i32
    %c0_i32_0 = arith.constant 0 : i32
    %c0_i32_1 = arith.constant 0 : i32
    return %c0_i32, %c0_i32_0 : i32, i32
  }
  func.func @transform_20(%arg0: i32) -> (i32, i32, i32) {
    %c0_i32 = arith.constant 0 : i32
    %c0_i32_0 = arith.constant 0 : i32
    %c0_i32_1 = arith.constant 0 : i32
    return %arg0, %c0_i32, %c0_i32_0 : i32, i32, i32
  }
}

module attributes {stable_mosaic.version = 11 : i64} {
  func.func @transformer_block_kernel(%arg0: i32, %arg1: memref<2x8x32xf32, #tpu.memory_space<vmem>>, %arg2: memref<2x8x32xf32, #tpu.memory_space<vmem>>, %arg3: memref<2x8x32xf32, #tpu.memory_space<vmem>>, %arg4: memref<2x1x8x8xi8, #tpu.memory_space<vmem>>, %arg5: memref<32x32xf32, #tpu.memory_space<vmem>>, %arg6: memref<1x32xf32, #tpu.memory_space<vmem>>, %arg7: memref<32x32xf32, #tpu.memory_space<vmem>>, %arg8: memref<1x32xf32, #tpu.memory_space<vmem>>, %arg9: memref<32x32xf32, #tpu.memory_space<vmem>>, %arg10: memref<1x32xf32, #tpu.memory_space<vmem>>, %arg11: memref<32x32xf32, #tpu.memory_space<vmem>>, %arg12: memref<1x32xf32, #tpu.memory_space<vmem>>, %arg13: memref<1x32xf32, #tpu.memory_space<vmem>>, %arg14: memref<1x32xf32, #tpu.memory_space<vmem>>, %arg15: memref<32x64xf32, #tpu.memory_space<vmem>>, %arg16: memref<1x64xf32, #tpu.memory_space<vmem>>, %arg17: memref<64x32xf32, #tpu.memory_space<vmem>>, %arg18: memref<1x32xf32, #tpu.memory_space<vmem>>, %arg19: memref<1x32xf32, #tpu.memory_space<vmem>>, %arg20: memref<1x32xf32, #tpu.memory_space<vmem>>, %arg21: memref<2x8x32xf32, #tpu.memory_space<vmem>>) attributes {dimension_semantics = [#tpu.dimension_semantics<parallel>], iteration_bounds = array<i64: 1>, scalar_prefetch = 0 : i64, scratch_operands = 0 : i64, tpu.core_type = #tpu.core_type<tc>, window_params = [{transform_indices = @transform_0, window_bounds = array<i64: 2, 8, 32>}, {transform_indices = @transform_1, window_bounds = array<i64: 2, 8, 32>}, {transform_indices = @transform_2, window_bounds = array<i64: 2, 8, 32>}, {transform_indices = @transform_3, window_bounds = array<i64: 2, 1, 8, 8>}, {pipeline_mode = #tpu.pipeline_mode<synchronous>, transform_indices = @transform_4, window_bounds = array<i64: 32, 32>}, {pipeline_mode = #tpu.pipeline_mode<synchronous>, transform_indices = @transform_5, window_bounds = array<i64: 1, 32>}, {pipeline_mode = #tpu.pipeline_mode<synchronous>, transform_indices = @transform_6, window_bounds = array<i64: 32, 32>}, {pipeline_mode = #tpu.pipeline_mode<synchronous>, transform_indices = @transform_7, window_bounds = array<i64: 1, 32>}, {pipeline_mode = #tpu.pipeline_mode<synchronous>, transform_indices = @transform_8, window_bounds = array<i64: 32, 32>}, {pipeline_mode = #tpu.pipeline_mode<synchronous>, transform_indices = @transform_9, window_bounds = array<i64: 1, 32>}, {pipeline_mode = #tpu.pipeline_mode<synchronous>, transform_indices = @transform_10, window_bounds = array<i64: 32, 32>}, {pipeline_mode = #tpu.pipeline_mode<synchronous>, transform_indices = @transform_11, window_bounds = array<i64: 1, 32>}, {pipeline_mode = #tpu.pipeline_mode<synchronous>, transform_indices = @transform_12, window_bounds = array<i64: 1, 32>}, {pipeline_mode = #tpu.pipeline_mode<synchronous>, transform_indices = @transform_13, window_bounds = array<i64: 1, 32>}, {pipeline_mode = #tpu.pipeline_mode<synchronous>, transform_indices = @transform_14, window_bounds = array<i64: 32, 64>}, {pipeline_mode = #tpu.pipeline_mode<synchronous>, transform_indices = @transform_15, window_bounds = array<i64: 1, 64>}, {pipeline_mode = #tpu.pipeline_mode<synchronous>, transform_indices = @transform_16, window_bounds = array<i64: 64, 32>}, {pipeline_mode = #tpu.pipeline_mode<synchronous>, transform_indices = @transform_17, window_bounds = array<i64: 1, 32>}, {pipeline_mode = #tpu.pipeline_mode<synchronous>, transform_indices = @transform_18, window_bounds = array<i64: 1, 32>}, {pipeline_mode = #tpu.pipeline_mode<synchronous>, transform_indices = @transform_19, window_bounds = array<i64: 1, 32>}, {transform_indices = @transform_20, window_bounds = array<i64: 2, 8, 32>}]} {
    %c0 = arith.constant 0 : index
    %c0_0 = arith.constant 0 : index
    %c0_1 = arith.constant 0 : index
    %0 = vector.load %arg1[%c0, %c0_0, %c0_1] : memref<2x8x32xf32, #tpu.memory_space<vmem>>, vector<2x8x32xf32>
    %1 = vector.shape_cast %0 : vector<2x8x32xf32> to vector<16x32xf32>
    %c0_2 = arith.constant 0 : index
    %c0_3 = arith.constant 0 : index
    %c0_4 = arith.constant 0 : index
    %2 = vector.load %arg2[%c0_2, %c0_3, %c0_4] : memref<2x8x32xf32, #tpu.memory_space<vmem>>, vector<2x8x32xf32>
    %3 = vector.shape_cast %2 : vector<2x8x32xf32> to vector<16x32xf32>
    %c0_5 = arith.constant 0 : index
    %c0_6 = arith.constant 0 : index
    %c0_7 = arith.constant 0 : index
    %4 = vector.load %arg3[%c0_5, %c0_6, %c0_7] : memref<2x8x32xf32, #tpu.memory_space<vmem>>, vector<2x8x32xf32>
    %5 = vector.shape_cast %4 : vector<2x8x32xf32> to vector<16x32xf32>
    %c0_8 = arith.constant 0 : index
    %c0_9 = arith.constant 0 : index
    %6 = vector.load %arg5[%c0_8, %c0_9] : memref<32x32xf32, #tpu.memory_space<vmem>>, vector<32x32xf32>
    %cst = arith.constant dense<0.000000e+00> : vector<16x32xf32>
    %7 = tpu.matmul %1, %6, %cst {dimension_numbers = #tpu.dot_dimension_numbers<[1], [0], [0], [1], [0, 0, 1, 1], [], []>} : vector<16x32xf32>, vector<32x32xf32>, vector<16x32xf32> -> vector<16x32xf32>
    %c0_10 = arith.constant 0 : index
    %c0_11 = arith.constant 0 : index
    %8 = vector.load %arg6[%c0_10, %c0_11] : memref<1x32xf32, #tpu.memory_space<vmem>>, vector<1x32xf32>
    %9 = vector.broadcast %8 : vector<1x32xf32> to vector<16x32xf32>
    %10 = arith.addf %7, %9 : vector<16x32xf32>
    %cst_12 = arith.constant 0.353553385 : f32
    %11 = vector.broadcast %cst_12 : f32 to vector<16x32xf32>
    %12 = arith.mulf %10, %11 : vector<16x32xf32>
    %c0_13 = arith.constant 0 : index
    %c0_14 = arith.constant 0 : index
    %13 = vector.load %arg7[%c0_13, %c0_14] : memref<32x32xf32, #tpu.memory_space<vmem>>, vector<32x32xf32>
    %cst_15 = arith.constant dense<0.000000e+00> : vector<16x32xf32>
    %14 = tpu.matmul %3, %13, %cst_15 {dimension_numbers = #tpu.dot_dimension_numbers<[1], [0], [0], [1], [0, 0, 1, 1], [], []>} : vector<16x32xf32>, vector<32x32xf32>, vector<16x32xf32> -> vector<16x32xf32>
    %c0_16 = arith.constant 0 : index
    %c0_17 = arith.constant 0 : index
    %15 = vector.load %arg8[%c0_16, %c0_17] : memref<1x32xf32, #tpu.memory_space<vmem>>, vector<1x32xf32>
    %16 = vector.broadcast %15 : vector<1x32xf32> to vector<16x32xf32>
    %17 = arith.addf %14, %16 : vector<16x32xf32>
    %c0_18 = arith.constant 0 : index
    %c0_19 = arith.constant 0 : index
    %18 = vector.load %arg9[%c0_18, %c0_19] : memref<32x32xf32, #tpu.memory_space<vmem>>, vector<32x32xf32>
    %cst_20 = arith.constant dense<0.000000e+00> : vector<16x32xf32>
    %19 = tpu.matmul %5, %18, %cst_20 {dimension_numbers = #tpu.dot_dimension_numbers<[1], [0], [0], [1], [0, 0, 1, 1], [], []>} : vector<16x32xf32>, vector<32x32xf32>, vector<16x32xf32> -> vector<16x32xf32>
    %c0_21 = arith.constant 0 : index
    %c0_22 = arith.constant 0 : index
    %20 = vector.load %arg10[%c0_21, %c0_22] : memref<1x32xf32, #tpu.memory_space<vmem>>, vector<1x32xf32>
    %21 = vector.broadcast %20 : vector<1x32xf32> to vector<16x32xf32>
    %22 = arith.addf %19, %21 : vector<16x32xf32>
    %23 = vector.shape_cast %12 : vector<16x32xf32> to vector<16x4x8xf32>
    %24 = tpu.transpose %23, [1, 0, 2] : vector<16x4x8xf32> -> vector<4x16x8xf32>
    %25 = vector.shape_cast %24 : vector<4x16x8xf32> to vector<8x8x8xf32>
    %26 = vector.shape_cast %17 : vector<16x32xf32> to vector<16x4x8xf32>
    %27 = tpu.transpose %26, [1, 0, 2] : vector<16x4x8xf32> -> vector<4x16x8xf32>
    %28 = vector.shape_cast %27 : vector<4x16x8xf32> to vector<8x8x8xf32>
    %29 = vector.shape_cast %22 : vector<16x32xf32> to vector<16x4x8xf32>
    %30 = tpu.transpose %29, [1, 0, 2] : vector<16x4x8xf32> -> vector<4x16x8xf32>
    %31 = vector.shape_cast %30 : vector<4x16x8xf32> to vector<8x8x8xf32>
    "tpu.trace_start"() <{level = 10 : i32, message = "bqd,bkd->bqk"}> : () -> ()
    %cst_23 = arith.constant dense<0.000000e+00> : vector<8x8x8xf32>
    %32 = tpu.matmul %25, %28, %cst_23 {dimension_numbers = #tpu.dot_dimension_numbers<[2], [2], [1], [1], [0, 0, 0, 1, 1, 1], [0], [0]>} : vector<8x8x8xf32>, vector<8x8x8xf32>, vector<8x8x8xf32> -> vector<8x8x8xf32>
    "tpu.trace_stop"() : () -> ()
    %c0_24 = arith.constant 0 : index
    %c0_25 = arith.constant 0 : index
    %c0_26 = arith.constant 0 : index
    %c0_27 = arith.constant 0 : index
    %33 = vector.load %arg4[%c0_24, %c0_25, %c0_26, %c0_27] : memref<2x1x8x8xi8, #tpu.memory_space<vmem>>, vector<2x1x8x8xi8>
    %34 = vector.shape_cast %33 : vector<2x1x8x8xi8> to vector<2x8x8xi8>
    %c0_i8 = arith.constant 0 : i8
    %35 = vector.broadcast %c0_i8 : i8 to vector<2x8x8xi8>
    %36 = arith.cmpi ne, %34, %35 : vector<2x8x8xi8>
    %37 = vector.shape_cast %36 : vector<2x8x8xi1> to vector<1x2x8x8xi1>
    %38 = vector.shape_cast %32 : vector<8x8x8xf32> to vector<4x2x8x8xf32>
    %cst_28 = arith.constant 0xFF800000 : f32
    %39 = vector.shape_cast %37 : vector<1x2x8x8xi1> to vector<1x2x8x8xi1>
    %40 = vector.broadcast %39 : vector<1x2x8x8xi1> to vector<4x2x8x8xi1>
    %41 = vector.broadcast %cst_28 : f32 to vector<4x2x8x8xf32>
    %42 = arith.select %40, %38, %41 : vector<4x2x8x8xi1>, vector<4x2x8x8xf32>
    %43 = vector.shape_cast %42 : vector<4x2x8x8xf32> to vector<8x8x8xf32>
    %cst_29 = arith.constant dense<0xFF800000> : vector<8x8xf32>
    %44 = vector.multi_reduction <maximumf>, %43, %cst_29 [2] : vector<8x8x8xf32> to vector<8x8xf32>
    %45 = vector.shape_cast %44 : vector<8x8xf32> to vector<8x8x1xf32>
    %46 = vector.broadcast %45 : vector<8x8x1xf32> to vector<8x8x8xf32>
    %47 = arith.subf %43, %46 : vector<8x8x8xf32>
    %48 = math.exp %47 : vector<8x8x8xf32>
    %cst_30 = arith.constant dense<0.000000e+00> : vector<8x8xf32>
    %49 = vector.multi_reduction <add>, %48, %cst_30 [2] : vector<8x8x8xf32> to vector<8x8xf32>
    %50 = vector.shape_cast %49 : vector<8x8xf32> to vector<8x8x1xf32>
    %51 = tpu.reciprocal %50 {approx = true} : vector<8x8x1xf32> -> vector<8x8x1xf32>
    "tpu.trace_start"() <{level = 10 : i32, message = "bqk,bkd->bqd"}> : () -> ()
    %cst_31 = arith.constant dense<0.000000e+00> : vector<8x8x8xf32>
    %52 = tpu.matmul %48, %31, %cst_31 {dimension_numbers = #tpu.dot_dimension_numbers<[2], [1], [1], [2], [0, 0, 0, 1, 1, 2], [0], [0]>} : vector<8x8x8xf32>, vector<8x8x8xf32>, vector<8x8x8xf32> -> vector<8x8x8xf32>
    "tpu.trace_stop"() : () -> ()
    %53 = vector.broadcast %51 : vector<8x8x1xf32> to vector<8x8x8xf32>
    %54 = arith.mulf %52, %53 : vector<8x8x8xf32>
    %55 = vector.shape_cast %54 : vector<8x8x8xf32> to vector<4x16x8xf32>
    %56 = tpu.transpose %55, [1, 0, 2] : vector<4x16x8xf32> -> vector<16x4x8xf32>
    %57 = vector.shape_cast %56 : vector<16x4x8xf32> to vector<16x32xf32>
    %c0_32 = arith.constant 0 : index
    %c0_33 = arith.constant 0 : index
    %58 = vector.load %arg11[%c0_32, %c0_33] : memref<32x32xf32, #tpu.memory_space<vmem>>, vector<32x32xf32>
    %cst_34 = arith.constant dense<0.000000e+00> : vector<16x32xf32>
    %59 = tpu.matmul %57, %58, %cst_34 {dimension_numbers = #tpu.dot_dimension_numbers<[1], [0], [0], [1], [0, 0, 1, 1], [], []>} : vector<16x32xf32>, vector<32x32xf32>, vector<16x32xf32> -> vector<16x32xf32>
    %c0_35 = arith.constant 0 : index
    %c0_36 = arith.constant 0 : index
    %60 = vector.load %arg12[%c0_35, %c0_36] : memref<1x32xf32, #tpu.memory_space<vmem>>, vector<1x32xf32>
    %61 = vector.broadcast %60 : vector<1x32xf32> to vector<16x32xf32>
    %62 = arith.addf %59, %61 : vector<16x32xf32>
    %63 = arith.addf %1, %62 : vector<16x32xf32>
    %c0_37 = arith.constant 0 : index
    %c0_38 = arith.constant 0 : index
    %64 = vector.load %arg13[%c0_37, %c0_38] : memref<1x32xf32, #tpu.memory_space<vmem>>, vector<1x32xf32>
    %c0_39 = arith.constant 0 : index
    %c0_40 = arith.constant 0 : index
    %65 = vector.load %arg14[%c0_39, %c0_40] : memref<1x32xf32, #tpu.memory_space<vmem>>, vector<1x32xf32>
    %cst_41 = arith.constant dense<0.000000e+00> : vector<16xf32>
    %66 = vector.multi_reduction <add>, %63, %cst_41 [1] : vector<16x32xf32> to vector<16xf32>
    %67 = vector.shape_cast %66 : vector<16xf32> to vector<16x1xf32>
    %cst_42 = arith.constant 3.200000e+01 : f32
    %68 = vector.broadcast %cst_42 : f32 to vector<16x1xf32>
    %69 = arith.divf %67, %68 : vector<16x1xf32>
    %70 = vector.broadcast %69 : vector<16x1xf32> to vector<16x32xf32>
    %71 = arith.subf %63, %70 : vector<16x32xf32>
    %72 = arith.mulf %71, %71 : vector<16x32xf32>
    %cst_43 = arith.constant dense<0.000000e+00> : vector<16xf32>
    %73 = vector.multi_reduction <add>, %72, %cst_43 [1] : vector<16x32xf32> to vector<16xf32>
    %74 = vector.shape_cast %73 : vector<16xf32> to vector<16x1xf32>
    %cst_44 = arith.constant 3.200000e+01 : f32
    %75 = vector.broadcast %cst_44 : f32 to vector<16x1xf32>
    %76 = arith.divf %74, %75 : vector<16x1xf32>
    %77 = vector.broadcast %69 : vector<16x1xf32> to vector<16x32xf32>
    %78 = arith.subf %63, %77 : vector<16x32xf32>
    %cst_45 = arith.constant 9.99999997E-7 : f32
    %79 = vector.broadcast %cst_45 : f32 to vector<16x1xf32>
    %80 = arith.addf %76, %79 : vector<16x1xf32>
    %81 = math.rsqrt %80 : vector<16x1xf32>
    %82 = vector.broadcast %81 : vector<16x1xf32> to vector<16x32xf32>
    %83 = arith.mulf %78, %82 : vector<16x32xf32>
    %84 = vector.broadcast %64 : vector<1x32xf32> to vector<16x32xf32>
    %85 = arith.mulf %83, %84 : vector<16x32xf32>
    %86 = vector.broadcast %65 : vector<1x32xf32> to vector<16x32xf32>
    %87 = arith.addf %85, %86 : vector<16x32xf32>
    %c0_46 = arith.constant 0 : index
    %c0_47 = arith.constant 0 : index
    %88 = vector.load %arg15[%c0_46, %c0_47] : memref<32x64xf32, #tpu.memory_space<vmem>>, vector<32x64xf32>
    %cst_48 = arith.constant dense<0.000000e+00> : vector<16x64xf32>
    %89 = tpu.matmul %87, %88, %cst_48 {dimension_numbers = #tpu.dot_dimension_numbers<[1], [0], [0], [1], [0, 0, 1, 1], [], []>} : vector<16x32xf32>, vector<32x64xf32>, vector<16x64xf32> -> vector<16x64xf32>
    %c0_49 = arith.constant 0 : index
    %c0_50 = arith.constant 0 : index
    %90 = vector.load %arg16[%c0_49, %c0_50] : memref<1x64xf32, #tpu.memory_space<vmem>>, vector<1x64xf32>
    %91 = vector.broadcast %90 : vector<1x64xf32> to vector<16x64xf32>
    %92 = arith.addf %89, %91 : vector<16x64xf32>
    %cst_51 = arith.constant 0.000000e+00 : f32
    %93 = vector.broadcast %cst_51 : f32 to vector<16x64xf32>
    %94 = arith.maximumf %92, %93 : vector<16x64xf32>
    %c0_52 = arith.constant 0 : index
    %c0_53 = arith.constant 0 : index
    %95 = vector.load %arg17[%c0_52, %c0_53] : memref<64x32xf32, #tpu.memory_space<vmem>>, vector<64x32xf32>
    %cst_54 = arith.constant dense<0.000000e+00> : vector<16x32xf32>
    %96 = tpu.matmul %94, %95, %cst_54 {dimension_numbers = #tpu.dot_dimension_numbers<[1], [0], [0], [1], [0, 0, 1, 1], [], []>} : vector<16x64xf32>, vector<64x32xf32>, vector<16x32xf32> -> vector<16x32xf32>
    %c0_55 = arith.constant 0 : index
    %c0_56 = arith.constant 0 : index
    %97 = vector.load %arg18[%c0_55, %c0_56] : memref<1x32xf32, #tpu.memory_space<vmem>>, vector<1x32xf32>
    %98 = vector.broadcast %97 : vector<1x32xf32> to vector<16x32xf32>
    %99 = arith.addf %96, %98 : vector<16x32xf32>
    %100 = arith.addf %87, %99 : vector<16x32xf32>
    %c0_57 = arith.constant 0 : index
    %c0_58 = arith.constant 0 : index
    %101 = vector.load %arg19[%c0_57, %c0_58] : memref<1x32xf32, #tpu.memory_space<vmem>>, vector<1x32xf32>
    %c0_59 = arith.constant 0 : index
    %c0_60 = arith.constant 0 : index
    %102 = vector.load %arg20[%c0_59, %c0_60] : memref<1x32xf32, #tpu.memory_space<vmem>>, vector<1x32xf32>
    %cst_61 = arith.constant dense<0.000000e+00> : vector<16xf32>
    %103 = vector.multi_reduction <add>, %100, %cst_61 [1] : vector<16x32xf32> to vector<16xf32>
    %104 = vector.shape_cast %103 : vector<16xf32> to vector<16x1xf32>
    %cst_62 = arith.constant 3.200000e+01 : f32
    %105 = vector.broadcast %cst_62 : f32 to vector<16x1xf32>
    %106 = arith.divf %104, %105 : vector<16x1xf32>
    %107 = vector.broadcast %106 : vector<16x1xf32> to vector<16x32xf32>
    %108 = arith.subf %100, %107 : vector<16x32xf32>
    %109 = arith.mulf %108, %108 : vector<16x32xf32>
    %cst_63 = arith.constant dense<0.000000e+00> : vector<16xf32>
    %110 = vector.multi_reduction <add>, %109, %cst_63 [1] : vector<16x32xf32> to vector<16xf32>
    %111 = vector.shape_cast %110 : vector<16xf32> to vector<16x1xf32>
    %cst_64 = arith.constant 3.200000e+01 : f32
    %112 = vector.broadcast %cst_64 : f32 to vector<16x1xf32>
    %113 = arith.divf %111, %112 : vector<16x1xf32>
    %114 = vector.broadcast %106 : vector<16x1xf32> to vector<16x32xf32>
    %115 = arith.subf %100, %114 : vector<16x32xf32>
    %cst_65 = arith.constant 9.99999997E-7 : f32
    %116 = vector.broadcast %cst_65 : f32 to vector<16x1xf32>
    %117 = arith.addf %113, %116 : vector<16x1xf32>
    %118 = math.rsqrt %117 : vector<16x1xf32>
    %119 = vector.broadcast %118 : vector<16x1xf32> to vector<16x32xf32>
    %120 = arith.mulf %115, %119 : vector<16x32xf32>
    %121 = vector.broadcast %101 : vector<1x32xf32> to vector<16x32xf32>
    %122 = arith.mulf %120, %121 : vector<16x32xf32>
    %123 = vector.broadcast %102 : vector<1x32xf32> to vector<16x32xf32>
    %124 = arith.addf %122, %123 : vector<16x32xf32>
    %125 = vector.shape_cast %124 : vector<16x32xf32> to vector<2x8x32xf32>
    %c0_66 = arith.constant 0 : index
    %c0_67 = arith.constant 0 : index
    %c0_68 = arith.constant 0 : index
    %126 = vector.load %arg21[%c0_66, %c0_67, %c0_68] : memref<2x8x32xf32, #tpu.memory_space<vmem>>, vector<2x8x32xf32>
    tpu.vector_store %arg21[%c0_66, %c0_67, %c0_68], %125 {strides = array<i32>} : memref<2x8x32xf32, #tpu.memory_space<vmem>>, vector<2x8x32xf32>,
    return
  }
  func.func @transform_0(%arg0: i32) -> (i32, i32, i32) {
    %c0_i32 = arith.constant 0 : i32
    %c0_i32_0 = arith.constant 0 : i32
    %c0_i32_1 = arith.constant 0 : i32
    return %arg0, %c0_i32, %c0_i32_0 : i32, i32, i32
  }
  func.func @transform_1(%arg0: i32) -> (i32, i32, i32) {
    %c0_i32 = arith.constant 0 : i32
    %c0_i32_0 = arith.constant 0 : i32
    %c0_i32_1 = arith.constant 0 : i32
    return %arg0, %c0_i32, %c0_i32_0 : i32, i32, i32
  }
  func.func @transform_2(%arg0: i32) -> (i32, i32, i32) {
    %c0_i32 = arith.constant 0 : i32
    %c0_i32_0 = arith.constant 0 : i32
    %c0_i32_1 = arith.constant 0 : i32
    return %arg0, %c0_i32, %c0_i32_0 : i32, i32, i32
  }
  func.func @transform_3(%arg0: i32) -> (i32, i32, i32, i32) {
    %c0_i32 = arith.constant 0 : i32
    %c0_i32_0 = arith.constant 0 : i32
    %c0_i32_1 = arith.constant 0 : i32
    %c0_i32_2 = arith.constant 0 : i32
    return %arg0, %c0_i32, %c0_i32_0, %c0_i32_1 : i32, i32, i32, i32
  }
  func.func @transform_4(%arg0: i32) -> (i32, i32) {
    %c0_i32 = arith.constant 0 : i32
    %c0_i32_0 = arith.constant 0 : i32
    %c0_i32_1 = arith.constant 0 : i32
    return %c0_i32, %c0_i32_0 : i32, i32
  }
  func.func @transform_5(%arg0: i32) -> (i32, i32) {
    %c0_i32 = arith.constant 0 : i32
    %c0_i32_0 = arith.constant 0 : i32
    %c0_i32_1 = arith.constant 0 : i32
    return %c0_i32, %c0_i32_0 : i32, i32
  }
  func.func @transform_6(%arg0: i32) -> (i32, i32) {
    %c0_i32 = arith.constant 0 : i32
    %c0_i32_0 = arith.constant 0 : i32
    %c0_i32_1 = arith.constant 0 : i32
    return %c0_i32, %c0_i32_0 : i32, i32
  }
  func.func @transform_7(%arg0: i32) -> (i32, i32) {
    %c0_i32 = arith.constant 0 : i32
    %c0_i32_0 = arith.constant 0 : i32
    %c0_i32_1 = arith.constant 0 : i32
    return %c0_i32, %c0_i32_0 : i32, i32
  }
  func.func @transform_8(%arg0: i32) -> (i32, i32) {
    %c0_i32 = arith.constant 0 : i32
    %c0_i32_0 = arith.constant 0 : i32
    %c0_i32_1 = arith.constant 0 : i32
    return %c0_i32, %c0_i32_0 : i32, i32
  }
  func.func @transform_9(%arg0: i32) -> (i32, i32) {
    %c0_i32 = arith.constant 0 : i32
    %c0_i32_0 = arith.constant 0 : i32
    %c0_i32_1 = arith.constant 0 : i32
    return %c0_i32, %c0_i32_0 : i32, i32
  }
  func.func @transform_10(%arg0: i32) -> (i32, i32) {
    %c0_i32 = arith.constant 0 : i32
    %c0_i32_0 = arith.constant 0 : i32
    %c0_i32_1 = arith.constant 0 : i32
    return %c0_i32, %c0_i32_0 : i32, i32
  }
  func.func @transform_11(%arg0: i32) -> (i32, i32) {
    %c0_i32 = arith.constant 0 : i32
    %c0_i32_0 = arith.constant 0 : i32
    %c0_i32_1 = arith.constant 0 : i32
    return %c0_i32, %c0_i32_0 : i32, i32
  }
  func.func @transform_12(%arg0: i32) -> (i32, i32) {
    %c0_i32 = arith.constant 0 : i32
    %c0_i32_0 = arith.constant 0 : i32
    %c0_i32_1 = arith.constant 0 : i32
    return %c0_i32, %c0_i32_0 : i32, i32
  }
  func.func @transform_13(%arg0: i32) -> (i32, i32) {
    %c0_i32 = arith.constant 0 : i32
    %c0_i32_0 = arith.constant 0 : i32
    %c0_i32_1 = arith.constant 0 : i32
    return %c0_i32, %c0_i32_0 : i32, i32
  }
  func.func @transform_14(%arg0: i32) -> (i32, i32) {
    %c0_i32 = arith.constant 0 : i32
    %c0_i32_0 = arith.constant 0 : i32
    %c0_i32_1 = arith.constant 0 : i32
    return %c0_i32, %c0_i32_0 : i32, i32
  }
  func.func @transform_15(%arg0: i32) -> (i32, i32) {
    %c0_i32 = arith.constant 0 : i32
    %c0_i32_0 = arith.constant 0 : i32
    %c0_i32_1 = arith.constant 0 : i32
    return %c0_i32, %c0_i32_0 : i32, i32
  }
  func.func @transform_16(%arg0: i32) -> (i32, i32) {
    %c0_i32 = arith.constant 0 : i32
    %c0_i32_0 = arith.constant 0 : i32
    %c0_i32_1 = arith.constant 0 : i32
    return %c0_i32, %c0_i32_0 : i32, i32
  }
  func.func @transform_17(%arg0: i32) -> (i32, i32) {
    %c0_i32 = arith.constant 0 : i32
    %c0_i32_0 = arith.constant 0 : i32
    %c0_i32_1 = arith.constant 0 : i32
    return %c0_i32, %c0_i32_0 : i32, i32
  }
  func.func @transform_18(%arg0: i32) -> (i32, i32) {
    %c0_i32 = arith.constant 0 : i32
    %c0_i32_0 = arith.constant 0 : i32
    %c0_i32_1 = arith.constant 0 : i32
    return %c0_i32, %c0_i32_0 : i32, i32
  }
  func.func @transform_19(%arg0: i32) -> (i32, i32) {
    %c0_i32 = arith.constant 0 : i32
    %c0_i32_0 = arith.constant 0 : i32
    %c0_i32_1 = arith.constant 0 : i32
    return %c0_i32, %c0_i32_0 : i32, i32
  }
  func.func @transform_20(%arg0: i32) -> (i32, i32, i32) {
    %c0_i32 = arith.constant 0 : i32
    %c0_i32_0 = arith.constant 0 : i32
    %c0_i32_1 = arith.constant 0 : i32
    return %arg0, %c0_i32, %c0_i32_0 : i32, i32, i32
  }
}

</mosaic_0001>

<llo_original>
// kernel: tpu_custom_call.1
$region0: #{tpu_custom_call.1}
  #allocation0 [shape = 'u32[]', space=smem, size = 0x4, offset = 0x4, fixed_abs, tag = 'smem constant byte address 0x4 - core index']
  #allocation1 [shape = 'u32[144,128]{1,0:T(1,128)}', space=vmem, size = 0x12000, scoped, tag = 'internal scratch']
  %s0 = inlined_call_operand.hbm [shape: f32[2,8,32], index: 0, kind: input, shape index: {}]
  %s1 = inlined_call_operand.hbm [shape: f32[2,8,32], index: 1, kind: input, shape index: {}]
  %s2 = inlined_call_operand.hbm [shape: f32[2,8,32], index: 2, kind: input, shape index: {}]
  %s3 = inlined_call_operand.hbm [shape: s8[2,1,8,8], index: 3, kind: input, shape index: {}]
  %s4 = inlined_call_operand.hbm [shape: f32[32,32], index: 4, kind: input, shape index: {}]
  %s5 = inlined_call_operand.hbm [shape: f32[1,32], index: 5, kind: input, shape index: {}]
  %s6 = inlined_call_operand.hbm [shape: f32[32,32], index: 6, kind: input, shape index: {}]
  %s7 = inlined_call_operand.hbm [shape: f32[1,32], index: 7, kind: input, shape index: {}]
  %s8 = inlined_call_operand.hbm [shape: f32[32,32], index: 8, kind: input, shape index: {}]
  %s9 = inlined_call_operand.hbm [shape: f32[1,32], index: 9, kind: input, shape index: {}]
  %s10 = inlined_call_operand.hbm [shape: f32[32,32], index: 10, kind: input, shape index: {}]
  %s11 = inlined_call_operand.hbm [shape: f32[1,32], index: 11, kind: input, shape index: {}]
  %s12 = inlined_call_operand.hbm [shape: f32[1,32], index: 12, kind: input, shape index: {}]
  %s13 = inlined_call_operand.hbm [shape: f32[1,32], index: 13, kind: input, shape index: {}]
  %s14 = inlined_call_operand.hbm [shape: f32[32,64], index: 14, kind: input, shape index: {}]
  %s15 = inlined_call_operand.hbm [shape: f32[1,64], index: 15, kind: input, shape index: {}]
  %s16 = inlined_call_operand.hbm [shape: f32[64,32], index: 16, kind: input, shape index: {}]
  %s17 = inlined_call_operand.hbm [shape: f32[1,32], index: 17, kind: input, shape index: {}]
  %s18 = inlined_call_operand.hbm [shape: f32[1,32], index: 18, kind: input, shape index: {}]
  %s19 = inlined_call_operand.hbm [shape: f32[1,32], index: 19, kind: input, shape index: {}]
  %s20 = inlined_call_operand.hbm [shape: f32[2,8,32], index: 20, kind: output, shape index: {}]
  %s21 = sld [smem:[#allocation0]]
  $region170: #{tpu_custom_call.1} parent=0
    _
  %s23 = ssub.s32 1, %s21
  %s24 = scalar_select 0, %s23, %s21
  $region1: #{tpu_custom_call.1} parent=0
    #allocation2 [shape = 'u8[8192]{0}', space=vmem, size = 0x2000, scoped, tag = 'input window, operand 0, single buffered']
    #allocation3 [shape = 's32[1]{0}', space=sflag, size = 0x4, scoped, tag = 'scoped memory for tpu_custom_call.1']
    #allocation4 [shape = 's32[1]{0}', space=sflag, size = 0x4, scoped, tag = 'scoped memory for tpu_custom_call.1']
    #allocation5 [shape = 'u8[8192]{0}', space=vmem, size = 0x2000, scoped, tag = 'input window, operand 1, single buffered']
    #allocation6 [shape = 's32[1]{0}', space=sflag, size = 0x4, scoped, tag = 'scoped memory for tpu_custom_call.1']
    #allocation7 [shape = 'u8[8192]{0}', space=vmem, size = 0x2000, scoped, tag = 'input window, operand 2, single buffered']
    #allocation8 [shape = 'u8[2048]{0}', space=vmem, size = 0x800, scoped, tag = 'input window, operand 3, single buffered']
    #allocation9 [shape = 's32[1]{0}', space=sflag, size = 0x4, scoped, tag = 'scoped memory for tpu_custom_call.1']
    #allocation10 [shape = 'u8[16384]{0}', space=vmem, size = 0x4000, scoped, tag = 'input window, operand 4, single buffered']
    #allocation11 [shape = 'u8[512]{0}', space=vmem, size = 0x400, scoped, tag = 'input window, operand 5, single buffered']
    #allocation12 [shape = 's32[1]{0}', space=sflag, size = 0x4, scoped, tag = 'scoped memory for tpu_custom_call.1']
    #allocation13 [shape = 'u8[16384]{0}', space=vmem, size = 0x4000, scoped, tag = 'input window, operand 6, single buffered']
    #allocation14 [shape = 'u8[512]{0}', space=vmem, size = 0x400, scoped, tag = 'input window, operand 7, single buffered']
    #allocation15 [shape = 's32[1]{0}', space=sflag, size = 0x4, scoped, tag = 'scoped memory for tpu_custom_call.1']
    #allocation16 [shape = 'u8[16384]{0}', space=vmem, size = 0x4000, scoped, tag = 'input window, operand 8, single buffered']
    #allocation17 [shape = 'u8[512]{0}', space=vmem, size = 0x400, scoped, tag = 'input window, operand 9, single buffered']
    #allocation18 [shape = 's32[1]{0}', space=sflag, size = 0x4, scoped, tag = 'scoped memory for tpu_custom_call.1']
    #allocation19 [shape = 'u8[16384]{0}', space=vmem, size = 0x4000, scoped, tag = 'input window, operand 10, single buffered']
    #allocation20 [shape = 'u8[512]{0}', space=vmem, size = 0x400, scoped, tag = 'input window, operand 11, single buffered']
    #allocation21 [shape = 's32[1]{0}', space=sflag, size = 0x4, scoped, tag = 'scoped memory for tpu_custom_call.1']
    #allocation22 [shape = 'u8[512]{0}', space=vmem, size = 0x400, scoped, tag = 'input window, operand 12, single buffered']
    #allocation23 [shape = 'u8[512]{0}', space=vmem, size = 0x400, scoped, tag = 'input window, operand 13, single buffered']
    #allocation24 [shape = 's32[1]{0}', space=sflag, size = 0x4, scoped, tag = 'scoped memory for tpu_custom_call.1']
    #allocation25 [shape = 'u8[16384]{0}', space=vmem, size = 0x4000, scoped, tag = 'input window, operand 14, single buffered']
    #allocation26 [shape = 'u8[512]{0}', space=vmem, size = 0x400, scoped, tag = 'input window, operand 15, single buffered']
    #allocation27 [shape = 's32[1]{0}', space=sflag, size = 0x4, scoped, tag = 'scoped memory for tpu_custom_call.1']
    #allocation28 [shape = 'u8[32768]{0}', space=vmem, size = 0x8000, scoped, tag = 'input window, operand 16, single buffered']
    #allocation29 [shape = 'u8[512]{0}', space=vmem, size = 0x400, scoped, tag = 'input window, operand 17, single buffered']
    #allocation30 [shape = 's32[1]{0}', space=sflag, size = 0x4, scoped, tag = 'scoped memory for tpu_custom_call.1']
    #allocation31 [shape = 'u8[512]{0}', space=vmem, size = 0x400, scoped, tag = 'input window, operand 18, single buffered']
    #allocation32 [shape = 'u8[512]{0}', space=vmem, size = 0x400, scoped, tag = 'input window, operand 19, single buffered']
    #allocation33 [shape = 's32[1]{0}', space=sflag, size = 0x4, scoped, tag = 'scoped memory for tpu_custom_call.1']
    #allocation34 [shape = 'u8[8192]{0}', space=vmem, size = 0x2000, scoped, tag = 'output window, operand 0, single buffered']
    %25 = vsyncpa [#allocation3], 0
    %26 = vsyncpa [#allocation6], 0
    %27 = vsyncpa [#allocation9], 0
    %28 = vsyncpa [#allocation12], 0
    %29 = vsyncpa [#allocation15], 0
    %30 = vsyncpa [#allocation18], 0
    %31 = vsyncpa [#allocation21], 0
    %32 = vsyncpa [#allocation24], 0
    %33 = vsyncpa [#allocation27], 0
    %34 = vsyncpa [#allocation30], 0
    %35 = vsyncpa [#allocation33], 0
    %36 = vsyncpa [#allocation4], 0
    // Predicated region
    $region2: #{tpu_custom_call.1} parent=1 // pred_check
      _
    $region3: #{tpu_custom_call.1} parent=1 // pred_check_branch
      %38 = sbr.rel (0) target = $region5
    $region4: #{tpu_custom_call.1} parent=1 // pred_region
      %s40 = ssub.s32 256, 256
      %41 = vsyncadd [#allocation3], %s40
      %s42 = sshll.u32 [#allocation2], 4
      %s43 = int_to_ptr.vmem [resolvable:$true] %s42
      %48 = dma.hbm_to_vmem [thread:$0]  %s0, 256, %s43, [#allocation3], 128, 128, 8
    $region5: #{tpu_custom_call.1} parent=1 // pred_fallthru
      _
    // Predicated region
    $region6: #{tpu_custom_call.1} parent=1 // pred_check
      _
    $region7: #{tpu_custom_call.1} parent=1 // pred_check_branch
      %50 = sbr.rel (0) target = $region9
    $region8: #{tpu_custom_call.1} parent=1 // pred_region
      %s52 = ssub.s32 256, 256
      %53 = vsyncadd [#allocation6], %s52
      %s54 = sshll.u32 [#allocation5], 4
      %s55 = int_to_ptr.vmem [resolvable:$true] %s54
      %60 = dma.hbm_to_vmem [thread:$0]  %s1, 256, %s55, [#allocation6], 128, 128, 8
    $region9: #{tpu_custom_call.1} parent=1 // pred_fallthru
      _
    // Predicated region
    $region10: #{tpu_custom_call.1} parent=1 // pred_check
      _
    $region11: #{tpu_custom_call.1} parent=1 // pred_check_branch
      %62 = sbr.rel (0) target = $region13
    $region12: #{tpu_custom_call.1} parent=1 // pred_region
      %s64 = ssub.s32 256, 256
      %65 = vsyncadd [#allocation6], %s64
      %s66 = sshll.u32 [#allocation7], 4
      %s67 = int_to_ptr.vmem [resolvable:$true] %s66
      %72 = dma.hbm_to_vmem [thread:$0]  %s2, 256, %s67, [#allocation6], 128, 128, 8
    $region13: #{tpu_custom_call.1} parent=1 // pred_fallthru
      _
    // Predicated region
    $region14: #{tpu_custom_call.1} parent=1 // pred_check
      _
    $region15: #{tpu_custom_call.1} parent=1 // pred_check_branch
      %74 = sbr.rel (0) target = $region17
    $region16: #{tpu_custom_call.1} parent=1 // pred_region
      %s76 = ssub.s32 64, 64
      %77 = vsyncadd [#allocation9], %s76
      %s78 = sshll.u32 [#allocation8], 4
      %s79 = int_to_ptr.vmem [resolvable:$true] %s78
      %84 = dma.hbm_to_vmem [thread:$0]  %s3, 64, %s79, [#allocation9], 32, 32, 2
    $region17: #{tpu_custom_call.1} parent=1 // pred_fallthru
      _
    // Predicated region
    $region18: #{tpu_custom_call.1} parent=1 // pred_check
      _
    $region19: #{tpu_custom_call.1} parent=1 // pred_check_branch
      %86 = sbr.rel (0) target = $region21
    $region20: #{tpu_custom_call.1} parent=1 // pred_region
      %s88 = ssub.s32 512, 512
      %89 = vsyncadd [#allocation9], %s88
      %s90 = sshll.u32 [#allocation10], 4
      %s91 = int_to_ptr.vmem [resolvable:$true] %s90
      %96 = dma.hbm_to_vmem [thread:$0]  %s4, 512, %s91, [#allocation9], 128, 128, 8
    $region21: #{tpu_custom_call.1} parent=1 // pred_fallthru
      _
    // Predicated region
    $region22: #{tpu_custom_call.1} parent=1 // pred_check
      _
    $region23: #{tpu_custom_call.1} parent=1 // pred_check_branch
      %98 = sbr.rel (0) target = $region25
    $region24: #{tpu_custom_call.1} parent=1 // pred_region
      %s100 = ssub.s32 16, 16
      %101 = vsyncadd [#allocation12], %s100
      %s103 = sshll.u32 [#allocation11], 4
      %s104 = int_to_ptr.vmem [resolvable:$true] %s103
      %106 = dma.hbm_to_vmem [thread:$0]  %s5, 16, %s104, [#allocation12]
    $region25: #{tpu_custom_call.1} parent=1 // pred_fallthru
      _
    // Predicated region
    $region26: #{tpu_custom_call.1} parent=1 // pred_check
      _
    $region27: #{tpu_custom_call.1} parent=1 // pred_check_branch
      %108 = sbr.rel (0) target = $region29
    $region28: #{tpu_custom_call.1} parent=1 // pred_region
      %s110 = ssub.s32 512, 512
      %111 = vsyncadd [#allocation12], %s110
      %s112 = sshll.u32 [#allocation13], 4
      %s113 = int_to_ptr.vmem [resolvable:$true] %s112
      %118 = dma.hbm_to_vmem [thread:$0]  %s6, 512, %s113, [#allocation12], 128, 128, 8
    $region29: #{tpu_custom_call.1} parent=1 // pred_fallthru
      _
    // Predicated region
    $region30: #{tpu_custom_call.1} parent=1 // pred_check
      _
    $region31: #{tpu_custom_call.1} parent=1 // pred_check_branch
      %120 = sbr.rel (0) target = $region33
    $region32: #{tpu_custom_call.1} parent=1 // pred_region
      %s122 = ssub.s32 16, 16
      %123 = vsyncadd [#allocation15], %s122
      %s125 = sshll.u32 [#allocation14], 4
      %s126 = int_to_ptr.vmem [resolvable:$true] %s125
      %128 = dma.hbm_to_vmem [thread:$0]  %s7, 16, %s126, [#allocation15]
    $region33: #{tpu_custom_call.1} parent=1 // pred_fallthru
      _
    // Predicated region
    $region34: #{tpu_custom_call.1} parent=1 // pred_check
      _
    $region35: #{tpu_custom_call.1} parent=1 // pred_check_branch
      %130 = sbr.rel (0) target = $region37
    $region36: #{tpu_custom_call.1} parent=1 // pred_region
      %s132 = ssub.s32 512, 512
      %133 = vsyncadd [#allocation15], %s132
      %s134 = sshll.u32 [#allocation16], 4
      %s135 = int_to_ptr.vmem [resolvable:$true] %s134
      %140 = dma.hbm_to_vmem [thread:$0]  %s8, 512, %s135, [#allocation15], 128, 128, 8
    $region37: #{tpu_custom_call.1} parent=1 // pred_fallthru
      _
    // Predicated region
    $region38: #{tpu_custom_call.1} parent=1 // pred_check
      _
    $region39: #{tpu_custom_call.1} parent=1 // pred_check_branch
      %142 = sbr.rel (0) target = $region41
    $region40: #{tpu_custom_call.1} parent=1 // pred_region
      %s144 = ssub.s32 16, 16
      %145 = vsyncadd [#allocation18], %s144
      %s147 = sshll.u32 [#allocation17], 4
      %s148 = int_to_ptr.vmem [resolvable:$true] %s147
      %150 = dma.hbm_to_vmem [thread:$0]  %s9, 16, %s148, [#allocation18]
    $region41: #{tpu_custom_call.1} parent=1 // pred_fallthru
      _
    // Predicated region
    $region42: #{tpu_custom_call.1} parent=1 // pred_check
      _
    $region43: #{tpu_custom_call.1} parent=1 // pred_check_branch
      %152 = sbr.rel (0) target = $region45
    $region44: #{tpu_custom_call.1} parent=1 // pred_region
      %s154 = ssub.s32 512, 512
      %155 = vsyncadd [#allocation18], %s154
      %s156 = sshll.u32 [#allocation19], 4
      %s157 = int_to_ptr.vmem [resolvable:$true] %s156
      %162 = dma.hbm_to_vmem [thread:$0]  %s10, 512, %s157, [#allocation18], 128, 128, 8
    $region45: #{tpu_custom_call.1} parent=1 // pred_fallthru
      _
    // Predicated region
    $region46: #{tpu_custom_call.1} parent=1 // pred_check
      _
    $region47: #{tpu_custom_call.1} parent=1 // pred_check_branch
      %164 = sbr.rel (0) target = $region49
    $region48: #{tpu_custom_call.1} parent=1 // pred_region
      %s166 = ssub.s32 16, 16
      %167 = vsyncadd [#allocation21], %s166
      %s169 = sshll.u32 [#allocation20], 4
      %s170 = int_to_ptr.vmem [resolvable:$true] %s169
      %172 = dma.hbm_to_vmem [thread:$0]  %s11, 16, %s170, [#allocation21]
    $region49: #{tpu_custom_call.1} parent=1 // pred_fallthru
      _
    // Predicated region
    $region50: #{tpu_custom_call.1} parent=1 // pred_check
      _
    $region51: #{tpu_custom_call.1} parent=1 // pred_check_branch
      %174 = sbr.rel (0) target = $region53
    $region52: #{tpu_custom_call.1} parent=1 // pred_region
      %s176 = ssub.s32 16, 16
      %177 = vsyncadd [#allocation21], %s176
      %s179 = sshll.u32 [#allocation22], 4
      %s180 = int_to_ptr.vmem [resolvable:$true] %s179
      %182 = dma.hbm_to_vmem [thread:$0]  %s12, 16, %s180, [#allocation21]
    $region53: #{tpu_custom_call.1} parent=1 // pred_fallthru
      _
    // Predicated region
    $region54: #{tpu_custom_call.1} parent=1 // pred_check
      _
    $region55: #{tpu_custom_call.1} parent=1 // pred_check_branch
      %184 = sbr.rel (0) target = $region57
    $region56: #{tpu_custom_call.1} parent=1 // pred_region
      %s186 = ssub.s32 16, 16
      %187 = vsyncadd [#allocation24], %s186
      %s189 = sshll.u32 [#allocation23], 4
      %s190 = int_to_ptr.vmem [resolvable:$true] %s189
      %192 = dma.hbm_to_vmem [thread:$0]  %s13, 16, %s190, [#allocation24]
    $region57: #{tpu_custom_call.1} parent=1 // pred_fallthru
      _
    // Predicated region
    $region58: #{tpu_custom_call.1} parent=1 // pred_check
      _
    $region59: #{tpu_custom_call.1} parent=1 // pred_check_branch
      %194 = sbr.rel (0) target = $region61
    $region60: #{tpu_custom_call.1} parent=1 // pred_region
      %s196 = ssub.s32 512, 512
      %197 = vsyncadd [#allocation24], %s196
      %s198 = sshll.u32 [#allocation25], 4
      %s199 = int_to_ptr.vmem [resolvable:$true] %s198
      %204 = dma.hbm_to_vmem [thread:$0]  %s14, 512, %s199, [#allocation24], 128, 128, 8
    $region61: #{tpu_custom_call.1} parent=1 // pred_fallthru
      _
    // Predicated region
    $region62: #{tpu_custom_call.1} parent=1 // pred_check
      _
    $region63: #{tpu_custom_call.1} parent=1 // pred_check_branch
      %206 = sbr.rel (0) target = $region65
    $region64: #{tpu_custom_call.1} parent=1 // pred_region
      %s208 = ssub.s32 16, 16
      %209 = vsyncadd [#allocation27], %s208
      %s211 = sshll.u32 [#allocation26], 4
      %s212 = int_to_ptr.vmem [resolvable:$true] %s211
      %214 = dma.hbm_to_vmem [thread:$0]  %s15, 16, %s212, [#allocation27]
    $region65: #{tpu_custom_call.1} parent=1 // pred_fallthru
      _
    // Predicated region
    $region66: #{tpu_custom_call.1} parent=1 // pred_check
      _
    $region67: #{tpu_custom_call.1} parent=1 // pred_check_branch
      %216 = sbr.rel (0) target = $region69
    $region68: #{tpu_custom_call.1} parent=1 // pred_region
      %s218 = ssub.s32 1024, 1024
      %219 = vsyncadd [#allocation27], %s218
      %s220 = sshll.u32 [#allocation28], 4
      %s221 = int_to_ptr.vmem [resolvable:$true] %s220
      %226 = dma.hbm_to_vmem [thread:$0]  %s16, 1024, %s221, [#allocation27], 128, 128, 8
    $region69: #{tpu_custom_call.1} parent=1 // pred_fallthru
      _
    // Predicated region
    $region70: #{tpu_custom_call.1} parent=1 // pred_check
      _
    $region71: #{tpu_custom_call.1} parent=1 // pred_check_branch
      %228 = sbr.rel (0) target = $region73
    $region72: #{tpu_custom_call.1} parent=1 // pred_region
      %s230 = ssub.s32 16, 16
      %231 = vsyncadd [#allocation30], %s230
      %s233 = sshll.u32 [#allocation29], 4
      %s234 = int_to_ptr.vmem [resolvable:$true] %s233
      %236 = dma.hbm_to_vmem [thread:$0]  %s17, 16, %s234, [#allocation30]
    $region73: #{tpu_custom_call.1} parent=1 // pred_fallthru
      _
    // Predicated region
    $region74: #{tpu_custom_call.1} parent=1 // pred_check
      _
    $region75: #{tpu_custom_call.1} parent=1 // pred_check_branch
      %238 = sbr.rel (0) target = $region77
    $region76: #{tpu_custom_call.1} parent=1 // pred_region
      %s240 = ssub.s32 16, 16
      %241 = vsyncadd [#allocation30], %s240
      %s243 = sshll.u32 [#allocation31], 4
      %s244 = int_to_ptr.vmem [resolvable:$true] %s243
      %246 = dma.hbm_to_vmem [thread:$0]  %s18, 16, %s244, [#allocation30]
    $region77: #{tpu_custom_call.1} parent=1 // pred_fallthru
      _
    // Predicated region
    $region78: #{tpu_custom_call.1} parent=1 // pred_check
      _
    $region79: #{tpu_custom_call.1} parent=1 // pred_check_branch
      %248 = sbr.rel (0) target = $region81
    $region80: #{tpu_custom_call.1} parent=1 // pred_region
      %s250 = ssub.s32 16, 16
      %251 = vsyncadd [#allocation33], %s250
      %s253 = sshll.u32 [#allocation32], 4
      %s254 = int_to_ptr.vmem [resolvable:$true] %s253
      %256 = dma.hbm_to_vmem [thread:$0]  %s19, 16, %s254, [#allocation33]
    $region81: #{tpu_custom_call.1} parent=1 // pred_fallthru
      _
    // Predicated region
    $region82: #{tpu_custom_call.1} parent=1 // pred_check
      _
    $region83: #{tpu_custom_call.1} parent=1 // pred_check_branch
      %258 = sbr.rel (0) target = $region85
    $region84: #{tpu_custom_call.1} parent=1 // pred_region
      %259 = dma.done [#allocation3], 256
    $region85: #{tpu_custom_call.1} parent=1 // pred_fallthru
      _
    // Predicated region
    $region86: #{tpu_custom_call.1} parent=1 // pred_check
      _
    $region87: #{tpu_custom_call.1} parent=1 // pred_check_branch
      %261 = sbr.rel (0) target = $region89
    $region88: #{tpu_custom_call.1} parent=1 // pred_region
      %262 = dma.done [#allocation6], 256
    $region89: #{tpu_custom_call.1} parent=1 // pred_fallthru
      _
    // Predicated region
    $region90: #{tpu_custom_call.1} parent=1 // pred_check
      _
    $region91: #{tpu_custom_call.1} parent=1 // pred_check_branch
      %264 = sbr.rel (0) target = $region93
    $region92: #{tpu_custom_call.1} parent=1 // pred_region
      %265 = dma.done [#allocation6], 256
    $region93: #{tpu_custom_call.1} parent=1 // pred_fallthru
      _
    // Predicated region
    $region94: #{tpu_custom_call.1} parent=1 // pred_check
      _
    $region95: #{tpu_custom_call.1} parent=1 // pred_check_branch
      %267 = sbr.rel (0) target = $region97
    $region96: #{tpu_custom_call.1} parent=1 // pred_region
      %268 = dma.done [#allocation9], 64
    $region97: #{tpu_custom_call.1} parent=1 // pred_fallthru
      _
    // Predicated region
    $region98: #{tpu_custom_call.1} parent=1 // pred_check
      _
    $region99: #{tpu_custom_call.1} parent=1 // pred_check_branch
      %270 = sbr.rel (0) target = $region101
    $region100: #{tpu_custom_call.1} parent=1 // pred_region
      %271 = dma.done [#allocation9], 512
    $region101: #{tpu_custom_call.1} parent=1 // pred_fallthru
      _
    // Predicated region
    $region102: #{tpu_custom_call.1} parent=1 // pred_check
      _
    $region103: #{tpu_custom_call.1} parent=1 // pred_check_branch
      %273 = sbr.rel (0) target = $region105
    $region104: #{tpu_custom_call.1} parent=1 // pred_region
      %274 = dma.done [#allocation12], 16
    $region105: #{tpu_custom_call.1} parent=1 // pred_fallthru
      _
    // Predicated region
    $region106: #{tpu_custom_call.1} parent=1 // pred_check
      _
    $region107: #{tpu_custom_call.1} parent=1 // pred_check_branch
      %276 = sbr.rel (0) target = $region109
    $region108: #{tpu_custom_call.1} parent=1 // pred_region
      %277 = dma.done [#allocation12], 512
    $region109: #{tpu_custom_call.1} parent=1 // pred_fallthru
      _
    // Predicated region
    $region110: #{tpu_custom_call.1} parent=1 // pred_check
      _
    $region111: #{tpu_custom_call.1} parent=1 // pred_check_branch
      %279 = sbr.rel (0) target = $region113
    $region112: #{tpu_custom_call.1} parent=1 // pred_region
      %280 = dma.done [#allocation15], 16
    $region113: #{tpu_custom_call.1} parent=1 // pred_fallthru
      _
    // Predicated region
    $region114: #{tpu_custom_call.1} parent=1 // pred_check
      _
    $region115: #{tpu_custom_call.1} parent=1 // pred_check_branch
      %282 = sbr.rel (0) target = $region117
    $region116: #{tpu_custom_call.1} parent=1 // pred_region
      %283 = dma.done [#allocation15], 512
    $region117: #{tpu_custom_call.1} parent=1 // pred_fallthru
      _
    // Predicated region
    $region118: #{tpu_custom_call.1} parent=1 // pred_check
      _
    $region119: #{tpu_custom_call.1} parent=1 // pred_check_branch
      %285 = sbr.rel (0) target = $region121
    $region120: #{tpu_custom_call.1} parent=1 // pred_region
      %286 = dma.done [#allocation18], 16
    $region121: #{tpu_custom_call.1} parent=1 // pred_fallthru
      _
    // Predicated region
    $region122: #{tpu_custom_call.1} parent=1 // pred_check
      _
    $region123: #{tpu_custom_call.1} parent=1 // pred_check_branch
      %288 = sbr.rel (0) target = $region125
    $region124: #{tpu_custom_call.1} parent=1 // pred_region
      %289 = dma.done [#allocation18], 512
    $region125: #{tpu_custom_call.1} parent=1 // pred_fallthru
      _
    // Predicated region
    $region126: #{tpu_custom_call.1} parent=1 // pred_check
      _
    $region127: #{tpu_custom_call.1} parent=1 // pred_check_branch
      %291 = sbr.rel (0) target = $region129
    $region128: #{tpu_custom_call.1} parent=1 // pred_region
      %292 = dma.done [#allocation21], 16
    $region129: #{tpu_custom_call.1} parent=1 // pred_fallthru
      _
    // Predicated region
    $region130: #{tpu_custom_call.1} parent=1 // pred_check
      _
    $region131: #{tpu_custom_call.1} parent=1 // pred_check_branch
      %294 = sbr.rel (0) target = $region133
    $region132: #{tpu_custom_call.1} parent=1 // pred_region
      %295 = dma.done [#allocation21], 16
    $region133: #{tpu_custom_call.1} parent=1 // pred_fallthru
      _
    // Predicated region
    $region134: #{tpu_custom_call.1} parent=1 // pred_check
      _
    $region135: #{tpu_custom_call.1} parent=1 // pred_check_branch
      %297 = sbr.rel (0) target = $region137
    $region136: #{tpu_custom_call.1} parent=1 // pred_region
      %298 = dma.done [#allocation24], 16
    $region137: #{tpu_custom_call.1} parent=1 // pred_fallthru
      _
    // Predicated region
    $region138: #{tpu_custom_call.1} parent=1 // pred_check
      _
    $region139: #{tpu_custom_call.1} parent=1 // pred_check_branch
      %300 = sbr.rel (0) target = $region141
    $region140: #{tpu_custom_call.1} parent=1 // pred_region
      %301 = dma.done [#allocation24], 512
    $region141: #{tpu_custom_call.1} parent=1 // pred_fallthru
      _
    // Predicated region
    $region142: #{tpu_custom_call.1} parent=1 // pred_check
      _
    $region143: #{tpu_custom_call.1} parent=1 // pred_check_branch
      %303 = sbr.rel (0) target = $region145
    $region144: #{tpu_custom_call.1} parent=1 // pred_region
      %304 = dma.done [#allocation27], 16
    $region145: #{tpu_custom_call.1} parent=1 // pred_fallthru
      _
    // Predicated region
    $region146: #{tpu_custom_call.1} parent=1 // pred_check
      _
    $region147: #{tpu_custom_call.1} parent=1 // pred_check_branch
      %306 = sbr.rel (0) target = $region149
    $region148: #{tpu_custom_call.1} parent=1 // pred_region
      %307 = dma.done [#allocation27], 1024
    $region149: #{tpu_custom_call.1} parent=1 // pred_fallthru
      _
    // Predicated region
    $region150: #{tpu_custom_call.1} parent=1 // pred_check
      _
    $region151: #{tpu_custom_call.1} parent=1 // pred_check_branch
      %309 = sbr.rel (0) target = $region153
    $region152: #{tpu_custom_call.1} parent=1 // pred_region
      %310 = dma.done [#allocation30], 16
    $region153: #{tpu_custom_call.1} parent=1 // pred_fallthru
      _
    // Predicated region
    $region154: #{tpu_custom_call.1} parent=1 // pred_check
      _
    $region155: #{tpu_custom_call.1} parent=1 // pred_check_branch
      %312 = sbr.rel (0) target = $region157
    $region156: #{tpu_custom_call.1} parent=1 // pred_region
      %313 = dma.done [#allocation30], 16
    $region157: #{tpu_custom_call.1} parent=1 // pred_fallthru
      _
    // Predicated region
    $region158: #{tpu_custom_call.1} parent=1 // pred_check
      _
    $region159: #{tpu_custom_call.1} parent=1 // pred_check_branch
      %315 = sbr.rel (0) target = $region161
    $region160: #{tpu_custom_call.1} parent=1 // pred_region
      %316 = dma.done [#allocation33], 16
    $region161: #{tpu_custom_call.1} parent=1 // pred_fallthru
      _
    %v319 = vld [vmem:[#allocation2] sm:$0xff]
    %v320 = vld [vmem:[#allocation2 + $0x8] sm:$0xff]
    %v321 = vld [vmem:[#allocation5] sm:$0xff]
    %v322 = vld [vmem:[#allocation5 + $0x8] sm:$0xff]
    %v323 = vld [vmem:[#allocation7] sm:$0xff]
    %v324 = vld [vmem:[#allocation7 + $0x8] sm:$0xff]
    %v325 = vld [vmem:[#allocation10] sm:$0xff]
    %v326 = vld [vmem:[#allocation10 + $0x8] sm:$0xff]
    %v327 = vld [vmem:[#allocation10 + $0x10] sm:$0xff]
    %v328 = vld [vmem:[#allocation10 + $0x18] sm:$0xff]
    %v329 = vld [vmem:[#allocation11] sm:$0x1]
    %v331 = vlaneseq
    %v332 = vshrl.u32 %v331, 7
    %v333 = vsub.s32 0, %v332
    %v334 = vrot.slane %v329, %v333
    %vm336 = vcmask 261120
    %v338 = vsel %vm336, %v319, 0
    %v341 = vsel %vm336, %v320, 0
    %343 = vmatprep.subr.mxu0 0.0
    %344 = vmatpush1.msra.mxu0 %v325
    %345 = vmatprep.subr.mxu0 0.0
    %346 = vmatpush1.msra.mxu0 %v326
    %347 = vmatprep.subr.mxu0 0.0
    %348 = vmatpush1.msra.mxu0 %v327
    %349 = vmatprep.subr.mxu0 0.0
    %350 = vmatpush1.msra.mxu0 %v328
    %351 = vmatprep.subr.mxu0 0.0
    %352 = vmatpush1.msra.mxu0 0.0
    %353 = vmatprep.subr.mxu0 0.0
    %354 = vmatpush1.msra.mxu0 0.0
    %355 = vmatprep.subr.mxu0 0.0
    %356 = vmatpush1.msra.mxu0 0.0
    %357 = vmatprep.subr.mxu0 0.0
    %358 = vmatpush1.msra.mxu0 0.0
    %359 = vmatprep.subr.mxu0 0.0
    %360 = vmatpush1.msra.mxu0 0.0
    %361 = vmatprep.subr.mxu0 0.0
    %362 = vmatpush1.msra.mxu0 0.0
    %363 = vmatprep.subr.mxu0 0.0
    %364 = vmatpush1.msra.mxu0 0.0
    %365 = vmatprep.subr.mxu0 0.0
    %366 = vmatpush1.msra.mxu0 0.0
    %367 = vmatprep.subr.mxu0 0.0
    %368 = vmatpush1.msra.mxu0 0.0
    %369 = vmatprep.subr.mxu0 0.0
    %370 = vmatpush1.msra.mxu0 0.0
    %371 = vmatprep.subr.mxu0 0.0
    %372 = vmatpush1.msra.mxu0 0.0
    %373 = vmatprep.subr.mxu0 0.0
    %374 = vmatpush1.msra.mxu0 0.0
    %375 = vmatprep.subr.mxu0 0.0
    %376 = vmatpush1.msra.mxu0 0.0
    %377 = vmatprep.subr.mxu0 0.0
    %378 = vmatpush1.msra.mxu0 0.0
    %379 = vmatprep.subr.mxu0 0.0
    %380 = vmatpush1.msra.mxu0 0.0
    %381 = vmatprep.subr.mxu0 0.0
    %382 = vmatpush1.msra.mxu0 0.0
    %383 = vmatprep.subr.mxu0 0.0
    %384 = vmatpush1.msra.mxu0 0.0
    %385 = vmatprep.subr.mxu0 0.0
    %386 = vmatpush1.msra.mxu0 0.0
    %387 = vmatprep.subr.mxu0 0.0
    %388 = vmatpush1.msra.mxu0 0.0
    %389 = vmatprep.subr.mxu0 0.0
    %390 = vmatpush1.msra.mxu0 0.0
    %391 = vmatprep.subr.mxu0 0.0
    %392 = vmatpush1.msra.mxu0 0.0
    %393 = vmatprep.subr.mxu0 0.0
    %394 = vmatpush1.msra.mxu0 0.0
    %395 = vmatprep.subr.mxu0 0.0
    %396 = vmatpush1.msra.mxu0 0.0
    %397 = vmatprep.subr.mxu0 0.0
    %398 = vmatpush1.msra.mxu0 0.0
    %399 = vmatprep.subr.mxu0 0.0
    %400 = vmatpush1.msra.mxu0 0.0
    %401 = vmatprep.subr.mxu0 0.0
    %402 = vmatpush1.msra.mxu0 0.0
    %403 = vmatprep.subr.mxu0 0.0
    %404 = vmatpush1.msra.mxu0 0.0
    %405 = vmatprep.subr.mxu0 0.0
    %406 = vmatpush1.msra.mxu0 0.0
    %407 = vmatprep.mubr.f32.mxu0 0.0
    %408 = vmatmul.mubr.f32.gmra.mrb[0].mxu0 %v338
    %v409 = vpop.f32.mrb[0].mxu0
    %v410 = vadd.f32 %v334, %v409
    %v411 = vpop.f32.mrb[0].mxu0
    %412 = vmatprep.mubr.f32.mxu0 0.0
    %413 = vmatmul.mubr.f32.gmra.mrb[0].mxu0 %v341
    %v414 = vpop.f32.mrb[0].mxu0
    %v415 = vadd.f32 %v334, %v414
    %v416 = vpop.f32.mrb[0].mxu0
    %417 = vdwg.mxu0
    %v418 = vmul.f32 %v410, 0.35355338
    %v419 = vmul.f32 %v415, 0.35355338
    %v420 = vld [vmem:[#allocation13] sm:$0xff]
    %v421 = vld [vmem:[#allocation13 + $0x8] sm:$0xff]
    %v422 = vld [vmem:[#allocation13 + $0x10] sm:$0xff]
    %v423 = vld [vmem:[#allocation13 + $0x18] sm:$0xff]
    %v424 = vld [vmem:[#allocation14] sm:$0x1]
    %v426 = vlaneseq
    %v427 = vshrl.u32 %v426, 7
    %v428 = vsub.s32 0, %v427
    %v429 = vrot.slane %v424, %v428
    %v432 = vsel %vm336, %v321, 0
    %v435 = vsel %vm336, %v322, 0
    %437 = vmatprep.subr.mxu0 0.0
    %438 = vmatpush1.msra.mxu0 %v420
    %439 = vmatprep.subr.mxu0 0.0
    %440 = vmatpush1.msra.mxu0 %v421
    %441 = vmatprep.subr.mxu0 0.0
    %442 = vmatpush1.msra.mxu0 %v422
    %443 = vmatprep.subr.mxu0 0.0
    %444 = vmatpush1.msra.mxu0 %v423
    %445 = vmatprep.subr.mxu0 0.0
    %446 = vmatpush1.msra.mxu0 0.0
    %447 = vmatprep.subr.mxu0 0.0
    %448 = vmatpush1.msra.mxu0 0.0
    %449 = vmatprep.subr.mxu0 0.0
    %450 = vmatpush1.msra.mxu0 0.0
    %451 = vmatprep.subr.mxu0 0.0
    %452 = vmatpush1.msra.mxu0 0.0
    %453 = vmatprep.subr.mxu0 0.0
    %454 = vmatpush1.msra.mxu0 0.0
    %455 = vmatprep.subr.mxu0 0.0
    %456 = vmatpush1.msra.mxu0 0.0
    %457 = vmatprep.subr.mxu0 0.0
    %458 = vmatpush1.msra.mxu0 0.0
    %459 = vmatprep.subr.mxu0 0.0
    %460 = vmatpush1.msra.mxu0 0.0
    %461 = vmatprep.subr.mxu0 0.0
    %462 = vmatpush1.msra.mxu0 0.0
    %463 = vmatprep.subr.mxu0 0.0
    %464 = vmatpush1.msra.mxu0 0.0
    %465 = vmatprep.subr.mxu0 0.0
    %466 = vmatpush1.msra.mxu0 0.0
    %467 = vmatprep.subr.mxu0 0.0
    %468 = vmatpush1.msra.mxu0 0.0
    %469 = vmatprep.subr.mxu0 0.0
    %470 = vmatpush1.msra.mxu0 0.0
    %471 = vmatprep.subr.mxu0 0.0
    %472 = vmatpush1.msra.mxu0 0.0
    %473 = vmatprep.subr.mxu0 0.0
    %474 = vmatpush1.msra.mxu0 0.0
    %475 = vmatprep.subr.mxu0 0.0
    %476 = vmatpush1.msra.mxu0 0.0
    %477 = vmatprep.subr.mxu0 0.0
    %478 = vmatpush1.msra.mxu0 0.0
    %479 = vmatprep.subr.mxu0 0.0
    %480 = vmatpush1.msra.mxu0 0.0
    %481 = vmatprep.subr.mxu0 0.0
    %482 = vmatpush1.msra.mxu0 0.0
    %483 = vmatprep.subr.mxu0 0.0
    %484 = vmatpush1.msra.mxu0 0.0
    %485 = vmatprep.subr.mxu0 0.0
    %486 = vmatpush1.msra.mxu0 0.0
    %487 = vmatprep.subr.mxu0 0.0
    %488 = vmatpush1.msra.mxu0 0.0
    %489 = vmatprep.subr.mxu0 0.0
    %490 = vmatpush1.msra.mxu0 0.0
    %491 = vmatprep.subr.mxu0 0.0
    %492 = vmatpush1.msra.mxu0 0.0
    %493 = vmatprep.subr.mxu0 0.0
    %494 = vmatpush1.msra.mxu0 0.0
    %495 = vmatprep.subr.mxu0 0.0
    %496 = vmatpush1.msra.mxu0 0.0
    %497 = vmatprep.subr.mxu0 0.0
    %498 = vmatpush1.msra.mxu0 0.0
    %499 = vmatprep.subr.mxu0 0.0
    %500 = vmatpush1.msra.mxu0 0.0
    %501 = vmatprep.mubr.f32.mxu0 0.0
    %502 = vmatmul.mubr.f32.gmra.mrb[0].mxu0 %v432
    %v503 = vpop.f32.mrb[0].mxu0
    %v504 = vadd.f32 %v429, %v503
    %v505 = vpop.f32.mrb[0].mxu0
    %506 = vmatprep.mubr.f32.mxu0 0.0
    %507 = vmatmul.mubr.f32.gmra.mrb[0].mxu0 %v435
    %v508 = vpop.f32.mrb[0].mxu0
    %v509 = vadd.f32 %v429, %v508
    %v510 = vpop.f32.mrb[0].mxu0
    %511 = vdwg.mxu0
    %v512 = vld [vmem:[#allocation16] sm:$0xff]
    %v513 = vld [vmem:[#allocation16 + $0x8] sm:$0xff]
    %v514 = vld [vmem:[#allocation16 + $0x10] sm:$0xff]
    %v515 = vld [vmem:[#allocation16 + $0x18] sm:$0xff]
    %v516 = vld [vmem:[#allocation17] sm:$0x1]
    %v518 = vlaneseq
    %v519 = vshrl.u32 %v518, 7
    %v520 = vsub.s32 0, %v519
    %v521 = vrot.slane %v516, %v520
    %v524 = vsel %vm336, %v323, 0
    %v527 = vsel %vm336, %v324, 0
    %529 = vmatprep.subr.mxu0 0.0
    %530 = vmatpush1.msra.mxu0 %v512
    %531 = vmatprep.subr.mxu0 0.0
    %532 = vmatpush1.msra.mxu0 %v513
    %533 = vmatprep.subr.mxu0 0.0
    %534 = vmatpush1.msra.mxu0 %v514
    %535 = vmatprep.subr.mxu0 0.0
    %536 = vmatpush1.msra.mxu0 %v515
    %537 = vmatprep.subr.mxu0 0.0
    %538 = vmatpush1.msra.mxu0 0.0
    %539 = vmatprep.subr.mxu0 0.0
    %540 = vmatpush1.msra.mxu0 0.0
    %541 = vmatprep.subr.mxu0 0.0
    %542 = vmatpush1.msra.mxu0 0.0
    %543 = vmatprep.subr.mxu0 0.0
    %544 = vmatpush1.msra.mxu0 0.0
    %545 = vmatprep.subr.mxu0 0.0
    %546 = vmatpush1.msra.mxu0 0.0
    %547 = vmatprep.subr.mxu0 0.0
    %548 = vmatpush1.msra.mxu0 0.0
    %549 = vmatprep.subr.mxu0 0.0
    %550 = vmatpush1.msra.mxu0 0.0
    %551 = vmatprep.subr.mxu0 0.0
    %552 = vmatpush1.msra.mxu0 0.0
    %553 = vmatprep.subr.mxu0 0.0
    %554 = vmatpush1.msra.mxu0 0.0
    %555 = vmatprep.subr.mxu0 0.0
    %556 = vmatpush1.msra.mxu0 0.0
    %557 = vmatprep.subr.mxu0 0.0
    %558 = vmatpush1.msra.mxu0 0.0
    %559 = vmatprep.subr.mxu0 0.0
    %560 = vmatpush1.msra.mxu0 0.0
    %561 = vmatprep.subr.mxu0 0.0
    %562 = vmatpush1.msra.mxu0 0.0
    %563 = vmatprep.subr.mxu0 0.0
    %564 = vmatpush1.msra.mxu0 0.0
    %565 = vmatprep.subr.mxu0 0.0
    %566 = vmatpush1.msra.mxu0 0.0
    %567 = vmatprep.subr.mxu0 0.0
    %568 = vmatpush1.msra.mxu0 0.0
    %569 = vmatprep.subr.mxu0 0.0
    %570 = vmatpush1.msra.mxu0 0.0
    %571 = vmatprep.subr.mxu0 0.0
    %572 = vmatpush1.msra.mxu0 0.0
    %573 = vmatprep.subr.mxu0 0.0
    %574 = vmatpush1.msra.mxu0 0.0
    %575 = vmatprep.subr.mxu0 0.0
    %576 = vmatpush1.msra.mxu0 0.0
    %577 = vmatprep.subr.mxu0 0.0
    %578 = vmatpush1.msra.mxu0 0.0
    %579 = vmatprep.subr.mxu0 0.0
    %580 = vmatpush1.msra.mxu0 0.0
    %581 = vmatprep.subr.mxu0 0.0
    %582 = vmatpush1.msra.mxu0 0.0
    %583 = vmatprep.subr.mxu0 0.0
    %584 = vmatpush1.msra.mxu0 0.0
    %585 = vmatprep.subr.mxu0 0.0
    %586 = vmatpush1.msra.mxu0 0.0
    %587 = vmatprep.subr.mxu0 0.0
    %588 = vmatpush1.msra.mxu0 0.0
    %589 = vmatprep.subr.mxu0 0.0
    %590 = vmatpush1.msra.mxu0 0.0
    %591 = vmatprep.subr.mxu0 0.0
    %592 = vmatpush1.msra.mxu0 0.0
    %593 = vmatprep.mubr.f32.mxu0 0.0
    %594 = vmatmul.mubr.f32.gmra.mrb[0].mxu0 %v524
    %v595 = vpop.f32.mrb[0].mxu0
    %v596 = vadd.f32 %v521, %v595
    %v597 = vpop.f32.mrb[0].mxu0
    %598 = vmatprep.mubr.f32.mxu0 0.0
    %599 = vmatmul.mubr.f32.gmra.mrb[0].mxu0 %v527
    %v600 = vpop.f32.mrb[0].mxu0
    %v601 = vadd.f32 %v521, %v600
    %v602 = vpop.f32.mrb[0].mxu0
    %603 = vdwg.mxu0
    %606 = vrot.lane.b32.xlu0 %v418, 120
    %v607 = vpop.permute.xlu0 %606
    %608 = vrot.lane.b32.xlu0 %v419, 120
    %v609 = vpop.permute.xlu0 %608
    %612 = vrot.lane.b32.xlu0 %v418, 112
    %v613 = vpop.permute.xlu0 %612
    %614 = vrot.lane.b32.xlu0 %v419, 112
    %v615 = vpop.permute.xlu0 %614
    %618 = vrot.lane.b32.xlu0 %v418, 104
    %v619 = vpop.permute.xlu0 %618
    %620 = vrot.lane.b32.xlu0 %v419, 104
    %v621 = vpop.permute.xlu0 %620
    %v624 = vcombine.low %v418, %v613
    %v625 = vcombine.high %v418, %v613
    %v627 = vunpack.c.l.s4 1983009808
    %v628 = vunpack.c.0.s8 %v627
    %v629 = vlaneseq
    %v630 = vshrl.u32 %v629, 7
    %v631 = vsub.s32 %v628, %v630
    %v632 = vrot.slane %v624, %v631
    %v634 = vunpack.c.l.s4 1983009808
    %v635 = vunpack.c.0.s8 %v634
    %v636 = vlaneseq
    %v637 = vshrl.u32 %v636, 7
    %v638 = vsub.s32 %v635, %v637
    %v639 = vrot.slane %v625, %v638
    %v640 = vcombine.low %v607, %v619
    %v641 = vcombine.high %v607, %v619
    %v643 = vunpack.c.l.s4 1983009808
    %v644 = vunpack.c.0.s8 %v643
    %v645 = vlaneseq
    %v646 = vshrl.u32 %v645, 7
    %v647 = vsub.s32 %v644, %v646
    %v648 = vrot.slane %v640, %v647
    %v650 = vunpack.c.l.s4 1983009808
    %v651 = vunpack.c.0.s8 %v650
    %v652 = vlaneseq
    %v653 = vshrl.u32 %v652, 7
    %v654 = vsub.s32 %v651, %v653
    %v655 = vrot.slane %v641, %v654
    %v656 = vcombine.low %v632, %v648
    %v657 = vcombine.high %v632, %v648
    %v659 = vunpack.c.l.s4 1934713408
    %v660 = vunpack.c.0.s8 %v659
    %v661 = vlaneseq
    %v662 = vshrl.u32 %v661, 7
    %v663 = vsub.s32 %v660, %v662
    %v664 = vrot.slane %v656, %v663
    %v666 = vunpack.c.l.s4 1934713408
    %v667 = vunpack.c.0.s8 %v666
    %v668 = vlaneseq
    %v669 = vshrl.u32 %v668, 7
    %v670 = vsub.s32 %v667, %v669
    %v671 = vrot.slane %v657, %v670
    %v672 = vcombine.low %v639, %v655
    %v673 = vcombine.high %v639, %v655
    %v675 = vunpack.c.l.s4 1934713408
    %v676 = vunpack.c.0.s8 %v675
    %v677 = vlaneseq
    %v678 = vshrl.u32 %v677, 7
    %v679 = vsub.s32 %v676, %v678
    %v680 = vrot.slane %v672, %v679
    %v682 = vunpack.c.l.s4 1934713408
    %v683 = vunpack.c.0.s8 %v682
    %v684 = vlaneseq
    %v685 = vshrl.u32 %v684, 7
    %v686 = vsub.s32 %v683, %v685
    %v687 = vrot.slane %v673, %v686
    %v688 = vcombine.high %v664, 0.0
    %v689 = vcombine.high %v671, 0.0
    %v690 = vcombine.high %v680, 0.0
    %v691 = vcombine.high %v687, 0.0
    %v692 = vcombine.low %v419, %v615
    %v693 = vcombine.high %v419, %v615
    %v695 = vunpack.c.l.s4 1983009808
    %v696 = vunpack.c.0.s8 %v695
    %v697 = vlaneseq
    %v698 = vshrl.u32 %v697, 7
    %v699 = vsub.s32 %v696, %v698
    %v700 = vrot.slane %v692, %v699
    %v702 = vunpack.c.l.s4 1983009808
    %v703 = vunpack.c.0.s8 %v702
    %v704 = vlaneseq
    %v705 = vshrl.u32 %v704, 7
    %v706 = vsub.s32 %v703, %v705
    %v707 = vrot.slane %v693, %v706
    %v708 = vcombine.low %v609, %v621
    %v709 = vcombine.high %v609, %v621
    %v711 = vunpack.c.l.s4 1983009808
    %v712 = vunpack.c.0.s8 %v711
    %v713 = vlaneseq
    %v714 = vshrl.u32 %v713, 7
    %v715 = vsub.s32 %v712, %v714
    %v716 = vrot.slane %v708, %v715
    %v718 = vunpack.c.l.s4 1983009808
    %v719 = vunpack.c.0.s8 %v718
    %v720 = vlaneseq
    %v721 = vshrl.u32 %v720, 7
    %v722 = vsub.s32 %v719, %v721
    %v723 = vrot.slane %v709, %v722
    %v724 = vcombine.low %v700, %v716
    %v725 = vcombine.high %v700, %v716
    %v727 = vunpack.c.l.s4 1934713408
    %v728 = vunpack.c.0.s8 %v727
    %v729 = vlaneseq
    %v730 = vshrl.u32 %v729, 7
    %v731 = vsub.s32 %v728, %v730
    %v732 = vrot.slane %v724, %v731
    %v734 = vunpack.c.l.s4 1934713408
    %v735 = vunpack.c.0.s8 %v734
    %v736 = vlaneseq
    %v737 = vshrl.u32 %v736, 7
    %v738 = vsub.s32 %v735, %v737
    %v739 = vrot.slane %v725, %v738
    %v740 = vcombine.low %v707, %v723
    %v741 = vcombine.high %v707, %v723
    %v743 = vunpack.c.l.s4 1934713408
    %v744 = vunpack.c.0.s8 %v743
    %v745 = vlaneseq
    %v746 = vshrl.u32 %v745, 7
    %v747 = vsub.s32 %v744, %v746
    %v748 = vrot.slane %v740, %v747
    %v750 = vunpack.c.l.s4 1934713408
    %v751 = vunpack.c.0.s8 %v750
    %v752 = vlaneseq
    %v753 = vshrl.u32 %v752, 7
    %v754 = vsub.s32 %v751, %v753
    %v755 = vrot.slane %v741, %v754
    %v756 = vcombine.high %v732, 0.0
    %v757 = vcombine.high %v739, 0.0
    %v758 = vcombine.high %v748, 0.0
    %v759 = vcombine.high %v755, 0.0
    %v760 = vcombine.low %v664, %v671
    %v762 = vunpack.c.l.s4 1983009808
    %v763 = vunpack.c.0.s8 %v762
    %v764 = vlaneseq
    %v765 = vshrl.u32 %v764, 7
    %v766 = vsub.s32 %v763, %v765
    %v767 = vrot.slane %v760, %v766
    %v768 = vcombine.low %v688, %v689
    %v770 = vunpack.c.l.s4 1983009808
    %v771 = vunpack.c.0.s8 %v770
    %v772 = vlaneseq
    %v773 = vshrl.u32 %v772, 7
    %v774 = vsub.s32 %v771, %v773
    %v775 = vrot.slane %v768, %v774
    %v776 = vcombine.low %v680, %v687
    %v778 = vunpack.c.l.s4 1983009808
    %v779 = vunpack.c.0.s8 %v778
    %v780 = vlaneseq
    %v781 = vshrl.u32 %v780, 7
    %v782 = vsub.s32 %v779, %v781
    %v783 = vrot.slane %v776, %v782
    %v784 = vcombine.low %v690, %v691
    %v786 = vunpack.c.l.s4 1983009808
    %v787 = vunpack.c.0.s8 %v786
    %v788 = vlaneseq
    %v789 = vshrl.u32 %v788, 7
    %v790 = vsub.s32 %v787, %v789
    %v791 = vrot.slane %v784, %v790
    %v792 = vcombine.low %v767, %v775
    %v793 = vcombine.high %v767, %v775
    %v795 = vunpack.c.l.s4 1934713408
    %v796 = vunpack.c.0.s8 %v795
    %v797 = vlaneseq
    %v798 = vshrl.u32 %v797, 7
    %v799 = vsub.s32 %v796, %v798
    %v800 = vrot.slane %v792, %v799
    %v802 = vunpack.c.l.s4 1934713408
    %v803 = vunpack.c.0.s8 %v802
    %v804 = vlaneseq
    %v805 = vshrl.u32 %v804, 7
    %v806 = vsub.s32 %v803, %v805
    %v807 = vrot.slane %v793, %v806
    %v808 = vcombine.low %v783, %v791
    %v809 = vcombine.high %v783, %v791
    %v811 = vunpack.c.l.s4 1934713408
    %v812 = vunpack.c.0.s8 %v811
    %v813 = vlaneseq
    %v814 = vshrl.u32 %v813, 7
    %v815 = vsub.s32 %v812, %v814
    %v816 = vrot.slane %v808, %v815
    %v818 = vunpack.c.l.s4 1934713408
    %v819 = vunpack.c.0.s8 %v818
    %v820 = vlaneseq
    %v821 = vshrl.u32 %v820, 7
    %v822 = vsub.s32 %v819, %v821
    %v823 = vrot.slane %v809, %v822
    %v824 = vcombine.low %v800, %v816
    %v825 = vcombine.high %v800, %v816
    %v826 = vcombine.low %v807, %v823
    %v827 = vcombine.high %v807, %v823
    %v828 = vcombine.low %v732, %v739
    %v830 = vunpack.c.l.s4 1983009808
    %v831 = vunpack.c.0.s8 %v830
    %v832 = vlaneseq
    %v833 = vshrl.u32 %v832, 7
    %v834 = vsub.s32 %v831, %v833
    %v835 = vrot.slane %v828, %v834
    %v836 = vcombine.low %v756, %v757
    %v838 = vunpack.c.l.s4 1983009808
    %v839 = vunpack.c.0.s8 %v838
    %v840 = vlaneseq
    %v841 = vshrl.u32 %v840, 7
    %v842 = vsub.s32 %v839, %v841
    %v843 = vrot.slane %v836, %v842
    %v844 = vcombine.low %v748, %v755
    %v846 = vunpack.c.l.s4 1983009808
    %v847 = vunpack.c.0.s8 %v846
    %v848 = vlaneseq
    %v849 = vshrl.u32 %v848, 7
    %v850 = vsub.s32 %v847, %v849
    %v851 = vrot.slane %v844, %v850
    %v852 = vcombine.low %v758, %v759
    %v854 = vunpack.c.l.s4 1983009808
    %v855 = vunpack.c.0.s8 %v854
    %v856 = vlaneseq
    %v857 = vshrl.u32 %v856, 7
    %v858 = vsub.s32 %v855, %v857
    %v859 = vrot.slane %v852, %v858
    %v860 = vcombine.low %v835, %v843
    %v861 = vcombine.high %v835, %v843
    %v863 = vunpack.c.l.s4 1934713408
    %v864 = vunpack.c.0.s8 %v863
    %v865 = vlaneseq
    %v866 = vshrl.u32 %v865, 7
    %v867 = vsub.s32 %v864, %v866
    %v868 = vrot.slane %v860, %v867
    %v870 = vunpack.c.l.s4 1934713408
    %v871 = vunpack.c.0.s8 %v870
    %v872 = vlaneseq
    %v873 = vshrl.u32 %v872, 7
    %v874 = vsub.s32 %v871, %v873
    %v875 = vrot.slane %v861, %v874
    %v876 = vcombine.low %v851, %v859
    %v877 = vcombine.high %v851, %v859
    %v879 = vunpack.c.l.s4 1934713408
    %v880 = vunpack.c.0.s8 %v879
    %v881 = vlaneseq
    %v882 = vshrl.u32 %v881, 7
    %v883 = vsub.s32 %v880, %v882
    %v884 = vrot.slane %v876, %v883
    %v886 = vunpack.c.l.s4 1934713408
    %v887 = vunpack.c.0.s8 %v886
    %v888 = vlaneseq
    %v889 = vshrl.u32 %v888, 7
    %v890 = vsub.s32 %v887, %v889
    %v891 = vrot.slane %v877, %v890
    %v892 = vcombine.low %v868, %v884
    %v893 = vcombine.high %v868, %v884
    %v894 = vcombine.low %v875, %v891
    %v895 = vcombine.high %v875, %v891
    %898 = vrot.lane.b32.xlu0 %v504, 120
    %v899 = vpop.permute.xlu0 %898
    %900 = vrot.lane.b32.xlu0 %v509, 120
    %v901 = vpop.permute.xlu0 %900
    %904 = vrot.lane.b32.xlu0 %v504, 112
    %v905 = vpop.permute.xlu0 %904
    %906 = vrot.lane.b32.xlu0 %v509, 112
    %v907 = vpop.permute.xlu0 %906
    %910 = vrot.lane.b32.xlu0 %v504, 104
    %v911 = vpop.permute.xlu0 %910
    %912 = vrot.lane.b32.xlu0 %v509, 104
    %v913 = vpop.permute.xlu0 %912
    %v916 = vcombine.low %v504, %v905
    %v917 = vcombine.high %v504, %v905
    %v919 = vunpack.c.l.s4 1983009808
    %v920 = vunpack.c.0.s8 %v919
    %v921 = vlaneseq
    %v922 = vshrl.u32 %v921, 7
    %v923 = vsub.s32 %v920, %v922
    %v924 = vrot.slane %v916, %v923
    %v926 = vunpack.c.l.s4 1983009808
    %v927 = vunpack.c.0.s8 %v926
    %v928 = vlaneseq
    %v929 = vshrl.u32 %v928, 7
    %v930 = vsub.s32 %v927, %v929
    %v931 = vrot.slane %v917, %v930
    %v932 = vcombine.low %v899, %v911
    %v933 = vcombine.high %v899, %v911
    %v935 = vunpack.c.l.s4 1983009808
    %v936 = vunpack.c.0.s8 %v935
    %v937 = vlaneseq
    %v938 = vshrl.u32 %v937, 7
    %v939 = vsub.s32 %v936, %v938
    %v940 = vrot.slane %v932, %v939
    %v942 = vunpack.c.l.s4 1983009808
    %v943 = vunpack.c.0.s8 %v942
    %v944 = vlaneseq
    %v945 = vshrl.u32 %v944, 7
    %v946 = vsub.s32 %v943, %v945
    %v947 = vrot.slane %v933, %v946
    %v948 = vcombine.low %v924, %v940
    %v949 = vcombine.high %v924, %v940
    %v951 = vunpack.c.l.s4 1934713408
    %v952 = vunpack.c.0.s8 %v951
    %v953 = vlaneseq
    %v954 = vshrl.u32 %v953, 7
    %v955 = vsub.s32 %v952, %v954
    %v956 = vrot.slane %v948, %v955
    %v958 = vunpack.c.l.s4 1934713408
    %v959 = vunpack.c.0.s8 %v958
    %v960 = vlaneseq
    %v961 = vshrl.u32 %v960, 7
    %v962 = vsub.s32 %v959, %v961
    %v963 = vrot.slane %v949, %v962
    %v964 = vcombine.low %v931, %v947
    %v965 = vcombine.high %v931, %v947
    %v967 = vunpack.c.l.s4 1934713408
    %v968 = vunpack.c.0.s8 %v967
    %v969 = vlaneseq
    %v970 = vshrl.u32 %v969, 7
    %v971 = vsub.s32 %v968, %v970
    %v972 = vrot.slane %v964, %v971
    %v974 = vunpack.c.l.s4 1934713408
    %v975 = vunpack.c.0.s8 %v974
    %v976 = vlaneseq
    %v977 = vshrl.u32 %v976, 7
    %v978 = vsub.s32 %v975, %v977
    %v979 = vrot.slane %v965, %v978
    %v980 = vcombine.high %v956, 0.0
    %v981 = vcombine.high %v963, 0.0
    %v982 = vcombine.high %v972, 0.0
    %v983 = vcombine.high %v979, 0.0
    %v984 = vcombine.low %v509, %v907
    %v985 = vcombine.high %v509, %v907
    %v987 = vunpack.c.l.s4 1983009808
    %v988 = vunpack.c.0.s8 %v987
    %v989 = vlaneseq
    %v990 = vshrl.u32 %v989, 7
    %v991 = vsub.s32 %v988, %v990
    %v992 = vrot.slane %v984, %v991
    %v994 = vunpack.c.l.s4 1983009808
    %v995 = vunpack.c.0.s8 %v994
    %v996 = vlaneseq
    %v997 = vshrl.u32 %v996, 7
    %v998 = vsub.s32 %v995, %v997
    %v999 = vrot.slane %v985, %v998
    %v1000 = vcombine.low %v901, %v913
    %v1001 = vcombine.high %v901, %v913
    %v1003 = vunpack.c.l.s4 1983009808
    %v1004 = vunpack.c.0.s8 %v1003
    %v1005 = vlaneseq
    %v1006 = vshrl.u32 %v1005, 7
    %v1007 = vsub.s32 %v1004, %v1006
    %v1008 = vrot.slane %v1000, %v1007
    %v1010 = vunpack.c.l.s4 1983009808
    %v1011 = vunpack.c.0.s8 %v1010
    %v1012 = vlaneseq
    %v1013 = vshrl.u32 %v1012, 7
    %v1014 = vsub.s32 %v1011, %v1013
    %v1015 = vrot.slane %v1001, %v1014
    %v1016 = vcombine.low %v992, %v1008
    %v1017 = vcombine.high %v992, %v1008
    %v1019 = vunpack.c.l.s4 1934713408
    %v1020 = vunpack.c.0.s8 %v1019
    %v1021 = vlaneseq
    %v1022 = vshrl.u32 %v1021, 7
    %v1023 = vsub.s32 %v1020, %v1022
    %v1024 = vrot.slane %v1016, %v1023
    %v1026 = vunpack.c.l.s4 1934713408
    %v1027 = vunpack.c.0.s8 %v1026
    %v1028 = vlaneseq
    %v1029 = vshrl.u32 %v1028, 7
    %v1030 = vsub.s32 %v1027, %v1029
    %v1031 = vrot.slane %v1017, %v1030
    %v1032 = vcombine.low %v999, %v1015
    %v1033 = vcombine.high %v999, %v1015
    %v1035 = vunpack.c.l.s4 1934713408
    %v1036 = vunpack.c.0.s8 %v1035
    %v1037 = vlaneseq
    %v1038 = vshrl.u32 %v1037, 7
    %v1039 = vsub.s32 %v1036, %v1038
    %v1040 = vrot.slane %v1032, %v1039
    %v1042 = vunpack.c.l.s4 1934713408
    %v1043 = vunpack.c.0.s8 %v1042
    %v1044 = vlaneseq
    %v1045 = vshrl.u32 %v1044, 7
    %v1046 = vsub.s32 %v1043, %v1045
    %v1047 = vrot.slane %v1033, %v1046
    %v1048 = vcombine.high %v1024, 0.0
    %v1049 = vcombine.high %v1031, 0.0
    %v1050 = vcombine.high %v1040, 0.0
    %v1051 = vcombine.high %v1047, 0.0
    %v1052 = vcombine.low %v956, %v963
    %v1054 = vunpack.c.l.s4 1983009808
    %v1055 = vunpack.c.0.s8 %v1054
    %v1056 = vlaneseq
    %v1057 = vshrl.u32 %v1056, 7
    %v1058 = vsub.s32 %v1055, %v1057
    %v1059 = vrot.slane %v1052, %v1058
    %v1060 = vcombine.low %v980, %v981
    %v1062 = vunpack.c.l.s4 1983009808
    %v1063 = vunpack.c.0.s8 %v1062
    %v1064 = vlaneseq
    %v1065 = vshrl.u32 %v1064, 7
    %v1066 = vsub.s32 %v1063, %v1065
    %v1067 = vrot.slane %v1060, %v1066
    %v1068 = vcombine.low %v972, %v979
    %v1070 = vunpack.c.l.s4 1983009808
    %v1071 = vunpack.c.0.s8 %v1070
    %v1072 = vlaneseq
    %v1073 = vshrl.u32 %v1072, 7
    %v1074 = vsub.s32 %v1071, %v1073
    %v1075 = vrot.slane %v1068, %v1074
    %v1076 = vcombine.low %v982, %v983
    %v1078 = vunpack.c.l.s4 1983009808
    %v1079 = vunpack.c.0.s8 %v1078
    %v1080 = vlaneseq
    %v1081 = vshrl.u32 %v1080, 7
    %v1082 = vsub.s32 %v1079, %v1081
    %v1083 = vrot.slane %v1076, %v1082
    %v1084 = vcombine.low %v1059, %v1067
    %v1085 = vcombine.high %v1059, %v1067
    %v1087 = vunpack.c.l.s4 1934713408
    %v1088 = vunpack.c.0.s8 %v1087
    %v1089 = vlaneseq
    %v1090 = vshrl.u32 %v1089, 7
    %v1091 = vsub.s32 %v1088, %v1090
    %v1092 = vrot.slane %v1084, %v1091
    %v1094 = vunpack.c.l.s4 1934713408
    %v1095 = vunpack.c.0.s8 %v1094
    %v1096 = vlaneseq
    %v1097 = vshrl.u32 %v1096, 7
    %v1098 = vsub.s32 %v1095, %v1097
    %v1099 = vrot.slane %v1085, %v1098
    %v1100 = vcombine.low %v1075, %v1083
    %v1101 = vcombine.high %v1075, %v1083
    %v1103 = vunpack.c.l.s4 1934713408
    %v1104 = vunpack.c.0.s8 %v1103
    %v1105 = vlaneseq
    %v1106 = vshrl.u32 %v1105, 7
    %v1107 = vsub.s32 %v1104, %v1106
    %v1108 = vrot.slane %v1100, %v1107
    %v1110 = vunpack.c.l.s4 1934713408
    %v1111 = vunpack.c.0.s8 %v1110
    %v1112 = vlaneseq
    %v1113 = vshrl.u32 %v1112, 7
    %v1114 = vsub.s32 %v1111, %v1113
    %v1115 = vrot.slane %v1101, %v1114
    %v1116 = vcombine.low %v1092, %v1108
    %v1117 = vcombine.high %v1092, %v1108
    %v1118 = vcombine.low %v1099, %v1115
    %v1119 = vcombine.high %v1099, %v1115
    %v1120 = vcombine.low %v1024, %v1031
    %v1122 = vunpack.c.l.s4 1983009808
    %v1123 = vunpack.c.0.s8 %v1122
    %v1124 = vlaneseq
    %v1125 = vshrl.u32 %v1124, 7
    %v1126 = vsub.s32 %v1123, %v1125
    %v1127 = vrot.slane %v1120, %v1126
    %v1128 = vcombine.low %v1048, %v1049
    %v1130 = vunpack.c.l.s4 1983009808
    %v1131 = vunpack.c.0.s8 %v1130
    %v1132 = vlaneseq
    %v1133 = vshrl.u32 %v1132, 7
    %v1134 = vsub.s32 %v1131, %v1133
    %v1135 = vrot.slane %v1128, %v1134
    %v1136 = vcombine.low %v1040, %v1047
    %v1138 = vunpack.c.l.s4 1983009808
    %v1139 = vunpack.c.0.s8 %v1138
    %v1140 = vlaneseq
    %v1141 = vshrl.u32 %v1140, 7
    %v1142 = vsub.s32 %v1139, %v1141
    %v1143 = vrot.slane %v1136, %v1142
    %v1144 = vcombine.low %v1050, %v1051
    %v1146 = vunpack.c.l.s4 1983009808
    %v1147 = vunpack.c.0.s8 %v1146
    %v1148 = vlaneseq
    %v1149 = vshrl.u32 %v1148, 7
    %v1150 = vsub.s32 %v1147, %v1149
    %v1151 = vrot.slane %v1144, %v1150
    %v1152 = vcombine.low %v1127, %v1135
    %v1153 = vcombine.high %v1127, %v1135
    %v1155 = vunpack.c.l.s4 1934713408
    %v1156 = vunpack.c.0.s8 %v1155
    %v1157 = vlaneseq
    %v1158 = vshrl.u32 %v1157, 7
    %v1159 = vsub.s32 %v1156, %v1158
    %v1160 = vrot.slane %v1152, %v1159
    %v1162 = vunpack.c.l.s4 1934713408
    %v1163 = vunpack.c.0.s8 %v1162
    %v1164 = vlaneseq
    %v1165 = vshrl.u32 %v1164, 7
    %v1166 = vsub.s32 %v1163, %v1165
    %v1167 = vrot.slane %v1153, %v1166
    %v1168 = vcombine.low %v1143, %v1151
    %v1169 = vcombine.high %v1143, %v1151
    %v1171 = vunpack.c.l.s4 1934713408
    %v1172 = vunpack.c.0.s8 %v1171
    %v1173 = vlaneseq
    %v1174 = vshrl.u32 %v1173, 7
    %v1175 = vsub.s32 %v1172, %v1174
    %v1176 = vrot.slane %v1168, %v1175
    %v1178 = vunpack.c.l.s4 1934713408
    %v1179 = vunpack.c.0.s8 %v1178
    %v1180 = vlaneseq
    %v1181 = vshrl.u32 %v1180, 7
    %v1182 = vsub.s32 %v1179, %v1181
    %v1183 = vrot.slane %v1169, %v1182
    %v1184 = vcombine.low %v1160, %v1176
    %v1185 = vcombine.high %v1160, %v1176
    %v1186 = vcombine.low %v1167, %v1183
    %v1187 = vcombine.high %v1167, %v1183
    %1190 = vrot.lane.b32.xlu0 %v596, 120
    %v1191 = vpop.permute.xlu0 %1190
    %1192 = vrot.lane.b32.xlu0 %v601, 120
    %v1193 = vpop.permute.xlu0 %1192
    %1196 = vrot.lane.b32.xlu0 %v596, 112
    %v1197 = vpop.permute.xlu0 %1196
    %1198 = vrot.lane.b32.xlu0 %v601, 112
    %v1199 = vpop.permute.xlu0 %1198
    %1202 = vrot.lane.b32.xlu0 %v596, 104
    %v1203 = vpop.permute.xlu0 %1202
    %1204 = vrot.lane.b32.xlu0 %v601, 104
    %v1205 = vpop.permute.xlu0 %1204
    %v1208 = vcombine.low %v596, %v1197
    %v1209 = vcombine.high %v596, %v1197
    %v1211 = vunpack.c.l.s4 1983009808
    %v1212 = vunpack.c.0.s8 %v1211
    %v1213 = vlaneseq
    %v1214 = vshrl.u32 %v1213, 7
    %v1215 = vsub.s32 %v1212, %v1214
    %v1216 = vrot.slane %v1208, %v1215
    %v1218 = vunpack.c.l.s4 1983009808
    %v1219 = vunpack.c.0.s8 %v1218
    %v1220 = vlaneseq
    %v1221 = vshrl.u32 %v1220, 7
    %v1222 = vsub.s32 %v1219, %v1221
    %v1223 = vrot.slane %v1209, %v1222
    %v1224 = vcombine.low %v1191, %v1203
    %v1225 = vcombine.high %v1191, %v1203
    %v1227 = vunpack.c.l.s4 1983009808
    %v1228 = vunpack.c.0.s8 %v1227
    %v1229 = vlaneseq
    %v1230 = vshrl.u32 %v1229, 7
    %v1231 = vsub.s32 %v1228, %v1230
    %v1232 = vrot.slane %v1224, %v1231
    %v1234 = vunpack.c.l.s4 1983009808
    %v1235 = vunpack.c.0.s8 %v1234
    %v1236 = vlaneseq
    %v1237 = vshrl.u32 %v1236, 7
    %v1238 = vsub.s32 %v1235, %v1237
    %v1239 = vrot.slane %v1225, %v1238
    %v1240 = vcombine.low %v1216, %v1232
    %v1241 = vcombine.high %v1216, %v1232
    %v1243 = vunpack.c.l.s4 1934713408
    %v1244 = vunpack.c.0.s8 %v1243
    %v1245 = vlaneseq
    %v1246 = vshrl.u32 %v1245, 7
    %v1247 = vsub.s32 %v1244, %v1246
    %v1248 = vrot.slane %v1240, %v1247
    %v1250 = vunpack.c.l.s4 1934713408
    %v1251 = vunpack.c.0.s8 %v1250
    %v1252 = vlaneseq
    %v1253 = vshrl.u32 %v1252, 7
    %v1254 = vsub.s32 %v1251, %v1253
    %v1255 = vrot.slane %v1241, %v1254
    %v1256 = vcombine.low %v1223, %v1239
    %v1257 = vcombine.high %v1223, %v1239
    %v1259 = vunpack.c.l.s4 1934713408
    %v1260 = vunpack.c.0.s8 %v1259
    %v1261 = vlaneseq
    %v1262 = vshrl.u32 %v1261, 7
    %v1263 = vsub.s32 %v1260, %v1262
    %v1264 = vrot.slane %v1256, %v1263
    %v1266 = vunpack.c.l.s4 1934713408
    %v1267 = vunpack.c.0.s8 %v1266
    %v1268 = vlaneseq
    %v1269 = vshrl.u32 %v1268, 7
    %v1270 = vsub.s32 %v1267, %v1269
    %v1271 = vrot.slane %v1257, %v1270
    %v1272 = vcombine.high %v1248, 0.0
    %v1273 = vcombine.high %v1255, 0.0
    %v1274 = vcombine.high %v1264, 0.0
    %v1275 = vcombine.high %v1271, 0.0
    %v1276 = vcombine.low %v601, %v1199
    %v1277 = vcombine.high %v601, %v1199
    %v1279 = vunpack.c.l.s4 1983009808
    %v1280 = vunpack.c.0.s8 %v1279
    %v1281 = vlaneseq
    %v1282 = vshrl.u32 %v1281, 7
    %v1283 = vsub.s32 %v1280, %v1282
    %v1284 = vrot.slane %v1276, %v1283
    %v1286 = vunpack.c.l.s4 1983009808
    %v1287 = vunpack.c.0.s8 %v1286
    %v1288 = vlaneseq
    %v1289 = vshrl.u32 %v1288, 7
    %v1290 = vsub.s32 %v1287, %v1289
    %v1291 = vrot.slane %v1277, %v1290
    %v1292 = vcombine.low %v1193, %v1205
    %v1293 = vcombine.high %v1193, %v1205
    %v1295 = vunpack.c.l.s4 1983009808
    %v1296 = vunpack.c.0.s8 %v1295
    %v1297 = vlaneseq
    %v1298 = vshrl.u32 %v1297, 7
    %v1299 = vsub.s32 %v1296, %v1298
    %v1300 = vrot.slane %v1292, %v1299
    %v1302 = vunpack.c.l.s4 1983009808
    %v1303 = vunpack.c.0.s8 %v1302
    %v1304 = vlaneseq
    %v1305 = vshrl.u32 %v1304, 7
    %v1306 = vsub.s32 %v1303, %v1305
    %v1307 = vrot.slane %v1293, %v1306
    %v1308 = vcombine.low %v1284, %v1300
    %v1309 = vcombine.high %v1284, %v1300
    %v1311 = vunpack.c.l.s4 1934713408
    %v1312 = vunpack.c.0.s8 %v1311
    %v1313 = vlaneseq
    %v1314 = vshrl.u32 %v1313, 7
    %v1315 = vsub.s32 %v1312, %v1314
    %v1316 = vrot.slane %v1308, %v1315
    %v1318 = vunpack.c.l.s4 1934713408
    %v1319 = vunpack.c.0.s8 %v1318
    %v1320 = vlaneseq
    %v1321 = vshrl.u32 %v1320, 7
    %v1322 = vsub.s32 %v1319, %v1321
    %v1323 = vrot.slane %v1309, %v1322
    %v1324 = vcombine.low %v1291, %v1307
    %v1325 = vcombine.high %v1291, %v1307
    %v1327 = vunpack.c.l.s4 1934713408
    %v1328 = vunpack.c.0.s8 %v1327
    %v1329 = vlaneseq
    %v1330 = vshrl.u32 %v1329, 7
    %v1331 = vsub.s32 %v1328, %v1330
    %v1332 = vrot.slane %v1324, %v1331
    %v1334 = vunpack.c.l.s4 1934713408
    %v1335 = vunpack.c.0.s8 %v1334
    %v1336 = vlaneseq
    %v1337 = vshrl.u32 %v1336, 7
    %v1338 = vsub.s32 %v1335, %v1337
    %v1339 = vrot.slane %v1325, %v1338
    %v1340 = vcombine.high %v1316, 0.0
    %v1341 = vcombine.high %v1323, 0.0
    %v1342 = vcombine.high %v1332, 0.0
    %v1343 = vcombine.high %v1339, 0.0
    %v1344 = vcombine.low %v1248, %v1255
    %v1346 = vunpack.c.l.s4 1983009808
    %v1347 = vunpack.c.0.s8 %v1346
    %v1348 = vlaneseq
    %v1349 = vshrl.u32 %v1348, 7
    %v1350 = vsub.s32 %v1347, %v1349
    %v1351 = vrot.slane %v1344, %v1350
    %v1352 = vcombine.low %v1272, %v1273
    %v1354 = vunpack.c.l.s4 1983009808
    %v1355 = vunpack.c.0.s8 %v1354
    %v1356 = vlaneseq
    %v1357 = vshrl.u32 %v1356, 7
    %v1358 = vsub.s32 %v1355, %v1357
    %v1359 = vrot.slane %v1352, %v1358
    %v1360 = vcombine.low %v1264, %v1271
    %v1362 = vunpack.c.l.s4 1983009808
    %v1363 = vunpack.c.0.s8 %v1362
    %v1364 = vlaneseq
    %v1365 = vshrl.u32 %v1364, 7
    %v1366 = vsub.s32 %v1363, %v1365
    %v1367 = vrot.slane %v1360, %v1366
    %v1368 = vcombine.low %v1274, %v1275
    %v1370 = vunpack.c.l.s4 1983009808
    %v1371 = vunpack.c.0.s8 %v1370
    %v1372 = vlaneseq
    %v1373 = vshrl.u32 %v1372, 7
    %v1374 = vsub.s32 %v1371, %v1373
    %v1375 = vrot.slane %v1368, %v1374
    %v1376 = vcombine.low %v1351, %v1359
    %v1377 = vcombine.high %v1351, %v1359
    %v1379 = vunpack.c.l.s4 1934713408
    %v1380 = vunpack.c.0.s8 %v1379
    %v1381 = vlaneseq
    %v1382 = vshrl.u32 %v1381, 7
    %v1383 = vsub.s32 %v1380, %v1382
    %v1384 = vrot.slane %v1376, %v1383
    %v1386 = vunpack.c.l.s4 1934713408
    %v1387 = vunpack.c.0.s8 %v1386
    %v1388 = vlaneseq
    %v1389 = vshrl.u32 %v1388, 7
    %v1390 = vsub.s32 %v1387, %v1389
    %v1391 = vrot.slane %v1377, %v1390
    %v1392 = vcombine.low %v1367, %v1375
    %v1393 = vcombine.high %v1367, %v1375
    %v1395 = vunpack.c.l.s4 1934713408
    %v1396 = vunpack.c.0.s8 %v1395
    %v1397 = vlaneseq
    %v1398 = vshrl.u32 %v1397, 7
    %v1399 = vsub.s32 %v1396, %v1398
    %v1400 = vrot.slane %v1392, %v1399
    %v1402 = vunpack.c.l.s4 1934713408
    %v1403 = vunpack.c.0.s8 %v1402
    %v1404 = vlaneseq
    %v1405 = vshrl.u32 %v1404, 7
    %v1406 = vsub.s32 %v1403, %v1405
    %v1407 = vrot.slane %v1393, %v1406
    %v1408 = vcombine.low %v1384, %v1400
    %v1409 = vcombine.high %v1384, %v1400
    %v1410 = vcombine.low %v1391, %v1407
    %v1411 = vcombine.high %v1391, %v1407
    %v1412 = vcombine.low %v1316, %v1323
    %v1414 = vunpack.c.l.s4 1983009808
    %v1415 = vunpack.c.0.s8 %v1414
    %v1416 = vlaneseq
    %v1417 = vshrl.u32 %v1416, 7
    %v1418 = vsub.s32 %v1415, %v1417
    %v1419 = vrot.slane %v1412, %v1418
    %v1420 = vcombine.low %v1340, %v1341
    %v1422 = vunpack.c.l.s4 1983009808
    %v1423 = vunpack.c.0.s8 %v1422
    %v1424 = vlaneseq
    %v1425 = vshrl.u32 %v1424, 7
    %v1426 = vsub.s32 %v1423, %v1425
    %v1427 = vrot.slane %v1420, %v1426
    %v1428 = vcombine.low %v1332, %v1339
    %v1430 = vunpack.c.l.s4 1983009808
    %v1431 = vunpack.c.0.s8 %v1430
    %v1432 = vlaneseq
    %v1433 = vshrl.u32 %v1432, 7
    %v1434 = vsub.s32 %v1431, %v1433
    %v1435 = vrot.slane %v1428, %v1434
    %v1436 = vcombine.low %v1342, %v1343
    %v1438 = vunpack.c.l.s4 1983009808
    %v1439 = vunpack.c.0.s8 %v1438
    %v1440 = vlaneseq
    %v1441 = vshrl.u32 %v1440, 7
    %v1442 = vsub.s32 %v1439, %v1441
    %v1443 = vrot.slane %v1436, %v1442
    %v1444 = vcombine.low %v1419, %v1427
    %v1445 = vcombine.high %v1419, %v1427
    %v1447 = vunpack.c.l.s4 1934713408
    %v1448 = vunpack.c.0.s8 %v1447
    %v1449 = vlaneseq
    %v1450 = vshrl.u32 %v1449, 7
    %v1451 = vsub.s32 %v1448, %v1450
    %v1452 = vrot.slane %v1444, %v1451
    %v1454 = vunpack.c.l.s4 1934713408
    %v1455 = vunpack.c.0.s8 %v1454
    %v1456 = vlaneseq
    %v1457 = vshrl.u32 %v1456, 7
    %v1458 = vsub.s32 %v1455, %v1457
    %v1459 = vrot.slane %v1445, %v1458
    %v1460 = vcombine.low %v1435, %v1443
    %v1461 = vcombine.high %v1435, %v1443
    %v1463 = vunpack.c.l.s4 1934713408
    %v1464 = vunpack.c.0.s8 %v1463
    %v1465 = vlaneseq
    %v1466 = vshrl.u32 %v1465, 7
    %v1467 = vsub.s32 %v1464, %v1466
    %v1468 = vrot.slane %v1460, %v1467
    %v1470 = vunpack.c.l.s4 1934713408
    %v1471 = vunpack.c.0.s8 %v1470
    %v1472 = vlaneseq
    %v1473 = vshrl.u32 %v1472, 7
    %v1474 = vsub.s32 %v1471, %v1473
    %v1475 = vrot.slane %v1461, %v1474
    %v1476 = vcombine.low %v1452, %v1468
    %v1477 = vcombine.high %v1452, %v1468
    %v1478 = vcombine.low %v1459, %v1475
    %v1479 = vcombine.high %v1459, %v1475
    %vm1480 = vcmask 64512
    %v1482 = vsel %vm1480, %v824, 0
    %v1485 = vsel %vm1480, %v1116, 0
    %1487 = vmatprep.subr.mxu0 0.0
    %1488 = vmatpush1.xpose.msra.mxu0 %v1485
    %1489 = vmatprep.subr.mxu0 0.0
    %1490 = vmatpush1.xpose.msra.mxu0 0.0
    %1491 = vmatprep.subr.mxu0 0.0
    %1492 = vmatpush1.xpose.msra.mxu0 0.0
    %1493 = vmatprep.subr.mxu0 0.0
    %1494 = vmatpush1.xpose.msra.mxu0 0.0
    %1495 = vmatprep.subr.mxu0 0.0
    %1496 = vmatpush1.xpose.msra.mxu0 0.0
    %1497 = vmatprep.subr.mxu0 0.0
    %1498 = vmatpush1.xpose.msra.mxu0 0.0
    %1499 = vmatprep.subr.mxu0 0.0
    %1500 = vmatpush1.xpose.msra.mxu0 0.0
    %1501 = vmatprep.subr.mxu0 0.0
    %1502 = vmatpush1.xpose.msra.mxu0 0.0
    %1503 = vmatprep.subr.mxu0 0.0
    %1504 = vmatpush1.xpose.msra.mxu0 0.0
    %1505 = vmatprep.subr.mxu0 0.0
    %1506 = vmatpush1.xpose.msra.mxu0 0.0
    %1507 = vmatprep.subr.mxu0 0.0
    %1508 = vmatpush1.xpose.msra.mxu0 0.0
    %1509 = vmatprep.subr.mxu0 0.0
    %1510 = vmatpush1.xpose.msra.mxu0 0.0
    %1511 = vmatprep.subr.mxu0 0.0
    %1512 = vmatpush1.xpose.msra.mxu0 0.0
    %1513 = vmatprep.subr.mxu0 0.0
    %1514 = vmatpush1.xpose.msra.mxu0 0.0
    %1515 = vmatprep.subr.mxu0 0.0
    %1516 = vmatpush1.xpose.msra.mxu0 0.0
    %1517 = vmatprep.subr.mxu0 0.0
    %1518 = vmatpush1.xpose.msra.mxu0 0.0
    %1519 = vmatprep.subr.mxu0 0.0
    %1520 = vmatpush1.xpose.msra.mxu0 0.0
    %1521 = vmatprep.subr.mxu0 0.0
    %1522 = vmatpush1.xpose.msra.mxu0 0.0
    %1523 = vmatprep.subr.mxu0 0.0
    %1524 = vmatpush1.xpose.msra.mxu0 0.0
    %1525 = vmatprep.subr.mxu0 0.0
    %1526 = vmatpush1.xpose.msra.mxu0 0.0
    %1527 = vmatprep.subr.mxu0 0.0
    %1528 = vmatpush1.xpose.msra.mxu0 0.0
    %1529 = vmatprep.subr.mxu0 0.0
    %1530 = vmatpush1.xpose.msra.mxu0 0.0
    %1531 = vmatprep.subr.mxu0 0.0
    %1532 = vmatpush1.xpose.msra.mxu0 0.0
    %1533 = vmatprep.subr.mxu0 0.0
    %1534 = vmatpush1.xpose.msra.mxu0 0.0
    %1535 = vmatprep.subr.mxu0 0.0
    %1536 = vmatpush1.xpose.msra.mxu0 0.0
    %1537 = vmatprep.subr.mxu0 0.0
    %1538 = vmatpush1.xpose.msra.mxu0 0.0
    %1539 = vmatprep.subr.mxu0 0.0
    %1540 = vmatpush1.xpose.msra.mxu0 0.0
    %1541 = vmatprep.subr.mxu0 0.0
    %1542 = vmatpush1.xpose.msra.mxu0 0.0
    %1543 = vmatprep.subr.mxu0 0.0
    %1544 = vmatpush1.xpose.msra.mxu0 0.0
    %1545 = vmatprep.subr.mxu0 0.0
    %1546 = vmatpush1.xpose.msra.mxu0 0.0
    %1547 = vmatprep.subr.mxu0 0.0
    %1548 = vmatpush1.xpose.msra.mxu0 0.0
    %1549 = vmatprep.subr.mxu0 0.0
    %1550 = vmatpush1.xpose.msra.mxu0 0.0
    %1551 = vmatprep.mubr.f32.mxu0 0.0
    %1552 = vmatmul.mubr.f32.gmra.mrb[0].mxu0 %v1482
    %v1553 = vpop.f32.mrb[0].mxu0
    %v1554 = vadd.f32 0.0, %v1553
    %v1555 = vpop.f32.mrb[0].mxu0
    %1556 = vdwg.mxu0
    %v1558 = vsel %vm1480, %v892, 0
    %v1561 = vsel %vm1480, %v1184, 0
    %1563 = vmatprep.subr.mxu0 0.0
    %1564 = vmatpush1.xpose.msra.mxu0 %v1561
    %1565 = vmatprep.subr.mxu0 0.0
    %1566 = vmatpush1.xpose.msra.mxu0 0.0
    %1567 = vmatprep.subr.mxu0 0.0
    %1568 = vmatpush1.xpose.msra.mxu0 0.0
    %1569 = vmatprep.subr.mxu0 0.0
    %1570 = vmatpush1.xpose.msra.mxu0 0.0
    %1571 = vmatprep.subr.mxu0 0.0
    %1572 = vmatpush1.xpose.msra.mxu0 0.0
    %1573 = vmatprep.subr.mxu0 0.0
    %1574 = vmatpush1.xpose.msra.mxu0 0.0
    %1575 = vmatprep.subr.mxu0 0.0
    %1576 = vmatpush1.xpose.msra.mxu0 0.0
    %1577 = vmatprep.subr.mxu0 0.0
    %1578 = vmatpush1.xpose.msra.mxu0 0.0
    %1579 = vmatprep.subr.mxu0 0.0
    %1580 = vmatpush1.xpose.msra.mxu0 0.0
    %1581 = vmatprep.subr.mxu0 0.0
    %1582 = vmatpush1.xpose.msra.mxu0 0.0
    %1583 = vmatprep.subr.mxu0 0.0
    %1584 = vmatpush1.xpose.msra.mxu0 0.0
    %1585 = vmatprep.subr.mxu0 0.0
    %1586 = vmatpush1.xpose.msra.mxu0 0.0
    %1587 = vmatprep.subr.mxu0 0.0
    %1588 = vmatpush1.xpose.msra.mxu0 0.0
    %1589 = vmatprep.subr.mxu0 0.0
    %1590 = vmatpush1.xpose.msra.mxu0 0.0
    %1591 = vmatprep.subr.mxu0 0.0
    %1592 = vmatpush1.xpose.msra.mxu0 0.0
    %1593 = vmatprep.subr.mxu0 0.0
    %1594 = vmatpush1.xpose.msra.mxu0 0.0
    %1595 = vmatprep.subr.mxu0 0.0
    %1596 = vmatpush1.xpose.msra.mxu0 0.0
    %1597 = vmatprep.subr.mxu0 0.0
    %1598 = vmatpush1.xpose.msra.mxu0 0.0
    %1599 = vmatprep.subr.mxu0 0.0
    %1600 = vmatpush1.xpose.msra.mxu0 0.0
    %1601 = vmatprep.subr.mxu0 0.0
    %1602 = vmatpush1.xpose.msra.mxu0 0.0
    %1603 = vmatprep.subr.mxu0 0.0
    %1604 = vmatpush1.xpose.msra.mxu0 0.0
    %1605 = vmatprep.subr.mxu0 0.0
    %1606 = vmatpush1.xpose.msra.mxu0 0.0
    %1607 = vmatprep.subr.mxu0 0.0
    %1608 = vmatpush1.xpose.msra.mxu0 0.0
    %1609 = vmatprep.subr.mxu0 0.0
    %1610 = vmatpush1.xpose.msra.mxu0 0.0
    %1611 = vmatprep.subr.mxu0 0.0
    %1612 = vmatpush1.xpose.msra.mxu0 0.0
    %1613 = vmatprep.subr.mxu0 0.0
    %1614 = vmatpush1.xpose.msra.mxu0 0.0
    %1615 = vmatprep.subr.mxu0 0.0
    %1616 = vmatpush1.xpose.msra.mxu0 0.0
    %1617 = vmatprep.subr.mxu0 0.0
    %1618 = vmatpush1.xpose.msra.mxu0 0.0
    %1619 = vmatprep.subr.mxu0 0.0
    %1620 = vmatpush1.xpose.msra.mxu0 0.0
    %1621 = vmatprep.subr.mxu0 0.0
    %1622 = vmatpush1.xpose.msra.mxu0 0.0
    %1623 = vmatprep.subr.mxu0 0.0
    %1624 = vmatpush1.xpose.msra.mxu0 0.0
    %1625 = vmatprep.subr.mxu0 0.0
    %1626 = vmatpush1.xpose.msra.mxu0 0.0
    %1627 = vmatprep.mubr.f32.mxu0 0.0
    %1628 = vmatmul.mubr.f32.gmra.mrb[0].mxu0 %v1558
    %v1629 = vpop.f32.mrb[0].mxu0
    %v1630 = vadd.f32 0.0, %v1629
    %v1631 = vpop.f32.mrb[0].mxu0
    %1632 = vdwg.mxu0
    %v1634 = vsel %vm1480, %v825, 0
    %v1637 = vsel %vm1480, %v1117, 0
    %1639 = vmatprep.subr.mxu0 0.0
    %1640 = vmatpush1.xpose.msra.mxu0 %v1637
    %1641 = vmatprep.subr.mxu0 0.0
    %1642 = vmatpush1.xpose.msra.mxu0 0.0
    %1643 = vmatprep.subr.mxu0 0.0
    %1644 = vmatpush1.xpose.msra.mxu0 0.0
    %1645 = vmatprep.subr.mxu0 0.0
    %1646 = vmatpush1.xpose.msra.mxu0 0.0
    %1647 = vmatprep.subr.mxu0 0.0
    %1648 = vmatpush1.xpose.msra.mxu0 0.0
    %1649 = vmatprep.subr.mxu0 0.0
    %1650 = vmatpush1.xpose.msra.mxu0 0.0
    %1651 = vmatprep.subr.mxu0 0.0
    %1652 = vmatpush1.xpose.msra.mxu0 0.0
    %1653 = vmatprep.subr.mxu0 0.0
    %1654 = vmatpush1.xpose.msra.mxu0 0.0
    %1655 = vmatprep.subr.mxu0 0.0
    %1656 = vmatpush1.xpose.msra.mxu0 0.0
    %1657 = vmatprep.subr.mxu0 0.0
    %1658 = vmatpush1.xpose.msra.mxu0 0.0
    %1659 = vmatprep.subr.mxu0 0.0
    %1660 = vmatpush1.xpose.msra.mxu0 0.0
    %1661 = vmatprep.subr.mxu0 0.0
    %1662 = vmatpush1.xpose.msra.mxu0 0.0
    %1663 = vmatprep.subr.mxu0 0.0
    %1664 = vmatpush1.xpose.msra.mxu0 0.0
    %1665 = vmatprep.subr.mxu0 0.0
    %1666 = vmatpush1.xpose.msra.mxu0 0.0
    %1667 = vmatprep.subr.mxu0 0.0
    %1668 = vmatpush1.xpose.msra.mxu0 0.0
    %1669 = vmatprep.subr.mxu0 0.0
    %1670 = vmatpush1.xpose.msra.mxu0 0.0
    %1671 = vmatprep.subr.mxu0 0.0
    %1672 = vmatpush1.xpose.msra.mxu0 0.0
    %1673 = vmatprep.subr.mxu0 0.0
    %1674 = vmatpush1.xpose.msra.mxu0 0.0
    %1675 = vmatprep.subr.mxu0 0.0
    %1676 = vmatpush1.xpose.msra.mxu0 0.0
    %1677 = vmatprep.subr.mxu0 0.0
    %1678 = vmatpush1.xpose.msra.mxu0 0.0
    %1679 = vmatprep.subr.mxu0 0.0
    %1680 = vmatpush1.xpose.msra.mxu0 0.0
    %1681 = vmatprep.subr.mxu0 0.0
    %1682 = vmatpush1.xpose.msra.mxu0 0.0
    %1683 = vmatprep.subr.mxu0 0.0
    %1684 = vmatpush1.xpose.msra.mxu0 0.0
    %1685 = vmatprep.subr.mxu0 0.0
    %1686 = vmatpush1.xpose.msra.mxu0 0.0
    %1687 = vmatprep.subr.mxu0 0.0
    %1688 = vmatpush1.xpose.msra.mxu0 0.0
    %1689 = vmatprep.subr.mxu0 0.0
    %1690 = vmatpush1.xpose.msra.mxu0 0.0
    %1691 = vmatprep.subr.mxu0 0.0
    %1692 = vmatpush1.xpose.msra.mxu0 0.0
    %1693 = vmatprep.subr.mxu0 0.0
    %1694 = vmatpush1.xpose.msra.mxu0 0.0
    %1695 = vmatprep.subr.mxu0 0.0
    %1696 = vmatpush1.xpose.msra.mxu0 0.0
    %1697 = vmatprep.subr.mxu0 0.0
    %1698 = vmatpush1.xpose.msra.mxu0 0.0
    %1699 = vmatprep.subr.mxu0 0.0
    %1700 = vmatpush1.xpose.msra.mxu0 0.0
    %1701 = vmatprep.subr.mxu0 0.0
    %1702 = vmatpush1.xpose.msra.mxu0 0.0
    %1703 = vmatprep.mubr.f32.mxu0 0.0
    %1704 = vmatmul.mubr.f32.gmra.mrb[0].mxu0 %v1634
    %v1705 = vpop.f32.mrb[0].mxu0
    %v1706 = vadd.f32 0.0, %v1705
    %v1707 = vpop.f32.mrb[0].mxu0
    %1708 = vdwg.mxu0
    %v1710 = vsel %vm1480, %v893, 0
    %v1713 = vsel %vm1480, %v1185, 0
    %1715 = vmatprep.subr.mxu0 0.0
    %1716 = vmatpush1.xpose.msra.mxu0 %v1713
    %1717 = vmatprep.subr.mxu0 0.0
    %1718 = vmatpush1.xpose.msra.mxu0 0.0
    %1719 = vmatprep.subr.mxu0 0.0
    %1720 = vmatpush1.xpose.msra.mxu0 0.0
    %1721 = vmatprep.subr.mxu0 0.0
    %1722 = vmatpush1.xpose.msra.mxu0 0.0
    %1723 = vmatprep.subr.mxu0 0.0
    %1724 = vmatpush1.xpose.msra.mxu0 0.0
    %1725 = vmatprep.subr.mxu0 0.0
    %1726 = vmatpush1.xpose.msra.mxu0 0.0
    %1727 = vmatprep.subr.mxu0 0.0
    %1728 = vmatpush1.xpose.msra.mxu0 0.0
    %1729 = vmatprep.subr.mxu0 0.0
    %1730 = vmatpush1.xpose.msra.mxu0 0.0
    %1731 = vmatprep.subr.mxu0 0.0
    %1732 = vmatpush1.xpose.msra.mxu0 0.0
    %1733 = vmatprep.subr.mxu0 0.0
    %1734 = vmatpush1.xpose.msra.mxu0 0.0
    %1735 = vmatprep.subr.mxu0 0.0
    %1736 = vmatpush1.xpose.msra.mxu0 0.0
    %1737 = vmatprep.subr.mxu0 0.0
    %1738 = vmatpush1.xpose.msra.mxu0 0.0
    %1739 = vmatprep.subr.mxu0 0.0
    %1740 = vmatpush1.xpose.msra.mxu0 0.0
    %1741 = vmatprep.subr.mxu0 0.0
    %1742 = vmatpush1.xpose.msra.mxu0 0.0
    %1743 = vmatprep.subr.mxu0 0.0
    %1744 = vmatpush1.xpose.msra.mxu0 0.0
    %1745 = vmatprep.subr.mxu0 0.0
    %1746 = vmatpush1.xpose.msra.mxu0 0.0
    %1747 = vmatprep.subr.mxu0 0.0
    %1748 = vmatpush1.xpose.msra.mxu0 0.0
    %1749 = vmatprep.subr.mxu0 0.0
    %1750 = vmatpush1.xpose.msra.mxu0 0.0
    %1751 = vmatprep.subr.mxu0 0.0
    %1752 = vmatpush1.xpose.msra.mxu0 0.0
    %1753 = vmatprep.subr.mxu0 0.0
    %1754 = vmatpush1.xpose.msra.mxu0 0.0
    %1755 = vmatprep.subr.mxu0 0.0
    %1756 = vmatpush1.xpose.msra.mxu0 0.0
    %1757 = vmatprep.subr.mxu0 0.0
    %1758 = vmatpush1.xpose.msra.mxu0 0.0
    %1759 = vmatprep.subr.mxu0 0.0
    %1760 = vmatpush1.xpose.msra.mxu0 0.0
    %1761 = vmatprep.subr.mxu0 0.0
    %1762 = vmatpush1.xpose.msra.mxu0 0.0
    %1763 = vmatprep.subr.mxu0 0.0
    %1764 = vmatpush1.xpose.msra.mxu0 0.0
    %1765 = vmatprep.subr.mxu0 0.0
    %1766 = vmatpush1.xpose.msra.mxu0 0.0
    %1767 = vmatprep.subr.mxu0 0.0
    %1768 = vmatpush1.xpose.msra.mxu0 0.0
    %1769 = vmatprep.subr.mxu0 0.0
    %1770 = vmatpush1.xpose.msra.mxu0 0.0
    %1771 = vmatprep.subr.mxu0 0.0
    %1772 = vmatpush1.xpose.msra.mxu0 0.0
    %1773 = vmatprep.subr.mxu0 0.0
    %1774 = vmatpush1.xpose.msra.mxu0 0.0
    %1775 = vmatprep.subr.mxu0 0.0
    %1776 = vmatpush1.xpose.msra.mxu0 0.0
    %1777 = vmatprep.subr.mxu0 0.0
    %1778 = vmatpush1.xpose.msra.mxu0 0.0
    %1779 = vmatprep.mubr.f32.mxu0 0.0
    %1780 = vmatmul.mubr.f32.gmra.mrb[0].mxu0 %v1710
    %v1781 = vpop.f32.mrb[0].mxu0
    %v1782 = vadd.f32 0.0, %v1781
    %v1783 = vpop.f32.mrb[0].mxu0
    %1784 = vdwg.mxu0
    %v1786 = vsel %vm1480, %v826, 0
    %v1789 = vsel %vm1480, %v1118, 0
    %1791 = vmatprep.subr.mxu0 0.0
    %1792 = vmatpush1.xpose.msra.mxu0 %v1789
    %1793 = vmatprep.subr.mxu0 0.0
    %1794 = vmatpush1.xpose.msra.mxu0 0.0
    %1795 = vmatprep.subr.mxu0 0.0
    %1796 = vmatpush1.xpose.msra.mxu0 0.0
    %1797 = vmatprep.subr.mxu0 0.0
    %1798 = vmatpush1.xpose.msra.mxu0 0.0
    %1799 = vmatprep.subr.mxu0 0.0
    %1800 = vmatpush1.xpose.msra.mxu0 0.0
    %1801 = vmatprep.subr.mxu0 0.0
    %1802 = vmatpush1.xpose.msra.mxu0 0.0
    %1803 = vmatprep.subr.mxu0 0.0
    %1804 = vmatpush1.xpose.msra.mxu0 0.0
    %1805 = vmatprep.subr.mxu0 0.0
    %1806 = vmatpush1.xpose.msra.mxu0 0.0
    %1807 = vmatprep.subr.mxu0 0.0
    %1808 = vmatpush1.xpose.msra.mxu0 0.0
    %1809 = vmatprep.subr.mxu0 0.0
    %1810 = vmatpush1.xpose.msra.mxu0 0.0
    %1811 = vmatprep.subr.mxu0 0.0
    %1812 = vmatpush1.xpose.msra.mxu0 0.0
    %1813 = vmatprep.subr.mxu0 0.0
    %1814 = vmatpush1.xpose.msra.mxu0 0.0
    %1815 = vmatprep.subr.mxu0 0.0
    %1816 = vmatpush1.xpose.msra.mxu0 0.0
    %1817 = vmatprep.subr.mxu0 0.0
    %1818 = vmatpush1.xpose.msra.mxu0 0.0
    %1819 = vmatprep.subr.mxu0 0.0
    %1820 = vmatpush1.xpose.msra.mxu0 0.0
    %1821 = vmatprep.subr.mxu0 0.0
    %1822 = vmatpush1.xpose.msra.mxu0 0.0
    %1823 = vmatprep.subr.mxu0 0.0
    %1824 = vmatpush1.xpose.msra.mxu0 0.0
    %1825 = vmatprep.subr.mxu0 0.0
    %1826 = vmatpush1.xpose.msra.mxu0 0.0
    %1827 = vmatprep.subr.mxu0 0.0
    %1828 = vmatpush1.xpose.msra.mxu0 0.0
    %1829 = vmatprep.subr.mxu0 0.0
    %1830 = vmatpush1.xpose.msra.mxu0 0.0
    %1831 = vmatprep.subr.mxu0 0.0
    %1832 = vmatpush1.xpose.msra.mxu0 0.0
    %1833 = vmatprep.subr.mxu0 0.0
    %1834 = vmatpush1.xpose.msra.mxu0 0.0
    %1835 = vmatprep.subr.mxu0 0.0
    %1836 = vmatpush1.xpose.msra.mxu0 0.0
    %1837 = vmatprep.subr.mxu0 0.0
    %1838 = vmatpush1.xpose.msra.mxu0 0.0
    %1839 = vmatprep.subr.mxu0 0.0
    %1840 = vmatpush1.xpose.msra.mxu0 0.0
    %1841 = vmatprep.subr.mxu0 0.0
    %1842 = vmatpush1.xpose.msra.mxu0 0.0
    %1843 = vmatprep.subr.mxu0 0.0
    %1844 = vmatpush1.xpose.msra.mxu0 0.0
    %1845 = vmatprep.subr.mxu0 0.0
    %1846 = vmatpush1.xpose.msra.mxu0 0.0
    %1847 = vmatprep.subr.mxu0 0.0
    %1848 = vmatpush1.xpose.msra.mxu0 0.0
    %1849 = vmatprep.subr.mxu0 0.0
    %1850 = vmatpush1.xpose.msra.mxu0 0.0
    %1851 = vmatprep.subr.mxu0 0.0
    %1852 = vmatpush1.xpose.msra.mxu0 0.0
    %1853 = vmatprep.subr.mxu0 0.0
    %1854 = vmatpush1.xpose.msra.mxu0 0.0
    %1855 = vmatprep.mubr.f32.mxu0 0.0
    %1856 = vmatmul.mubr.f32.gmra.mrb[0].mxu0 %v1786
    %v1857 = vpop.f32.mrb[0].mxu0
    %v1858 = vadd.f32 0.0, %v1857
    %v1859 = vpop.f32.mrb[0].mxu0
    %1860 = vdwg.mxu0
    %v1862 = vsel %vm1480, %v894, 0
    %v1865 = vsel %vm1480, %v1186, 0
    %1867 = vmatprep.subr.mxu0 0.0
    %1868 = vmatpush1.xpose.msra.mxu0 %v1865
    %1869 = vmatprep.subr.mxu0 0.0
    %1870 = vmatpush1.xpose.msra.mxu0 0.0
    %1871 = vmatprep.subr.mxu0 0.0
    %1872 = vmatpush1.xpose.msra.mxu0 0.0
    %1873 = vmatprep.subr.mxu0 0.0
    %1874 = vmatpush1.xpose.msra.mxu0 0.0
    %1875 = vmatprep.subr.mxu0 0.0
    %1876 = vmatpush1.xpose.msra.mxu0 0.0
    %1877 = vmatprep.subr.mxu0 0.0
    %1878 = vmatpush1.xpose.msra.mxu0 0.0
    %1879 = vmatprep.subr.mxu0 0.0
    %1880 = vmatpush1.xpose.msra.mxu0 0.0
    %1881 = vmatprep.subr.mxu0 0.0
    %1882 = vmatpush1.xpose.msra.mxu0 0.0
    %1883 = vmatprep.subr.mxu0 0.0
    %1884 = vmatpush1.xpose.msra.mxu0 0.0
    %1885 = vmatprep.subr.mxu0 0.0
    %1886 = vmatpush1.xpose.msra.mxu0 0.0
    %1887 = vmatprep.subr.mxu0 0.0
    %1888 = vmatpush1.xpose.msra.mxu0 0.0
    %1889 = vmatprep.subr.mxu0 0.0
    %1890 = vmatpush1.xpose.msra.mxu0 0.0
    %1891 = vmatprep.subr.mxu0 0.0
    %1892 = vmatpush1.xpose.msra.mxu0 0.0
    %1893 = vmatprep.subr.mxu0 0.0
    %1894 = vmatpush1.xpose.msra.mxu0 0.0
    %1895 = vmatprep.subr.mxu0 0.0
    %1896 = vmatpush1.xpose.msra.mxu0 0.0
    %1897 = vmatprep.subr.mxu0 0.0
    %1898 = vmatpush1.xpose.msra.mxu0 0.0
    %1899 = vmatprep.subr.mxu0 0.0
    %1900 = vmatpush1.xpose.msra.mxu0 0.0
    %1901 = vmatprep.subr.mxu0 0.0
    %1902 = vmatpush1.xpose.msra.mxu0 0.0
    %1903 = vmatprep.subr.mxu0 0.0
    %1904 = vmatpush1.xpose.msra.mxu0 0.0
    %1905 = vmatprep.subr.mxu0 0.0
    %1906 = vmatpush1.xpose.msra.mxu0 0.0
    %1907 = vmatprep.subr.mxu0 0.0
    %1908 = vmatpush1.xpose.msra.mxu0 0.0
    %1909 = vmatprep.subr.mxu0 0.0
    %1910 = vmatpush1.xpose.msra.mxu0 0.0
    %1911 = vmatprep.subr.mxu0 0.0
    %1912 = vmatpush1.xpose.msra.mxu0 0.0
    %1913 = vmatprep.subr.mxu0 0.0
    %1914 = vmatpush1.xpose.msra.mxu0 0.0
    %1915 = vmatprep.subr.mxu0 0.0
    %1916 = vmatpush1.xpose.msra.mxu0 0.0
    %1917 = vmatprep.subr.mxu0 0.0
    %1918 = vmatpush1.xpose.msra.mxu0 0.0
    %1919 = vmatprep.subr.mxu0 0.0
    %1920 = vmatpush1.xpose.msra.mxu0 0.0
    %1921 = vmatprep.subr.mxu0 0.0
    %1922 = vmatpush1.xpose.msra.mxu0 0.0
    %1923 = vmatprep.subr.mxu0 0.0
    %1924 = vmatpush1.xpose.msra.mxu0 0.0
    %1925 = vmatprep.subr.mxu0 0.0
    %1926 = vmatpush1.xpose.msra.mxu0 0.0
    %1927 = vmatprep.subr.mxu0 0.0
    %1928 = vmatpush1.xpose.msra.mxu0 0.0
    %1929 = vmatprep.subr.mxu0 0.0
    %1930 = vmatpush1.xpose.msra.mxu0 0.0
    %1931 = vmatprep.mubr.f32.mxu0 0.0
    %1932 = vmatmul.mubr.f32.gmra.mrb[0].mxu0 %v1862
    %v1933 = vpop.f32.mrb[0].mxu0
    %v1934 = vadd.f32 0.0, %v1933
    %v1935 = vpop.f32.mrb[0].mxu0
    %1936 = vdwg.mxu0
    %v1938 = vsel %vm1480, %v827, 0
    %v1941 = vsel %vm1480, %v1119, 0
    %1943 = vmatprep.subr.mxu0 0.0
    %1944 = vmatpush1.xpose.msra.mxu0 %v1941
    %1945 = vmatprep.subr.mxu0 0.0
    %1946 = vmatpush1.xpose.msra.mxu0 0.0
    %1947 = vmatprep.subr.mxu0 0.0
    %1948 = vmatpush1.xpose.msra.mxu0 0.0
    %1949 = vmatprep.subr.mxu0 0.0
    %1950 = vmatpush1.xpose.msra.mxu0 0.0
    %1951 = vmatprep.subr.mxu0 0.0
    %1952 = vmatpush1.xpose.msra.mxu0 0.0
    %1953 = vmatprep.subr.mxu0 0.0
    %1954 = vmatpush1.xpose.msra.mxu0 0.0
    %1955 = vmatprep.subr.mxu0 0.0
    %1956 = vmatpush1.xpose.msra.mxu0 0.0
    %1957 = vmatprep.subr.mxu0 0.0
    %1958 = vmatpush1.xpose.msra.mxu0 0.0
    %1959 = vmatprep.subr.mxu0 0.0
    %1960 = vmatpush1.xpose.msra.mxu0 0.0
    %1961 = vmatprep.subr.mxu0 0.0
    %1962 = vmatpush1.xpose.msra.mxu0 0.0
    %1963 = vmatprep.subr.mxu0 0.0
    %1964 = vmatpush1.xpose.msra.mxu0 0.0
    %1965 = vmatprep.subr.mxu0 0.0
    %1966 = vmatpush1.xpose.msra.mxu0 0.0
    %1967 = vmatprep.subr.mxu0 0.0
    %1968 = vmatpush1.xpose.msra.mxu0 0.0
    %1969 = vmatprep.subr.mxu0 0.0
    %1970 = vmatpush1.xpose.msra.mxu0 0.0
    %1971 = vmatprep.subr.mxu0 0.0
    %1972 = vmatpush1.xpose.msra.mxu0 0.0
    %1973 = vmatprep.subr.mxu0 0.0
    %1974 = vmatpush1.xpose.msra.mxu0 0.0
    %1975 = vmatprep.subr.mxu0 0.0
    %1976 = vmatpush1.xpose.msra.mxu0 0.0
    %1977 = vmatprep.subr.mxu0 0.0
    %1978 = vmatpush1.xpose.msra.mxu0 0.0
    %1979 = vmatprep.subr.mxu0 0.0
    %1980 = vmatpush1.xpose.msra.mxu0 0.0
    %1981 = vmatprep.subr.mxu0 0.0
    %1982 = vmatpush1.xpose.msra.mxu0 0.0
    %1983 = vmatprep.subr.mxu0 0.0
    %1984 = vmatpush1.xpose.msra.mxu0 0.0
    %1985 = vmatprep.subr.mxu0 0.0
    %1986 = vmatpush1.xpose.msra.mxu0 0.0
    %1987 = vmatprep.subr.mxu0 0.0
    %1988 = vmatpush1.xpose.msra.mxu0 0.0
    %1989 = vmatprep.subr.mxu0 0.0
    %1990 = vmatpush1.xpose.msra.mxu0 0.0
    %1991 = vmatprep.subr.mxu0 0.0
    %1992 = vmatpush1.xpose.msra.mxu0 0.0
    %1993 = vmatprep.subr.mxu0 0.0
    %1994 = vmatpush1.xpose.msra.mxu0 0.0
    %1995 = vmatprep.subr.mxu0 0.0
    %1996 = vmatpush1.xpose.msra.mxu0 0.0
    %1997 = vmatprep.subr.mxu0 0.0
    %1998 = vmatpush1.xpose.msra.mxu0 0.0
    %1999 = vmatprep.subr.mxu0 0.0
    %2000 = vmatpush1.xpose.msra.mxu0 0.0
    %2001 = vmatprep.subr.mxu0 0.0
    %2002 = vmatpush1.xpose.msra.mxu0 0.0
    %2003 = vmatprep.subr.mxu0 0.0
    %2004 = vmatpush1.xpose.msra.mxu0 0.0
    %2005 = vmatprep.subr.mxu0 0.0
    %2006 = vmatpush1.xpose.msra.mxu0 0.0
    %2007 = vmatprep.mubr.f32.mxu0 0.0
    %2008 = vmatmul.mubr.f32.gmra.mrb[0].mxu0 %v1938
    %v2009 = vpop.f32.mrb[0].mxu0
    %v2010 = vadd.f32 0.0, %v2009
    %v2011 = vpop.f32.mrb[0].mxu0
    %2012 = vdwg.mxu0
    %v2014 = vsel %vm1480, %v895, 0
    %v2017 = vsel %vm1480, %v1187, 0
    %2019 = vmatprep.subr.mxu0 0.0
    %2020 = vmatpush1.xpose.msra.mxu0 %v2017
    %2021 = vmatprep.subr.mxu0 0.0
    %2022 = vmatpush1.xpose.msra.mxu0 0.0
    %2023 = vmatprep.subr.mxu0 0.0
    %2024 = vmatpush1.xpose.msra.mxu0 0.0
    %2025 = vmatprep.subr.mxu0 0.0
    %2026 = vmatpush1.xpose.msra.mxu0 0.0
    %2027 = vmatprep.subr.mxu0 0.0
    %2028 = vmatpush1.xpose.msra.mxu0 0.0
    %2029 = vmatprep.subr.mxu0 0.0
    %2030 = vmatpush1.xpose.msra.mxu0 0.0
    %2031 = vmatprep.subr.mxu0 0.0
    %2032 = vmatpush1.xpose.msra.mxu0 0.0
    %2033 = vmatprep.subr.mxu0 0.0
    %2034 = vmatpush1.xpose.msra.mxu0 0.0
    %2035 = vmatprep.subr.mxu0 0.0
    %2036 = vmatpush1.xpose.msra.mxu0 0.0
    %2037 = vmatprep.subr.mxu0 0.0
    %2038 = vmatpush1.xpose.msra.mxu0 0.0
    %2039 = vmatprep.subr.mxu0 0.0
    %2040 = vmatpush1.xpose.msra.mxu0 0.0
    %2041 = vmatprep.subr.mxu0 0.0
    %2042 = vmatpush1.xpose.msra.mxu0 0.0
    %2043 = vmatprep.subr.mxu0 0.0
    %2044 = vmatpush1.xpose.msra.mxu0 0.0
    %2045 = vmatprep.subr.mxu0 0.0
    %2046 = vmatpush1.xpose.msra.mxu0 0.0
    %2047 = vmatprep.subr.mxu0 0.0
    %2048 = vmatpush1.xpose.msra.mxu0 0.0
    %2049 = vmatprep.subr.mxu0 0.0
    %2050 = vmatpush1.xpose.msra.mxu0 0.0
    %2051 = vmatprep.subr.mxu0 0.0
    %2052 = vmatpush1.xpose.msra.mxu0 0.0
    %2053 = vmatprep.subr.mxu0 0.0
    %2054 = vmatpush1.xpose.msra.mxu0 0.0
    %2055 = vmatprep.subr.mxu0 0.0
    %2056 = vmatpush1.xpose.msra.mxu0 0.0
    %2057 = vmatprep.subr.mxu0 0.0
    %2058 = vmatpush1.xpose.msra.mxu0 0.0
    %2059 = vmatprep.subr.mxu0 0.0
    %2060 = vmatpush1.xpose.msra.mxu0 0.0
    %2061 = vmatprep.subr.mxu0 0.0
    %2062 = vmatpush1.xpose.msra.mxu0 0.0
    %2063 = vmatprep.subr.mxu0 0.0
    %2064 = vmatpush1.xpose.msra.mxu0 0.0
    %2065 = vmatprep.subr.mxu0 0.0
    %2066 = vmatpush1.xpose.msra.mxu0 0.0
    %2067 = vmatprep.subr.mxu0 0.0
    %2068 = vmatpush1.xpose.msra.mxu0 0.0
    %2069 = vmatprep.subr.mxu0 0.0
    %2070 = vmatpush1.xpose.msra.mxu0 0.0
    %2071 = vmatprep.subr.mxu0 0.0
    %2072 = vmatpush1.xpose.msra.mxu0 0.0
    %2073 = vmatprep.subr.mxu0 0.0
    %2074 = vmatpush1.xpose.msra.mxu0 0.0
    %2075 = vmatprep.subr.mxu0 0.0
    %2076 = vmatpush1.xpose.msra.mxu0 0.0
    %2077 = vmatprep.subr.mxu0 0.0
    %2078 = vmatpush1.xpose.msra.mxu0 0.0
    %2079 = vmatprep.subr.mxu0 0.0
    %2080 = vmatpush1.xpose.msra.mxu0 0.0
    %2081 = vmatprep.subr.mxu0 0.0
    %2082 = vmatpush1.xpose.msra.mxu0 0.0
    %2083 = vmatprep.mubr.f32.mxu0 0.0
    %2084 = vmatmul.mubr.f32.gmra.mrb[0].mxu0 %v2014
    %v2085 = vpop.f32.mrb[0].mxu0
    %v2086 = vadd.f32 0.0, %v2085
    %v2087 = vpop.f32.mrb[0].mxu0
    %2088 = vdwg.mxu0
    %v2089 = vld [vmem:[#allocation8] sm:$0x3]
    %v2090 = vld [vmem:[#allocation8 + $0x2] sm:$0x3]
    %vm2091 = vnez %v2089
    %vm2092 = vnez %v2090
    %v2093 = vsel %vm2091, 16843009, 0
    %v2094 = vsel %vm2092, 16843009, 0
    %v2095 = vunpack.c.0.s8 %v2093
    %v2096 = vunpack.c.0.s8 %v2094
    %vm2097 = vcmp.ne.s32.totalorder %v2095, 0
    %vm2098 = vcmp.ne.s32.totalorder %v2096, 0
    %v2099 = vsel %vm2097, 1, 0
    %v2100 = vsel %vm2098, 1, 0
    %vm2101 = vcmp.eq.s32.totalorder %v2099, 1
    %vm2102 = vcmp.eq.s32.totalorder %v2100, 1
    %v2103 = vsel %vm2101, %v1554, -inf
    %v2104 = vsel %vm2102, %v1630, -inf
    %v2105 = vsel %vm2101, %v1706, -inf
    %v2106 = vsel %vm2102, %v1782, -inf
    %v2107 = vsel %vm2101, %v1858, -inf
    %v2108 = vsel %vm2102, %v1934, -inf
    %v2109 = vsel %vm2101, %v2010, -inf
    %v2110 = vsel %vm2102, %v2086, -inf
    %v2111 = vsel %vm1480, %v2103, -inf
    %2112 = vmax.xlane.f32.xlu0 %v2111
    %v2113 = vpop.xlane.xlu0 %2112
    %v2114 = vsel %vm1480, %v2104, -inf
    %2115 = vmax.xlane.f32.xlu0 %v2114
    %v2116 = vpop.xlane.xlu0 %2115
    %v2117 = vsel %vm1480, %v2105, -inf
    %2118 = vmax.xlane.f32.xlu0 %v2117
    %v2119 = vpop.xlane.xlu0 %2118
    %v2120 = vsel %vm1480, %v2106, -inf
    %2121 = vmax.xlane.f32.xlu0 %v2120
    %v2122 = vpop.xlane.xlu0 %2121
    %v2123 = vsel %vm1480, %v2107, -inf
    %2124 = vmax.xlane.f32.xlu0 %v2123
    %v2125 = vpop.xlane.xlu0 %2124
    %v2126 = vsel %vm1480, %v2108, -inf
    %2127 = vmax.xlane.f32.xlu0 %v2126
    %v2128 = vpop.xlane.xlu0 %2127
    %v2129 = vsel %vm1480, %v2109, -inf
    %2130 = vmax.xlane.f32.xlu0 %v2129
    %v2131 = vpop.xlane.xlu0 %2130
    %v2132 = vsel %vm1480, %v2110, -inf
    %2133 = vmax.xlane.f32.xlu0 %v2132
    %v2134 = vpop.xlane.xlu0 %2133
    %v2135 = vsub.f32 %v2103, %v2113
    %v2136 = vsub.f32 %v2104, %v2116
    %v2137 = vsub.f32 %v2105, %v2119
    %v2138 = vsub.f32 %v2106, %v2122
    %v2139 = vsub.f32 %v2107, %v2125
    %v2140 = vsub.f32 %v2108, %v2128
    %v2141 = vsub.f32 %v2109, %v2131
    %v2142 = vsub.f32 %v2110, %v2134
    %v2143 = vmul.f32 %v2135, 1.442695
    %v2144 = vpow.pop %v2143
    %v2145 = vmul.f32 %v2136, 1.442695
    %v2146 = vpow.pop %v2145
    %v2147 = vmul.f32 %v2137, 1.442695
    %v2148 = vpow.pop %v2147
    %v2149 = vmul.f32 %v2138, 1.442695
    %v2150 = vpow.pop %v2149
    %v2151 = vmul.f32 %v2139, 1.442695
    %v2152 = vpow.pop %v2151
    %v2153 = vmul.f32 %v2140, 1.442695
    %v2154 = vpow.pop %v2153
    %v2155 = vmul.f32 %v2141, 1.442695
    %v2156 = vpow.pop %v2155
    %v2157 = vmul.f32 %v2142, 1.442695
    %v2158 = vpow.pop %v2157
    %v2159 = vsel %vm1480, %v2144, 0.0
    %2160 = vadd.xlane.f32.xlu0 %v2159
    %v2161 = vpop.xlane.xlu0 %2160
    %v2162 = vsel %vm1480, %v2146, 0.0
    %2163 = vadd.xlane.f32.xlu0 %v2162
    %v2164 = vpop.xlane.xlu0 %2163
    %v2165 = vsel %vm1480, %v2148, 0.0
    %2166 = vadd.xlane.f32.xlu0 %v2165
    %v2167 = vpop.xlane.xlu0 %2166
    %v2168 = vsel %vm1480, %v2150, 0.0
    %2169 = vadd.xlane.f32.xlu0 %v2168
    %v2170 = vpop.xlane.xlu0 %2169
    %v2171 = vsel %vm1480, %v2152, 0.0
    %2172 = vadd.xlane.f32.xlu0 %v2171
    %v2173 = vpop.xlane.xlu0 %2172
    %v2174 = vsel %vm1480, %v2154, 0.0
    %2175 = vadd.xlane.f32.xlu0 %v2174
    %v2176 = vpop.xlane.xlu0 %2175
    %v2177 = vsel %vm1480, %v2156, 0.0
    %2178 = vadd.xlane.f32.xlu0 %v2177
    %v2179 = vpop.xlane.xlu0 %2178
    %v2180 = vsel %vm1480, %v2158, 0.0
    %2181 = vadd.xlane.f32.xlu0 %v2180
    %v2182 = vpop.xlane.xlu0 %2181
    %v2183 = vrcp.pop %v2161
    %v2184 = vrcp.pop %v2164
    %v2185 = vrcp.pop %v2167
    %v2186 = vrcp.pop %v2170
    %v2187 = vrcp.pop %v2173
    %v2188 = vrcp.pop %v2176
    %v2189 = vrcp.pop %v2179
    %v2190 = vrcp.pop %v2182
    %v2192 = vsel %vm1480, %v2144, 0
    %2194 = vmatprep.subr.mxu0 0.0
    %2195 = vmatpush1.msra.mxu0 %v1408
    %2196 = vmatprep.subr.mxu0 0.0
    %2197 = vmatpush1.msra.mxu0 0.0
    %2198 = vmatprep.subr.mxu0 0.0
    %2199 = vmatpush1.msra.mxu0 0.0
    %2200 = vmatprep.subr.mxu0 0.0
    %2201 = vmatpush1.msra.mxu0 0.0
    %2202 = vmatprep.subr.mxu0 0.0
    %2203 = vmatpush1.msra.mxu0 0.0
    %2204 = vmatprep.subr.mxu0 0.0
    %2205 = vmatpush1.msra.mxu0 0.0
    %2206 = vmatprep.subr.mxu0 0.0
    %2207 = vmatpush1.msra.mxu0 0.0
    %2208 = vmatprep.subr.mxu0 0.0
    %2209 = vmatpush1.msra.mxu0 0.0
    %2210 = vmatprep.subr.mxu0 0.0
    %2211 = vmatpush1.msra.mxu0 0.0
    %2212 = vmatprep.subr.mxu0 0.0
    %2213 = vmatpush1.msra.mxu0 0.0
    %2214 = vmatprep.subr.mxu0 0.0
    %2215 = vmatpush1.msra.mxu0 0.0
    %2216 = vmatprep.subr.mxu0 0.0
    %2217 = vmatpush1.msra.mxu0 0.0
    %2218 = vmatprep.subr.mxu0 0.0
    %2219 = vmatpush1.msra.mxu0 0.0
    %2220 = vmatprep.subr.mxu0 0.0
    %2221 = vmatpush1.msra.mxu0 0.0
    %2222 = vmatprep.subr.mxu0 0.0
    %2223 = vmatpush1.msra.mxu0 0.0
    %2224 = vmatprep.subr.mxu0 0.0
    %2225 = vmatpush1.msra.mxu0 0.0
    %2226 = vmatprep.subr.mxu0 0.0
    %2227 = vmatpush1.msra.mxu0 0.0
    %2228 = vmatprep.subr.mxu0 0.0
    %2229 = vmatpush1.msra.mxu0 0.0
    %2230 = vmatprep.subr.mxu0 0.0
    %2231 = vmatpush1.msra.mxu0 0.0
    %2232 = vmatprep.subr.mxu0 0.0
    %2233 = vmatpush1.msra.mxu0 0.0
    %2234 = vmatprep.subr.mxu0 0.0
    %2235 = vmatpush1.msra.mxu0 0.0
    %2236 = vmatprep.subr.mxu0 0.0
    %2237 = vmatpush1.msra.mxu0 0.0
    %2238 = vmatprep.subr.mxu0 0.0
    %2239 = vmatpush1.msra.mxu0 0.0
    %2240 = vmatprep.subr.mxu0 0.0
    %2241 = vmatpush1.msra.mxu0 0.0
    %2242 = vmatprep.subr.mxu0 0.0
    %2243 = vmatpush1.msra.mxu0 0.0
    %2244 = vmatprep.subr.mxu0 0.0
    %2245 = vmatpush1.msra.mxu0 0.0
    %2246 = vmatprep.subr.mxu0 0.0
    %2247 = vmatpush1.msra.mxu0 0.0
    %2248 = vmatprep.subr.mxu0 0.0
    %2249 = vmatpush1.msra.mxu0 0.0
    %2250 = vmatprep.subr.mxu0 0.0
    %2251 = vmatpush1.msra.mxu0 0.0
    %2252 = vmatprep.subr.mxu0 0.0
    %2253 = vmatpush1.msra.mxu0 0.0
    %2254 = vmatprep.subr.mxu0 0.0
    %2255 = vmatpush1.msra.mxu0 0.0
    %2256 = vmatprep.subr.mxu0 0.0
    %2257 = vmatpush1.msra.mxu0 0.0
    %2258 = vmatprep.mubr.f32.mxu0 0.0
    %2259 = vmatmul.mubr.f32.gmra.mrb[0].mxu0 %v2192
    %v2260 = vpop.f32.mrb[0].mxu0
    %v2261 = vadd.f32 0.0, %v2260
    %v2262 = vpop.f32.mrb[0].mxu0
    %2263 = vdwg.mxu0
    %v2265 = vsel %vm1480, %v2146, 0
    %2267 = vmatprep.subr.mxu0 0.0
    %2268 = vmatpush1.msra.mxu0 %v1476
    %2269 = vmatprep.subr.mxu0 0.0
    %2270 = vmatpush1.msra.mxu0 0.0
    %2271 = vmatprep.subr.mxu0 0.0
    %2272 = vmatpush1.msra.mxu0 0.0
    %2273 = vmatprep.subr.mxu0 0.0
    %2274 = vmatpush1.msra.mxu0 0.0
    %2275 = vmatprep.subr.mxu0 0.0
    %2276 = vmatpush1.msra.mxu0 0.0
    %2277 = vmatprep.subr.mxu0 0.0
    %2278 = vmatpush1.msra.mxu0 0.0
    %2279 = vmatprep.subr.mxu0 0.0
    %2280 = vmatpush1.msra.mxu0 0.0
    %2281 = vmatprep.subr.mxu0 0.0
    %2282 = vmatpush1.msra.mxu0 0.0
    %2283 = vmatprep.subr.mxu0 0.0
    %2284 = vmatpush1.msra.mxu0 0.0
    %2285 = vmatprep.subr.mxu0 0.0
    %2286 = vmatpush1.msra.mxu0 0.0
    %2287 = vmatprep.subr.mxu0 0.0
    %2288 = vmatpush1.msra.mxu0 0.0
    %2289 = vmatprep.subr.mxu0 0.0
    %2290 = vmatpush1.msra.mxu0 0.0
    %2291 = vmatprep.subr.mxu0 0.0
    %2292 = vmatpush1.msra.mxu0 0.0
    %2293 = vmatprep.subr.mxu0 0.0
    %2294 = vmatpush1.msra.mxu0 0.0
    %2295 = vmatprep.subr.mxu0 0.0
    %2296 = vmatpush1.msra.mxu0 0.0
    %2297 = vmatprep.subr.mxu0 0.0
    %2298 = vmatpush1.msra.mxu0 0.0
    %2299 = vmatprep.subr.mxu0 0.0
    %2300 = vmatpush1.msra.mxu0 0.0
    %2301 = vmatprep.subr.mxu0 0.0
    %2302 = vmatpush1.msra.mxu0 0.0
    %2303 = vmatprep.subr.mxu0 0.0
    %2304 = vmatpush1.msra.mxu0 0.0
    %2305 = vmatprep.subr.mxu0 0.0
    %2306 = vmatpush1.msra.mxu0 0.0
    %2307 = vmatprep.subr.mxu0 0.0
    %2308 = vmatpush1.msra.mxu0 0.0
    %2309 = vmatprep.subr.mxu0 0.0
    %2310 = vmatpush1.msra.mxu0 0.0
    %2311 = vmatprep.subr.mxu0 0.0
    %2312 = vmatpush1.msra.mxu0 0.0
    %2313 = vmatprep.subr.mxu0 0.0
    %2314 = vmatpush1.msra.mxu0 0.0
    %2315 = vmatprep.subr.mxu0 0.0
    %2316 = vmatpush1.msra.mxu0 0.0
    %2317 = vmatprep.subr.mxu0 0.0
    %2318 = vmatpush1.msra.mxu0 0.0
    %2319 = vmatprep.subr.mxu0 0.0
    %2320 = vmatpush1.msra.mxu0 0.0
    %2321 = vmatprep.subr.mxu0 0.0
    %2322 = vmatpush1.msra.mxu0 0.0
    %2323 = vmatprep.subr.mxu0 0.0
    %2324 = vmatpush1.msra.mxu0 0.0
    %2325 = vmatprep.subr.mxu0 0.0
    %2326 = vmatpush1.msra.mxu0 0.0
    %2327 = vmatprep.subr.mxu0 0.0
    %2328 = vmatpush1.msra.mxu0 0.0
    %2329 = vmatprep.subr.mxu0 0.0
    %2330 = vmatpush1.msra.mxu0 0.0
    %2331 = vmatprep.mubr.f32.mxu0 0.0
    %2332 = vmatmul.mubr.f32.gmra.mrb[0].mxu0 %v2265
    %v2333 = vpop.f32.mrb[0].mxu0
    %v2334 = vadd.f32 0.0, %v2333
    %v2335 = vpop.f32.mrb[0].mxu0
    %2336 = vdwg.mxu0
    %v2338 = vsel %vm1480, %v2148, 0
    %2340 = vmatprep.subr.mxu0 0.0
    %2341 = vmatpush1.msra.mxu0 %v1409
    %2342 = vmatprep.subr.mxu0 0.0
    %2343 = vmatpush1.msra.mxu0 0.0
    %2344 = vmatprep.subr.mxu0 0.0
    %2345 = vmatpush1.msra.mxu0 0.0
    %2346 = vmatprep.subr.mxu0 0.0
    %2347 = vmatpush1.msra.mxu0 0.0
    %2348 = vmatprep.subr.mxu0 0.0
    %2349 = vmatpush1.msra.mxu0 0.0
    %2350 = vmatprep.subr.mxu0 0.0
    %2351 = vmatpush1.msra.mxu0 0.0
    %2352 = vmatprep.subr.mxu0 0.0
    %2353 = vmatpush1.msra.mxu0 0.0
    %2354 = vmatprep.subr.mxu0 0.0
    %2355 = vmatpush1.msra.mxu0 0.0
    %2356 = vmatprep.subr.mxu0 0.0
    %2357 = vmatpush1.msra.mxu0 0.0
    %2358 = vmatprep.subr.mxu0 0.0
    %2359 = vmatpush1.msra.mxu0 0.0
    %2360 = vmatprep.subr.mxu0 0.0
    %2361 = vmatpush1.msra.mxu0 0.0
    %2362 = vmatprep.subr.mxu0 0.0
    %2363 = vmatpush1.msra.mxu0 0.0
    %2364 = vmatprep.subr.mxu0 0.0
    %2365 = vmatpush1.msra.mxu0 0.0
    %2366 = vmatprep.subr.mxu0 0.0
    %2367 = vmatpush1.msra.mxu0 0.0
    %2368 = vmatprep.subr.mxu0 0.0
    %2369 = vmatpush1.msra.mxu0 0.0
    %2370 = vmatprep.subr.mxu0 0.0
    %2371 = vmatpush1.msra.mxu0 0.0
    %2372 = vmatprep.subr.mxu0 0.0
    %2373 = vmatpush1.msra.mxu0 0.0
    %2374 = vmatprep.subr.mxu0 0.0
    %2375 = vmatpush1.msra.mxu0 0.0
    %2376 = vmatprep.subr.mxu0 0.0
    %2377 = vmatpush1.msra.mxu0 0.0
    %2378 = vmatprep.subr.mxu0 0.0
    %2379 = vmatpush1.msra.mxu0 0.0
    %2380 = vmatprep.subr.mxu0 0.0
    %2381 = vmatpush1.msra.mxu0 0.0
    %2382 = vmatprep.subr.mxu0 0.0
    %2383 = vmatpush1.msra.mxu0 0.0
    %2384 = vmatprep.subr.mxu0 0.0
    %2385 = vmatpush1.msra.mxu0 0.0
    %2386 = vmatprep.subr.mxu0 0.0
    %2387 = vmatpush1.msra.mxu0 0.0
    %2388 = vmatprep.subr.mxu0 0.0
    %2389 = vmatpush1.msra.mxu0 0.0
    %2390 = vmatprep.subr.mxu0 0.0
    %2391 = vmatpush1.msra.mxu0 0.0
    %2392 = vmatprep.subr.mxu0 0.0
    %2393 = vmatpush1.msra.mxu0 0.0
    %2394 = vmatprep.subr.mxu0 0.0
    %2395 = vmatpush1.msra.mxu0 0.0
    %2396 = vmatprep.subr.mxu0 0.0
    %2397 = vmatpush1.msra.mxu0 0.0
    %2398 = vmatprep.subr.mxu0 0.0
    %2399 = vmatpush1.msra.mxu0 0.0
    %2400 = vmatprep.subr.mxu0 0.0
    %2401 = vmatpush1.msra.mxu0 0.0
    %2402 = vmatprep.subr.mxu0 0.0
    %2403 = vmatpush1.msra.mxu0 0.0
    %2404 = vmatprep.mubr.f32.mxu0 0.0
    %2405 = vmatmul.mubr.f32.gmra.mrb[0].mxu0 %v2338
    %v2406 = vpop.f32.mrb[0].mxu0
    %v2407 = vadd.f32 0.0, %v2406
    %v2408 = vpop.f32.mrb[0].mxu0
    %2409 = vdwg.mxu0
    %v2411 = vsel %vm1480, %v2150, 0
    %2413 = vmatprep.subr.mxu0 0.0
    %2414 = vmatpush1.msra.mxu0 %v1477
    %2415 = vmatprep.subr.mxu0 0.0
    %2416 = vmatpush1.msra.mxu0 0.0
    %2417 = vmatprep.subr.mxu0 0.0
    %2418 = vmatpush1.msra.mxu0 0.0
    %2419 = vmatprep.subr.mxu0 0.0
    %2420 = vmatpush1.msra.mxu0 0.0
    %2421 = vmatprep.subr.mxu0 0.0
    %2422 = vmatpush1.msra.mxu0 0.0
    %2423 = vmatprep.subr.mxu0 0.0
    %2424 = vmatpush1.msra.mxu0 0.0
    %2425 = vmatprep.subr.mxu0 0.0
    %2426 = vmatpush1.msra.mxu0 0.0
    %2427 = vmatprep.subr.mxu0 0.0
    %2428 = vmatpush1.msra.mxu0 0.0
    %2429 = vmatprep.subr.mxu0 0.0
    %2430 = vmatpush1.msra.mxu0 0.0
    %2431 = vmatprep.subr.mxu0 0.0
    %2432 = vmatpush1.msra.mxu0 0.0
    %2433 = vmatprep.subr.mxu0 0.0
    %2434 = vmatpush1.msra.mxu0 0.0
    %2435 = vmatprep.subr.mxu0 0.0
    %2436 = vmatpush1.msra.mxu0 0.0
    %2437 = vmatprep.subr.mxu0 0.0
    %2438 = vmatpush1.msra.mxu0 0.0
    %2439 = vmatprep.subr.mxu0 0.0
    %2440 = vmatpush1.msra.mxu0 0.0
    %2441 = vmatprep.subr.mxu0 0.0
    %2442 = vmatpush1.msra.mxu0 0.0
    %2443 = vmatprep.subr.mxu0 0.0
    %2444 = vmatpush1.msra.mxu0 0.0
    %2445 = vmatprep.subr.mxu0 0.0
    %2446 = vmatpush1.msra.mxu0 0.0
    %2447 = vmatprep.subr.mxu0 0.0
    %2448 = vmatpush1.msra.mxu0 0.0
    %2449 = vmatprep.subr.mxu0 0.0
    %2450 = vmatpush1.msra.mxu0 0.0
    %2451 = vmatprep.subr.mxu0 0.0
    %2452 = vmatpush1.msra.mxu0 0.0
    %2453 = vmatprep.subr.mxu0 0.0
    %2454 = vmatpush1.msra.mxu0 0.0
    %2455 = vmatprep.subr.mxu0 0.0
    %2456 = vmatpush1.msra.mxu0 0.0
    %2457 = vmatprep.subr.mxu0 0.0
    %2458 = vmatpush1.msra.mxu0 0.0
    %2459 = vmatprep.subr.mxu0 0.0
    %2460 = vmatpush1.msra.mxu0 0.0
    %2461 = vmatprep.subr.mxu0 0.0
    %2462 = vmatpush1.msra.mxu0 0.0
    %2463 = vmatprep.subr.mxu0 0.0
    %2464 = vmatpush1.msra.mxu0 0.0
    %2465 = vmatprep.subr.mxu0 0.0
    %2466 = vmatpush1.msra.mxu0 0.0
    %2467 = vmatprep.subr.mxu0 0.0
    %2468 = vmatpush1.msra.mxu0 0.0
    %2469 = vmatprep.subr.mxu0 0.0
    %2470 = vmatpush1.msra.mxu0 0.0
    %2471 = vmatprep.subr.mxu0 0.0
    %2472 = vmatpush1.msra.mxu0 0.0
    %2473 = vmatprep.subr.mxu0 0.0
    %2474 = vmatpush1.msra.mxu0 0.0
    %2475 = vmatprep.subr.mxu0 0.0
    %2476 = vmatpush1.msra.mxu0 0.0
    %2477 = vmatprep.mubr.f32.mxu0 0.0
    %2478 = vmatmul.mubr.f32.gmra.mrb[0].mxu0 %v2411
    %v2479 = vpop.f32.mrb[0].mxu0
    %v2480 = vadd.f32 0.0, %v2479
    %v2481 = vpop.f32.mrb[0].mxu0
    %2482 = vdwg.mxu0
    %v2484 = vsel %vm1480, %v2152, 0
    %2486 = vmatprep.subr.mxu0 0.0
    %2487 = vmatpush1.msra.mxu0 %v1410
    %2488 = vmatprep.subr.mxu0 0.0
    %2489 = vmatpush1.msra.mxu0 0.0
    %2490 = vmatprep.subr.mxu0 0.0
    %2491 = vmatpush1.msra.mxu0 0.0
    %2492 = vmatprep.subr.mxu0 0.0
    %2493 = vmatpush1.msra.mxu0 0.0
    %2494 = vmatprep.subr.mxu0 0.0
    %2495 = vmatpush1.msra.mxu0 0.0
    %2496 = vmatprep.subr.mxu0 0.0
    %2497 = vmatpush1.msra.mxu0 0.0
    %2498 = vmatprep.subr.mxu0 0.0
    %2499 = vmatpush1.msra.mxu0 0.0
    %2500 = vmatprep.subr.mxu0 0.0
    %2501 = vmatpush1.msra.mxu0 0.0
    %2502 = vmatprep.subr.mxu0 0.0
    %2503 = vmatpush1.msra.mxu0 0.0
    %2504 = vmatprep.subr.mxu0 0.0
    %2505 = vmatpush1.msra.mxu0 0.0
    %2506 = vmatprep.subr.mxu0 0.0
    %2507 = vmatpush1.msra.mxu0 0.0
    %2508 = vmatprep.subr.mxu0 0.0
    %2509 = vmatpush1.msra.mxu0 0.0
    %2510 = vmatprep.subr.mxu0 0.0
    %2511 = vmatpush1.msra.mxu0 0.0
    %2512 = vmatprep.subr.mxu0 0.0
    %2513 = vmatpush1.msra.mxu0 0.0
    %2514 = vmatprep.subr.mxu0 0.0
    %2515 = vmatpush1.msra.mxu0 0.0
    %2516 = vmatprep.subr.mxu0 0.0
    %2517 = vmatpush1.msra.mxu0 0.0
    %2518 = vmatprep.subr.mxu0 0.0
    %2519 = vmatpush1.msra.mxu0 0.0
    %2520 = vmatprep.subr.mxu0 0.0
    %2521 = vmatpush1.msra.mxu0 0.0
    %2522 = vmatprep.subr.mxu0 0.0
    %2523 = vmatpush1.msra.mxu0 0.0
    %2524 = vmatprep.subr.mxu0 0.0
    %2525 = vmatpush1.msra.mxu0 0.0
    %2526 = vmatprep.subr.mxu0 0.0
    %2527 = vmatpush1.msra.mxu0 0.0
    %2528 = vmatprep.subr.mxu0 0.0
    %2529 = vmatpush1.msra.mxu0 0.0
    %2530 = vmatprep.subr.mxu0 0.0
    %2531 = vmatpush1.msra.mxu0 0.0
    %2532 = vmatprep.subr.mxu0 0.0
    %2533 = vmatpush1.msra.mxu0 0.0
    %2534 = vmatprep.subr.mxu0 0.0
    %2535 = vmatpush1.msra.mxu0 0.0
    %2536 = vmatprep.subr.mxu0 0.0
    %2537 = vmatpush1.msra.mxu0 0.0
    %2538 = vmatprep.subr.mxu0 0.0
    %2539 = vmatpush1.msra.mxu0 0.0
    %2540 = vmatprep.subr.mxu0 0.0
    %2541 = vmatpush1.msra.mxu0 0.0
    %2542 = vmatprep.subr.mxu0 0.0
    %2543 = vmatpush1.msra.mxu0 0.0
    %2544 = vmatprep.subr.mxu0 0.0
    %2545 = vmatpush1.msra.mxu0 0.0
    %2546 = vmatprep.subr.mxu0 0.0
    %2547 = vmatpush1.msra.mxu0 0.0
    %2548 = vmatprep.subr.mxu0 0.0
    %2549 = vmatpush1.msra.mxu0 0.0
    %2550 = vmatprep.mubr.f32.mxu0 0.0
    %2551 = vmatmul.mubr.f32.gmra.mrb[0].mxu0 %v2484
    %v2552 = vpop.f32.mrb[0].mxu0
    %v2553 = vadd.f32 0.0, %v2552
    %v2554 = vpop.f32.mrb[0].mxu0
    %2555 = vdwg.mxu0
    %v2557 = vsel %vm1480, %v2154, 0
    %2559 = vmatprep.subr.mxu0 0.0
    %2560 = vmatpush1.msra.mxu0 %v1478
    %2561 = vmatprep.subr.mxu0 0.0
    %2562 = vmatpush1.msra.mxu0 0.0
    %2563 = vmatprep.subr.mxu0 0.0
    %2564 = vmatpush1.msra.mxu0 0.0
    %2565 = vmatprep.subr.mxu0 0.0
    %2566 = vmatpush1.msra.mxu0 0.0
    %2567 = vmatprep.subr.mxu0 0.0
    %2568 = vmatpush1.msra.mxu0 0.0
    %2569 = vmatprep.subr.mxu0 0.0
    %2570 = vmatpush1.msra.mxu0 0.0
    %2571 = vmatprep.subr.mxu0 0.0
    %2572 = vmatpush1.msra.mxu0 0.0
    %2573 = vmatprep.subr.mxu0 0.0
    %2574 = vmatpush1.msra.mxu0 0.0
    %2575 = vmatprep.subr.mxu0 0.0
    %2576 = vmatpush1.msra.mxu0 0.0
    %2577 = vmatprep.subr.mxu0 0.0
    %2578 = vmatpush1.msra.mxu0 0.0
    %2579 = vmatprep.subr.mxu0 0.0
    %2580 = vmatpush1.msra.mxu0 0.0
    %2581 = vmatprep.subr.mxu0 0.0
    %2582 = vmatpush1.msra.mxu0 0.0
    %2583 = vmatprep.subr.mxu0 0.0
    %2584 = vmatpush1.msra.mxu0 0.0
    %2585 = vmatprep.subr.mxu0 0.0
    %2586 = vmatpush1.msra.mxu0 0.0
    %2587 = vmatprep.subr.mxu0 0.0
    %2588 = vmatpush1.msra.mxu0 0.0
    %2589 = vmatprep.subr.mxu0 0.0
    %2590 = vmatpush1.msra.mxu0 0.0
    %2591 = vmatprep.subr.mxu0 0.0
    %2592 = vmatpush1.msra.mxu0 0.0
    %2593 = vmatprep.subr.mxu0 0.0
    %2594 = vmatpush1.msra.mxu0 0.0
    %2595 = vmatprep.subr.mxu0 0.0
    %2596 = vmatpush1.msra.mxu0 0.0
    %2597 = vmatprep.subr.mxu0 0.0
    %2598 = vmatpush1.msra.mxu0 0.0
    %2599 = vmatprep.subr.mxu0 0.0
    %2600 = vmatpush1.msra.mxu0 0.0
    %2601 = vmatprep.subr.mxu0 0.0
    %2602 = vmatpush1.msra.mxu0 0.0
    %2603 = vmatprep.subr.mxu0 0.0
    %2604 = vmatpush1.msra.mxu0 0.0
    %2605 = vmatprep.subr.mxu0 0.0
    %2606 = vmatpush1.msra.mxu0 0.0
    %2607 = vmatprep.subr.mxu0 0.0
    %2608 = vmatpush1.msra.mxu0 0.0
    %2609 = vmatprep.subr.mxu0 0.0
    %2610 = vmatpush1.msra.mxu0 0.0
    %2611 = vmatprep.subr.mxu0 0.0
    %2612 = vmatpush1.msra.mxu0 0.0
    %2613 = vmatprep.subr.mxu0 0.0
    %2614 = vmatpush1.msra.mxu0 0.0
    %2615 = vmatprep.subr.mxu0 0.0
    %2616 = vmatpush1.msra.mxu0 0.0
    %2617 = vmatprep.subr.mxu0 0.0
    %2618 = vmatpush1.msra.mxu0 0.0
    %2619 = vmatprep.subr.mxu0 0.0
    %2620 = vmatpush1.msra.mxu0 0.0
    %2621 = vmatprep.subr.mxu0 0.0
    %2622 = vmatpush1.msra.mxu0 0.0
    %2623 = vmatprep.mubr.f32.mxu0 0.0
    %2624 = vmatmul.mubr.f32.gmra.mrb[0].mxu0 %v2557
    %v2625 = vpop.f32.mrb[0].mxu0
    %v2626 = vadd.f32 0.0, %v2625
    %v2627 = vpop.f32.mrb[0].mxu0
    %2628 = vdwg.mxu0
    %v2630 = vsel %vm1480, %v2156, 0
    %2632 = vmatprep.subr.mxu0 0.0
    %2633 = vmatpush1.msra.mxu0 %v1411
    %2634 = vmatprep.subr.mxu0 0.0
    %2635 = vmatpush1.msra.mxu0 0.0
    %2636 = vmatprep.subr.mxu0 0.0
    %2637 = vmatpush1.msra.mxu0 0.0
    %2638 = vmatprep.subr.mxu0 0.0
    %2639 = vmatpush1.msra.mxu0 0.0
    %2640 = vmatprep.subr.mxu0 0.0
    %2641 = vmatpush1.msra.mxu0 0.0
    %2642 = vmatprep.subr.mxu0 0.0
    %2643 = vmatpush1.msra.mxu0 0.0
    %2644 = vmatprep.subr.mxu0 0.0
    %2645 = vmatpush1.msra.mxu0 0.0
    %2646 = vmatprep.subr.mxu0 0.0
    %2647 = vmatpush1.msra.mxu0 0.0
    %2648 = vmatprep.subr.mxu0 0.0
    %2649 = vmatpush1.msra.mxu0 0.0
    %2650 = vmatprep.subr.mxu0 0.0
    %2651 = vmatpush1.msra.mxu0 0.0
    %2652 = vmatprep.subr.mxu0 0.0
    %2653 = vmatpush1.msra.mxu0 0.0
    %2654 = vmatprep.subr.mxu0 0.0
    %2655 = vmatpush1.msra.mxu0 0.0
    %2656 = vmatprep.subr.mxu0 0.0
    %2657 = vmatpush1.msra.mxu0 0.0
    %2658 = vmatprep.subr.mxu0 0.0
    %2659 = vmatpush1.msra.mxu0 0.0
    %2660 = vmatprep.subr.mxu0 0.0
    %2661 = vmatpush1.msra.mxu0 0.0
    %2662 = vmatprep.subr.mxu0 0.0
    %2663 = vmatpush1.msra.mxu0 0.0
    %2664 = vmatprep.subr.mxu0 0.0
    %2665 = vmatpush1.msra.mxu0 0.0
    %2666 = vmatprep.subr.mxu0 0.0
    %2667 = vmatpush1.msra.mxu0 0.0
    %2668 = vmatprep.subr.mxu0 0.0
    %2669 = vmatpush1.msra.mxu0 0.0
    %2670 = vmatprep.subr.mxu0 0.0
    %2671 = vmatpush1.msra.mxu0 0.0
    %2672 = vmatprep.subr.mxu0 0.0
    %2673 = vmatpush1.msra.mxu0 0.0
    %2674 = vmatprep.subr.mxu0 0.0
    %2675 = vmatpush1.msra.mxu0 0.0
    %2676 = vmatprep.subr.mxu0 0.0
    %2677 = vmatpush1.msra.mxu0 0.0
    %2678 = vmatprep.subr.mxu0 0.0
    %2679 = vmatpush1.msra.mxu0 0.0
    %2680 = vmatprep.subr.mxu0 0.0
    %2681 = vmatpush1.msra.mxu0 0.0
    %2682 = vmatprep.subr.mxu0 0.0
    %2683 = vmatpush1.msra.mxu0 0.0
    %2684 = vmatprep.subr.mxu0 0.0
    %2685 = vmatpush1.msra.mxu0 0.0
    %2686 = vmatprep.subr.mxu0 0.0
    %2687 = vmatpush1.msra.mxu0 0.0
    %2688 = vmatprep.subr.mxu0 0.0
    %2689 = vmatpush1.msra.mxu0 0.0
    %2690 = vmatprep.subr.mxu0 0.0
    %2691 = vmatpush1.msra.mxu0 0.0
    %2692 = vmatprep.subr.mxu0 0.0
    %2693 = vmatpush1.msra.mxu0 0.0
    %2694 = vmatprep.subr.mxu0 0.0
    %2695 = vmatpush1.msra.mxu0 0.0
    %2696 = vmatprep.mubr.f32.mxu0 0.0
    %2697 = vmatmul.mubr.f32.gmra.mrb[0].mxu0 %v2630
    %v2698 = vpop.f32.mrb[0].mxu0
    %v2699 = vadd.f32 0.0, %v2698
    %v2700 = vpop.f32.mrb[0].mxu0
    %2701 = vdwg.mxu0
    %v2703 = vsel %vm1480, %v2158, 0
    %2705 = vmatprep.subr.mxu0 0.0
    %2706 = vmatpush1.msra.mxu0 %v1479
    %2707 = vmatprep.subr.mxu0 0.0
    %2708 = vmatpush1.msra.mxu0 0.0
    %2709 = vmatprep.subr.mxu0 0.0
    %2710 = vmatpush1.msra.mxu0 0.0
    %2711 = vmatprep.subr.mxu0 0.0
    %2712 = vmatpush1.msra.mxu0 0.0
    %2713 = vmatprep.subr.mxu0 0.0
    %2714 = vmatpush1.msra.mxu0 0.0
    %2715 = vmatprep.subr.mxu0 0.0
    %2716 = vmatpush1.msra.mxu0 0.0
    %2717 = vmatprep.subr.mxu0 0.0
    %2718 = vmatpush1.msra.mxu0 0.0
    %2719 = vmatprep.subr.mxu0 0.0
    %2720 = vmatpush1.msra.mxu0 0.0
    %2721 = vmatprep.subr.mxu0 0.0
    %2722 = vmatpush1.msra.mxu0 0.0
    %2723 = vmatprep.subr.mxu0 0.0
    %2724 = vmatpush1.msra.mxu0 0.0
    %2725 = vmatprep.subr.mxu0 0.0
    %2726 = vmatpush1.msra.mxu0 0.0
    %2727 = vmatprep.subr.mxu0 0.0
    %2728 = vmatpush1.msra.mxu0 0.0
    %2729 = vmatprep.subr.mxu0 0.0
    %2730 = vmatpush1.msra.mxu0 0.0
    %2731 = vmatprep.subr.mxu0 0.0
    %2732 = vmatpush1.msra.mxu0 0.0
    %2733 = vmatprep.subr.mxu0 0.0
    %2734 = vmatpush1.msra.mxu0 0.0
    %2735 = vmatprep.subr.mxu0 0.0
    %2736 = vmatpush1.msra.mxu0 0.0
    %2737 = vmatprep.subr.mxu0 0.0
    %2738 = vmatpush1.msra.mxu0 0.0
    %2739 = vmatprep.subr.mxu0 0.0
    %2740 = vmatpush1.msra.mxu0 0.0
    %2741 = vmatprep.subr.mxu0 0.0
    %2742 = vmatpush1.msra.mxu0 0.0
    %2743 = vmatprep.subr.mxu0 0.0
    %2744 = vmatpush1.msra.mxu0 0.0
    %2745 = vmatprep.subr.mxu0 0.0
    %2746 = vmatpush1.msra.mxu0 0.0
    %2747 = vmatprep.subr.mxu0 0.0
    %2748 = vmatpush1.msra.mxu0 0.0
    %2749 = vmatprep.subr.mxu0 0.0
    %2750 = vmatpush1.msra.mxu0 0.0
    %2751 = vmatprep.subr.mxu0 0.0
    %2752 = vmatpush1.msra.mxu0 0.0
    %2753 = vmatprep.subr.mxu0 0.0
    %2754 = vmatpush1.msra.mxu0 0.0
    %2755 = vmatprep.subr.mxu0 0.0
    %2756 = vmatpush1.msra.mxu0 0.0
    %2757 = vmatprep.subr.mxu0 0.0
    %2758 = vmatpush1.msra.mxu0 0.0
    %2759 = vmatprep.subr.mxu0 0.0
    %2760 = vmatpush1.msra.mxu0 0.0
    %2761 = vmatprep.subr.mxu0 0.0
    %2762 = vmatpush1.msra.mxu0 0.0
    %2763 = vmatprep.subr.mxu0 0.0
    %2764 = vmatpush1.msra.mxu0 0.0
    %2765 = vmatprep.subr.mxu0 0.0
    %2766 = vmatpush1.msra.mxu0 0.0
    %2767 = vmatprep.subr.mxu0 0.0
    %2768 = vmatpush1.msra.mxu0 0.0
    %2769 = vmatprep.mubr.f32.mxu0 0.0
    %2770 = vmatmul.mubr.f32.gmra.mrb[0].mxu0 %v2703
    %v2771 = vpop.f32.mrb[0].mxu0
    %v2772 = vadd.f32 0.0, %v2771
    %v2773 = vpop.f32.mrb[0].mxu0
    %2774 = vdwg.mxu0
    %v2775 = vmul.f32 %v2261, %v2183
    %v2776 = vmul.f32 %v2334, %v2184
    %v2777 = vmul.f32 %v2407, %v2185
    %v2778 = vmul.f32 %v2480, %v2186
    %v2779 = vmul.f32 %v2553, %v2187
    %v2780 = vmul.f32 %v2626, %v2188
    %v2781 = vmul.f32 %v2699, %v2189
    %v2782 = vmul.f32 %v2772, %v2190
    %v2783 = vcombine.low %v2775, %v2779
    %v2784 = vcombine.high %v2775, %v2779
    %v2786 = vunpack.c.l.s4 1983009808
    %v2787 = vunpack.c.0.s8 %v2786
    %v2788 = vlaneseq
    %v2789 = vshrl.u32 %v2788, 7
    %v2790 = vsub.s32 %v2787, %v2789
    %v2791 = vrot.slane %v2783, %v2790
    %v2793 = vunpack.c.l.s4 1983009808
    %v2794 = vunpack.c.0.s8 %v2793
    %v2795 = vlaneseq
    %v2796 = vshrl.u32 %v2795, 7
    %v2797 = vsub.s32 %v2794, %v2796
    %v2798 = vrot.slane %v2784, %v2797
    %v2799 = vcombine.low %v2777, %v2781
    %v2800 = vcombine.high %v2777, %v2781
    %v2802 = vunpack.c.l.s4 1983009808
    %v2803 = vunpack.c.0.s8 %v2802
    %v2804 = vlaneseq
    %v2805 = vshrl.u32 %v2804, 7
    %v2806 = vsub.s32 %v2803, %v2805
    %v2807 = vrot.slane %v2799, %v2806
    %v2809 = vunpack.c.l.s4 1983009808
    %v2810 = vunpack.c.0.s8 %v2809
    %v2811 = vlaneseq
    %v2812 = vshrl.u32 %v2811, 7
    %v2813 = vsub.s32 %v2810, %v2812
    %v2814 = vrot.slane %v2800, %v2813
    %v2815 = vcombine.low %v2791, %v2807
    %v2816 = vcombine.high %v2791, %v2807
    %v2818 = vunpack.c.l.s4 1934713408
    %v2819 = vunpack.c.0.s8 %v2818
    %v2820 = vlaneseq
    %v2821 = vshrl.u32 %v2820, 7
    %v2822 = vsub.s32 %v2819, %v2821
    %v2823 = vrot.slane %v2815, %v2822
    %v2825 = vunpack.c.l.s4 1934713408
    %v2826 = vunpack.c.0.s8 %v2825
    %v2827 = vlaneseq
    %v2828 = vshrl.u32 %v2827, 7
    %v2829 = vsub.s32 %v2826, %v2828
    %v2830 = vrot.slane %v2816, %v2829
    %v2831 = vcombine.low %v2798, %v2814
    %v2832 = vcombine.high %v2798, %v2814
    %v2834 = vunpack.c.l.s4 1934713408
    %v2835 = vunpack.c.0.s8 %v2834
    %v2836 = vlaneseq
    %v2837 = vshrl.u32 %v2836, 7
    %v2838 = vsub.s32 %v2835, %v2837
    %v2839 = vrot.slane %v2831, %v2838
    %v2841 = vunpack.c.l.s4 1934713408
    %v2842 = vunpack.c.0.s8 %v2841
    %v2843 = vlaneseq
    %v2844 = vshrl.u32 %v2843, 7
    %v2845 = vsub.s32 %v2842, %v2844
    %v2846 = vrot.slane %v2832, %v2845
    %v2847 = vcombine.high %v2823, 0.0
    %v2848 = vcombine.high %v2830, 0.0
    %v2849 = vcombine.high %v2839, 0.0
    %v2850 = vcombine.high %v2846, 0.0
    %v2851 = vcombine.low %v2776, %v2780
    %v2852 = vcombine.high %v2776, %v2780
    %v2854 = vunpack.c.l.s4 1983009808
    %v2855 = vunpack.c.0.s8 %v2854
    %v2856 = vlaneseq
    %v2857 = vshrl.u32 %v2856, 7
    %v2858 = vsub.s32 %v2855, %v2857
    %v2859 = vrot.slane %v2851, %v2858
    %v2861 = vunpack.c.l.s4 1983009808
    %v2862 = vunpack.c.0.s8 %v2861
    %v2863 = vlaneseq
    %v2864 = vshrl.u32 %v2863, 7
    %v2865 = vsub.s32 %v2862, %v2864
    %v2866 = vrot.slane %v2852, %v2865
    %v2867 = vcombine.low %v2778, %v2782
    %v2868 = vcombine.high %v2778, %v2782
    %v2870 = vunpack.c.l.s4 1983009808
    %v2871 = vunpack.c.0.s8 %v2870
    %v2872 = vlaneseq
    %v2873 = vshrl.u32 %v2872, 7
    %v2874 = vsub.s32 %v2871, %v2873
    %v2875 = vrot.slane %v2867, %v2874
    %v2877 = vunpack.c.l.s4 1983009808
    %v2878 = vunpack.c.0.s8 %v2877
    %v2879 = vlaneseq
    %v2880 = vshrl.u32 %v2879, 7
    %v2881 = vsub.s32 %v2878, %v2880
    %v2882 = vrot.slane %v2868, %v2881
    %v2883 = vcombine.low %v2859, %v2875
    %v2884 = vcombine.high %v2859, %v2875
    %v2886 = vunpack.c.l.s4 1934713408
    %v2887 = vunpack.c.0.s8 %v2886
    %v2888 = vlaneseq
    %v2889 = vshrl.u32 %v2888, 7
    %v2890 = vsub.s32 %v2887, %v2889
    %v2891 = vrot.slane %v2883, %v2890
    %v2893 = vunpack.c.l.s4 1934713408
    %v2894 = vunpack.c.0.s8 %v2893
    %v2895 = vlaneseq
    %v2896 = vshrl.u32 %v2895, 7
    %v2897 = vsub.s32 %v2894, %v2896
    %v2898 = vrot.slane %v2884, %v2897
    %v2899 = vcombine.low %v2866, %v2882
    %v2900 = vcombine.high %v2866, %v2882
    %v2902 = vunpack.c.l.s4 1934713408
    %v2903 = vunpack.c.0.s8 %v2902
    %v2904 = vlaneseq
    %v2905 = vshrl.u32 %v2904, 7
    %v2906 = vsub.s32 %v2903, %v2905
    %v2907 = vrot.slane %v2899, %v2906
    %v2909 = vunpack.c.l.s4 1934713408
    %v2910 = vunpack.c.0.s8 %v2909
    %v2911 = vlaneseq
    %v2912 = vshrl.u32 %v2911, 7
    %v2913 = vsub.s32 %v2910, %v2912
    %v2914 = vrot.slane %v2900, %v2913
    %v2915 = vcombine.high %v2891, 0.0
    %v2916 = vcombine.high %v2898, 0.0
    %v2917 = vcombine.high %v2907, 0.0
    %v2918 = vcombine.high %v2914, 0.0
    %v2919 = vcombine.low %v2823, %v2830
    %v2921 = vunpack.c.l.s4 1983009808
    %v2922 = vunpack.c.0.s8 %v2921
    %v2923 = vlaneseq
    %v2924 = vshrl.u32 %v2923, 7
    %v2925 = vsub.s32 %v2922, %v2924
    %v2926 = vrot.slane %v2919, %v2925
    %v2927 = vcombine.low %v2847, %v2848
    %v2929 = vunpack.c.l.s4 1983009808
    %v2930 = vunpack.c.0.s8 %v2929
    %v2931 = vlaneseq
    %v2932 = vshrl.u32 %v2931, 7
    %v2933 = vsub.s32 %v2930, %v2932
    %v2934 = vrot.slane %v2927, %v2933
    %v2935 = vcombine.low %v2839, %v2846
    %v2937 = vunpack.c.l.s4 1983009808
    %v2938 = vunpack.c.0.s8 %v2937
    %v2939 = vlaneseq
    %v2940 = vshrl.u32 %v2939, 7
    %v2941 = vsub.s32 %v2938, %v2940
    %v2942 = vrot.slane %v2935, %v2941
    %v2943 = vcombine.low %v2849, %v2850
    %v2945 = vunpack.c.l.s4 1983009808
    %v2946 = vunpack.c.0.s8 %v2945
    %v2947 = vlaneseq
    %v2948 = vshrl.u32 %v2947, 7
    %v2949 = vsub.s32 %v2946, %v2948
    %v2950 = vrot.slane %v2943, %v2949
    %v2951 = vcombine.low %v2926, %v2934
    %v2952 = vcombine.high %v2926, %v2934
    %v2954 = vunpack.c.l.s4 1934713408
    %v2955 = vunpack.c.0.s8 %v2954
    %v2956 = vlaneseq
    %v2957 = vshrl.u32 %v2956, 7
    %v2958 = vsub.s32 %v2955, %v2957
    %v2959 = vrot.slane %v2951, %v2958
    %v2961 = vunpack.c.l.s4 1934713408
    %v2962 = vunpack.c.0.s8 %v2961
    %v2963 = vlaneseq
    %v2964 = vshrl.u32 %v2963, 7
    %v2965 = vsub.s32 %v2962, %v2964
    %v2966 = vrot.slane %v2952, %v2965
    %v2967 = vcombine.low %v2942, %v2950
    %v2968 = vcombine.high %v2942, %v2950
    %v2970 = vunpack.c.l.s4 1934713408
    %v2971 = vunpack.c.0.s8 %v2970
    %v2972 = vlaneseq
    %v2973 = vshrl.u32 %v2972, 7
    %v2974 = vsub.s32 %v2971, %v2973
    %v2975 = vrot.slane %v2967, %v2974
    %v2977 = vunpack.c.l.s4 1934713408
    %v2978 = vunpack.c.0.s8 %v2977
    %v2979 = vlaneseq
    %v2980 = vshrl.u32 %v2979, 7
    %v2981 = vsub.s32 %v2978, %v2980
    %v2982 = vrot.slane %v2968, %v2981
    %v2983 = vcombine.low %v2959, %v2975
    %v2984 = vcombine.high %v2959, %v2975
    %v2985 = vcombine.low %v2966, %v2982
    %v2986 = vcombine.high %v2966, %v2982
    %v2987 = vcombine.low %v2891, %v2898
    %v2989 = vunpack.c.l.s4 1983009808
    %v2990 = vunpack.c.0.s8 %v2989
    %v2991 = vlaneseq
    %v2992 = vshrl.u32 %v2991, 7
    %v2993 = vsub.s32 %v2990, %v2992
    %v2994 = vrot.slane %v2987, %v2993
    %v2995 = vcombine.low %v2915, %v2916
    %v2997 = vunpack.c.l.s4 1983009808
    %v2998 = vunpack.c.0.s8 %v2997
    %v2999 = vlaneseq
    %v3000 = vshrl.u32 %v2999, 7
    %v3001 = vsub.s32 %v2998, %v3000
    %v3002 = vrot.slane %v2995, %v3001
    %v3003 = vcombine.low %v2907, %v2914
    %v3005 = vunpack.c.l.s4 1983009808
    %v3006 = vunpack.c.0.s8 %v3005
    %v3007 = vlaneseq
    %v3008 = vshrl.u32 %v3007, 7
    %v3009 = vsub.s32 %v3006, %v3008
    %v3010 = vrot.slane %v3003, %v3009
    %v3011 = vcombine.low %v2917, %v2918
    %v3013 = vunpack.c.l.s4 1983009808
    %v3014 = vunpack.c.0.s8 %v3013
    %v3015 = vlaneseq
    %v3016 = vshrl.u32 %v3015, 7
    %v3017 = vsub.s32 %v3014, %v3016
    %v3018 = vrot.slane %v3011, %v3017
    %v3019 = vcombine.low %v2994, %v3002
    %v3020 = vcombine.high %v2994, %v3002
    %v3022 = vunpack.c.l.s4 1934713408
    %v3023 = vunpack.c.0.s8 %v3022
    %v3024 = vlaneseq
    %v3025 = vshrl.u32 %v3024, 7
    %v3026 = vsub.s32 %v3023, %v3025
    %v3027 = vrot.slane %v3019, %v3026
    %v3029 = vunpack.c.l.s4 1934713408
    %v3030 = vunpack.c.0.s8 %v3029
    %v3031 = vlaneseq
    %v3032 = vshrl.u32 %v3031, 7
    %v3033 = vsub.s32 %v3030, %v3032
    %v3034 = vrot.slane %v3020, %v3033
    %v3035 = vcombine.low %v3010, %v3018
    %v3036 = vcombine.high %v3010, %v3018
    %v3038 = vunpack.c.l.s4 1934713408
    %v3039 = vunpack.c.0.s8 %v3038
    %v3040 = vlaneseq
    %v3041 = vshrl.u32 %v3040, 7
    %v3042 = vsub.s32 %v3039, %v3041
    %v3043 = vrot.slane %v3035, %v3042
    %v3045 = vunpack.c.l.s4 1934713408
    %v3046 = vunpack.c.0.s8 %v3045
    %v3047 = vlaneseq
    %v3048 = vshrl.u32 %v3047, 7
    %v3049 = vsub.s32 %v3046, %v3048
    %v3050 = vrot.slane %v3036, %v3049
    %v3051 = vcombine.low %v3027, %v3043
    %v3052 = vcombine.high %v3027, %v3043
    %v3053 = vcombine.low %v3034, %v3050
    %v3054 = vcombine.high %v3034, %v3050
    %3057 = vrot.lane.b32.xlu0 %v2984, 8
    %v3058 = vpop.permute.xlu0 %3057
    %3059 = vrot.lane.b32.xlu0 %v3052, 8
    %v3060 = vpop.permute.xlu0 %3059
    %3065 = vrot.lane.b32.xlu0 %v2985, 16
    %v3066 = vpop.permute.xlu0 %3065
    %3067 = vrot.lane.b32.xlu0 %v3053, 16
    %v3068 = vpop.permute.xlu0 %3067
    %3073 = vrot.lane.b32.xlu0 %v2986, 24
    %v3074 = vpop.permute.xlu0 %3073
    %3075 = vrot.lane.b32.xlu0 %v3054, 24
    %v3076 = vpop.permute.xlu0 %3075
    %v3079 = vsel %vm1480, %v2983, %v3058
    %v3080 = vsel %vm1480, %v3051, %v3060
    %vm3081 = vcmask 130048
    %v3082 = vsel %vm3081, %v3079, %v3066
    %v3083 = vsel %vm3081, %v3080, %v3068
    %vm3084 = vcmask 195584
    %v3085 = vsel %vm3084, %v3082, %v3074
    %v3086 = vsel %vm3084, %v3083, %v3076
    %v3087 = vld [vmem:[#allocation19] sm:$0xff]
    %v3088 = vld [vmem:[#allocation19 + $0x8] sm:$0xff]
    %v3089 = vld [vmem:[#allocation19 + $0x10] sm:$0xff]
    %v3090 = vld [vmem:[#allocation19 + $0x18] sm:$0xff]
    %v3091 = vld [vmem:[#allocation20] sm:$0x1]
    %v3093 = vlaneseq
    %v3094 = vshrl.u32 %v3093, 7
    %v3095 = vsub.s32 0, %v3094
    %v3096 = vrot.slane %v3091, %v3095
    %v3099 = vsel %vm336, %v3085, 0
    %v3102 = vsel %vm336, %v3086, 0
    %3104 = vmatprep.subr.mxu0 0.0
    %3105 = vmatpush1.msra.mxu0 %v3087
    %3106 = vmatprep.subr.mxu0 0.0
    %3107 = vmatpush1.msra.mxu0 %v3088
    %3108 = vmatprep.subr.mxu0 0.0
    %3109 = vmatpush1.msra.mxu0 %v3089
    %3110 = vmatprep.subr.mxu0 0.0
    %3111 = vmatpush1.msra.mxu0 %v3090
    %3112 = vmatprep.subr.mxu0 0.0
    %3113 = vmatpush1.msra.mxu0 0.0
    %3114 = vmatprep.subr.mxu0 0.0
    %3115 = vmatpush1.msra.mxu0 0.0
    %3116 = vmatprep.subr.mxu0 0.0
    %3117 = vmatpush1.msra.mxu0 0.0
    %3118 = vmatprep.subr.mxu0 0.0
    %3119 = vmatpush1.msra.mxu0 0.0
    %3120 = vmatprep.subr.mxu0 0.0
    %3121 = vmatpush1.msra.mxu0 0.0
    %3122 = vmatprep.subr.mxu0 0.0
    %3123 = vmatpush1.msra.mxu0 0.0
    %3124 = vmatprep.subr.mxu0 0.0
    %3125 = vmatpush1.msra.mxu0 0.0
    %3126 = vmatprep.subr.mxu0 0.0
    %3127 = vmatpush1.msra.mxu0 0.0
    %3128 = vmatprep.subr.mxu0 0.0
    %3129 = vmatpush1.msra.mxu0 0.0
    %3130 = vmatprep.subr.mxu0 0.0
    %3131 = vmatpush1.msra.mxu0 0.0
    %3132 = vmatprep.subr.mxu0 0.0
    %3133 = vmatpush1.msra.mxu0 0.0
    %3134 = vmatprep.subr.mxu0 0.0
    %3135 = vmatpush1.msra.mxu0 0.0
    %3136 = vmatprep.subr.mxu0 0.0
    %3137 = vmatpush1.msra.mxu0 0.0
    %3138 = vmatprep.subr.mxu0 0.0
    %3139 = vmatpush1.msra.mxu0 0.0
    %3140 = vmatprep.subr.mxu0 0.0
    %3141 = vmatpush1.msra.mxu0 0.0
    %3142 = vmatprep.subr.mxu0 0.0
    %3143 = vmatpush1.msra.mxu0 0.0
    %3144 = vmatprep.subr.mxu0 0.0
    %3145 = vmatpush1.msra.mxu0 0.0
    %3146 = vmatprep.subr.mxu0 0.0
    %3147 = vmatpush1.msra.mxu0 0.0
    %3148 = vmatprep.subr.mxu0 0.0
    %3149 = vmatpush1.msra.mxu0 0.0
    %3150 = vmatprep.subr.mxu0 0.0
    %3151 = vmatpush1.msra.mxu0 0.0
    %3152 = vmatprep.subr.mxu0 0.0
    %3153 = vmatpush1.msra.mxu0 0.0
    %3154 = vmatprep.subr.mxu0 0.0
    %3155 = vmatpush1.msra.mxu0 0.0
    %3156 = vmatprep.subr.mxu0 0.0
    %3157 = vmatpush1.msra.mxu0 0.0
    %3158 = vmatprep.subr.mxu0 0.0
    %3159 = vmatpush1.msra.mxu0 0.0
    %3160 = vmatprep.subr.mxu0 0.0
    %3161 = vmatpush1.msra.mxu0 0.0
    %3162 = vmatprep.subr.mxu0 0.0
    %3163 = vmatpush1.msra.mxu0 0.0
    %3164 = vmatprep.subr.mxu0 0.0
    %3165 = vmatpush1.msra.mxu0 0.0
    %3166 = vmatprep.subr.mxu0 0.0
    %3167 = vmatpush1.msra.mxu0 0.0
    %3168 = vmatprep.mubr.f32.mxu0 0.0
    %3169 = vmatmul.mubr.f32.gmra.mrb[0].mxu0 %v3099
    %v3170 = vpop.f32.mrb[0].mxu0
    %v3171 = vadd.f32 %v3096, %v3170
    %v3172 = vpop.f32.mrb[0].mxu0
    %3173 = vmatprep.mubr.f32.mxu0 0.0
    %3174 = vmatmul.mubr.f32.gmra.mrb[0].mxu0 %v3102
    %v3175 = vpop.f32.mrb[0].mxu0
    %v3176 = vadd.f32 %v3096, %v3175
    %v3177 = vpop.f32.mrb[0].mxu0
    %3178 = vdwg.mxu0
    %v3179 = vadd.f32 %v319, %v3171
    %v3180 = vadd.f32 %v320, %v3176
    %v3181 = vld [vmem:[#allocation22] sm:$0x1]
    %v3182 = vld [vmem:[#allocation23] sm:$0x1]
    %v3183 = vsel %vm336, %v3179, 0.0
    %3184 = vadd.xlane.f32.xlu0 %v3183
    %v3185 = vpop.xlane.xlu0 %3184
    %v3186 = vsel %vm336, %v3180, 0.0
    %3187 = vadd.xlane.f32.xlu0 %v3186
    %v3188 = vpop.xlane.xlu0 %3187
    %v3189 = vrcp.pop 32.0
    %v3190 = vmul.f32 %v3185, %v3189
    %v3191 = vmul.f32 %v3188, %v3189
    %v3192 = vsub.f32 %v3179, %v3190
    %v3193 = vsub.f32 %v3180, %v3191
    %v3194 = vmul.f32 %v3192, %v3192
    %v3195 = vmul.f32 %v3193, %v3193
    %v3196 = vsel %vm336, %v3194, 0.0
    %3197 = vadd.xlane.f32.xlu0 %v3196
    %v3198 = vpop.xlane.xlu0 %3197
    %v3199 = vsel %vm336, %v3195, 0.0
    %3200 = vadd.xlane.f32.xlu0 %v3199
    %v3201 = vpop.xlane.xlu0 %3200
    %v3202 = vmul.f32 %v3198, %v3189
    %v3203 = vmul.f32 %v3201, %v3189
    %v3204 = vadd.f32 %v3202, 1e-06
    %v3205 = vadd.f32 %v3203, 1e-06
    %v3206 = vrsqrt.pop %v3204
    %v3207 = vrsqrt.pop %v3205
    %v3208 = vmul.f32 %v3192, %v3206
    %v3209 = vmul.f32 %v3193, %v3207
    %v3211 = vlaneseq
    %v3212 = vshrl.u32 %v3211, 7
    %v3213 = vsub.s32 0, %v3212
    %v3214 = vrot.slane %v3181, %v3213
    %v3216 = vmul.f32 %v3208, %v3214
    %v3217 = vmul.f32 %v3209, %v3214
    %v3219 = vlaneseq
    %v3220 = vshrl.u32 %v3219, 7
    %v3221 = vsub.s32 0, %v3220
    %v3222 = vrot.slane %v3182, %v3221
    %v3224 = vadd.f32 %v3216, %v3222
    %v3225 = vadd.f32 %v3217, %v3222
    %v3226 = vld [vmem:[#allocation25] sm:$0xff]
    %v3227 = vld [vmem:[#allocation25 + $0x8] sm:$0xff]
    %v3228 = vld [vmem:[#allocation25 + $0x10] sm:$0xff]
    %v3229 = vld [vmem:[#allocation25 + $0x18] sm:$0xff]
    %v3230 = vld [vmem:[#allocation26] sm:$0x1]
    %v3232 = vlaneseq
    %v3233 = vshrl.u32 %v3232, 7
    %v3234 = vsub.s32 0, %v3233
    %v3235 = vrot.slane %v3230, %v3234
    %v3238 = vsel %vm336, %v3224, 0
    %v3241 = vsel %vm336, %v3225, 0
    %3243 = vmatprep.subr.mxu0 0.0
    %3244 = vmatpush1.msra.mxu0 %v3226
    %3245 = vmatprep.subr.mxu0 0.0
    %3246 = vmatpush1.msra.mxu0 %v3227
    %3247 = vmatprep.subr.mxu0 0.0
    %3248 = vmatpush1.msra.mxu0 %v3228
    %3249 = vmatprep.subr.mxu0 0.0
    %3250 = vmatpush1.msra.mxu0 %v3229
    %3251 = vmatprep.subr.mxu0 0.0
    %3252 = vmatpush1.msra.mxu0 0.0
    %3253 = vmatprep.subr.mxu0 0.0
    %3254 = vmatpush1.msra.mxu0 0.0
    %3255 = vmatprep.subr.mxu0 0.0
    %3256 = vmatpush1.msra.mxu0 0.0
    %3257 = vmatprep.subr.mxu0 0.0
    %3258 = vmatpush1.msra.mxu0 0.0
    %3259 = vmatprep.subr.mxu0 0.0
    %3260 = vmatpush1.msra.mxu0 0.0
    %3261 = vmatprep.subr.mxu0 0.0
    %3262 = vmatpush1.msra.mxu0 0.0
    %3263 = vmatprep.subr.mxu0 0.0
    %3264 = vmatpush1.msra.mxu0 0.0
    %3265 = vmatprep.subr.mxu0 0.0
    %3266 = vmatpush1.msra.mxu0 0.0
    %3267 = vmatprep.subr.mxu0 0.0
    %3268 = vmatpush1.msra.mxu0 0.0
    %3269 = vmatprep.subr.mxu0 0.0
    %3270 = vmatpush1.msra.mxu0 0.0
    %3271 = vmatprep.subr.mxu0 0.0
    %3272 = vmatpush1.msra.mxu0 0.0
    %3273 = vmatprep.subr.mxu0 0.0
    %3274 = vmatpush1.msra.mxu0 0.0
    %3275 = vmatprep.subr.mxu0 0.0
    %3276 = vmatpush1.msra.mxu0 0.0
    %3277 = vmatprep.subr.mxu0 0.0
    %3278 = vmatpush1.msra.mxu0 0.0
    %3279 = vmatprep.subr.mxu0 0.0
    %3280 = vmatpush1.msra.mxu0 0.0
    %3281 = vmatprep.subr.mxu0 0.0
    %3282 = vmatpush1.msra.mxu0 0.0
    %3283 = vmatprep.subr.mxu0 0.0
    %3284 = vmatpush1.msra.mxu0 0.0
    %3285 = vmatprep.subr.mxu0 0.0
    %3286 = vmatpush1.msra.mxu0 0.0
    %3287 = vmatprep.subr.mxu0 0.0
    %3288 = vmatpush1.msra.mxu0 0.0
    %3289 = vmatprep.subr.mxu0 0.0
    %3290 = vmatpush1.msra.mxu0 0.0
    %3291 = vmatprep.subr.mxu0 0.0
    %3292 = vmatpush1.msra.mxu0 0.0
    %3293 = vmatprep.subr.mxu0 0.0
    %3294 = vmatpush1.msra.mxu0 0.0
    %3295 = vmatprep.subr.mxu0 0.0
    %3296 = vmatpush1.msra.mxu0 0.0
    %3297 = vmatprep.subr.mxu0 0.0
    %3298 = vmatpush1.msra.mxu0 0.0
    %3299 = vmatprep.subr.mxu0 0.0
    %3300 = vmatpush1.msra.mxu0 0.0
    %3301 = vmatprep.subr.mxu0 0.0
    %3302 = vmatpush1.msra.mxu0 0.0
    %3303 = vmatprep.subr.mxu0 0.0
    %3304 = vmatpush1.msra.mxu0 0.0
    %3305 = vmatprep.subr.mxu0 0.0
    %3306 = vmatpush1.msra.mxu0 0.0
    %3307 = vmatprep.mubr.f32.mxu0 0.0
    %3308 = vmatmul.mubr.f32.gmra.mrb[0].mxu0 %v3238
    %v3309 = vpop.f32.mrb[0].mxu0
    %v3310 = vadd.f32 %v3235, %v3309
    %v3311 = vpop.f32.mrb[0].mxu0
    %3312 = vmatprep.mubr.f32.mxu0 0.0
    %3313 = vmatmul.mubr.f32.gmra.mrb[0].mxu0 %v3241
    %v3314 = vpop.f32.mrb[0].mxu0
    %v3315 = vadd.f32 %v3235, %v3314
    %v3316 = vpop.f32.mrb[0].mxu0
    %3317 = vdwg.mxu0
    %v3318 = vmax.f32 %v3310, 0.0
    %v3319 = vmax.f32 %v3315, 0.0
    %v3320 = vld [vmem:[#allocation28] sm:$0xff]
    %v3321 = vld [vmem:[#allocation28 + $0x8] sm:$0xff]
    %v3322 = vld [vmem:[#allocation28 + $0x10] sm:$0xff]
    %v3323 = vld [vmem:[#allocation28 + $0x18] sm:$0xff]
    %v3324 = vld [vmem:[#allocation28 + $0x20] sm:$0xff]
    %v3325 = vld [vmem:[#allocation28 + $0x28] sm:$0xff]
    %v3326 = vld [vmem:[#allocation28 + $0x30] sm:$0xff]
    %v3327 = vld [vmem:[#allocation28 + $0x38] sm:$0xff]
    %v3328 = vld [vmem:[#allocation29] sm:$0x1]
    %v3330 = vlaneseq
    %v3331 = vshrl.u32 %v3330, 7
    %v3332 = vsub.s32 0, %v3331
    %v3333 = vrot.slane %v3328, %v3332
    %vm3335 = vcmask 523264
    %v3337 = vsel %vm3335, %v3318, 0
    %v3340 = vsel %vm3335, %v3319, 0
    %3342 = vmatprep.subr.mxu0 0.0
    %3343 = vmatpush1.msra.mxu0 %v3320
    %3344 = vmatprep.subr.mxu0 0.0
    %3345 = vmatpush1.msra.mxu0 %v3321
    %3346 = vmatprep.subr.mxu0 0.0
    %3347 = vmatpush1.msra.mxu0 %v3322
    %3348 = vmatprep.subr.mxu0 0.0
    %3349 = vmatpush1.msra.mxu0 %v3323
    %3350 = vmatprep.subr.mxu0 0.0
    %3351 = vmatpush1.msra.mxu0 %v3324
    %3352 = vmatprep.subr.mxu0 0.0
    %3353 = vmatpush1.msra.mxu0 %v3325
    %3354 = vmatprep.subr.mxu0 0.0
    %3355 = vmatpush1.msra.mxu0 %v3326
    %3356 = vmatprep.subr.mxu0 0.0
    %3357 = vmatpush1.msra.mxu0 %v3327
    %3358 = vmatprep.subr.mxu0 0.0
    %3359 = vmatpush1.msra.mxu0 0.0
    %3360 = vmatprep.subr.mxu0 0.0
    %3361 = vmatpush1.msra.mxu0 0.0
    %3362 = vmatprep.subr.mxu0 0.0
    %3363 = vmatpush1.msra.mxu0 0.0
    %3364 = vmatprep.subr.mxu0 0.0
    %3365 = vmatpush1.msra.mxu0 0.0
    %3366 = vmatprep.subr.mxu0 0.0
    %3367 = vmatpush1.msra.mxu0 0.0
    %3368 = vmatprep.subr.mxu0 0.0
    %3369 = vmatpush1.msra.mxu0 0.0
    %3370 = vmatprep.subr.mxu0 0.0
    %3371 = vmatpush1.msra.mxu0 0.0
    %3372 = vmatprep.subr.mxu0 0.0
    %3373 = vmatpush1.msra.mxu0 0.0
    %3374 = vmatprep.subr.mxu0 0.0
    %3375 = vmatpush1.msra.mxu0 0.0
    %3376 = vmatprep.subr.mxu0 0.0
    %3377 = vmatpush1.msra.mxu0 0.0
    %3378 = vmatprep.subr.mxu0 0.0
    %3379 = vmatpush1.msra.mxu0 0.0
    %3380 = vmatprep.subr.mxu0 0.0
    %3381 = vmatpush1.msra.mxu0 0.0
    %3382 = vmatprep.subr.mxu0 0.0
    %3383 = vmatpush1.msra.mxu0 0.0
    %3384 = vmatprep.subr.mxu0 0.0
    %3385 = vmatpush1.msra.mxu0 0.0
    %3386 = vmatprep.subr.mxu0 0.0
    %3387 = vmatpush1.msra.mxu0 0.0
    %3388 = vmatprep.subr.mxu0 0.0
    %3389 = vmatpush1.msra.mxu0 0.0
    %3390 = vmatprep.subr.mxu0 0.0
    %3391 = vmatpush1.msra.mxu0 0.0
    %3392 = vmatprep.subr.mxu0 0.0
    %3393 = vmatpush1.msra.mxu0 0.0
    %3394 = vmatprep.subr.mxu0 0.0
    %3395 = vmatpush1.msra.mxu0 0.0
    %3396 = vmatprep.subr.mxu0 0.0
    %3397 = vmatpush1.msra.mxu0 0.0
    %3398 = vmatprep.subr.mxu0 0.0
    %3399 = vmatpush1.msra.mxu0 0.0
    %3400 = vmatprep.subr.mxu0 0.0
    %3401 = vmatpush1.msra.mxu0 0.0
    %3402 = vmatprep.subr.mxu0 0.0
    %3403 = vmatpush1.msra.mxu0 0.0
    %3404 = vmatprep.subr.mxu0 0.0
    %3405 = vmatpush1.msra.mxu0 0.0
    %3406 = vmatprep.mubr.f32.mxu0 0.0
    %3407 = vmatmul.mubr.f32.gmra.mrb[0].mxu0 %v3337
    %v3408 = vpop.f32.mrb[0].mxu0
    %v3409 = vadd.f32 %v3333, %v3408
    %v3410 = vpop.f32.mrb[0].mxu0
    %3411 = vmatprep.mubr.f32.mxu0 0.0
    %3412 = vmatmul.mubr.f32.gmra.mrb[0].mxu0 %v3340
    %v3413 = vpop.f32.mrb[0].mxu0
    %v3414 = vadd.f32 %v3333, %v3413
    %v3415 = vpop.f32.mrb[0].mxu0
    %3416 = vdwg.mxu0
    %v3417 = vadd.f32 %v3224, %v3409
    %v3418 = vadd.f32 %v3225, %v3414
    %v3419 = vld [vmem:[#allocation31] sm:$0x1]
    %v3420 = vld [vmem:[#allocation32] sm:$0x1]
    %v3421 = vsel %vm336, %v3417, 0.0
    %3422 = vadd.xlane.f32.xlu0 %v3421
    %v3423 = vpop.xlane.xlu0 %3422
    %v3424 = vsel %vm336, %v3418, 0.0
    %3425 = vadd.xlane.f32.xlu0 %v3424
    %v3426 = vpop.xlane.xlu0 %3425
    %v3427 = vmul.f32 %v3423, %v3189
    %v3428 = vmul.f32 %v3426, %v3189
    %v3429 = vsub.f32 %v3417, %v3427
    %v3430 = vsub.f32 %v3418, %v3428
    %v3431 = vmul.f32 %v3429, %v3429
    %v3432 = vmul.f32 %v3430, %v3430
    %v3433 = vsel %vm336, %v3431, 0.0
    %3434 = vadd.xlane.f32.xlu0 %v3433
    %v3435 = vpop.xlane.xlu0 %3434
    %v3436 = vsel %vm336, %v3432, 0.0
    %3437 = vadd.xlane.f32.xlu0 %v3436
    %v3438 = vpop.xlane.xlu0 %3437
    %v3439 = vmul.f32 %v3435, %v3189
    %v3440 = vmul.f32 %v3438, %v3189
    %v3441 = vadd.f32 %v3439, 1e-06
    %v3442 = vadd.f32 %v3440, 1e-06
    %v3443 = vrsqrt.pop %v3441
    %v3444 = vrsqrt.pop %v3442
    %v3445 = vmul.f32 %v3429, %v3443
    %v3446 = vmul.f32 %v3430, %v3444
    %v3448 = vlaneseq
    %v3449 = vshrl.u32 %v3448, 7
    %v3450 = vsub.s32 0, %v3449
    %v3451 = vrot.slane %v3419, %v3450
    %v3453 = vmul.f32 %v3445, %v3451
    %v3454 = vmul.f32 %v3446, %v3451
    %v3456 = vlaneseq
    %v3457 = vshrl.u32 %v3456, 7
    %v3458 = vsub.s32 0, %v3457
    %v3459 = vrot.slane %v3420, %v3458
    %v3461 = vadd.f32 %v3453, %v3459
    %v3462 = vadd.f32 %v3454, %v3459
    %3463 = vst.msk [vmem:[#allocation34] sm:$0xff] %vm336, %v3461
    %3464 = vst.msk [vmem:[#allocation34 + $0x8] sm:$0xff] %vm336, %v3462
    // Predicated region
    $region162: #{tpu_custom_call.1} parent=1 // pred_check
      _
    $region163: #{tpu_custom_call.1} parent=1 // pred_check_branch
      %3466 = sbr.rel (0) target = $region165
    $region164: #{tpu_custom_call.1} parent=1 // pred_region
      %s3468 = ssub.s32 256, 256
      %3469 = vsyncadd [#allocation4], %s3468
      %s3470 = sshll.u32 [#allocation34], 4
      %s3471 = int_to_ptr.vmem [resolvable:$true] %s3470
      %3476 = dma.vmem_to_hbm [thread:$0]  %s3471, 256, %s20, [#allocation4], 128, 128, 8
    $region165: #{tpu_custom_call.1} parent=1 // pred_fallthru
      _
    // Predicated region
    $region166: #{tpu_custom_call.1} parent=1 // pred_check
      _
    $region167: #{tpu_custom_call.1} parent=1 // pred_check_branch
      %3478 = sbr.rel (0) target = $region169
    $region168: #{tpu_custom_call.1} parent=1 // pred_region
      %3479 = dma.done [#allocation4], 256
    $region169: #{tpu_custom_call.1} parent=1 // pred_fallthru
      _
    %3480 = vsyncpa [#allocation3], 1
    %3481 = vsyncpa [#allocation6], 1
    %3482 = vsyncpa [#allocation9], 1
    %3483 = vsyncpa [#allocation12], 1
    %3484 = vsyncpa [#allocation15], 1
    %3485 = vsyncpa [#allocation18], 1
    %3486 = vsyncpa [#allocation21], 1
    %3487 = vsyncpa [#allocation24], 1
    %3488 = vsyncpa [#allocation27], 1
    %3489 = vsyncpa [#allocation30], 1
    %3490 = vsyncpa [#allocation33], 1
    %3491 = vsyncpa [#allocation4], 1

// kernel: tpu_custom_call.1
$region0: #{tpu_custom_call.1}
  #allocation0 [shape = 'u32[]', space=smem, size = 0x4, offset = 0x4, fixed_abs, tag = 'smem constant byte address 0x4 - core index']
  #allocation1 [shape = 'u32[144,128]{1,0:T(1,128)}', space=vmem, size = 0x12000, scoped, tag = 'internal scratch']
  %s0 = inlined_call_operand.hbm [shape: f32[2,8,32], index: 0, kind: input, shape index: {}]
  %s1 = inlined_call_operand.hbm [shape: f32[2,8,32], index: 1, kind: input, shape index: {}]
  %s2 = inlined_call_operand.hbm [shape: f32[2,8,32], index: 2, kind: input, shape index: {}]
  %s3 = inlined_call_operand.hbm [shape: s8[2,1,8,8], index: 3, kind: input, shape index: {}]
  %s4 = inlined_call_operand.hbm [shape: f32[32,32], index: 4, kind: input, shape index: {}]
  %s5 = inlined_call_operand.hbm [shape: f32[1,32], index: 5, kind: input, shape index: {}]
  %s6 = inlined_call_operand.hbm [shape: f32[32,32], index: 6, kind: input, shape index: {}]
  %s7 = inlined_call_operand.hbm [shape: f32[1,32], index: 7, kind: input, shape index: {}]
  %s8 = inlined_call_operand.hbm [shape: f32[32,32], index: 8, kind: input, shape index: {}]
  %s9 = inlined_call_operand.hbm [shape: f32[1,32], index: 9, kind: input, shape index: {}]
  %s10 = inlined_call_operand.hbm [shape: f32[32,32], index: 10, kind: input, shape index: {}]
  %s11 = inlined_call_operand.hbm [shape: f32[1,32], index: 11, kind: input, shape index: {}]
  %s12 = inlined_call_operand.hbm [shape: f32[1,32], index: 12, kind: input, shape index: {}]
  %s13 = inlined_call_operand.hbm [shape: f32[1,32], index: 13, kind: input, shape index: {}]
  %s14 = inlined_call_operand.hbm [shape: f32[32,64], index: 14, kind: input, shape index: {}]
  %s15 = inlined_call_operand.hbm [shape: f32[1,64], index: 15, kind: input, shape index: {}]
  %s16 = inlined_call_operand.hbm [shape: f32[64,32], index: 16, kind: input, shape index: {}]
  %s17 = inlined_call_operand.hbm [shape: f32[1,32], index: 17, kind: input, shape index: {}]
  %s18 = inlined_call_operand.hbm [shape: f32[1,32], index: 18, kind: input, shape index: {}]
  %s19 = inlined_call_operand.hbm [shape: f32[1,32], index: 19, kind: input, shape index: {}]
  %s20 = inlined_call_operand.hbm [shape: f32[2,8,32], index: 20, kind: output, shape index: {}]
  %s21 = sld [smem:[#allocation0]]
  $region170: #{tpu_custom_call.1} parent=0
    _
  %s23 = ssub.s32 1, %s21
  %s24 = scalar_select 0, %s23, %s21
  $region1: #{tpu_custom_call.1} parent=0
    #allocation2 [shape = 'u8[8192]{0}', space=vmem, size = 0x2000, scoped, tag = 'input window, operand 0, single buffered']
    #allocation3 [shape = 's32[1]{0}', space=sflag, size = 0x4, scoped, tag = 'scoped memory for tpu_custom_call.1']
    #allocation4 [shape = 's32[1]{0}', space=sflag, size = 0x4, scoped, tag = 'scoped memory for tpu_custom_call.1']
    #allocation5 [shape = 'u8[8192]{0}', space=vmem, size = 0x2000, scoped, tag = 'input window, operand 1, single buffered']
    #allocation6 [shape = 's32[1]{0}', space=sflag, size = 0x4, scoped, tag = 'scoped memory for tpu_custom_call.1']
    #allocation7 [shape = 'u8[8192]{0}', space=vmem, size = 0x2000, scoped, tag = 'input window, operand 2, single buffered']
    #allocation8 [shape = 'u8[2048]{0}', space=vmem, size = 0x800, scoped, tag = 'input window, operand 3, single buffered']
    #allocation9 [shape = 's32[1]{0}', space=sflag, size = 0x4, scoped, tag = 'scoped memory for tpu_custom_call.1']
    #allocation10 [shape = 'u8[16384]{0}', space=vmem, size = 0x4000, scoped, tag = 'input window, operand 4, single buffered']
    #allocation11 [shape = 'u8[512]{0}', space=vmem, size = 0x400, scoped, tag = 'input window, operand 5, single buffered']
    #allocation12 [shape = 's32[1]{0}', space=sflag, size = 0x4, scoped, tag = 'scoped memory for tpu_custom_call.1']
    #allocation13 [shape = 'u8[16384]{0}', space=vmem, size = 0x4000, scoped, tag = 'input window, operand 6, single buffered']
    #allocation14 [shape = 'u8[512]{0}', space=vmem, size = 0x400, scoped, tag = 'input window, operand 7, single buffered']
    #allocation15 [shape = 's32[1]{0}', space=sflag, size = 0x4, scoped, tag = 'scoped memory for tpu_custom_call.1']
    #allocation16 [shape = 'u8[16384]{0}', space=vmem, size = 0x4000, scoped, tag = 'input window, operand 8, single buffered']
    #allocation17 [shape = 'u8[512]{0}', space=vmem, size = 0x400, scoped, tag = 'input window, operand 9, single buffered']
    #allocation18 [shape = 's32[1]{0}', space=sflag, size = 0x4, scoped, tag = 'scoped memory for tpu_custom_call.1']
    #allocation19 [shape = 'u8[16384]{0}', space=vmem, size = 0x4000, scoped, tag = 'input window, operand 10, single buffered']
    #allocation20 [shape = 'u8[512]{0}', space=vmem, size = 0x400, scoped, tag = 'input window, operand 11, single buffered']
    #allocation21 [shape = 's32[1]{0}', space=sflag, size = 0x4, scoped, tag = 'scoped memory for tpu_custom_call.1']
    #allocation22 [shape = 'u8[512]{0}', space=vmem, size = 0x400, scoped, tag = 'input window, operand 12, single buffered']
    #allocation23 [shape = 'u8[512]{0}', space=vmem, size = 0x400, scoped, tag = 'input window, operand 13, single buffered']
    #allocation24 [shape = 's32[1]{0}', space=sflag, size = 0x4, scoped, tag = 'scoped memory for tpu_custom_call.1']
    #allocation25 [shape = 'u8[16384]{0}', space=vmem, size = 0x4000, scoped, tag = 'input window, operand 14, single buffered']
    #allocation26 [shape = 'u8[512]{0}', space=vmem, size = 0x400, scoped, tag = 'input window, operand 15, single buffered']
    #allocation27 [shape = 's32[1]{0}', space=sflag, size = 0x4, scoped, tag = 'scoped memory for tpu_custom_call.1']
    #allocation28 [shape = 'u8[32768]{0}', space=vmem, size = 0x8000, scoped, tag = 'input window, operand 16, single buffered']
    #allocation29 [shape = 'u8[512]{0}', space=vmem, size = 0x400, scoped, tag = 'input window, operand 17, single buffered']
    #allocation30 [shape = 's32[1]{0}', space=sflag, size = 0x4, scoped, tag = 'scoped memory for tpu_custom_call.1']
    #allocation31 [shape = 'u8[512]{0}', space=vmem, size = 0x400, scoped, tag = 'input window, operand 18, single buffered']
    #allocation32 [shape = 'u8[512]{0}', space=vmem, size = 0x400, scoped, tag = 'input window, operand 19, single buffered']
    #allocation33 [shape = 's32[1]{0}', space=sflag, size = 0x4, scoped, tag = 'scoped memory for tpu_custom_call.1']
    #allocation34 [shape = 'u8[8192]{0}', space=vmem, size = 0x2000, scoped, tag = 'output window, operand 0, single buffered']
    %25 = vsyncpa [#allocation3], 0
    %26 = vsyncpa [#allocation6], 0
    %27 = vsyncpa [#allocation9], 0
    %28 = vsyncpa [#allocation12], 0
    %29 = vsyncpa [#allocation15], 0
    %30 = vsyncpa [#allocation18], 0
    %31 = vsyncpa [#allocation21], 0
    %32 = vsyncpa [#allocation24], 0
    %33 = vsyncpa [#allocation27], 0
    %34 = vsyncpa [#allocation30], 0
    %35 = vsyncpa [#allocation33], 0
    %36 = vsyncpa [#allocation4], 0
    // Predicated region
    $region2: #{tpu_custom_call.1} parent=1 // pred_check
      _
    $region3: #{tpu_custom_call.1} parent=1 // pred_check_branch
      %38 = sbr.rel (0) target = $region5
    $region4: #{tpu_custom_call.1} parent=1 // pred_region
      %s40 = ssub.s32 256, 256
      %41 = vsyncadd [#allocation3], %s40
      %s42 = sshll.u32 [#allocation2], 4
      %s43 = int_to_ptr.vmem [resolvable:$true] %s42
      %48 = dma.hbm_to_vmem [thread:$0]  %s0, 256, %s43, [#allocation3], 128, 128, 8
    $region5: #{tpu_custom_call.1} parent=1 // pred_fallthru
      _
    // Predicated region
    $region6: #{tpu_custom_call.1} parent=1 // pred_check
      _
    $region7: #{tpu_custom_call.1} parent=1 // pred_check_branch
      %50 = sbr.rel (0) target = $region9
    $region8: #{tpu_custom_call.1} parent=1 // pred_region
      %s52 = ssub.s32 256, 256
      %53 = vsyncadd [#allocation6], %s52
      %s54 = sshll.u32 [#allocation5], 4
      %s55 = int_to_ptr.vmem [resolvable:$true] %s54
      %60 = dma.hbm_to_vmem [thread:$0]  %s1, 256, %s55, [#allocation6], 128, 128, 8
    $region9: #{tpu_custom_call.1} parent=1 // pred_fallthru
      _
    // Predicated region
    $region10: #{tpu_custom_call.1} parent=1 // pred_check
      _
    $region11: #{tpu_custom_call.1} parent=1 // pred_check_branch
      %62 = sbr.rel (0) target = $region13
    $region12: #{tpu_custom_call.1} parent=1 // pred_region
      %s64 = ssub.s32 256, 256
      %65 = vsyncadd [#allocation6], %s64
      %s66 = sshll.u32 [#allocation7], 4
      %s67 = int_to_ptr.vmem [resolvable:$true] %s66
      %72 = dma.hbm_to_vmem [thread:$0]  %s2, 256, %s67, [#allocation6], 128, 128, 8
    $region13: #{tpu_custom_call.1} parent=1 // pred_fallthru
      _
    // Predicated region
    $region14: #{tpu_custom_call.1} parent=1 // pred_check
      _
    $region15: #{tpu_custom_call.1} parent=1 // pred_check_branch
      %74 = sbr.rel (0) target = $region17
    $region16: #{tpu_custom_call.1} parent=1 // pred_region
      %s76 = ssub.s32 64, 64
      %77 = vsyncadd [#allocation9], %s76
      %s78 = sshll.u32 [#allocation8], 4
      %s79 = int_to_ptr.vmem [resolvable:$true] %s78
      %84 = dma.hbm_to_vmem [thread:$0]  %s3, 64, %s79, [#allocation9], 32, 32, 2
    $region17: #{tpu_custom_call.1} parent=1 // pred_fallthru
      _
    // Predicated region
    $region18: #{tpu_custom_call.1} parent=1 // pred_check
      _
    $region19: #{tpu_custom_call.1} parent=1 // pred_check_branch
      %86 = sbr.rel (0) target = $region21
    $region20: #{tpu_custom_call.1} parent=1 // pred_region
      %s88 = ssub.s32 512, 512
      %89 = vsyncadd [#allocation9], %s88
      %s90 = sshll.u32 [#allocation10], 4
      %s91 = int_to_ptr.vmem [resolvable:$true] %s90
      %96 = dma.hbm_to_vmem [thread:$0]  %s4, 512, %s91, [#allocation9], 128, 128, 8
    $region21: #{tpu_custom_call.1} parent=1 // pred_fallthru
      _
    // Predicated region
    $region22: #{tpu_custom_call.1} parent=1 // pred_check
      _
    $region23: #{tpu_custom_call.1} parent=1 // pred_check_branch
      %98 = sbr.rel (0) target = $region25
    $region24: #{tpu_custom_call.1} parent=1 // pred_region
      %s100 = ssub.s32 16, 16
      %101 = vsyncadd [#allocation12], %s100
      %s103 = sshll.u32 [#allocation11], 4
      %s104 = int_to_ptr.vmem [resolvable:$true] %s103
      %106 = dma.hbm_to_vmem [thread:$0]  %s5, 16, %s104, [#allocation12]
    $region25: #{tpu_custom_call.1} parent=1 // pred_fallthru
      _
    // Predicated region
    $region26: #{tpu_custom_call.1} parent=1 // pred_check
      _
    $region27: #{tpu_custom_call.1} parent=1 // pred_check_branch
      %108 = sbr.rel (0) target = $region29
    $region28: #{tpu_custom_call.1} parent=1 // pred_region
      %s110 = ssub.s32 512, 512
      %111 = vsyncadd [#allocation12], %s110
      %s112 = sshll.u32 [#allocation13], 4
      %s113 = int_to_ptr.vmem [resolvable:$true] %s112
      %118 = dma.hbm_to_vmem [thread:$0]  %s6, 512, %s113, [#allocation12], 128, 128, 8
    $region29: #{tpu_custom_call.1} parent=1 // pred_fallthru
      _
    // Predicated region
    $region30: #{tpu_custom_call.1} parent=1 // pred_check
      _
    $region31: #{tpu_custom_call.1} parent=1 // pred_check_branch
      %120 = sbr.rel (0) target = $region33
    $region32: #{tpu_custom_call.1} parent=1 // pred_region
      %s122 = ssub.s32 16, 16
      %123 = vsyncadd [#allocation15], %s122
      %s125 = sshll.u32 [#allocation14], 4
      %s126 = int_to_ptr.vmem [resolvable:$true] %s125
      %128 = dma.hbm_to_vmem [thread:$0]  %s7, 16, %s126, [#allocation15]
    $region33: #{tpu_custom_call.1} parent=1 // pred_fallthru
      _
    // Predicated region
    $region34: #{tpu_custom_call.1} parent=1 // pred_check
      _
    $region35: #{tpu_custom_call.1} parent=1 // pred_check_branch
      %130 = sbr.rel (0) target = $region37
    $region36: #{tpu_custom_call.1} parent=1 // pred_region
      %s132 = ssub.s32 512, 512
      %133 = vsyncadd [#allocation15], %s132
      %s134 = sshll.u32 [#allocation16], 4
      %s135 = int_to_ptr.vmem [resolvable:$true] %s134
      %140 = dma.hbm_to_vmem [thread:$0]  %s8, 512, %s135, [#allocation15], 128, 128, 8
    $region37: #{tpu_custom_call.1} parent=1 // pred_fallthru
      _
    // Predicated region
    $region38: #{tpu_custom_call.1} parent=1 // pred_check
      _
    $region39: #{tpu_custom_call.1} parent=1 // pred_check_branch
      %142 = sbr.rel (0) target = $region41
    $region40: #{tpu_custom_call.1} parent=1 // pred_region
      %s144 = ssub.s32 16, 16
      %145 = vsyncadd [#allocation18], %s144
      %s147 = sshll.u32 [#allocation17], 4
      %s148 = int_to_ptr.vmem [resolvable:$true] %s147
      %150 = dma.hbm_to_vmem [thread:$0]  %s9, 16, %s148, [#allocation18]
    $region41: #{tpu_custom_call.1} parent=1 // pred_fallthru
      _
    // Predicated region
    $region42: #{tpu_custom_call.1} parent=1 // pred_check
      _
    $region43: #{tpu_custom_call.1} parent=1 // pred_check_branch
      %152 = sbr.rel (0) target = $region45
    $region44: #{tpu_custom_call.1} parent=1 // pred_region
      %s154 = ssub.s32 512, 512
      %155 = vsyncadd [#allocation18], %s154
      %s156 = sshll.u32 [#allocation19], 4
      %s157 = int_to_ptr.vmem [resolvable:$true] %s156
      %162 = dma.hbm_to_vmem [thread:$0]  %s10, 512, %s157, [#allocation18], 128, 128, 8
    $region45: #{tpu_custom_call.1} parent=1 // pred_fallthru
      _
    // Predicated region
    $region46: #{tpu_custom_call.1} parent=1 // pred_check
      _
    $region47: #{tpu_custom_call.1} parent=1 // pred_check_branch
      %164 = sbr.rel (0) target = $region49
    $region48: #{tpu_custom_call.1} parent=1 // pred_region
      %s166 = ssub.s32 16, 16
      %167 = vsyncadd [#allocation21], %s166
      %s169 = sshll.u32 [#allocation20], 4
      %s170 = int_to_ptr.vmem [resolvable:$true] %s169
      %172 = dma.hbm_to_vmem [thread:$0]  %s11, 16, %s170, [#allocation21]
    $region49: #{tpu_custom_call.1} parent=1 // pred_fallthru
      _
    // Predicated region
    $region50: #{tpu_custom_call.1} parent=1 // pred_check
      _
    $region51: #{tpu_custom_call.1} parent=1 // pred_check_branch
      %174 = sbr.rel (0) target = $region53
    $region52: #{tpu_custom_call.1} parent=1 // pred_region
      %s176 = ssub.s32 16, 16
      %177 = vsyncadd [#allocation21], %s176
      %s179 = sshll.u32 [#allocation22], 4
      %s180 = int_to_ptr.vmem [resolvable:$true] %s179
      %182 = dma.hbm_to_vmem [thread:$0]  %s12, 16, %s180, [#allocation21]
    $region53: #{tpu_custom_call.1} parent=1 // pred_fallthru
      _
    // Predicated region
    $region54: #{tpu_custom_call.1} parent=1 // pred_check
      _
    $region55: #{tpu_custom_call.1} parent=1 // pred_check_branch
      %184 = sbr.rel (0) target = $region57
    $region56: #{tpu_custom_call.1} parent=1 // pred_region
      %s186 = ssub.s32 16, 16
      %187 = vsyncadd [#allocation24], %s186
      %s189 = sshll.u32 [#allocation23], 4
      %s190 = int_to_ptr.vmem [resolvable:$true] %s189
      %192 = dma.hbm_to_vmem [thread:$0]  %s13, 16, %s190, [#allocation24]
    $region57: #{tpu_custom_call.1} parent=1 // pred_fallthru
      _
    // Predicated region
    $region58: #{tpu_custom_call.1} parent=1 // pred_check
      _
    $region59: #{tpu_custom_call.1} parent=1 // pred_check_branch
      %194 = sbr.rel (0) target = $region61
    $region60: #{tpu_custom_call.1} parent=1 // pred_region
      %s196 = ssub.s32 512, 512
      %197 = vsyncadd [#allocation24], %s196
      %s198 = sshll.u32 [#allocation25], 4
      %s199 = int_to_ptr.vmem [resolvable:$true] %s198
      %204 = dma.hbm_to_vmem [thread:$0]  %s14, 512, %s199, [#allocation24], 128, 128, 8
    $region61: #{tpu_custom_call.1} parent=1 // pred_fallthru
      _
    // Predicated region
    $region62: #{tpu_custom_call.1} parent=1 // pred_check
      _
    $region63: #{tpu_custom_call.1} parent=1 // pred_check_branch
      %206 = sbr.rel (0) target = $region65
    $region64: #{tpu_custom_call.1} parent=1 // pred_region
      %s208 = ssub.s32 16, 16
      %209 = vsyncadd [#allocation27], %s208
      %s211 = sshll.u32 [#allocation26], 4
      %s212 = int_to_ptr.vmem [resolvable:$true] %s211
      %214 = dma.hbm_to_vmem [thread:$0]  %s15, 16, %s212, [#allocation27]
    $region65: #{tpu_custom_call.1} parent=1 // pred_fallthru
      _
    // Predicated region
    $region66: #{tpu_custom_call.1} parent=1 // pred_check
      _
    $region67: #{tpu_custom_call.1} parent=1 // pred_check_branch
      %216 = sbr.rel (0) target = $region69
    $region68: #{tpu_custom_call.1} parent=1 // pred_region
      %s218 = ssub.s32 1024, 1024
      %219 = vsyncadd [#allocation27], %s218
      %s220 = sshll.u32 [#allocation28], 4
      %s221 = int_to_ptr.vmem [resolvable:$true] %s220
      %226 = dma.hbm_to_vmem [thread:$0]  %s16, 1024, %s221, [#allocation27], 128, 128, 8
    $region69: #{tpu_custom_call.1} parent=1 // pred_fallthru
      _
    // Predicated region
    $region70: #{tpu_custom_call.1} parent=1 // pred_check
      _
    $region71: #{tpu_custom_call.1} parent=1 // pred_check_branch
      %228 = sbr.rel (0) target = $region73
    $region72: #{tpu_custom_call.1} parent=1 // pred_region
      %s230 = ssub.s32 16, 16
      %231 = vsyncadd [#allocation30], %s230
      %s233 = sshll.u32 [#allocation29], 4
      %s234 = int_to_ptr.vmem [resolvable:$true] %s233
      %236 = dma.hbm_to_vmem [thread:$0]  %s17, 16, %s234, [#allocation30]
    $region73: #{tpu_custom_call.1} parent=1 // pred_fallthru
      _
    // Predicated region
    $region74: #{tpu_custom_call.1} parent=1 // pred_check
      _
    $region75: #{tpu_custom_call.1} parent=1 // pred_check_branch
      %238 = sbr.rel (0) target = $region77
    $region76: #{tpu_custom_call.1} parent=1 // pred_region
      %s240 = ssub.s32 16, 16
      %241 = vsyncadd [#allocation30], %s240
      %s243 = sshll.u32 [#allocation31], 4
      %s244 = int_to_ptr.vmem [resolvable:$true] %s243
      %246 = dma.hbm_to_vmem [thread:$0]  %s18, 16, %s244, [#allocation30]
    $region77: #{tpu_custom_call.1} parent=1 // pred_fallthru
      _
    // Predicated region
    $region78: #{tpu_custom_call.1} parent=1 // pred_check
      _
    $region79: #{tpu_custom_call.1} parent=1 // pred_check_branch
      %248 = sbr.rel (0) target = $region81
    $region80: #{tpu_custom_call.1} parent=1 // pred_region
      %s250 = ssub.s32 16, 16
      %251 = vsyncadd [#allocation33], %s250
      %s253 = sshll.u32 [#allocation32], 4
      %s254 = int_to_ptr.vmem [resolvable:$true] %s253
      %256 = dma.hbm_to_vmem [thread:$0]  %s19, 16, %s254, [#allocation33]
    $region81: #{tpu_custom_call.1} parent=1 // pred_fallthru
      _
    // Predicated region
    $region82: #{tpu_custom_call.1} parent=1 // pred_check
      _
    $region83: #{tpu_custom_call.1} parent=1 // pred_check_branch
      %258 = sbr.rel (0) target = $region85
    $region84: #{tpu_custom_call.1} parent=1 // pred_region
      %259 = dma.done [#allocation3], 256
    $region85: #{tpu_custom_call.1} parent=1 // pred_fallthru
      _
    // Predicated region
    $region86: #{tpu_custom_call.1} parent=1 // pred_check
      _
    $region87: #{tpu_custom_call.1} parent=1 // pred_check_branch
      %261 = sbr.rel (0) target = $region89
    $region88: #{tpu_custom_call.1} parent=1 // pred_region
      %262 = dma.done [#allocation6], 256
    $region89: #{tpu_custom_call.1} parent=1 // pred_fallthru
      _
    // Predicated region
    $region90: #{tpu_custom_call.1} parent=1 // pred_check
      _
    $region91: #{tpu_custom_call.1} parent=1 // pred_check_branch
      %264 = sbr.rel (0) target = $region93
    $region92: #{tpu_custom_call.1} parent=1 // pred_region
      %265 = dma.done [#allocation6], 256
    $region93: #{tpu_custom_call.1} parent=1 // pred_fallthru
      _
    // Predicated region
    $region94: #{tpu_custom_call.1} parent=1 // pred_check
      _
    $region95: #{tpu_custom_call.1} parent=1 // pred_check_branch
      %267 = sbr.rel (0) target = $region97
    $region96: #{tpu_custom_call.1} parent=1 // pred_region
      %268 = dma.done [#allocation9], 64
    $region97: #{tpu_custom_call.1} parent=1 // pred_fallthru
      _
    // Predicated region
    $region98: #{tpu_custom_call.1} parent=1 // pred_check
      _
    $region99: #{tpu_custom_call.1} parent=1 // pred_check_branch
      %270 = sbr.rel (0) target = $region101
    $region100: #{tpu_custom_call.1} parent=1 // pred_region
      %271 = dma.done [#allocation9], 512
    $region101: #{tpu_custom_call.1} parent=1 // pred_fallthru
      _
    // Predicated region
    $region102: #{tpu_custom_call.1} parent=1 // pred_check
      _
    $region103: #{tpu_custom_call.1} parent=1 // pred_check_branch
      %273 = sbr.rel (0) target = $region105
    $region104: #{tpu_custom_call.1} parent=1 // pred_region
      %274 = dma.done [#allocation12], 16
    $region105: #{tpu_custom_call.1} parent=1 // pred_fallthru
      _
    // Predicated region
    $region106: #{tpu_custom_call.1} parent=1 // pred_check
      _
    $region107: #{tpu_custom_call.1} parent=1 // pred_check_branch
      %276 = sbr.rel (0) target = $region109
    $region108: #{tpu_custom_call.1} parent=1 // pred_region
      %277 = dma.done [#allocation12], 512
    $region109: #{tpu_custom_call.1} parent=1 // pred_fallthru
      _
    // Predicated region
    $region110: #{tpu_custom_call.1} parent=1 // pred_check
      _
    $region111: #{tpu_custom_call.1} parent=1 // pred_check_branch
      %279 = sbr.rel (0) target = $region113
    $region112: #{tpu_custom_call.1} parent=1 // pred_region
      %280 = dma.done [#allocation15], 16
    $region113: #{tpu_custom_call.1} parent=1 // pred_fallthru
      _
    // Predicated region
    $region114: #{tpu_custom_call.1} parent=1 // pred_check
      _
    $region115: #{tpu_custom_call.1} parent=1 // pred_check_branch
      %282 = sbr.rel (0) target = $region117
    $region116: #{tpu_custom_call.1} parent=1 // pred_region
      %283 = dma.done [#allocation15], 512
    $region117: #{tpu_custom_call.1} parent=1 // pred_fallthru
      _
    // Predicated region
    $region118: #{tpu_custom_call.1} parent=1 // pred_check
      _
    $region119: #{tpu_custom_call.1} parent=1 // pred_check_branch
      %285 = sbr.rel (0) target = $region121
    $region120: #{tpu_custom_call.1} parent=1 // pred_region
      %286 = dma.done [#allocation18], 16
    $region121: #{tpu_custom_call.1} parent=1 // pred_fallthru
      _
    // Predicated region
    $region122: #{tpu_custom_call.1} parent=1 // pred_check
      _
    $region123: #{tpu_custom_call.1} parent=1 // pred_check_branch
      %288 = sbr.rel (0) target = $region125
    $region124: #{tpu_custom_call.1} parent=1 // pred_region
      %289 = dma.done [#allocation18], 512
    $region125: #{tpu_custom_call.1} parent=1 // pred_fallthru
      _
    // Predicated region
    $region126: #{tpu_custom_call.1} parent=1 // pred_check
      _
    $region127: #{tpu_custom_call.1} parent=1 // pred_check_branch
      %291 = sbr.rel (0) target = $region129
    $region128: #{tpu_custom_call.1} parent=1 // pred_region
      %292 = dma.done [#allocation21], 16
    $region129: #{tpu_custom_call.1} parent=1 // pred_fallthru
      _
    // Predicated region
    $region130: #{tpu_custom_call.1} parent=1 // pred_check
      _
    $region131: #{tpu_custom_call.1} parent=1 // pred_check_branch
      %294 = sbr.rel (0) target = $region133
    $region132: #{tpu_custom_call.1} parent=1 // pred_region
      %295 = dma.done [#allocation21], 16
    $region133: #{tpu_custom_call.1} parent=1 // pred_fallthru
      _
    // Predicated region
    $region134: #{tpu_custom_call.1} parent=1 // pred_check
      _
    $region135: #{tpu_custom_call.1} parent=1 // pred_check_branch
      %297 = sbr.rel (0) target = $region137
    $region136: #{tpu_custom_call.1} parent=1 // pred_region
      %298 = dma.done [#allocation24], 16
    $region137: #{tpu_custom_call.1} parent=1 // pred_fallthru
      _
    // Predicated region
    $region138: #{tpu_custom_call.1} parent=1 // pred_check
      _
    $region139: #{tpu_custom_call.1} parent=1 // pred_check_branch
      %300 = sbr.rel (0) target = $region141
    $region140: #{tpu_custom_call.1} parent=1 // pred_region
      %301 = dma.done [#allocation24], 512
    $region141: #{tpu_custom_call.1} parent=1 // pred_fallthru
      _
    // Predicated region
    $region142: #{tpu_custom_call.1} parent=1 // pred_check
      _
    $region143: #{tpu_custom_call.1} parent=1 // pred_check_branch
      %303 = sbr.rel (0) target = $region145
    $region144: #{tpu_custom_call.1} parent=1 // pred_region
      %304 = dma.done [#allocation27], 16
    $region145: #{tpu_custom_call.1} parent=1 // pred_fallthru
      _
    // Predicated region
    $region146: #{tpu_custom_call.1} parent=1 // pred_check
      _
    $region147: #{tpu_custom_call.1} parent=1 // pred_check_branch
      %306 = sbr.rel (0) target = $region149
    $region148: #{tpu_custom_call.1} parent=1 // pred_region
      %307 = dma.done [#allocation27], 1024
    $region149: #{tpu_custom_call.1} parent=1 // pred_fallthru
      _
    // Predicated region
    $region150: #{tpu_custom_call.1} parent=1 // pred_check
      _
    $region151: #{tpu_custom_call.1} parent=1 // pred_check_branch
      %309 = sbr.rel (0) target = $region153
    $region152: #{tpu_custom_call.1} parent=1 // pred_region
      %310 = dma.done [#allocation30], 16
    $region153: #{tpu_custom_call.1} parent=1 // pred_fallthru
      _
    // Predicated region
    $region154: #{tpu_custom_call.1} parent=1 // pred_check
      _
    $region155: #{tpu_custom_call.1} parent=1 // pred_check_branch
      %312 = sbr.rel (0) target = $region157
    $region156: #{tpu_custom_call.1} parent=1 // pred_region
      %313 = dma.done [#allocation30], 16
    $region157: #{tpu_custom_call.1} parent=1 // pred_fallthru
      _
    // Predicated region
    $region158: #{tpu_custom_call.1} parent=1 // pred_check
      _
    $region159: #{tpu_custom_call.1} parent=1 // pred_check_branch
      %315 = sbr.rel (0) target = $region161
    $region160: #{tpu_custom_call.1} parent=1 // pred_region
      %316 = dma.done [#allocation33], 16
    $region161: #{tpu_custom_call.1} parent=1 // pred_fallthru
      _
    %v319 = vld [vmem:[#allocation2] sm:$0xff]
    %v320 = vld [vmem:[#allocation2 + $0x8] sm:$0xff]
    %v321 = vld [vmem:[#allocation5] sm:$0xff]
    %v322 = vld [vmem:[#allocation5 + $0x8] sm:$0xff]
    %v323 = vld [vmem:[#allocation7] sm:$0xff]
    %v324 = vld [vmem:[#allocation7 + $0x8] sm:$0xff]
    %v325 = vld [vmem:[#allocation10] sm:$0xff]
    %v326 = vld [vmem:[#allocation10 + $0x8] sm:$0xff]
    %v327 = vld [vmem:[#allocation10 + $0x10] sm:$0xff]
    %v328 = vld [vmem:[#allocation10 + $0x18] sm:$0xff]
    %v329 = vld [vmem:[#allocation11] sm:$0x1]
    %v331 = vlaneseq
    %v332 = vshrl.u32 %v331, 7
    %v333 = vsub.s32 0, %v332
    %v334 = vrot.slane %v329, %v333
    %vm336 = vcmask 261120
    %v338 = vsel %vm336, %v319, 0
    %v341 = vsel %vm336, %v320, 0
    %343 = vmatprep.subr.mxu0 0.0
    %344 = vmatpush1.msra.mxu0 %v325
    %345 = vmatprep.subr.mxu0 0.0
    %346 = vmatpush1.msra.mxu0 %v326
    %347 = vmatprep.subr.mxu0 0.0
    %348 = vmatpush1.msra.mxu0 %v327
    %349 = vmatprep.subr.mxu0 0.0
    %350 = vmatpush1.msra.mxu0 %v328
    %351 = vmatprep.subr.mxu0 0.0
    %352 = vmatpush1.msra.mxu0 0.0
    %353 = vmatprep.subr.mxu0 0.0
    %354 = vmatpush1.msra.mxu0 0.0
    %355 = vmatprep.subr.mxu0 0.0
    %356 = vmatpush1.msra.mxu0 0.0
    %357 = vmatprep.subr.mxu0 0.0
    %358 = vmatpush1.msra.mxu0 0.0
    %359 = vmatprep.subr.mxu0 0.0
    %360 = vmatpush1.msra.mxu0 0.0
    %361 = vmatprep.subr.mxu0 0.0
    %362 = vmatpush1.msra.mxu0 0.0
    %363 = vmatprep.subr.mxu0 0.0
    %364 = vmatpush1.msra.mxu0 0.0
    %365 = vmatprep.subr.mxu0 0.0
    %366 = vmatpush1.msra.mxu0 0.0
    %367 = vmatprep.subr.mxu0 0.0
    %368 = vmatpush1.msra.mxu0 0.0
    %369 = vmatprep.subr.mxu0 0.0
    %370 = vmatpush1.msra.mxu0 0.0
    %371 = vmatprep.subr.mxu0 0.0
    %372 = vmatpush1.msra.mxu0 0.0
    %373 = vmatprep.subr.mxu0 0.0
    %374 = vmatpush1.msra.mxu0 0.0
    %375 = vmatprep.subr.mxu0 0.0
    %376 = vmatpush1.msra.mxu0 0.0
    %377 = vmatprep.subr.mxu0 0.0
    %378 = vmatpush1.msra.mxu0 0.0
    %379 = vmatprep.subr.mxu0 0.0
    %380 = vmatpush1.msra.mxu0 0.0
    %381 = vmatprep.subr.mxu0 0.0
    %382 = vmatpush1.msra.mxu0 0.0
    %383 = vmatprep.subr.mxu0 0.0
    %384 = vmatpush1.msra.mxu0 0.0
    %385 = vmatprep.subr.mxu0 0.0
    %386 = vmatpush1.msra.mxu0 0.0
    %387 = vmatprep.subr.mxu0 0.0
    %388 = vmatpush1.msra.mxu0 0.0
    %389 = vmatprep.subr.mxu0 0.0
    %390 = vmatpush1.msra.mxu0 0.0
    %391 = vmatprep.subr.mxu0 0.0
    %392 = vmatpush1.msra.mxu0 0.0
    %393 = vmatprep.subr.mxu0 0.0
    %394 = vmatpush1.msra.mxu0 0.0
    %395 = vmatprep.subr.mxu0 0.0
    %396 = vmatpush1.msra.mxu0 0.0
    %397 = vmatprep.subr.mxu0 0.0
    %398 = vmatpush1.msra.mxu0 0.0
    %399 = vmatprep.subr.mxu0 0.0
    %400 = vmatpush1.msra.mxu0 0.0
    %401 = vmatprep.subr.mxu0 0.0
    %402 = vmatpush1.msra.mxu0 0.0
    %403 = vmatprep.subr.mxu0 0.0
    %404 = vmatpush1.msra.mxu0 0.0
    %405 = vmatprep.subr.mxu0 0.0
    %406 = vmatpush1.msra.mxu0 0.0
    %407 = vmatprep.mubr.f32.mxu0 0.0
    %408 = vmatmul.mubr.f32.gmra.mrb[0].mxu0 %v338
    %v409 = vpop.f32.mrb[0].mxu0
    %v410 = vadd.f32 %v334, %v409
    %v411 = vpop.f32.mrb[0].mxu0
    %412 = vmatprep.mubr.f32.mxu0 0.0
    %413 = vmatmul.mubr.f32.gmra.mrb[0].mxu0 %v341
    %v414 = vpop.f32.mrb[0].mxu0
    %v415 = vadd.f32 %v334, %v414
    %v416 = vpop.f32.mrb[0].mxu0
    %417 = vdwg.mxu0
    %v418 = vmul.f32 %v410, 0.35355338
    %v419 = vmul.f32 %v415, 0.35355338
    %v420 = vld [vmem:[#allocation13] sm:$0xff]
    %v421 = vld [vmem:[#allocation13 + $0x8] sm:$0xff]
    %v422 = vld [vmem:[#allocation13 + $0x10] sm:$0xff]
    %v423 = vld [vmem:[#allocation13 + $0x18] sm:$0xff]
    %v424 = vld [vmem:[#allocation14] sm:$0x1]
    %v426 = vlaneseq
    %v427 = vshrl.u32 %v426, 7
    %v428 = vsub.s32 0, %v427
    %v429 = vrot.slane %v424, %v428
    %v432 = vsel %vm336, %v321, 0
    %v435 = vsel %vm336, %v322, 0
    %437 = vmatprep.subr.mxu0 0.0
    %438 = vmatpush1.msra.mxu0 %v420
    %439 = vmatprep.subr.mxu0 0.0
    %440 = vmatpush1.msra.mxu0 %v421
    %441 = vmatprep.subr.mxu0 0.0
    %442 = vmatpush1.msra.mxu0 %v422
    %443 = vmatprep.subr.mxu0 0.0
    %444 = vmatpush1.msra.mxu0 %v423
    %445 = vmatprep.subr.mxu0 0.0
    %446 = vmatpush1.msra.mxu0 0.0
    %447 = vmatprep.subr.mxu0 0.0
    %448 = vmatpush1.msra.mxu0 0.0
    %449 = vmatprep.subr.mxu0 0.0
    %450 = vmatpush1.msra.mxu0 0.0
    %451 = vmatprep.subr.mxu0 0.0
    %452 = vmatpush1.msra.mxu0 0.0
    %453 = vmatprep.subr.mxu0 0.0
    %454 = vmatpush1.msra.mxu0 0.0
    %455 = vmatprep.subr.mxu0 0.0
    %456 = vmatpush1.msra.mxu0 0.0
    %457 = vmatprep.subr.mxu0 0.0
    %458 = vmatpush1.msra.mxu0 0.0
    %459 = vmatprep.subr.mxu0 0.0
    %460 = vmatpush1.msra.mxu0 0.0
    %461 = vmatprep.subr.mxu0 0.0
    %462 = vmatpush1.msra.mxu0 0.0
    %463 = vmatprep.subr.mxu0 0.0
    %464 = vmatpush1.msra.mxu0 0.0
    %465 = vmatprep.subr.mxu0 0.0
    %466 = vmatpush1.msra.mxu0 0.0
    %467 = vmatprep.subr.mxu0 0.0
    %468 = vmatpush1.msra.mxu0 0.0
    %469 = vmatprep.subr.mxu0 0.0
    %470 = vmatpush1.msra.mxu0 0.0
    %471 = vmatprep.subr.mxu0 0.0
    %472 = vmatpush1.msra.mxu0 0.0
    %473 = vmatprep.subr.mxu0 0.0
    %474 = vmatpush1.msra.mxu0 0.0
    %475 = vmatprep.subr.mxu0 0.0
    %476 = vmatpush1.msra.mxu0 0.0
    %477 = vmatprep.subr.mxu0 0.0
    %478 = vmatpush1.msra.mxu0 0.0
    %479 = vmatprep.subr.mxu0 0.0
    %480 = vmatpush1.msra.mxu0 0.0
    %481 = vmatprep.subr.mxu0 0.0
    %482 = vmatpush1.msra.mxu0 0.0
    %483 = vmatprep.subr.mxu0 0.0
    %484 = vmatpush1.msra.mxu0 0.0
    %485 = vmatprep.subr.mxu0 0.0
    %486 = vmatpush1.msra.mxu0 0.0
    %487 = vmatprep.subr.mxu0 0.0
    %488 = vmatpush1.msra.mxu0 0.0
    %489 = vmatprep.subr.mxu0 0.0
    %490 = vmatpush1.msra.mxu0 0.0
    %491 = vmatprep.subr.mxu0 0.0
    %492 = vmatpush1.msra.mxu0 0.0
    %493 = vmatprep.subr.mxu0 0.0
    %494 = vmatpush1.msra.mxu0 0.0
    %495 = vmatprep.subr.mxu0 0.0
    %496 = vmatpush1.msra.mxu0 0.0
    %497 = vmatprep.subr.mxu0 0.0
    %498 = vmatpush1.msra.mxu0 0.0
    %499 = vmatprep.subr.mxu0 0.0
    %500 = vmatpush1.msra.mxu0 0.0
    %501 = vmatprep.mubr.f32.mxu0 0.0
    %502 = vmatmul.mubr.f32.gmra.mrb[0].mxu0 %v432
    %v503 = vpop.f32.mrb[0].mxu0
    %v504 = vadd.f32 %v429, %v503
    %v505 = vpop.f32.mrb[0].mxu0
    %506 = vmatprep.mubr.f32.mxu0 0.0
    %507 = vmatmul.mubr.f32.gmra.mrb[0].mxu0 %v435
    %v508 = vpop.f32.mrb[0].mxu0
    %v509 = vadd.f32 %v429, %v508
    %v510 = vpop.f32.mrb[0].mxu0
    %511 = vdwg.mxu0
    %v512 = vld [vmem:[#allocation16] sm:$0xff]
    %v513 = vld [vmem:[#allocation16 + $0x8] sm:$0xff]
    %v514 = vld [vmem:[#allocation16 + $0x10] sm:$0xff]
    %v515 = vld [vmem:[#allocation16 + $0x18] sm:$0xff]
    %v516 = vld [vmem:[#allocation17] sm:$0x1]
    %v518 = vlaneseq
    %v519 = vshrl.u32 %v518, 7
    %v520 = vsub.s32 0, %v519
    %v521 = vrot.slane %v516, %v520
    %v524 = vsel %vm336, %v323, 0
    %v527 = vsel %vm336, %v324, 0
    %529 = vmatprep.subr.mxu0 0.0
    %530 = vmatpush1.msra.mxu0 %v512
    %531 = vmatprep.subr.mxu0 0.0
    %532 = vmatpush1.msra.mxu0 %v513
    %533 = vmatprep.subr.mxu0 0.0
    %534 = vmatpush1.msra.mxu0 %v514
    %535 = vmatprep.subr.mxu0 0.0
    %536 = vmatpush1.msra.mxu0 %v515
    %537 = vmatprep.subr.mxu0 0.0
    %538 = vmatpush1.msra.mxu0 0.0
    %539 = vmatprep.subr.mxu0 0.0
    %540 = vmatpush1.msra.mxu0 0.0
    %541 = vmatprep.subr.mxu0 0.0
    %542 = vmatpush1.msra.mxu0 0.0
    %543 = vmatprep.subr.mxu0 0.0
    %544 = vmatpush1.msra.mxu0 0.0
    %545 = vmatprep.subr.mxu0 0.0
    %546 = vmatpush1.msra.mxu0 0.0
    %547 = vmatprep.subr.mxu0 0.0
    %548 = vmatpush1.msra.mxu0 0.0
    %549 = vmatprep.subr.mxu0 0.0
    %550 = vmatpush1.msra.mxu0 0.0
    %551 = vmatprep.subr.mxu0 0.0
    %552 = vmatpush1.msra.mxu0 0.0
    %553 = vmatprep.subr.mxu0 0.0
    %554 = vmatpush1.msra.mxu0 0.0
    %555 = vmatprep.subr.mxu0 0.0
    %556 = vmatpush1.msra.mxu0 0.0
    %557 = vmatprep.subr.mxu0 0.0
    %558 = vmatpush1.msra.mxu0 0.0
    %559 = vmatprep.subr.mxu0 0.0
    %560 = vmatpush1.msra.mxu0 0.0
    %561 = vmatprep.subr.mxu0 0.0
    %562 = vmatpush1.msra.mxu0 0.0
    %563 = vmatprep.subr.mxu0 0.0
    %564 = vmatpush1.msra.mxu0 0.0
    %565 = vmatprep.subr.mxu0 0.0
    %566 = vmatpush1.msra.mxu0 0.0
    %567 = vmatprep.subr.mxu0 0.0
    %568 = vmatpush1.msra.mxu0 0.0
    %569 = vmatprep.subr.mxu0 0.0
    %570 = vmatpush1.msra.mxu0 0.0
    %571 = vmatprep.subr.mxu0 0.0
    %572 = vmatpush1.msra.mxu0 0.0
    %573 = vmatprep.subr.mxu0 0.0
    %574 = vmatpush1.msra.mxu0 0.0
    %575 = vmatprep.subr.mxu0 0.0
    %576 = vmatpush1.msra.mxu0 0.0
    %577 = vmatprep.subr.mxu0 0.0
    %578 = vmatpush1.msra.mxu0 0.0
    %579 = vmatprep.subr.mxu0 0.0
    %580 = vmatpush1.msra.mxu0 0.0
    %581 = vmatprep.subr.mxu0 0.0
    %582 = vmatpush1.msra.mxu0 0.0
    %583 = vmatprep.subr.mxu0 0.0
    %584 = vmatpush1.msra.mxu0 0.0
    %585 = vmatprep.subr.mxu0 0.0
    %586 = vmatpush1.msra.mxu0 0.0
    %587 = vmatprep.subr.mxu0 0.0
    %588 = vmatpush1.msra.mxu0 0.0
    %589 = vmatprep.subr.mxu0 0.0
    %590 = vmatpush1.msra.mxu0 0.0
    %591 = vmatprep.subr.mxu0 0.0
    %592 = vmatpush1.msra.mxu0 0.0
    %593 = vmatprep.mubr.f32.mxu0 0.0
    %594 = vmatmul.mubr.f32.gmra.mrb[0].mxu0 %v524
    %v595 = vpop.f32.mrb[0].mxu0
    %v596 = vadd.f32 %v521, %v595
    %v597 = vpop.f32.mrb[0].mxu0
    %598 = vmatprep.mubr.f32.mxu0 0.0
    %599 = vmatmul.mubr.f32.gmra.mrb[0].mxu0 %v527
    %v600 = vpop.f32.mrb[0].mxu0
    %v601 = vadd.f32 %v521, %v600
    %v602 = vpop.f32.mrb[0].mxu0
    %603 = vdwg.mxu0
    %606 = vrot.lane.b32.xlu0 %v418, 120
    %v607 = vpop.permute.xlu0 %606
    %608 = vrot.lane.b32.xlu0 %v419, 120
    %v609 = vpop.permute.xlu0 %608
    %612 = vrot.lane.b32.xlu0 %v418, 112
    %v613 = vpop.permute.xlu0 %612
    %614 = vrot.lane.b32.xlu0 %v419, 112
    %v615 = vpop.permute.xlu0 %614
    %618 = vrot.lane.b32.xlu0 %v418, 104
    %v619 = vpop.permute.xlu0 %618
    %620 = vrot.lane.b32.xlu0 %v419, 104
    %v621 = vpop.permute.xlu0 %620
    %v624 = vcombine.low %v418, %v613
    %v625 = vcombine.high %v418, %v613
    %v627 = vunpack.c.l.s4 1983009808
    %v628 = vunpack.c.0.s8 %v627
    %v629 = vlaneseq
    %v630 = vshrl.u32 %v629, 7
    %v631 = vsub.s32 %v628, %v630
    %v632 = vrot.slane %v624, %v631
    %v634 = vunpack.c.l.s4 1983009808
    %v635 = vunpack.c.0.s8 %v634
    %v636 = vlaneseq
    %v637 = vshrl.u32 %v636, 7
    %v638 = vsub.s32 %v635, %v637
    %v639 = vrot.slane %v625, %v638
    %v640 = vcombine.low %v607, %v619
    %v641 = vcombine.high %v607, %v619
    %v643 = vunpack.c.l.s4 1983009808
    %v644 = vunpack.c.0.s8 %v643
    %v645 = vlaneseq
    %v646 = vshrl.u32 %v645, 7
    %v647 = vsub.s32 %v644, %v646
    %v648 = vrot.slane %v640, %v647
    %v650 = vunpack.c.l.s4 1983009808
    %v651 = vunpack.c.0.s8 %v650
    %v652 = vlaneseq
    %v653 = vshrl.u32 %v652, 7
    %v654 = vsub.s32 %v651, %v653
    %v655 = vrot.slane %v641, %v654
    %v656 = vcombine.low %v632, %v648
    %v657 = vcombine.high %v632, %v648
    %v659 = vunpack.c.l.s4 1934713408
    %v660 = vunpack.c.0.s8 %v659
    %v661 = vlaneseq
    %v662 = vshrl.u32 %v661, 7
    %v663 = vsub.s32 %v660, %v662
    %v664 = vrot.slane %v656, %v663
    %v666 = vunpack.c.l.s4 1934713408
    %v667 = vunpack.c.0.s8 %v666
    %v668 = vlaneseq
    %v669 = vshrl.u32 %v668, 7
    %v670 = vsub.s32 %v667, %v669
    %v671 = vrot.slane %v657, %v670
    %v672 = vcombine.low %v639, %v655
    %v673 = vcombine.high %v639, %v655
    %v675 = vunpack.c.l.s4 1934713408
    %v676 = vunpack.c.0.s8 %v675
    %v677 = vlaneseq
    %v678 = vshrl.u32 %v677, 7
    %v679 = vsub.s32 %v676, %v678
    %v680 = vrot.slane %v672, %v679
    %v682 = vunpack.c.l.s4 1934713408
    %v683 = vunpack.c.0.s8 %v682
    %v684 = vlaneseq
    %v685 = vshrl.u32 %v684, 7
    %v686 = vsub.s32 %v683, %v685
    %v687 = vrot.slane %v673, %v686
    %v688 = vcombine.high %v664, 0.0
    %v689 = vcombine.high %v671, 0.0
    %v690 = vcombine.high %v680, 0.0
    %v691 = vcombine.high %v687, 0.0
    %v692 = vcombine.low %v419, %v615
    %v693 = vcombine.high %v419, %v615
    %v695 = vunpack.c.l.s4 1983009808
    %v696 = vunpack.c.0.s8 %v695
    %v697 = vlaneseq
    %v698 = vshrl.u32 %v697, 7
    %v699 = vsub.s32 %v696, %v698
    %v700 = vrot.slane %v692, %v699
    %v702 = vunpack.c.l.s4 1983009808
    %v703 = vunpack.c.0.s8 %v702
    %v704 = vlaneseq
    %v705 = vshrl.u32 %v704, 7
    %v706 = vsub.s32 %v703, %v705
    %v707 = vrot.slane %v693, %v706
    %v708 = vcombine.low %v609, %v621
    %v709 = vcombine.high %v609, %v621
    %v711 = vunpack.c.l.s4 1983009808
    %v712 = vunpack.c.0.s8 %v711
    %v713 = vlaneseq
    %v714 = vshrl.u32 %v713, 7
    %v715 = vsub.s32 %v712, %v714
    %v716 = vrot.slane %v708, %v715
    %v718 = vunpack.c.l.s4 1983009808
    %v719 = vunpack.c.0.s8 %v718
    %v720 = vlaneseq
    %v721 = vshrl.u32 %v720, 7
    %v722 = vsub.s32 %v719, %v721
    %v723 = vrot.slane %v709, %v722
    %v724 = vcombine.low %v700, %v716
    %v725 = vcombine.high %v700, %v716
    %v727 = vunpack.c.l.s4 1934713408
    %v728 = vunpack.c.0.s8 %v727
    %v729 = vlaneseq
    %v730 = vshrl.u32 %v729, 7
    %v731 = vsub.s32 %v728, %v730
    %v732 = vrot.slane %v724, %v731
    %v734 = vunpack.c.l.s4 1934713408
    %v735 = vunpack.c.0.s8 %v734
    %v736 = vlaneseq
    %v737 = vshrl.u32 %v736, 7
    %v738 = vsub.s32 %v735, %v737
    %v739 = vrot.slane %v725, %v738
    %v740 = vcombine.low %v707, %v723
    %v741 = vcombine.high %v707, %v723
    %v743 = vunpack.c.l.s4 1934713408
    %v744 = vunpack.c.0.s8 %v743
    %v745 = vlaneseq
    %v746 = vshrl.u32 %v745, 7
    %v747 = vsub.s32 %v744, %v746
    %v748 = vrot.slane %v740, %v747
    %v750 = vunpack.c.l.s4 1934713408
    %v751 = vunpack.c.0.s8 %v750
    %v752 = vlaneseq
    %v753 = vshrl.u32 %v752, 7
    %v754 = vsub.s32 %v751, %v753
    %v755 = vrot.slane %v741, %v754
    %v756 = vcombine.high %v732, 0.0
    %v757 = vcombine.high %v739, 0.0
    %v758 = vcombine.high %v748, 0.0
    %v759 = vcombine.high %v755, 0.0
    %v760 = vcombine.low %v664, %v671
    %v762 = vunpack.c.l.s4 1983009808
    %v763 = vunpack.c.0.s8 %v762
    %v764 = vlaneseq
    %v765 = vshrl.u32 %v764, 7
    %v766 = vsub.s32 %v763, %v765
    %v767 = vrot.slane %v760, %v766
    %v768 = vcombine.low %v688, %v689
    %v770 = vunpack.c.l.s4 1983009808
    %v771 = vunpack.c.0.s8 %v770
    %v772 = vlaneseq
    %v773 = vshrl.u32 %v772, 7
    %v774 = vsub.s32 %v771, %v773
    %v775 = vrot.slane %v768, %v774
    %v776 = vcombine.low %v680, %v687
    %v778 = vunpack.c.l.s4 1983009808
    %v779 = vunpack.c.0.s8 %v778
    %v780 = vlaneseq
    %v781 = vshrl.u32 %v780, 7
    %v782 = vsub.s32 %v779, %v781
    %v783 = vrot.slane %v776, %v782
    %v784 = vcombine.low %v690, %v691
    %v786 = vunpack.c.l.s4 1983009808
    %v787 = vunpack.c.0.s8 %v786
    %v788 = vlaneseq
    %v789 = vshrl.u32 %v788, 7
    %v790 = vsub.s32 %v787, %v789
    %v791 = vrot.slane %v784, %v790
    %v792 = vcombine.low %v767, %v775
    %v793 = vcombine.high %v767, %v775
    %v795 = vunpack.c.l.s4 1934713408
    %v796 = vunpack.c.0.s8 %v795
    %v797 = vlaneseq
    %v798 = vshrl.u32 %v797, 7
    %v799 = vsub.s32 %v796, %v798
    %v800 = vrot.slane %v792, %v799
    %v802 = vunpack.c.l.s4 1934713408
    %v803 = vunpack.c.0.s8 %v802
    %v804 = vlaneseq
    %v805 = vshrl.u32 %v804, 7
    %v806 = vsub.s32 %v803, %v805
    %v807 = vrot.slane %v793, %v806
    %v808 = vcombine.low %v783, %v791
    %v809 = vcombine.high %v783, %v791
    %v811 = vunpack.c.l.s4 1934713408
    %v812 = vunpack.c.0.s8 %v811
    %v813 = vlaneseq
    %v814 = vshrl.u32 %v813, 7
    %v815 = vsub.s32 %v812, %v814
    %v816 = vrot.slane %v808, %v815
    %v818 = vunpack.c.l.s4 1934713408
    %v819 = vunpack.c.0.s8 %v818
    %v820 = vlaneseq
    %v821 = vshrl.u32 %v820, 7
    %v822 = vsub.s32 %v819, %v821
    %v823 = vrot.slane %v809, %v822
    %v824 = vcombine.low %v800, %v816
    %v825 = vcombine.high %v800, %v816
    %v826 = vcombine.low %v807, %v823
    %v827 = vcombine.high %v807, %v823
    %v828 = vcombine.low %v732, %v739
    %v830 = vunpack.c.l.s4 1983009808
    %v831 = vunpack.c.0.s8 %v830
    %v832 = vlaneseq
    %v833 = vshrl.u32 %v832, 7
    %v834 = vsub.s32 %v831, %v833
    %v835 = vrot.slane %v828, %v834
    %v836 = vcombine.low %v756, %v757
    %v838 = vunpack.c.l.s4 1983009808
    %v839 = vunpack.c.0.s8 %v838
    %v840 = vlaneseq
    %v841 = vshrl.u32 %v840, 7
    %v842 = vsub.s32 %v839, %v841
    %v843 = vrot.slane %v836, %v842
    %v844 = vcombine.low %v748, %v755
    %v846 = vunpack.c.l.s4 1983009808
    %v847 = vunpack.c.0.s8 %v846
    %v848 = vlaneseq
    %v849 = vshrl.u32 %v848, 7
    %v850 = vsub.s32 %v847, %v849
    %v851 = vrot.slane %v844, %v850
    %v852 = vcombine.low %v758, %v759
    %v854 = vunpack.c.l.s4 1983009808
    %v855 = vunpack.c.0.s8 %v854
    %v856 = vlaneseq
    %v857 = vshrl.u32 %v856, 7
    %v858 = vsub.s32 %v855, %v857
    %v859 = vrot.slane %v852, %v858
    %v860 = vcombine.low %v835, %v843
    %v861 = vcombine.high %v835, %v843
    %v863 = vunpack.c.l.s4 1934713408
    %v864 = vunpack.c.0.s8 %v863
    %v865 = vlaneseq
    %v866 = vshrl.u32 %v865, 7
    %v867 = vsub.s32 %v864, %v866
    %v868 = vrot.slane %v860, %v867
    %v870 = vunpack.c.l.s4 1934713408
    %v871 = vunpack.c.0.s8 %v870
    %v872 = vlaneseq
    %v873 = vshrl.u32 %v872, 7
    %v874 = vsub.s32 %v871, %v873
    %v875 = vrot.slane %v861, %v874
    %v876 = vcombine.low %v851, %v859
    %v877 = vcombine.high %v851, %v859
    %v879 = vunpack.c.l.s4 1934713408
    %v880 = vunpack.c.0.s8 %v879
    %v881 = vlaneseq
    %v882 = vshrl.u32 %v881, 7
    %v883 = vsub.s32 %v880, %v882
    %v884 = vrot.slane %v876, %v883
    %v886 = vunpack.c.l.s4 1934713408
    %v887 = vunpack.c.0.s8 %v886
    %v888 = vlaneseq
    %v889 = vshrl.u32 %v888, 7
    %v890 = vsub.s32 %v887, %v889
    %v891 = vrot.slane %v877, %v890
    %v892 = vcombine.low %v868, %v884
    %v893 = vcombine.high %v868, %v884
    %v894 = vcombine.low %v875, %v891
    %v895 = vcombine.high %v875, %v891
    %898 = vrot.lane.b32.xlu0 %v504, 120
    %v899 = vpop.permute.xlu0 %898
    %900 = vrot.lane.b32.xlu0 %v509, 120
    %v901 = vpop.permute.xlu0 %900
    %904 = vrot.lane.b32.xlu0 %v504, 112
    %v905 = vpop.permute.xlu0 %904
    %906 = vrot.lane.b32.xlu0 %v509, 112
    %v907 = vpop.permute.xlu0 %906
    %910 = vrot.lane.b32.xlu0 %v504, 104
    %v911 = vpop.permute.xlu0 %910
    %912 = vrot.lane.b32.xlu0 %v509, 104
    %v913 = vpop.permute.xlu0 %912
    %v916 = vcombine.low %v504, %v905
    %v917 = vcombine.high %v504, %v905
    %v919 = vunpack.c.l.s4 1983009808
    %v920 = vunpack.c.0.s8 %v919
    %v921 = vlaneseq
    %v922 = vshrl.u32 %v921, 7
    %v923 = vsub.s32 %v920, %v922
    %v924 = vrot.slane %v916, %v923
    %v926 = vunpack.c.l.s4 1983009808
    %v927 = vunpack.c.0.s8 %v926
    %v928 = vlaneseq
    %v929 = vshrl.u32 %v928, 7
    %v930 = vsub.s32 %v927, %v929
    %v931 = vrot.slane %v917, %v930
    %v932 = vcombine.low %v899, %v911
    %v933 = vcombine.high %v899, %v911
    %v935 = vunpack.c.l.s4 1983009808
    %v936 = vunpack.c.0.s8 %v935
    %v937 = vlaneseq
    %v938 = vshrl.u32 %v937, 7
    %v939 = vsub.s32 %v936, %v938
    %v940 = vrot.slane %v932, %v939
    %v942 = vunpack.c.l.s4 1983009808
    %v943 = vunpack.c.0.s8 %v942
    %v944 = vlaneseq
    %v945 = vshrl.u32 %v944, 7
    %v946 = vsub.s32 %v943, %v945
    %v947 = vrot.slane %v933, %v946
    %v948 = vcombine.low %v924, %v940
    %v949 = vcombine.high %v924, %v940
    %v951 = vunpack.c.l.s4 1934713408
    %v952 = vunpack.c.0.s8 %v951
    %v953 = vlaneseq
    %v954 = vshrl.u32 %v953, 7
    %v955 = vsub.s32 %v952, %v954
    %v956 = vrot.slane %v948, %v955
    %v958 = vunpack.c.l.s4 1934713408
    %v959 = vunpack.c.0.s8 %v958
    %v960 = vlaneseq
    %v961 = vshrl.u32 %v960, 7
    %v962 = vsub.s32 %v959, %v961
    %v963 = vrot.slane %v949, %v962
    %v964 = vcombine.low %v931, %v947
    %v965 = vcombine.high %v931, %v947
    %v967 = vunpack.c.l.s4 1934713408
    %v968 = vunpack.c.0.s8 %v967
    %v969 = vlaneseq
    %v970 = vshrl.u32 %v969, 7
    %v971 = vsub.s32 %v968, %v970
    %v972 = vrot.slane %v964, %v971
    %v974 = vunpack.c.l.s4 1934713408
    %v975 = vunpack.c.0.s8 %v974
    %v976 = vlaneseq
    %v977 = vshrl.u32 %v976, 7
    %v978 = vsub.s32 %v975, %v977
    %v979 = vrot.slane %v965, %v978
    %v980 = vcombine.high %v956, 0.0
    %v981 = vcombine.high %v963, 0.0
    %v982 = vcombine.high %v972, 0.0
    %v983 = vcombine.high %v979, 0.0
    %v984 = vcombine.low %v509, %v907
    %v985 = vcombine.high %v509, %v907
    %v987 = vunpack.c.l.s4 1983009808
    %v988 = vunpack.c.0.s8 %v987
    %v989 = vlaneseq
    %v990 = vshrl.u32 %v989, 7
    %v991 = vsub.s32 %v988, %v990
    %v992 = vrot.slane %v984, %v991
    %v994 = vunpack.c.l.s4 1983009808
    %v995 = vunpack.c.0.s8 %v994
    %v996 = vlaneseq
    %v997 = vshrl.u32 %v996, 7
    %v998 = vsub.s32 %v995, %v997
    %v999 = vrot.slane %v985, %v998
    %v1000 = vcombine.low %v901, %v913
    %v1001 = vcombine.high %v901, %v913
    %v1003 = vunpack.c.l.s4 1983009808
    %v1004 = vunpack.c.0.s8 %v1003
    %v1005 = vlaneseq
    %v1006 = vshrl.u32 %v1005, 7
    %v1007 = vsub.s32 %v1004, %v1006
    %v1008 = vrot.slane %v1000, %v1007
    %v1010 = vunpack.c.l.s4 1983009808
    %v1011 = vunpack.c.0.s8 %v1010
    %v1012 = vlaneseq
    %v1013 = vshrl.u32 %v1012, 7
    %v1014 = vsub.s32 %v1011, %v1013
    %v1015 = vrot.slane %v1001, %v1014
    %v1016 = vcombine.low %v992, %v1008
    %v1017 = vcombine.high %v992, %v1008
    %v1019 = vunpack.c.l.s4 1934713408
    %v1020 = vunpack.c.0.s8 %v1019
    %v1021 = vlaneseq
    %v1022 = vshrl.u32 %v1021, 7
    %v1023 = vsub.s32 %v1020, %v1022
    %v1024 = vrot.slane %v1016, %v1023
    %v1026 = vunpack.c.l.s4 1934713408
    %v1027 = vunpack.c.0.s8 %v1026
    %v1028 = vlaneseq
    %v1029 = vshrl.u32 %v1028, 7
    %v1030 = vsub.s32 %v1027, %v1029
    %v1031 = vrot.slane %v1017, %v1030
    %v1032 = vcombine.low %v999, %v1015
    %v1033 = vcombine.high %v999, %v1015
    %v1035 = vunpack.c.l.s4 1934713408
    %v1036 = vunpack.c.0.s8 %v1035
    %v1037 = vlaneseq
    %v1038 = vshrl.u32 %v1037, 7
    %v1039 = vsub.s32 %v1036, %v1038
    %v1040 = vrot.slane %v1032, %v1039
    %v1042 = vunpack.c.l.s4 1934713408
    %v1043 = vunpack.c.0.s8 %v1042
    %v1044 = vlaneseq
    %v1045 = vshrl.u32 %v1044, 7
    %v1046 = vsub.s32 %v1043, %v1045
    %v1047 = vrot.slane %v1033, %v1046
    %v1048 = vcombine.high %v1024, 0.0
    %v1049 = vcombine.high %v1031, 0.0
    %v1050 = vcombine.high %v1040, 0.0
    %v1051 = vcombine.high %v1047, 0.0
    %v1052 = vcombine.low %v956, %v963
    %v1054 = vunpack.c.l.s4 1983009808
    %v1055 = vunpack.c.0.s8 %v1054
    %v1056 = vlaneseq
    %v1057 = vshrl.u32 %v1056, 7
    %v1058 = vsub.s32 %v1055, %v1057
    %v1059 = vrot.slane %v1052, %v1058
    %v1060 = vcombine.low %v980, %v981
    %v1062 = vunpack.c.l.s4 1983009808
    %v1063 = vunpack.c.0.s8 %v1062
    %v1064 = vlaneseq
    %v1065 = vshrl.u32 %v1064, 7
    %v1066 = vsub.s32 %v1063, %v1065
    %v1067 = vrot.slane %v1060, %v1066
    %v1068 = vcombine.low %v972, %v979
    %v1070 = vunpack.c.l.s4 1983009808
    %v1071 = vunpack.c.0.s8 %v1070
    %v1072 = vlaneseq
    %v1073 = vshrl.u32 %v1072, 7
    %v1074 = vsub.s32 %v1071, %v1073
    %v1075 = vrot.slane %v1068, %v1074
    %v1076 = vcombine.low %v982, %v983
    %v1078 = vunpack.c.l.s4 1983009808
    %v1079 = vunpack.c.0.s8 %v1078
    %v1080 = vlaneseq
    %v1081 = vshrl.u32 %v1080, 7
    %v1082 = vsub.s32 %v1079, %v1081
    %v1083 = vrot.slane %v1076, %v1082
    %v1084 = vcombine.low %v1059, %v1067
    %v1085 = vcombine.high %v1059, %v1067
    %v1087 = vunpack.c.l.s4 1934713408
    %v1088 = vunpack.c.0.s8 %v1087
    %v1089 = vlaneseq
    %v1090 = vshrl.u32 %v1089, 7
    %v1091 = vsub.s32 %v1088, %v1090
    %v1092 = vrot.slane %v1084, %v1091
    %v1094 = vunpack.c.l.s4 1934713408
    %v1095 = vunpack.c.0.s8 %v1094
    %v1096 = vlaneseq
    %v1097 = vshrl.u32 %v1096, 7
    %v1098 = vsub.s32 %v1095, %v1097
    %v1099 = vrot.slane %v1085, %v1098
    %v1100 = vcombine.low %v1075, %v1083
    %v1101 = vcombine.high %v1075, %v1083
    %v1103 = vunpack.c.l.s4 1934713408
    %v1104 = vunpack.c.0.s8 %v1103
    %v1105 = vlaneseq
    %v1106 = vshrl.u32 %v1105, 7
    %v1107 = vsub.s32 %v1104, %v1106
    %v1108 = vrot.slane %v1100, %v1107
    %v1110 = vunpack.c.l.s4 1934713408
    %v1111 = vunpack.c.0.s8 %v1110
    %v1112 = vlaneseq
    %v1113 = vshrl.u32 %v1112, 7
    %v1114 = vsub.s32 %v1111, %v1113
    %v1115 = vrot.slane %v1101, %v1114
    %v1116 = vcombine.low %v1092, %v1108
    %v1117 = vcombine.high %v1092, %v1108
    %v1118 = vcombine.low %v1099, %v1115
    %v1119 = vcombine.high %v1099, %v1115
    %v1120 = vcombine.low %v1024, %v1031
    %v1122 = vunpack.c.l.s4 1983009808
    %v1123 = vunpack.c.0.s8 %v1122
    %v1124 = vlaneseq
    %v1125 = vshrl.u32 %v1124, 7
    %v1126 = vsub.s32 %v1123, %v1125
    %v1127 = vrot.slane %v1120, %v1126
    %v1128 = vcombine.low %v1048, %v1049
    %v1130 = vunpack.c.l.s4 1983009808
    %v1131 = vunpack.c.0.s8 %v1130
    %v1132 = vlaneseq
    %v1133 = vshrl.u32 %v1132, 7
    %v1134 = vsub.s32 %v1131, %v1133
    %v1135 = vrot.slane %v1128, %v1134
    %v1136 = vcombine.low %v1040, %v1047
    %v1138 = vunpack.c.l.s4 1983009808
    %v1139 = vunpack.c.0.s8 %v1138
    %v1140 = vlaneseq
    %v1141 = vshrl.u32 %v1140, 7
    %v1142 = vsub.s32 %v1139, %v1141
    %v1143 = vrot.slane %v1136, %v1142
    %v1144 = vcombine.low %v1050, %v1051
    %v1146 = vunpack.c.l.s4 1983009808
    %v1147 = vunpack.c.0.s8 %v1146
    %v1148 = vlaneseq
    %v1149 = vshrl.u32 %v1148, 7
    %v1150 = vsub.s32 %v1147, %v1149
    %v1151 = vrot.slane %v1144, %v1150
    %v1152 = vcombine.low %v1127, %v1135
    %v1153 = vcombine.high %v1127, %v1135
    %v1155 = vunpack.c.l.s4 1934713408
    %v1156 = vunpack.c.0.s8 %v1155
    %v1157 = vlaneseq
    %v1158 = vshrl.u32 %v1157, 7
    %v1159 = vsub.s32 %v1156, %v1158
    %v1160 = vrot.slane %v1152, %v1159
    %v1162 = vunpack.c.l.s4 1934713408
    %v1163 = vunpack.c.0.s8 %v1162
    %v1164 = vlaneseq
    %v1165 = vshrl.u32 %v1164, 7
    %v1166 = vsub.s32 %v1163, %v1165
    %v1167 = vrot.slane %v1153, %v1166
    %v1168 = vcombine.low %v1143, %v1151
    %v1169 = vcombine.high %v1143, %v1151
    %v1171 = vunpack.c.l.s4 1934713408
    %v1172 = vunpack.c.0.s8 %v1171
    %v1173 = vlaneseq
    %v1174 = vshrl.u32 %v1173, 7
    %v1175 = vsub.s32 %v1172, %v1174
    %v1176 = vrot.slane %v1168, %v1175
    %v1178 = vunpack.c.l.s4 1934713408
    %v1179 = vunpack.c.0.s8 %v1178
    %v1180 = vlaneseq
    %v1181 = vshrl.u32 %v1180, 7
    %v1182 = vsub.s32 %v1179, %v1181
    %v1183 = vrot.slane %v1169, %v1182
    %v1184 = vcombine.low %v1160, %v1176
    %v1185 = vcombine.high %v1160, %v1176
    %v1186 = vcombine.low %v1167, %v1183
    %v1187 = vcombine.high %v1167, %v1183
    %1190 = vrot.lane.b32.xlu0 %v596, 120
    %v1191 = vpop.permute.xlu0 %1190
    %1192 = vrot.lane.b32.xlu0 %v601, 120
    %v1193 = vpop.permute.xlu0 %1192
    %1196 = vrot.lane.b32.xlu0 %v596, 112
    %v1197 = vpop.permute.xlu0 %1196
    %1198 = vrot.lane.b32.xlu0 %v601, 112
    %v1199 = vpop.permute.xlu0 %1198
    %1202 = vrot.lane.b32.xlu0 %v596, 104
    %v1203 = vpop.permute.xlu0 %1202
    %1204 = vrot.lane.b32.xlu0 %v601, 104
    %v1205 = vpop.permute.xlu0 %1204
    %v1208 = vcombine.low %v596, %v1197
    %v1209 = vcombine.high %v596, %v1197
    %v1211 = vunpack.c.l.s4 1983009808
    %v1212 = vunpack.c.0.s8 %v1211
    %v1213 = vlaneseq
    %v1214 = vshrl.u32 %v1213, 7
    %v1215 = vsub.s32 %v1212, %v1214
    %v1216 = vrot.slane %v1208, %v1215
    %v1218 = vunpack.c.l.s4 1983009808
    %v1219 = vunpack.c.0.s8 %v1218
    %v1220 = vlaneseq
    %v1221 = vshrl.u32 %v1220, 7
    %v1222 = vsub.s32 %v1219, %v1221
    %v1223 = vrot.slane %v1209, %v1222
    %v1224 = vcombine.low %v1191, %v1203
    %v1225 = vcombine.high %v1191, %v1203
    %v1227 = vunpack.c.l.s4 1983009808
    %v1228 = vunpack.c.0.s8 %v1227
    %v1229 = vlaneseq
    %v1230 = vshrl.u32 %v1229, 7
    %v1231 = vsub.s32 %v1228, %v1230
    %v1232 = vrot.slane %v1224, %v1231
    %v1234 = vunpack.c.l.s4 1983009808
    %v1235 = vunpack.c.0.s8 %v1234
    %v1236 = vlaneseq
    %v1237 = vshrl.u32 %v1236, 7
    %v1238 = vsub.s32 %v1235, %v1237
    %v1239 = vrot.slane %v1225, %v1238
    %v1240 = vcombine.low %v1216, %v1232
    %v1241 = vcombine.high %v1216, %v1232
    %v1243 = vunpack.c.l.s4 1934713408
    %v1244 = vunpack.c.0.s8 %v1243
    %v1245 = vlaneseq
    %v1246 = vshrl.u32 %v1245, 7
    %v1247 = vsub.s32 %v1244, %v1246
    %v1248 = vrot.slane %v1240, %v1247
    %v1250 = vunpack.c.l.s4 1934713408
    %v1251 = vunpack.c.0.s8 %v1250
    %v1252 = vlaneseq
    %v1253 = vshrl.u32 %v1252, 7
    %v1254 = vsub.s32 %v1251, %v1253
    %v1255 = vrot.slane %v1241, %v1254
    %v1256 = vcombine.low %v1223, %v1239
    %v1257 = vcombine.high %v1223, %v1239
    %v1259 = vunpack.c.l.s4 1934713408
    %v1260 = vunpack.c.0.s8 %v1259
    %v1261 = vlaneseq
    %v1262 = vshrl.u32 %v1261, 7
    %v1263 = vsub.s32 %v1260, %v1262
    %v1264 = vrot.slane %v1256, %v1263
    %v1266 = vunpack.c.l.s4 1934713408
    %v1267 = vunpack.c.0.s8 %v1266
    %v1268 = vlaneseq
    %v1269 = vshrl.u32 %v1268, 7
    %v1270 = vsub.s32 %v1267, %v1269
    %v1271 = vrot.slane %v1257, %v1270
    %v1272 = vcombine.high %v1248, 0.0
    %v1273 = vcombine.high %v1255, 0.0
    %v1274 = vcombine.high %v1264, 0.0
    %v1275 = vcombine.high %v1271, 0.0
    %v1276 = vcombine.low %v601, %v1199
    %v1277 = vcombine.high %v601, %v1199
    %v1279 = vunpack.c.l.s4 1983009808
    %v1280 = vunpack.c.0.s8 %v1279
    %v1281 = vlaneseq
    %v1282 = vshrl.u32 %v1281, 7
    %v1283 = vsub.s32 %v1280, %v1282
    %v1284 = vrot.slane %v1276, %v1283
    %v1286 = vunpack.c.l.s4 1983009808
    %v1287 = vunpack.c.0.s8 %v1286
    %v1288 = vlaneseq
    %v1289 = vshrl.u32 %v1288, 7
    %v1290 = vsub.s32 %v1287, %v1289
    %v1291 = vrot.slane %v1277, %v1290
    %v1292 = vcombine.low %v1193, %v1205
    %v1293 = vcombine.high %v1193, %v1205
    %v1295 = vunpack.c.l.s4 1983009808
    %v1296 = vunpack.c.0.s8 %v1295
    %v1297 = vlaneseq
    %v1298 = vshrl.u32 %v1297, 7
    %v1299 = vsub.s32 %v1296, %v1298
    %v1300 = vrot.slane %v1292, %v1299
    %v1302 = vunpack.c.l.s4 1983009808
    %v1303 = vunpack.c.0.s8 %v1302
    %v1304 = vlaneseq
    %v1305 = vshrl.u32 %v1304, 7
    %v1306 = vsub.s32 %v1303, %v1305
    %v1307 = vrot.slane %v1293, %v1306
    %v1308 = vcombine.low %v1284, %v1300
    %v1309 = vcombine.high %v1284, %v1300
    %v1311 = vunpack.c.l.s4 1934713408
    %v1312 = vunpack.c.0.s8 %v1311
    %v1313 = vlaneseq
    %v1314 = vshrl.u32 %v1313, 7
    %v1315 = vsub.s32 %v1312, %v1314
    %v1316 = vrot.slane %v1308, %v1315
    %v1318 = vunpack.c.l.s4 1934713408
    %v1319 = vunpack.c.0.s8 %v1318
    %v1320 = vlaneseq
    %v1321 = vshrl.u32 %v1320, 7
    %v1322 = vsub.s32 %v1319, %v1321
    %v1323 = vrot.slane %v1309, %v1322
    %v1324 = vcombine.low %v1291, %v1307
    %v1325 = vcombine.high %v1291, %v1307
    %v1327 = vunpack.c.l.s4 1934713408
    %v1328 = vunpack.c.0.s8 %v1327
    %v1329 = vlaneseq
    %v1330 = vshrl.u32 %v1329, 7
    %v1331 = vsub.s32 %v1328, %v1330
    %v1332 = vrot.slane %v1324, %v1331
    %v1334 = vunpack.c.l.s4 1934713408
    %v1335 = vunpack.c.0.s8 %v1334
    %v1336 = vlaneseq
    %v1337 = vshrl.u32 %v1336, 7
    %v1338 = vsub.s32 %v1335, %v1337
    %v1339 = vrot.slane %v1325, %v1338
    %v1340 = vcombine.high %v1316, 0.0
    %v1341 = vcombine.high %v1323, 0.0
    %v1342 = vcombine.high %v1332, 0.0
    %v1343 = vcombine.high %v1339, 0.0
    %v1344 = vcombine.low %v1248, %v1255
    %v1346 = vunpack.c.l.s4 1983009808
    %v1347 = vunpack.c.0.s8 %v1346
    %v1348 = vlaneseq
    %v1349 = vshrl.u32 %v1348, 7
    %v1350 = vsub.s32 %v1347, %v1349
    %v1351 = vrot.slane %v1344, %v1350
    %v1352 = vcombine.low %v1272, %v1273
    %v1354 = vunpack.c.l.s4 1983009808
    %v1355 = vunpack.c.0.s8 %v1354
    %v1356 = vlaneseq
    %v1357 = vshrl.u32 %v1356, 7
    %v1358 = vsub.s32 %v1355, %v1357
    %v1359 = vrot.slane %v1352, %v1358
    %v1360 = vcombine.low %v1264, %v1271
    %v1362 = vunpack.c.l.s4 1983009808
    %v1363 = vunpack.c.0.s8 %v1362
    %v1364 = vlaneseq
    %v1365 = vshrl.u32 %v1364, 7
    %v1366 = vsub.s32 %v1363, %v1365
    %v1367 = vrot.slane %v1360, %v1366
    %v1368 = vcombine.low %v1274, %v1275
    %v1370 = vunpack.c.l.s4 1983009808
    %v1371 = vunpack.c.0.s8 %v1370
    %v1372 = vlaneseq
    %v1373 = vshrl.u32 %v1372, 7
    %v1374 = vsub.s32 %v1371, %v1373
    %v1375 = vrot.slane %v1368, %v1374
    %v1376 = vcombine.low %v1351, %v1359
    %v1377 = vcombine.high %v1351, %v1359
    %v1379 = vunpack.c.l.s4 1934713408
    %v1380 = vunpack.c.0.s8 %v1379
    %v1381 = vlaneseq
    %v1382 = vshrl.u32 %v1381, 7
    %v1383 = vsub.s32 %v1380, %v1382
    %v1384 = vrot.slane %v1376, %v1383
    %v1386 = vunpack.c.l.s4 1934713408
    %v1387 = vunpack.c.0.s8 %v1386
    %v1388 = vlaneseq
    %v1389 = vshrl.u32 %v1388, 7
    %v1390 = vsub.s32 %v1387, %v1389
    %v1391 = vrot.slane %v1377, %v1390
    %v1392 = vcombine.low %v1367, %v1375
    %v1393 = vcombine.high %v1367, %v1375
    %v1395 = vunpack.c.l.s4 1934713408
    %v1396 = vunpack.c.0.s8 %v1395
    %v1397 = vlaneseq
    %v1398 = vshrl.u32 %v1397, 7
    %v1399 = vsub.s32 %v1396, %v1398
    %v1400 = vrot.slane %v1392, %v1399
    %v1402 = vunpack.c.l.s4 1934713408
    %v1403 = vunpack.c.0.s8 %v1402
    %v1404 = vlaneseq
    %v1405 = vshrl.u32 %v1404, 7
    %v1406 = vsub.s32 %v1403, %v1405
    %v1407 = vrot.slane %v1393, %v1406
    %v1408 = vcombine.low %v1384, %v1400
    %v1409 = vcombine.high %v1384, %v1400
    %v1410 = vcombine.low %v1391, %v1407
    %v1411 = vcombine.high %v1391, %v1407
    %v1412 = vcombine.low %v1316, %v1323
    %v1414 = vunpack.c.l.s4 1983009808
    %v1415 = vunpack.c.0.s8 %v1414
    %v1416 = vlaneseq
    %v1417 = vshrl.u32 %v1416, 7
    %v1418 = vsub.s32 %v1415, %v1417
    %v1419 = vrot.slane %v1412, %v1418
    %v1420 = vcombine.low %v1340, %v1341
    %v1422 = vunpack.c.l.s4 1983009808
    %v1423 = vunpack.c.0.s8 %v1422
    %v1424 = vlaneseq
    %v1425 = vshrl.u32 %v1424, 7
    %v1426 = vsub.s32 %v1423, %v1425
    %v1427 = vrot.slane %v1420, %v1426
    %v1428 = vcombine.low %v1332, %v1339
    %v1430 = vunpack.c.l.s4 1983009808
    %v1431 = vunpack.c.0.s8 %v1430
    %v1432 = vlaneseq
    %v1433 = vshrl.u32 %v1432, 7
    %v1434 = vsub.s32 %v1431, %v1433
    %v1435 = vrot.slane %v1428, %v1434
    %v1436 = vcombine.low %v1342, %v1343
    %v1438 = vunpack.c.l.s4 1983009808
    %v1439 = vunpack.c.0.s8 %v1438
    %v1440 = vlaneseq
    %v1441 = vshrl.u32 %v1440, 7
    %v1442 = vsub.s32 %v1439, %v1441
    %v1443 = vrot.slane %v1436, %v1442
    %v1444 = vcombine.low %v1419, %v1427
    %v1445 = vcombine.high %v1419, %v1427
    %v1447 = vunpack.c.l.s4 1934713408
    %v1448 = vunpack.c.0.s8 %v1447
    %v1449 = vlaneseq
    %v1450 = vshrl.u32 %v1449, 7
    %v1451 = vsub.s32 %v1448, %v1450
    %v1452 = vrot.slane %v1444, %v1451
    %v1454 = vunpack.c.l.s4 1934713408
    %v1455 = vunpack.c.0.s8 %v1454
    %v1456 = vlaneseq
    %v1457 = vshrl.u32 %v1456, 7
    %v1458 = vsub.s32 %v1455, %v1457
    %v1459 = vrot.slane %v1445, %v1458
    %v1460 = vcombine.low %v1435, %v1443
    %v1461 = vcombine.high %v1435, %v1443
    %v1463 = vunpack.c.l.s4 1934713408
    %v1464 = vunpack.c.0.s8 %v1463
    %v1465 = vlaneseq
    %v1466 = vshrl.u32 %v1465, 7
    %v1467 = vsub.s32 %v1464, %v1466
    %v1468 = vrot.slane %v1460, %v1467
    %v1470 = vunpack.c.l.s4 1934713408
    %v1471 = vunpack.c.0.s8 %v1470
    %v1472 = vlaneseq
    %v1473 = vshrl.u32 %v1472, 7
    %v1474 = vsub.s32 %v1471, %v1473
    %v1475 = vrot.slane %v1461, %v1474
    %v1476 = vcombine.low %v1452, %v1468
    %v1477 = vcombine.high %v1452, %v1468
    %v1478 = vcombine.low %v1459, %v1475
    %v1479 = vcombine.high %v1459, %v1475
    %vm1480 = vcmask 64512
    %v1482 = vsel %vm1480, %v824, 0
    %v1485 = vsel %vm1480, %v1116, 0
    %1487 = vmatprep.subr.mxu0 0.0
    %1488 = vmatpush1.xpose.msra.mxu0 %v1485
    %1489 = vmatprep.subr.mxu0 0.0
    %1490 = vmatpush1.xpose.msra.mxu0 0.0
    %1491 = vmatprep.subr.mxu0 0.0
    %1492 = vmatpush1.xpose.msra.mxu0 0.0
    %1493 = vmatprep.subr.mxu0 0.0
    %1494 = vmatpush1.xpose.msra.mxu0 0.0
    %1495 = vmatprep.subr.mxu0 0.0
    %1496 = vmatpush1.xpose.msra.mxu0 0.0
    %1497 = vmatprep.subr.mxu0 0.0
    %1498 = vmatpush1.xpose.msra.mxu0 0.0
    %1499 = vmatprep.subr.mxu0 0.0
    %1500 = vmatpush1.xpose.msra.mxu0 0.0
    %1501 = vmatprep.subr.mxu0 0.0
    %1502 = vmatpush1.xpose.msra.mxu0 0.0
    %1503 = vmatprep.subr.mxu0 0.0
    %1504 = vmatpush1.xpose.msra.mxu0 0.0
    %1505 = vmatprep.subr.mxu0 0.0
    %1506 = vmatpush1.xpose.msra.mxu0 0.0
    %1507 = vmatprep.subr.mxu0 0.0
    %1508 = vmatpush1.xpose.msra.mxu0 0.0
    %1509 = vmatprep.subr.mxu0 0.0
    %1510 = vmatpush1.xpose.msra.mxu0 0.0
    %1511 = vmatprep.subr.mxu0 0.0
    %1512 = vmatpush1.xpose.msra.mxu0 0.0
    %1513 = vmatprep.subr.mxu0 0.0
    %1514 = vmatpush1.xpose.msra.mxu0 0.0
    %1515 = vmatprep.subr.mxu0 0.0
    %1516 = vmatpush1.xpose.msra.mxu0 0.0
    %1517 = vmatprep.subr.mxu0 0.0
    %1518 = vmatpush1.xpose.msra.mxu0 0.0
    %1519 = vmatprep.subr.mxu0 0.0
    %1520 = vmatpush1.xpose.msra.mxu0 0.0
    %1521 = vmatprep.subr.mxu0 0.0
    %1522 = vmatpush1.xpose.msra.mxu0 0.0
    %1523 = vmatprep.subr.mxu0 0.0
    %1524 = vmatpush1.xpose.msra.mxu0 0.0
    %1525 = vmatprep.subr.mxu0 0.0
    %1526 = vmatpush1.xpose.msra.mxu0 0.0
    %1527 = vmatprep.subr.mxu0 0.0
    %1528 = vmatpush1.xpose.msra.mxu0 0.0
    %1529 = vmatprep.subr.mxu0 0.0
    %1530 = vmatpush1.xpose.msra.mxu0 0.0
    %1531 = vmatprep.subr.mxu0 0.0
    %1532 = vmatpush1.xpose.msra.mxu0 0.0
    %1533 = vmatprep.subr.mxu0 0.0
    %1534 = vmatpush1.xpose.msra.mxu0 0.0
    %1535 = vmatprep.subr.mxu0 0.0
    %1536 = vmatpush1.xpose.msra.mxu0 0.0
    %1537 = vmatprep.subr.mxu0 0.0
    %1538 = vmatpush1.xpose.msra.mxu0 0.0
    %1539 = vmatprep.subr.mxu0 0.0
    %1540 = vmatpush1.xpose.msra.mxu0 0.0
    %1541 = vmatprep.subr.mxu0 0.0
    %1542 = vmatpush1.xpose.msra.mxu0 0.0
    %1543 = vmatprep.subr.mxu0 0.0
    %1544 = vmatpush1.xpose.msra.mxu0 0.0
    %1545 = vmatprep.subr.mxu0 0.0
    %1546 = vmatpush1.xpose.msra.mxu0 0.0
    %1547 = vmatprep.subr.mxu0 0.0
    %1548 = vmatpush1.xpose.msra.mxu0 0.0
    %1549 = vmatprep.subr.mxu0 0.0
    %1550 = vmatpush1.xpose.msra.mxu0 0.0
    %1551 = vmatprep.mubr.f32.mxu0 0.0
    %1552 = vmatmul.mubr.f32.gmra.mrb[0].mxu0 %v1482
    %v1553 = vpop.f32.mrb[0].mxu0
    %v1554 = vadd.f32 0.0, %v1553
    %v1555 = vpop.f32.mrb[0].mxu0
    %1556 = vdwg.mxu0
    %v1558 = vsel %vm1480, %v892, 0
    %v1561 = vsel %vm1480, %v1184, 0
    %1563 = vmatprep.subr.mxu0 0.0
    %1564 = vmatpush1.xpose.msra.mxu0 %v1561
    %1565 = vmatprep.subr.mxu0 0.0
    %1566 = vmatpush1.xpose.msra.mxu0 0.0
    %1567 = vmatprep.subr.mxu0 0.0
    %1568 = vmatpush1.xpose.msra.mxu0 0.0
    %1569 = vmatprep.subr.mxu0 0.0
    %1570 = vmatpush1.xpose.msra.mxu0 0.0
    %1571 = vmatprep.subr.mxu0 0.0
    %1572 = vmatpush1.xpose.msra.mxu0 0.0
    %1573 = vmatprep.subr.mxu0 0.0
    %1574 = vmatpush1.xpose.msra.mxu0 0.0
    %1575 = vmatprep.subr.mxu0 0.0
    %1576 = vmatpush1.xpose.msra.mxu0 0.0
    %1577 = vmatprep.subr.mxu0 0.0
    %1578 = vmatpush1.xpose.msra.mxu0 0.0
    %1579 = vmatprep.subr.mxu0 0.0
    %1580 = vmatpush1.xpose.msra.mxu0 0.0
    %1581 = vmatprep.subr.mxu0 0.0
    %1582 = vmatpush1.xpose.msra.mxu0 0.0
    %1583 = vmatprep.subr.mxu0 0.0
    %1584 = vmatpush1.xpose.msra.mxu0 0.0
    %1585 = vmatprep.subr.mxu0 0.0
    %1586 = vmatpush1.xpose.msra.mxu0 0.0
    %1587 = vmatprep.subr.mxu0 0.0
    %1588 = vmatpush1.xpose.msra.mxu0 0.0
    %1589 = vmatprep.subr.mxu0 0.0
    %1590 = vmatpush1.xpose.msra.mxu0 0.0
    %1591 = vmatprep.subr.mxu0 0.0
    %1592 = vmatpush1.xpose.msra.mxu0 0.0
    %1593 = vmatprep.subr.mxu0 0.0
    %1594 = vmatpush1.xpose.msra.mxu0 0.0
    %1595 = vmatprep.subr.mxu0 0.0
    %1596 = vmatpush1.xpose.msra.mxu0 0.0
    %1597 = vmatprep.subr.mxu0 0.0
    %1598 = vmatpush1.xpose.msra.mxu0 0.0
    %1599 = vmatprep.subr.mxu0 0.0
    %1600 = vmatpush1.xpose.msra.mxu0 0.0
    %1601 = vmatprep.subr.mxu0 0.0
    %1602 = vmatpush1.xpose.msra.mxu0 0.0
    %1603 = vmatprep.subr.mxu0 0.0
    %1604 = vmatpush1.xpose.msra.mxu0 0.0
    %1605 = vmatprep.subr.mxu0 0.0
    %1606 = vmatpush1.xpose.msra.mxu0 0.0
    %1607 = vmatprep.subr.mxu0 0.0
    %1608 = vmatpush1.xpose.msra.mxu0 0.0
    %1609 = vmatprep.subr.mxu0 0.0
    %1610 = vmatpush1.xpose.msra.mxu0 0.0
    %1611 = vmatprep.subr.mxu0 0.0
    %1612 = vmatpush1.xpose.msra.mxu0 0.0
    %1613 = vmatprep.subr.mxu0 0.0
    %1614 = vmatpush1.xpose.msra.mxu0 0.0
    %1615 = vmatprep.subr.mxu0 0.0
    %1616 = vmatpush1.xpose.msra.mxu0 0.0
    %1617 = vmatprep.subr.mxu0 0.0
    %1618 = vmatpush1.xpose.msra.mxu0 0.0
    %1619 = vmatprep.subr.mxu0 0.0
    %1620 = vmatpush1.xpose.msra.mxu0 0.0
    %1621 = vmatprep.subr.mxu0 0.0
    %1622 = vmatpush1.xpose.msra.mxu0 0.0
    %1623 = vmatprep.subr.mxu0 0.0
    %1624 = vmatpush1.xpose.msra.mxu0 0.0
    %1625 = vmatprep.subr.mxu0 0.0
    %1626 = vmatpush1.xpose.msra.mxu0 0.0
    %1627 = vmatprep.mubr.f32.mxu0 0.0
    %1628 = vmatmul.mubr.f32.gmra.mrb[0].mxu0 %v1558
    %v1629 = vpop.f32.mrb[0].mxu0
    %v1630 = vadd.f32 0.0, %v1629
    %v1631 = vpop.f32.mrb[0].mxu0
    %1632 = vdwg.mxu0
    %v1634 = vsel %vm1480, %v825, 0
    %v1637 = vsel %vm1480, %v1117, 0
    %1639 = vmatprep.subr.mxu0 0.0
    %1640 = vmatpush1.xpose.msra.mxu0 %v1637
    %1641 = vmatprep.subr.mxu0 0.0
    %1642 = vmatpush1.xpose.msra.mxu0 0.0
    %1643 = vmatprep.subr.mxu0 0.0
    %1644 = vmatpush1.xpose.msra.mxu0 0.0
    %1645 = vmatprep.subr.mxu0 0.0
    %1646 = vmatpush1.xpose.msra.mxu0 0.0
    %1647 = vmatprep.subr.mxu0 0.0
    %1648 = vmatpush1.xpose.msra.mxu0 0.0
    %1649 = vmatprep.subr.mxu0 0.0
    %1650 = vmatpush1.xpose.msra.mxu0 0.0
    %1651 = vmatprep.subr.mxu0 0.0
    %1652 = vmatpush1.xpose.msra.mxu0 0.0
    %1653 = vmatprep.subr.mxu0 0.0
    %1654 = vmatpush1.xpose.msra.mxu0 0.0
    %1655 = vmatprep.subr.mxu0 0.0
    %1656 = vmatpush1.xpose.msra.mxu0 0.0
    %1657 = vmatprep.subr.mxu0 0.0
    %1658 = vmatpush1.xpose.msra.mxu0 0.0
    %1659 = vmatprep.subr.mxu0 0.0
    %1660 = vmatpush1.xpose.msra.mxu0 0.0
    %1661 = vmatprep.subr.mxu0 0.0
    %1662 = vmatpush1.xpose.msra.mxu0 0.0
    %1663 = vmatprep.subr.mxu0 0.0
    %1664 = vmatpush1.xpose.msra.mxu0 0.0
    %1665 = vmatprep.subr.mxu0 0.0
    %1666 = vmatpush1.xpose.msra.mxu0 0.0
    %1667 = vmatprep.subr.mxu0 0.0
    %1668 = vmatpush1.xpose.msra.mxu0 0.0
    %1669 = vmatprep.subr.mxu0 0.0
    %1670 = vmatpush1.xpose.msra.mxu0 0.0
    %1671 = vmatprep.subr.mxu0 0.0
    %1672 = vmatpush1.xpose.msra.mxu0 0.0
    %1673 = vmatprep.subr.mxu0 0.0
    %1674 = vmatpush1.xpose.msra.mxu0 0.0
    %1675 = vmatprep.subr.mxu0 0.0
    %1676 = vmatpush1.xpose.msra.mxu0 0.0
    %1677 = vmatprep.subr.mxu0 0.0
    %1678 = vmatpush1.xpose.msra.mxu0 0.0
    %1679 = vmatprep.subr.mxu0 0.0
    %1680 = vmatpush1.xpose.msra.mxu0 0.0
    %1681 = vmatprep.subr.mxu0 0.0
    %1682 = vmatpush1.xpose.msra.mxu0 0.0
    %1683 = vmatprep.subr.mxu0 0.0
    %1684 = vmatpush1.xpose.msra.mxu0 0.0
    %1685 = vmatprep.subr.mxu0 0.0
    %1686 = vmatpush1.xpose.msra.mxu0 0.0
    %1687 = vmatprep.subr.mxu0 0.0
    %1688 = vmatpush1.xpose.msra.mxu0 0.0
    %1689 = vmatprep.subr.mxu0 0.0
    %1690 = vmatpush1.xpose.msra.mxu0 0.0
    %1691 = vmatprep.subr.mxu0 0.0
    %1692 = vmatpush1.xpose.msra.mxu0 0.0
    %1693 = vmatprep.subr.mxu0 0.0
    %1694 = vmatpush1.xpose.msra.mxu0 0.0
    %1695 = vmatprep.subr.mxu0 0.0
    %1696 = vmatpush1.xpose.msra.mxu0 0.0
    %1697 = vmatprep.subr.mxu0 0.0
    %1698 = vmatpush1.xpose.msra.mxu0 0.0
    %1699 = vmatprep.subr.mxu0 0.0
    %1700 = vmatpush1.xpose.msra.mxu0 0.0
    %1701 = vmatprep.subr.mxu0 0.0
    %1702 = vmatpush1.xpose.msra.mxu0 0.0
    %1703 = vmatprep.mubr.f32.mxu0 0.0
    %1704 = vmatmul.mubr.f32.gmra.mrb[0].mxu0 %v1634
    %v1705 = vpop.f32.mrb[0].mxu0
    %v1706 = vadd.f32 0.0, %v1705
    %v1707 = vpop.f32.mrb[0].mxu0
    %1708 = vdwg.mxu0
    %v1710 = vsel %vm1480, %v893, 0
    %v1713 = vsel %vm1480, %v1185, 0
    %1715 = vmatprep.subr.mxu0 0.0
    %1716 = vmatpush1.xpose.msra.mxu0 %v1713
    %1717 = vmatprep.subr.mxu0 0.0
    %1718 = vmatpush1.xpose.msra.mxu0 0.0
    %1719 = vmatprep.subr.mxu0 0.0
    %1720 = vmatpush1.xpose.msra.mxu0 0.0
    %1721 = vmatprep.subr.mxu0 0.0
    %1722 = vmatpush1.xpose.msra.mxu0 0.0
    %1723 = vmatprep.subr.mxu0 0.0
    %1724 = vmatpush1.xpose.msra.mxu0 0.0
    %1725 = vmatprep.subr.mxu0 0.0
    %1726 = vmatpush1.xpose.msra.mxu0 0.0
    %1727 = vmatprep.subr.mxu0 0.0
    %1728 = vmatpush1.xpose.msra.mxu0 0.0
    %1729 = vmatprep.subr.mxu0 0.0
    %1730 = vmatpush1.xpose.msra.mxu0 0.0
    %1731 = vmatprep.subr.mxu0 0.0
    %1732 = vmatpush1.xpose.msra.mxu0 0.0
    %1733 = vmatprep.subr.mxu0 0.0
    %1734 = vmatpush1.xpose.msra.mxu0 0.0
    %1735 = vmatprep.subr.mxu0 0.0
    %1736 = vmatpush1.xpose.msra.mxu0 0.0
    %1737 = vmatprep.subr.mxu0 0.0
    %1738 = vmatpush1.xpose.msra.mxu0 0.0
    %1739 = vmatprep.subr.mxu0 0.0
    %1740 = vmatpush1.xpose.msra.mxu0 0.0
    %1741 = vmatprep.subr.mxu0 0.0
    %1742 = vmatpush1.xpose.msra.mxu0 0.0
    %1743 = vmatprep.subr.mxu0 0.0
    %1744 = vmatpush1.xpose.msra.mxu0 0.0
    %1745 = vmatprep.subr.mxu0 0.0
    %1746 = vmatpush1.xpose.msra.mxu0 0.0
    %1747 = vmatprep.subr.mxu0 0.0
    %1748 = vmatpush1.xpose.msra.mxu0 0.0
    %1749 = vmatprep.subr.mxu0 0.0
    %1750 = vmatpush1.xpose.msra.mxu0 0.0
    %1751 = vmatprep.subr.mxu0 0.0
    %1752 = vmatpush1.xpose.msra.mxu0 0.0
    %1753 = vmatprep.subr.mxu0 0.0
    %1754 = vmatpush1.xpose.msra.mxu0 0.0
    %1755 = vmatprep.subr.mxu0 0.0
    %1756 = vmatpush1.xpose.msra.mxu0 0.0
    %1757 = vmatprep.subr.mxu0 0.0
    %1758 = vmatpush1.xpose.msra.mxu0 0.0
    %1759 = vmatprep.subr.mxu0 0.0
    %1760 = vmatpush1.xpose.msra.mxu0 0.0
    %1761 = vmatprep.subr.mxu0 0.0
    %1762 = vmatpush1.xpose.msra.mxu0 0.0
    %1763 = vmatprep.subr.mxu0 0.0
    %1764 = vmatpush1.xpose.msra.mxu0 0.0
    %1765 = vmatprep.subr.mxu0 0.0
    %1766 = vmatpush1.xpose.msra.mxu0 0.0
    %1767 = vmatprep.subr.mxu0 0.0
    %1768 = vmatpush1.xpose.msra.mxu0 0.0
    %1769 = vmatprep.subr.mxu0 0.0
    %1770 = vmatpush1.xpose.msra.mxu0 0.0
    %1771 = vmatprep.subr.mxu0 0.0
    %1772 = vmatpush1.xpose.msra.mxu0 0.0
    %1773 = vmatprep.subr.mxu0 0.0
    %1774 = vmatpush1.xpose.msra.mxu0 0.0
    %1775 = vmatprep.subr.mxu0 0.0
    %1776 = vmatpush1.xpose.msra.mxu0 0.0
    %1777 = vmatprep.subr.mxu0 0.0
    %1778 = vmatpush1.xpose.msra.mxu0 0.0
    %1779 = vmatprep.mubr.f32.mxu0 0.0
    %1780 = vmatmul.mubr.f32.gmra.mrb[0].mxu0 %v1710
    %v1781 = vpop.f32.mrb[0].mxu0
    %v1782 = vadd.f32 0.0, %v1781
    %v1783 = vpop.f32.mrb[0].mxu0
    %1784 = vdwg.mxu0
    %v1786 = vsel %vm1480, %v826, 0
    %v1789 = vsel %vm1480, %v1118, 0
    %1791 = vmatprep.subr.mxu0 0.0
    %1792 = vmatpush1.xpose.msra.mxu0 %v1789
    %1793 = vmatprep.subr.mxu0 0.0
    %1794 = vmatpush1.xpose.msra.mxu0 0.0
    %1795 = vmatprep.subr.mxu0 0.0
    %1796 = vmatpush1.xpose.msra.mxu0 0.0
    %1797 = vmatprep.subr.mxu0 0.0
    %1798 = vmatpush1.xpose.msra.mxu0 0.0
    %1799 = vmatprep.subr.mxu0 0.0
    %1800 = vmatpush1.xpose.msra.mxu0 0.0
    %1801 = vmatprep.subr.mxu0 0.0
    %1802 = vmatpush1.xpose.msra.mxu0 0.0
    %1803 = vmatprep.subr.mxu0 0.0
    %1804 = vmatpush1.xpose.msra.mxu0 0.0
    %1805 = vmatprep.subr.mxu0 0.0
    %1806 = vmatpush1.xpose.msra.mxu0 0.0
    %1807 = vmatprep.subr.mxu0 0.0
    %1808 = vmatpush1.xpose.msra.mxu0 0.0
    %1809 = vmatprep.subr.mxu0 0.0
    %1810 = vmatpush1.xpose.msra.mxu0 0.0
    %1811 = vmatprep.subr.mxu0 0.0
    %1812 = vmatpush1.xpose.msra.mxu0 0.0
    %1813 = vmatprep.subr.mxu0 0.0
    %1814 = vmatpush1.xpose.msra.mxu0 0.0
    %1815 = vmatprep.subr.mxu0 0.0
    %1816 = vmatpush1.xpose.msra.mxu0 0.0
    %1817 = vmatprep.subr.mxu0 0.0
    %1818 = vmatpush1.xpose.msra.mxu0 0.0
    %1819 = vmatprep.subr.mxu0 0.0
    %1820 = vmatpush1.xpose.msra.mxu0 0.0
    %1821 = vmatprep.subr.mxu0 0.0
    %1822 = vmatpush1.xpose.msra.mxu0 0.0
    %1823 = vmatprep.subr.mxu0 0.0
    %1824 = vmatpush1.xpose.msra.mxu0 0.0
    %1825 = vmatprep.subr.mxu0 0.0
    %1826 = vmatpush1.xpose.msra.mxu0 0.0
    %1827 = vmatprep.subr.mxu0 0.0
    %1828 = vmatpush1.xpose.msra.mxu0 0.0
    %1829 = vmatprep.subr.mxu0 0.0
    %1830 = vmatpush1.xpose.msra.mxu0 0.0
    %1831 = vmatprep.subr.mxu0 0.0
    %1832 = vmatpush1.xpose.msra.mxu0 0.0
    %1833 = vmatprep.subr.mxu0 0.0
    %1834 = vmatpush1.xpose.msra.mxu0 0.0
    %1835 = vmatprep.subr.mxu0 0.0
    %1836 = vmatpush1.xpose.msra.mxu0 0.0
    %1837 = vmatprep.subr.mxu0 0.0
    %1838 = vmatpush1.xpose.msra.mxu0 0.0
    %1839 = vmatprep.subr.mxu0 0.0
    %1840 = vmatpush1.xpose.msra.mxu0 0.0
    %1841 = vmatprep.subr.mxu0 0.0
    %1842 = vmatpush1.xpose.msra.mxu0 0.0
    %1843 = vmatprep.subr.mxu0 0.0
    %1844 = vmatpush1.xpose.msra.mxu0 0.0
    %1845 = vmatprep.subr.mxu0 0.0
    %1846 = vmatpush1.xpose.msra.mxu0 0.0
    %1847 = vmatprep.subr.mxu0 0.0
    %1848 = vmatpush1.xpose.msra.mxu0 0.0
    %1849 = vmatprep.subr.mxu0 0.0
    %1850 = vmatpush1.xpose.msra.mxu0 0.0
    %1851 = vmatprep.subr.mxu0 0.0
    %1852 = vmatpush1.xpose.msra.mxu0 0.0
    %1853 = vmatprep.subr.mxu0 0.0
    %1854 = vmatpush1.xpose.msra.mxu0 0.0
    %1855 = vmatprep.mubr.f32.mxu0 0.0
    %1856 = vmatmul.mubr.f32.gmra.mrb[0].mxu0 %v1786
    %v1857 = vpop.f32.mrb[0].mxu0
    %v1858 = vadd.f32 0.0, %v1857
    %v1859 = vpop.f32.mrb[0].mxu0
    %1860 = vdwg.mxu0
    %v1862 = vsel %vm1480, %v894, 0
    %v1865 = vsel %vm1480, %v1186, 0
    %1867 = vmatprep.subr.mxu0 0.0
    %1868 = vmatpush1.xpose.msra.mxu0 %v1865
    %1869 = vmatprep.subr.mxu0 0.0
    %1870 = vmatpush1.xpose.msra.mxu0 0.0
    %1871 = vmatprep.subr.mxu0 0.0
    %1872 = vmatpush1.xpose.msra.mxu0 0.0
    %1873 = vmatprep.subr.mxu0 0.0
    %1874 = vmatpush1.xpose.msra.mxu0 0.0
    %1875 = vmatprep.subr.mxu0 0.0
    %1876 = vmatpush1.xpose.msra.mxu0 0.0
    %1877 = vmatprep.subr.mxu0 0.0
    %1878 = vmatpush1.xpose.msra.mxu0 0.0
    %1879 = vmatprep.subr.mxu0 0.0
    %1880 = vmatpush1.xpose.msra.mxu0 0.0
    %1881 = vmatprep.subr.mxu0 0.0
    %1882 = vmatpush1.xpose.msra.mxu0 0.0
    %1883 = vmatprep.subr.mxu0 0.0
    %1884 = vmatpush1.xpose.msra.mxu0 0.0
    %1885 = vmatprep.subr.mxu0 0.0
    %1886 = vmatpush1.xpose.msra.mxu0 0.0
    %1887 = vmatprep.subr.mxu0 0.0
    %1888 = vmatpush1.xpose.msra.mxu0 0.0
    %1889 = vmatprep.subr.mxu0 0.0
    %1890 = vmatpush1.xpose.msra.mxu0 0.0
    %1891 = vmatprep.subr.mxu0 0.0
    %1892 = vmatpush1.xpose.msra.mxu0 0.0
    %1893 = vmatprep.subr.mxu0 0.0
    %1894 = vmatpush1.xpose.msra.mxu0 0.0
    %1895 = vmatprep.subr.mxu0 0.0
    %1896 = vmatpush1.xpose.msra.mxu0 0.0
    %1897 = vmatprep.subr.mxu0 0.0
    %1898 = vmatpush1.xpose.msra.mxu0 0.0
    %1899 = vmatprep.subr.mxu0 0.0
    %1900 = vmatpush1.xpose.msra.mxu0 0.0
    %1901 = vmatprep.subr.mxu0 0.0
    %1902 = vmatpush1.xpose.msra.mxu0 0.0
    %1903 = vmatprep.subr.mxu0 0.0
    %1904 = vmatpush1.xpose.msra.mxu0 0.0
    %1905 = vmatprep.subr.mxu0 0.0
    %1906 = vmatpush1.xpose.msra.mxu0 0.0
    %1907 = vmatprep.subr.mxu0 0.0
    %1908 = vmatpush1.xpose.msra.mxu0 0.0
    %1909 = vmatprep.subr.mxu0 0.0
    %1910 = vmatpush1.xpose.msra.mxu0 0.0
    %1911 = vmatprep.subr.mxu0 0.0
    %1912 = vmatpush1.xpose.msra.mxu0 0.0
    %1913 = vmatprep.subr.mxu0 0.0
    %1914 = vmatpush1.xpose.msra.mxu0 0.0
    %1915 = vmatprep.subr.mxu0 0.0
    %1916 = vmatpush1.xpose.msra.mxu0 0.0
    %1917 = vmatprep.subr.mxu0 0.0
    %1918 = vmatpush1.xpose.msra.mxu0 0.0
    %1919 = vmatprep.subr.mxu0 0.0
    %1920 = vmatpush1.xpose.msra.mxu0 0.0
    %1921 = vmatprep.subr.mxu0 0.0
    %1922 = vmatpush1.xpose.msra.mxu0 0.0
    %1923 = vmatprep.subr.mxu0 0.0
    %1924 = vmatpush1.xpose.msra.mxu0 0.0
    %1925 = vmatprep.subr.mxu0 0.0
    %1926 = vmatpush1.xpose.msra.mxu0 0.0
    %1927 = vmatprep.subr.mxu0 0.0
    %1928 = vmatpush1.xpose.msra.mxu0 0.0
    %1929 = vmatprep.subr.mxu0 0.0
    %1930 = vmatpush1.xpose.msra.mxu0 0.0
    %1931 = vmatprep.mubr.f32.mxu0 0.0
    %1932 = vmatmul.mubr.f32.gmra.mrb[0].mxu0 %v1862
    %v1933 = vpop.f32.mrb[0].mxu0
    %v1934 = vadd.f32 0.0, %v1933
    %v1935 = vpop.f32.mrb[0].mxu0
    %1936 = vdwg.mxu0
    %v1938 = vsel %vm1480, %v827, 0
    %v1941 = vsel %vm1480, %v1119, 0
    %1943 = vmatprep.subr.mxu0 0.0
    %1944 = vmatpush1.xpose.msra.mxu0 %v1941
    %1945 = vmatprep.subr.mxu0 0.0
    %1946 = vmatpush1.xpose.msra.mxu0 0.0
    %1947 = vmatprep.subr.mxu0 0.0
    %1948 = vmatpush1.xpose.msra.mxu0 0.0
    %1949 = vmatprep.subr.mxu0 0.0
    %1950 = vmatpush1.xpose.msra.mxu0 0.0
    %1951 = vmatprep.subr.mxu0 0.0
    %1952 = vmatpush1.xpose.msra.mxu0 0.0
    %1953 = vmatprep.subr.mxu0 0.0
    %1954 = vmatpush1.xpose.msra.mxu0 0.0
    %1955 = vmatprep.subr.mxu0 0.0
    %1956 = vmatpush1.xpose.msra.mxu0 0.0
    %1957 = vmatprep.subr.mxu0 0.0
    %1958 = vmatpush1.xpose.msra.mxu0 0.0
    %1959 = vmatprep.subr.mxu0 0.0
    %1960 = vmatpush1.xpose.msra.mxu0 0.0
    %1961 = vmatprep.subr.mxu0 0.0
    %1962 = vmatpush1.xpose.msra.mxu0 0.0
    %1963 = vmatprep.subr.mxu0 0.0
    %1964 = vmatpush1.xpose.msra.mxu0 0.0
    %1965 = vmatprep.subr.mxu0 0.0
    %1966 = vmatpush1.xpose.msra.mxu0 0.0
    %1967 = vmatprep.subr.mxu0 0.0
    %1968 = vmatpush1.xpose.msra.mxu0 0.0
    %1969 = vmatprep.subr.mxu0 0.0
    %1970 = vmatpush1.xpose.msra.mxu0 0.0
    %1971 = vmatprep.subr.mxu0 0.0
    %1972 = vmatpush1.xpose.msra.mxu0 0.0
    %1973 = vmatprep.subr.mxu0 0.0
    %1974 = vmatpush1.xpose.msra.mxu0 0.0
    %1975 = vmatprep.subr.mxu0 0.0
    %1976 = vmatpush1.xpose.msra.mxu0 0.0
    %1977 = vmatprep.subr.mxu0 0.0
    %1978 = vmatpush1.xpose.msra.mxu0 0.0
    %1979 = vmatprep.subr.mxu0 0.0
    %1980 = vmatpush1.xpose.msra.mxu0 0.0
    %1981 = vmatprep.subr.mxu0 0.0
    %1982 = vmatpush1.xpose.msra.mxu0 0.0
    %1983 = vmatprep.subr.mxu0 0.0
    %1984 = vmatpush1.xpose.msra.mxu0 0.0
    %1985 = vmatprep.subr.mxu0 0.0
    %1986 = vmatpush1.xpose.msra.mxu0 0.0
    %1987 = vmatprep.subr.mxu0 0.0
    %1988 = vmatpush1.xpose.msra.mxu0 0.0
    %1989 = vmatprep.subr.mxu0 0.0
    %1990 = vmatpush1.xpose.msra.mxu0 0.0
    %1991 = vmatprep.subr.mxu0 0.0
    %1992 = vmatpush1.xpose.msra.mxu0 0.0
    %1993 = vmatprep.subr.mxu0 0.0
    %1994 = vmatpush1.xpose.msra.mxu0 0.0
    %1995 = vmatprep.subr.mxu0 0.0
    %1996 = vmatpush1.xpose.msra.mxu0 0.0
    %1997 = vmatprep.subr.mxu0 0.0
    %1998 = vmatpush1.xpose.msra.mxu0 0.0
    %1999 = vmatprep.subr.mxu0 0.0
    %2000 = vmatpush1.xpose.msra.mxu0 0.0
    %2001 = vmatprep.subr.mxu0 0.0
    %2002 = vmatpush1.xpose.msra.mxu0 0.0
    %2003 = vmatprep.subr.mxu0 0.0
    %2004 = vmatpush1.xpose.msra.mxu0 0.0
    %2005 = vmatprep.subr.mxu0 0.0
    %2006 = vmatpush1.xpose.msra.mxu0 0.0
    %2007 = vmatprep.mubr.f32.mxu0 0.0
    %2008 = vmatmul.mubr.f32.gmra.mrb[0].mxu0 %v1938
    %v2009 = vpop.f32.mrb[0].mxu0
    %v2010 = vadd.f32 0.0, %v2009
    %v2011 = vpop.f32.mrb[0].mxu0
    %2012 = vdwg.mxu0
    %v2014 = vsel %vm1480, %v895, 0
    %v2017 = vsel %vm1480, %v1187, 0
    %2019 = vmatprep.subr.mxu0 0.0
    %2020 = vmatpush1.xpose.msra.mxu0 %v2017
    %2021 = vmatprep.subr.mxu0 0.0
    %2022 = vmatpush1.xpose.msra.mxu0 0.0
    %2023 = vmatprep.subr.mxu0 0.0
    %2024 = vmatpush1.xpose.msra.mxu0 0.0
    %2025 = vmatprep.subr.mxu0 0.0
    %2026 = vmatpush1.xpose.msra.mxu0 0.0
    %2027 = vmatprep.subr.mxu0 0.0
    %2028 = vmatpush1.xpose.msra.mxu0 0.0
    %2029 = vmatprep.subr.mxu0 0.0
    %2030 = vmatpush1.xpose.msra.mxu0 0.0
    %2031 = vmatprep.subr.mxu0 0.0
    %2032 = vmatpush1.xpose.msra.mxu0 0.0
    %2033 = vmatprep.subr.mxu0 0.0
    %2034 = vmatpush1.xpose.msra.mxu0 0.0
    %2035 = vmatprep.subr.mxu0 0.0
    %2036 = vmatpush1.xpose.msra.mxu0 0.0
    %2037 = vmatprep.subr.mxu0 0.0
    %2038 = vmatpush1.xpose.msra.mxu0 0.0
    %2039 = vmatprep.subr.mxu0 0.0
    %2040 = vmatpush1.xpose.msra.mxu0 0.0
    %2041 = vmatprep.subr.mxu0 0.0
    %2042 = vmatpush1.xpose.msra.mxu0 0.0
    %2043 = vmatprep.subr.mxu0 0.0
    %2044 = vmatpush1.xpose.msra.mxu0 0.0
    %2045 = vmatprep.subr.mxu0 0.0
    %2046 = vmatpush1.xpose.msra.mxu0 0.0
    %2047 = vmatprep.subr.mxu0 0.0
    %2048 = vmatpush1.xpose.msra.mxu0 0.0
    %2049 = vmatprep.subr.mxu0 0.0
    %2050 = vmatpush1.xpose.msra.mxu0 0.0
    %2051 = vmatprep.subr.mxu0 0.0
    %2052 = vmatpush1.xpose.msra.mxu0 0.0
    %2053 = vmatprep.subr.mxu0 0.0
    %2054 = vmatpush1.xpose.msra.mxu0 0.0
    %2055 = vmatprep.subr.mxu0 0.0
    %2056 = vmatpush1.xpose.msra.mxu0 0.0
    %2057 = vmatprep.subr.mxu0 0.0
    %2058 = vmatpush1.xpose.msra.mxu0 0.0
    %2059 = vmatprep.subr.mxu0 0.0
    %2060 = vmatpush1.xpose.msra.mxu0 0.0
    %2061 = vmatprep.subr.mxu0 0.0
    %2062 = vmatpush1.xpose.msra.mxu0 0.0
    %2063 = vmatprep.subr.mxu0 0.0
    %2064 = vmatpush1.xpose.msra.mxu0 0.0
    %2065 = vmatprep.subr.mxu0 0.0
    %2066 = vmatpush1.xpose.msra.mxu0 0.0
    %2067 = vmatprep.subr.mxu0 0.0
    %2068 = vmatpush1.xpose.msra.mxu0 0.0
    %2069 = vmatprep.subr.mxu0 0.0
    %2070 = vmatpush1.xpose.msra.mxu0 0.0
    %2071 = vmatprep.subr.mxu0 0.0
    %2072 = vmatpush1.xpose.msra.mxu0 0.0
    %2073 = vmatprep.subr.mxu0 0.0
    %2074 = vmatpush1.xpose.msra.mxu0 0.0
    %2075 = vmatprep.subr.mxu0 0.0
    %2076 = vmatpush1.xpose.msra.mxu0 0.0
    %2077 = vmatprep.subr.mxu0 0.0
    %2078 = vmatpush1.xpose.msra.mxu0 0.0
    %2079 = vmatprep.subr.mxu0 0.0
    %2080 = vmatpush1.xpose.msra.mxu0 0.0
    %2081 = vmatprep.subr.mxu0 0.0
    %2082 = vmatpush1.xpose.msra.mxu0 0.0
    %2083 = vmatprep.mubr.f32.mxu0 0.0
    %2084 = vmatmul.mubr.f32.gmra.mrb[0].mxu0 %v2014
    %v2085 = vpop.f32.mrb[0].mxu0
    %v2086 = vadd.f32 0.0, %v2085
    %v2087 = vpop.f32.mrb[0].mxu0
    %2088 = vdwg.mxu0
    %v2089 = vld [vmem:[#allocation8] sm:$0x3]
    %v2090 = vld [vmem:[#allocation8 + $0x2] sm:$0x3]
    %vm2091 = vnez %v2089
    %vm2092 = vnez %v2090
    %v2093 = vsel %vm2091, 16843009, 0
    %v2094 = vsel %vm2092, 16843009, 0
    %v2095 = vunpack.c.0.s8 %v2093
    %v2096 = vunpack.c.0.s8 %v2094
    %vm2097 = vcmp.ne.s32.totalorder %v2095, 0
    %vm2098 = vcmp.ne.s32.totalorder %v2096, 0
    %v2099 = vsel %vm2097, 1, 0
    %v2100 = vsel %vm2098, 1, 0
    %vm2101 = vcmp.eq.s32.totalorder %v2099, 1
    %vm2102 = vcmp.eq.s32.totalorder %v2100, 1
    %v2103 = vsel %vm2101, %v1554, -inf
    %v2104 = vsel %vm2102, %v1630, -inf
    %v2105 = vsel %vm2101, %v1706, -inf
    %v2106 = vsel %vm2102, %v1782, -inf
    %v2107 = vsel %vm2101, %v1858, -inf
    %v2108 = vsel %vm2102, %v1934, -inf
    %v2109 = vsel %vm2101, %v2010, -inf
    %v2110 = vsel %vm2102, %v2086, -inf
    %v2111 = vsel %vm1480, %v2103, -inf
    %2112 = vmax.xlane.f32.xlu0 %v2111
    %v2113 = vpop.xlane.xlu0 %2112
    %v2114 = vsel %vm1480, %v2104, -inf
    %2115 = vmax.xlane.f32.xlu0 %v2114
    %v2116 = vpop.xlane.xlu0 %2115
    %v2117 = vsel %vm1480, %v2105, -inf
    %2118 = vmax.xlane.f32.xlu0 %v2117
    %v2119 = vpop.xlane.xlu0 %2118
    %v2120 = vsel %vm1480, %v2106, -inf
    %2121 = vmax.xlane.f32.xlu0 %v2120
    %v2122 = vpop.xlane.xlu0 %2121
    %v2123 = vsel %vm1480, %v2107, -inf
    %2124 = vmax.xlane.f32.xlu0 %v2123
    %v2125 = vpop.xlane.xlu0 %2124
    %v2126 = vsel %vm1480, %v2108, -inf
    %2127 = vmax.xlane.f32.xlu0 %v2126
    %v2128 = vpop.xlane.xlu0 %2127
    %v2129 = vsel %vm1480, %v2109, -inf
    %2130 = vmax.xlane.f32.xlu0 %v2129
    %v2131 = vpop.xlane.xlu0 %2130
    %v2132 = vsel %vm1480, %v2110, -inf
    %2133 = vmax.xlane.f32.xlu0 %v2132
    %v2134 = vpop.xlane.xlu0 %2133
    %v2135 = vsub.f32 %v2103, %v2113
    %v2136 = vsub.f32 %v2104, %v2116
    %v2137 = vsub.f32 %v2105, %v2119
    %v2138 = vsub.f32 %v2106, %v2122
    %v2139 = vsub.f32 %v2107, %v2125
    %v2140 = vsub.f32 %v2108, %v2128
    %v2141 = vsub.f32 %v2109, %v2131
    %v2142 = vsub.f32 %v2110, %v2134
    %v2143 = vmul.f32 %v2135, 1.442695
    %v2144 = vpow.pop %v2143
    %v2145 = vmul.f32 %v2136, 1.442695
    %v2146 = vpow.pop %v2145
    %v2147 = vmul.f32 %v2137, 1.442695
    %v2148 = vpow.pop %v2147
    %v2149 = vmul.f32 %v2138, 1.442695
    %v2150 = vpow.pop %v2149
    %v2151 = vmul.f32 %v2139, 1.442695
    %v2152 = vpow.pop %v2151
    %v2153 = vmul.f32 %v2140, 1.442695
    %v2154 = vpow.pop %v2153
    %v2155 = vmul.f32 %v2141, 1.442695
    %v2156 = vpow.pop %v2155
    %v2157 = vmul.f32 %v2142, 1.442695
    %v2158 = vpow.pop %v2157
    %v2159 = vsel %vm1480, %v2144, 0.0
    %2160 = vadd.xlane.f32.xlu0 %v2159
    %v2161 = vpop.xlane.xlu0 %2160
    %v2162 = vsel %vm1480, %v2146, 0.0
    %2163 = vadd.xlane.f32.xlu0 %v2162
    %v2164 = vpop.xlane.xlu0 %2163
    %v2165 = vsel %vm1480, %v2148, 0.0
    %2166 = vadd.xlane.f32.xlu0 %v2165
    %v2167 = vpop.xlane.xlu0 %2166
    %v2168 = vsel %vm1480, %v2150, 0.0
    %2169 = vadd.xlane.f32.xlu0 %v2168
    %v2170 = vpop.xlane.xlu0 %2169
    %v2171 = vsel %vm1480, %v2152, 0.0
    %2172 = vadd.xlane.f32.xlu0 %v2171
    %v2173 = vpop.xlane.xlu0 %2172
    %v2174 = vsel %vm1480, %v2154, 0.0
    %2175 = vadd.xlane.f32.xlu0 %v2174
    %v2176 = vpop.xlane.xlu0 %2175
    %v2177 = vsel %vm1480, %v2156, 0.0
    %2178 = vadd.xlane.f32.xlu0 %v2177
    %v2179 = vpop.xlane.xlu0 %2178
    %v2180 = vsel %vm1480, %v2158, 0.0
    %2181 = vadd.xlane.f32.xlu0 %v2180
    %v2182 = vpop.xlane.xlu0 %2181
    %v2183 = vrcp.pop %v2161
    %v2184 = vrcp.pop %v2164
    %v2185 = vrcp.pop %v2167
    %v2186 = vrcp.pop %v2170
    %v2187 = vrcp.pop %v2173
    %v2188 = vrcp.pop %v2176
    %v2189 = vrcp.pop %v2179
    %v2190 = vrcp.pop %v2182
    %v2192 = vsel %vm1480, %v2144, 0
    %2194 = vmatprep.subr.mxu0 0.0
    %2195 = vmatpush1.msra.mxu0 %v1408
    %2196 = vmatprep.subr.mxu0 0.0
    %2197 = vmatpush1.msra.mxu0 0.0
    %2198 = vmatprep.subr.mxu0 0.0
    %2199 = vmatpush1.msra.mxu0 0.0
    %2200 = vmatprep.subr.mxu0 0.0
    %2201 = vmatpush1.msra.mxu0 0.0
    %2202 = vmatprep.subr.mxu0 0.0
    %2203 = vmatpush1.msra.mxu0 0.0
    %2204 = vmatprep.subr.mxu0 0.0
    %2205 = vmatpush1.msra.mxu0 0.0
    %2206 = vmatprep.subr.mxu0 0.0
    %2207 = vmatpush1.msra.mxu0 0.0
    %2208 = vmatprep.subr.mxu0 0.0
    %2209 = vmatpush1.msra.mxu0 0.0
    %2210 = vmatprep.subr.mxu0 0.0
    %2211 = vmatpush1.msra.mxu0 0.0
    %2212 = vmatprep.subr.mxu0 0.0
    %2213 = vmatpush1.msra.mxu0 0.0
    %2214 = vmatprep.subr.mxu0 0.0
    %2215 = vmatpush1.msra.mxu0 0.0
    %2216 = vmatprep.subr.mxu0 0.0
    %2217 = vmatpush1.msra.mxu0 0.0
    %2218 = vmatprep.subr.mxu0 0.0
    %2219 = vmatpush1.msra.mxu0 0.0
    %2220 = vmatprep.subr.mxu0 0.0
    %2221 = vmatpush1.msra.mxu0 0.0
    %2222 = vmatprep.subr.mxu0 0.0
    %2223 = vmatpush1.msra.mxu0 0.0
    %2224 = vmatprep.subr.mxu0 0.0
    %2225 = vmatpush1.msra.mxu0 0.0
    %2226 = vmatprep.subr.mxu0 0.0
    %2227 = vmatpush1.msra.mxu0 0.0
    %2228 = vmatprep.subr.mxu0 0.0
    %2229 = vmatpush1.msra.mxu0 0.0
    %2230 = vmatprep.subr.mxu0 0.0
    %2231 = vmatpush1.msra.mxu0 0.0
    %2232 = vmatprep.subr.mxu0 0.0
    %2233 = vmatpush1.msra.mxu0 0.0
    %2234 = vmatprep.subr.mxu0 0.0
    %2235 = vmatpush1.msra.mxu0 0.0
    %2236 = vmatprep.subr.mxu0 0.0
    %2237 = vmatpush1.msra.mxu0 0.0
    %2238 = vmatprep.subr.mxu0 0.0
    %2239 = vmatpush1.msra.mxu0 0.0
    %2240 = vmatprep.subr.mxu0 0.0
    %2241 = vmatpush1.msra.mxu0 0.0
    %2242 = vmatprep.subr.mxu0 0.0
    %2243 = vmatpush1.msra.mxu0 0.0
    %2244 = vmatprep.subr.mxu0 0.0
    %2245 = vmatpush1.msra.mxu0 0.0
    %2246 = vmatprep.subr.mxu0 0.0
    %2247 = vmatpush1.msra.mxu0 0.0
    %2248 = vmatprep.subr.mxu0 0.0
    %2249 = vmatpush1.msra.mxu0 0.0
    %2250 = vmatprep.subr.mxu0 0.0
    %2251 = vmatpush1.msra.mxu0 0.0
    %2252 = vmatprep.subr.mxu0 0.0
    %2253 = vmatpush1.msra.mxu0 0.0
    %2254 = vmatprep.subr.mxu0 0.0
    %2255 = vmatpush1.msra.mxu0 0.0
    %2256 = vmatprep.subr.mxu0 0.0
    %2257 = vmatpush1.msra.mxu0 0.0
    %2258 = vmatprep.mubr.f32.mxu0 0.0
    %2259 = vmatmul.mubr.f32.gmra.mrb[0].mxu0 %v2192
    %v2260 = vpop.f32.mrb[0].mxu0
    %v2261 = vadd.f32 0.0, %v2260
    %v2262 = vpop.f32.mrb[0].mxu0
    %2263 = vdwg.mxu0
    %v2265 = vsel %vm1480, %v2146, 0
    %2267 = vmatprep.subr.mxu0 0.0
    %2268 = vmatpush1.msra.mxu0 %v1476
    %2269 = vmatprep.subr.mxu0 0.0
    %2270 = vmatpush1.msra.mxu0 0.0
    %2271 = vmatprep.subr.mxu0 0.0
    %2272 = vmatpush1.msra.mxu0 0.0
    %2273 = vmatprep.subr.mxu0 0.0
    %2274 = vmatpush1.msra.mxu0 0.0
    %2275 = vmatprep.subr.mxu0 0.0
    %2276 = vmatpush1.msra.mxu0 0.0
    %2277 = vmatprep.subr.mxu0 0.0
    %2278 = vmatpush1.msra.mxu0 0.0
    %2279 = vmatprep.subr.mxu0 0.0
    %2280 = vmatpush1.msra.mxu0 0.0
    %2281 = vmatprep.subr.mxu0 0.0
    %2282 = vmatpush1.msra.mxu0 0.0
    %2283 = vmatprep.subr.mxu0 0.0
    %2284 = vmatpush1.msra.mxu0 0.0
    %2285 = vmatprep.subr.mxu0 0.0
    %2286 = vmatpush1.msra.mxu0 0.0
    %2287 = vmatprep.subr.mxu0 0.0
    %2288 = vmatpush1.msra.mxu0 0.0
    %2289 = vmatprep.subr.mxu0 0.0
    %2290 = vmatpush1.msra.mxu0 0.0
    %2291 = vmatprep.subr.mxu0 0.0
    %2292 = vmatpush1.msra.mxu0 0.0
    %2293 = vmatprep.subr.mxu0 0.0
    %2294 = vmatpush1.msra.mxu0 0.0
    %2295 = vmatprep.subr.mxu0 0.0
    %2296 = vmatpush1.msra.mxu0 0.0
    %2297 = vmatprep.subr.mxu0 0.0
    %2298 = vmatpush1.msra.mxu0 0.0
    %2299 = vmatprep.subr.mxu0 0.0
    %2300 = vmatpush1.msra.mxu0 0.0
    %2301 = vmatprep.subr.mxu0 0.0
    %2302 = vmatpush1.msra.mxu0 0.0
    %2303 = vmatprep.subr.mxu0 0.0
    %2304 = vmatpush1.msra.mxu0 0.0
    %2305 = vmatprep.subr.mxu0 0.0
    %2306 = vmatpush1.msra.mxu0 0.0
    %2307 = vmatprep.subr.mxu0 0.0
    %2308 = vmatpush1.msra.mxu0 0.0
    %2309 = vmatprep.subr.mxu0 0.0
    %2310 = vmatpush1.msra.mxu0 0.0
    %2311 = vmatprep.subr.mxu0 0.0
    %2312 = vmatpush1.msra.mxu0 0.0
    %2313 = vmatprep.subr.mxu0 0.0
    %2314 = vmatpush1.msra.mxu0 0.0
    %2315 = vmatprep.subr.mxu0 0.0
    %2316 = vmatpush1.msra.mxu0 0.0
    %2317 = vmatprep.subr.mxu0 0.0
    %2318 = vmatpush1.msra.mxu0 0.0
    %2319 = vmatprep.subr.mxu0 0.0
    %2320 = vmatpush1.msra.mxu0 0.0
    %2321 = vmatprep.subr.mxu0 0.0
    %2322 = vmatpush1.msra.mxu0 0.0
    %2323 = vmatprep.subr.mxu0 0.0
    %2324 = vmatpush1.msra.mxu0 0.0
    %2325 = vmatprep.subr.mxu0 0.0
    %2326 = vmatpush1.msra.mxu0 0.0
    %2327 = vmatprep.subr.mxu0 0.0
    %2328 = vmatpush1.msra.mxu0 0.0
    %2329 = vmatprep.subr.mxu0 0.0
    %2330 = vmatpush1.msra.mxu0 0.0
    %2331 = vmatprep.mubr.f32.mxu0 0.0
    %2332 = vmatmul.mubr.f32.gmra.mrb[0].mxu0 %v2265
    %v2333 = vpop.f32.mrb[0].mxu0
    %v2334 = vadd.f32 0.0, %v2333
    %v2335 = vpop.f32.mrb[0].mxu0
    %2336 = vdwg.mxu0
    %v2338 = vsel %vm1480, %v2148, 0
    %2340 = vmatprep.subr.mxu0 0.0
    %2341 = vmatpush1.msra.mxu0 %v1409
    %2342 = vmatprep.subr.mxu0 0.0
    %2343 = vmatpush1.msra.mxu0 0.0
    %2344 = vmatprep.subr.mxu0 0.0
    %2345 = vmatpush1.msra.mxu0 0.0
    %2346 = vmatprep.subr.mxu0 0.0
    %2347 = vmatpush1.msra.mxu0 0.0
    %2348 = vmatprep.subr.mxu0 0.0
    %2349 = vmatpush1.msra.mxu0 0.0
    %2350 = vmatprep.subr.mxu0 0.0
    %2351 = vmatpush1.msra.mxu0 0.0
    %2352 = vmatprep.subr.mxu0 0.0
    %2353 = vmatpush1.msra.mxu0 0.0
    %2354 = vmatprep.subr.mxu0 0.0
    %2355 = vmatpush1.msra.mxu0 0.0
    %2356 = vmatprep.subr.mxu0 0.0
    %2357 = vmatpush1.msra.mxu0 0.0
    %2358 = vmatprep.subr.mxu0 0.0
    %2359 = vmatpush1.msra.mxu0 0.0
    %2360 = vmatprep.subr.mxu0 0.0
    %2361 = vmatpush1.msra.mxu0 0.0
    %2362 = vmatprep.subr.mxu0 0.0
    %2363 = vmatpush1.msra.mxu0 0.0
    %2364 = vmatprep.subr.mxu0 0.0
    %2365 = vmatpush1.msra.mxu0 0.0
    %2366 = vmatprep.subr.mxu0 0.0
    %2367 = vmatpush1.msra.mxu0 0.0
    %2368 = vmatprep.subr.mxu0 0.0
    %2369 = vmatpush1.msra.mxu0 0.0
    %2370 = vmatprep.subr.mxu0 0.0
    %2371 = vmatpush1.msra.mxu0 0.0
    %2372 = vmatprep.subr.mxu0 0.0
    %2373 = vmatpush1.msra.mxu0 0.0
    %2374 = vmatprep.subr.mxu0 0.0
    %2375 = vmatpush1.msra.mxu0 0.0
    %2376 = vmatprep.subr.mxu0 0.0
    %2377 = vmatpush1.msra.mxu0 0.0
    %2378 = vmatprep.subr.mxu0 0.0
    %2379 = vmatpush1.msra.mxu0 0.0
    %2380 = vmatprep.subr.mxu0 0.0
    %2381 = vmatpush1.msra.mxu0 0.0
    %2382 = vmatprep.subr.mxu0 0.0
    %2383 = vmatpush1.msra.mxu0 0.0
    %2384 = vmatprep.subr.mxu0 0.0
    %2385 = vmatpush1.msra.mxu0 0.0
    %2386 = vmatprep.subr.mxu0 0.0
    %2387 = vmatpush1.msra.mxu0 0.0
    %2388 = vmatprep.subr.mxu0 0.0
    %2389 = vmatpush1.msra.mxu0 0.0
    %2390 = vmatprep.subr.mxu0 0.0
    %2391 = vmatpush1.msra.mxu0 0.0
    %2392 = vmatprep.subr.mxu0 0.0
    %2393 = vmatpush1.msra.mxu0 0.0
    %2394 = vmatprep.subr.mxu0 0.0
    %2395 = vmatpush1.msra.mxu0 0.0
    %2396 = vmatprep.subr.mxu0 0.0
    %2397 = vmatpush1.msra.mxu0 0.0
    %2398 = vmatprep.subr.mxu0 0.0
    %2399 = vmatpush1.msra.mxu0 0.0
    %2400 = vmatprep.subr.mxu0 0.0
    %2401 = vmatpush1.msra.mxu0 0.0
    %2402 = vmatprep.subr.mxu0 0.0
    %2403 = vmatpush1.msra.mxu0 0.0
    %2404 = vmatprep.mubr.f32.mxu0 0.0
    %2405 = vmatmul.mubr.f32.gmra.mrb[0].mxu0 %v2338
    %v2406 = vpop.f32.mrb[0].mxu0
    %v2407 = vadd.f32 0.0, %v2406
    %v2408 = vpop.f32.mrb[0].mxu0
    %2409 = vdwg.mxu0
    %v2411 = vsel %vm1480, %v2150, 0
    %2413 = vmatprep.subr.mxu0 0.0
    %2414 = vmatpush1.msra.mxu0 %v1477
    %2415 = vmatprep.subr.mxu0 0.0
    %2416 = vmatpush1.msra.mxu0 0.0
    %2417 = vmatprep.subr.mxu0 0.0
    %2418 = vmatpush1.msra.mxu0 0.0
    %2419 = vmatprep.subr.mxu0 0.0
    %2420 = vmatpush1.msra.mxu0 0.0
    %2421 = vmatprep.subr.mxu0 0.0
    %2422 = vmatpush1.msra.mxu0 0.0
    %2423 = vmatprep.subr.mxu0 0.0
    %2424 = vmatpush1.msra.mxu0 0.0
    %2425 = vmatprep.subr.mxu0 0.0
    %2426 = vmatpush1.msra.mxu0 0.0
    %2427 = vmatprep.subr.mxu0 0.0
    %2428 = vmatpush1.msra.mxu0 0.0
    %2429 = vmatprep.subr.mxu0 0.0
    %2430 = vmatpush1.msra.mxu0 0.0
    %2431 = vmatprep.subr.mxu0 0.0
    %2432 = vmatpush1.msra.mxu0 0.0
    %2433 = vmatprep.subr.mxu0 0.0
    %2434 = vmatpush1.msra.mxu0 0.0
    %2435 = vmatprep.subr.mxu0 0.0
    %2436 = vmatpush1.msra.mxu0 0.0
    %2437 = vmatprep.subr.mxu0 0.0
    %2438 = vmatpush1.msra.mxu0 0.0
    %2439 = vmatprep.subr.mxu0 0.0
    %2440 = vmatpush1.msra.mxu0 0.0
    %2441 = vmatprep.subr.mxu0 0.0
    %2442 = vmatpush1.msra.mxu0 0.0
    %2443 = vmatprep.subr.mxu0 0.0
    %2444 = vmatpush1.msra.mxu0 0.0
    %2445 = vmatprep.subr.mxu0 0.0
    %2446 = vmatpush1.msra.mxu0 0.0
    %2447 = vmatprep.subr.mxu0 0.0
    %2448 = vmatpush1.msra.mxu0 0.0
    %2449 = vmatprep.subr.mxu0 0.0
    %2450 = vmatpush1.msra.mxu0 0.0
    %2451 = vmatprep.subr.mxu0 0.0
    %2452 = vmatpush1.msra.mxu0 0.0
    %2453 = vmatprep.subr.mxu0 0.0
    %2454 = vmatpush1.msra.mxu0 0.0
    %2455 = vmatprep.subr.mxu0 0.0
    %2456 = vmatpush1.msra.mxu0 0.0
    %2457 = vmatprep.subr.mxu0 0.0
    %2458 = vmatpush1.msra.mxu0 0.0
    %2459 = vmatprep.subr.mxu0 0.0
    %2460 = vmatpush1.msra.mxu0 0.0
    %2461 = vmatprep.subr.mxu0 0.0
    %2462 = vmatpush1.msra.mxu0 0.0
    %2463 = vmatprep.subr.mxu0 0.0
    %2464 = vmatpush1.msra.mxu0 0.0
    %2465 = vmatprep.subr.mxu0 0.0
    %2466 = vmatpush1.msra.mxu0 0.0
    %2467 = vmatprep.subr.mxu0 0.0
    %2468 = vmatpush1.msra.mxu0 0.0
    %2469 = vmatprep.subr.mxu0 0.0
    %2470 = vmatpush1.msra.mxu0 0.0
    %2471 = vmatprep.subr.mxu0 0.0
    %2472 = vmatpush1.msra.mxu0 0.0
    %2473 = vmatprep.subr.mxu0 0.0
    %2474 = vmatpush1.msra.mxu0 0.0
    %2475 = vmatprep.subr.mxu0 0.0
    %2476 = vmatpush1.msra.mxu0 0.0
    %2477 = vmatprep.mubr.f32.mxu0 0.0
    %2478 = vmatmul.mubr.f32.gmra.mrb[0].mxu0 %v2411
    %v2479 = vpop.f32.mrb[0].mxu0
    %v2480 = vadd.f32 0.0, %v2479
    %v2481 = vpop.f32.mrb[0].mxu0
    %2482 = vdwg.mxu0
    %v2484 = vsel %vm1480, %v2152, 0
    %2486 = vmatprep.subr.mxu0 0.0
    %2487 = vmatpush1.msra.mxu0 %v1410
    %2488 = vmatprep.subr.mxu0 0.0
    %2489 = vmatpush1.msra.mxu0 0.0
    %2490 = vmatprep.subr.mxu0 0.0
    %2491 = vmatpush1.msra.mxu0 0.0
    %2492 = vmatprep.subr.mxu0 0.0
    %2493 = vmatpush1.msra.mxu0 0.0
    %2494 = vmatprep.subr.mxu0 0.0
    %2495 = vmatpush1.msra.mxu0 0.0
    %2496 = vmatprep.subr.mxu0 0.0
    %2497 = vmatpush1.msra.mxu0 0.0
    %2498 = vmatprep.subr.mxu0 0.0
    %2499 = vmatpush1.msra.mxu0 0.0
    %2500 = vmatprep.subr.mxu0 0.0
    %2501 = vmatpush1.msra.mxu0 0.0
    %2502 = vmatprep.subr.mxu0 0.0
    %2503 = vmatpush1.msra.mxu0 0.0
    %2504 = vmatprep.subr.mxu0 0.0
    %2505 = vmatpush1.msra.mxu0 0.0
    %2506 = vmatprep.subr.mxu0 0.0
    %2507 = vmatpush1.msra.mxu0 0.0
    %2508 = vmatprep.subr.mxu0 0.0
    %2509 = vmatpush1.msra.mxu0 0.0
    %2510 = vmatprep.subr.mxu0 0.0
    %2511 = vmatpush1.msra.mxu0 0.0
    %2512 = vmatprep.subr.mxu0 0.0
    %2513 = vmatpush1.msra.mxu0 0.0
    %2514 = vmatprep.subr.mxu0 0.0
    %2515 = vmatpush1.msra.mxu0 0.0
    %2516 = vmatprep.subr.mxu0 0.0
    %2517 = vmatpush1.msra.mxu0 0.0
    %2518 = vmatprep.subr.mxu0 0.0
    %2519 = vmatpush1.msra.mxu0 0.0
    %2520 = vmatprep.subr.mxu0 0.0
    %2521 = vmatpush1.msra.mxu0 0.0
    %2522 = vmatprep.subr.mxu0 0.0
    %2523 = vmatpush1.msra.mxu0 0.0
    %2524 = vmatprep.subr.mxu0 0.0
    %2525 = vmatpush1.msra.mxu0 0.0
    %2526 = vmatprep.subr.mxu0 0.0
    %2527 = vmatpush1.msra.mxu0 0.0
    %2528 = vmatprep.subr.mxu0 0.0
    %2529 = vmatpush1.msra.mxu0 0.0
    %2530 = vmatprep.subr.mxu0 0.0
    %2531 = vmatpush1.msra.mxu0 0.0
    %2532 = vmatprep.subr.mxu0 0.0
    %2533 = vmatpush1.msra.mxu0 0.0
    %2534 = vmatprep.subr.mxu0 0.0
    %2535 = vmatpush1.msra.mxu0 0.0
    %2536 = vmatprep.subr.mxu0 0.0
    %2537 = vmatpush1.msra.mxu0 0.0
    %2538 = vmatprep.subr.mxu0 0.0
    %2539 = vmatpush1.msra.mxu0 0.0
    %2540 = vmatprep.subr.mxu0 0.0
    %2541 = vmatpush1.msra.mxu0 0.0
    %2542 = vmatprep.subr.mxu0 0.0
    %2543 = vmatpush1.msra.mxu0 0.0
    %2544 = vmatprep.subr.mxu0 0.0
    %2545 = vmatpush1.msra.mxu0 0.0
    %2546 = vmatprep.subr.mxu0 0.0
    %2547 = vmatpush1.msra.mxu0 0.0
    %2548 = vmatprep.subr.mxu0 0.0
    %2549 = vmatpush1.msra.mxu0 0.0
    %2550 = vmatprep.mubr.f32.mxu0 0.0
    %2551 = vmatmul.mubr.f32.gmra.mrb[0].mxu0 %v2484
    %v2552 = vpop.f32.mrb[0].mxu0
    %v2553 = vadd.f32 0.0, %v2552
    %v2554 = vpop.f32.mrb[0].mxu0
    %2555 = vdwg.mxu0
    %v2557 = vsel %vm1480, %v2154, 0
    %2559 = vmatprep.subr.mxu0 0.0
    %2560 = vmatpush1.msra.mxu0 %v1478
    %2561 = vmatprep.subr.mxu0 0.0
    %2562 = vmatpush1.msra.mxu0 0.0
    %2563 = vmatprep.subr.mxu0 0.0
    %2564 = vmatpush1.msra.mxu0 0.0
    %2565 = vmatprep.subr.mxu0 0.0
    %2566 = vmatpush1.msra.mxu0 0.0
    %2567 = vmatprep.subr.mxu0 0.0
    %2568 = vmatpush1.msra.mxu0 0.0
    %2569 = vmatprep.subr.mxu0 0.0
    %2570 = vmatpush1.msra.mxu0 0.0
    %2571 = vmatprep.subr.mxu0 0.0
    %2572 = vmatpush1.msra.mxu0 0.0
    %2573 = vmatprep.subr.mxu0 0.0
    %2574 = vmatpush1.msra.mxu0 0.0
    %2575 = vmatprep.subr.mxu0 0.0
    %2576 = vmatpush1.msra.mxu0 0.0
    %2577 = vmatprep.subr.mxu0 0.0
    %2578 = vmatpush1.msra.mxu0 0.0
    %2579 = vmatprep.subr.mxu0 0.0
    %2580 = vmatpush1.msra.mxu0 0.0
    %2581 = vmatprep.subr.mxu0 0.0
    %2582 = vmatpush1.msra.mxu0 0.0
    %2583 = vmatprep.subr.mxu0 0.0
    %2584 = vmatpush1.msra.mxu0 0.0
    %2585 = vmatprep.subr.mxu0 0.0
    %2586 = vmatpush1.msra.mxu0 0.0
    %2587 = vmatprep.subr.mxu0 0.0
    %2588 = vmatpush1.msra.mxu0 0.0
    %2589 = vmatprep.subr.mxu0 0.0
    %2590 = vmatpush1.msra.mxu0 0.0
    %2591 = vmatprep.subr.mxu0 0.0
    %2592 = vmatpush1.msra.mxu0 0.0
    %2593 = vmatprep.subr.mxu0 0.0
    %2594 = vmatpush1.msra.mxu0 0.0
    %2595 = vmatprep.subr.mxu0 0.0
    %2596 = vmatpush1.msra.mxu0 0.0
    %2597 = vmatprep.subr.mxu0 0.0
    %2598 = vmatpush1.msra.mxu0 0.0
    %2599 = vmatprep.subr.mxu0 0.0
    %2600 = vmatpush1.msra.mxu0 0.0
    %2601 = vmatprep.subr.mxu0 0.0
    %2602 = vmatpush1.msra.mxu0 0.0
    %2603 = vmatprep.subr.mxu0 0.0
    %2604 = vmatpush1.msra.mxu0 0.0
    %2605 = vmatprep.subr.mxu0 0.0
    %2606 = vmatpush1.msra.mxu0 0.0
    %2607 = vmatprep.subr.mxu0 0.0
    %2608 = vmatpush1.msra.mxu0 0.0
    %2609 = vmatprep.subr.mxu0 0.0
    %2610 = vmatpush1.msra.mxu0 0.0
    %2611 = vmatprep.subr.mxu0 0.0
    %2612 = vmatpush1.msra.mxu0 0.0
    %2613 = vmatprep.subr.mxu0 0.0
    %2614 = vmatpush1.msra.mxu0 0.0
    %2615 = vmatprep.subr.mxu0 0.0
    %2616 = vmatpush1.msra.mxu0 0.0
    %2617 = vmatprep.subr.mxu0 0.0
    %2618 = vmatpush1.msra.mxu0 0.0
    %2619 = vmatprep.subr.mxu0 0.0
    %2620 = vmatpush1.msra.mxu0 0.0
    %2621 = vmatprep.subr.mxu0 0.0
    %2622 = vmatpush1.msra.mxu0 0.0
    %2623 = vmatprep.mubr.f32.mxu0 0.0
    %2624 = vmatmul.mubr.f32.gmra.mrb[0].mxu0 %v2557
    %v2625 = vpop.f32.mrb[0].mxu0
    %v2626 = vadd.f32 0.0, %v2625
    %v2627 = vpop.f32.mrb[0].mxu0
    %2628 = vdwg.mxu0
    %v2630 = vsel %vm1480, %v2156, 0
    %2632 = vmatprep.subr.mxu0 0.0
    %2633 = vmatpush1.msra.mxu0 %v1411
    %2634 = vmatprep.subr.mxu0 0.0
    %2635 = vmatpush1.msra.mxu0 0.0
    %2636 = vmatprep.subr.mxu0 0.0
    %2637 = vmatpush1.msra.mxu0 0.0
    %2638 = vmatprep.subr.mxu0 0.0
    %2639 = vmatpush1.msra.mxu0 0.0
    %2640 = vmatprep.subr.mxu0 0.0
    %2641 = vmatpush1.msra.mxu0 0.0
    %2642 = vmatprep.subr.mxu0 0.0
    %2643 = vmatpush1.msra.mxu0 0.0
    %2644 = vmatprep.subr.mxu0 0.0
    %2645 = vmatpush1.msra.mxu0 0.0
    %2646 = vmatprep.subr.mxu0 0.0
    %2647 = vmatpush1.msra.mxu0 0.0
    %2648 = vmatprep.subr.mxu0 0.0
    %2649 = vmatpush1.msra.mxu0 0.0
    %2650 = vmatprep.subr.mxu0 0.0
    %2651 = vmatpush1.msra.mxu0 0.0
    %2652 = vmatprep.subr.mxu0 0.0
    %2653 = vmatpush1.msra.mxu0 0.0
    %2654 = vmatprep.subr.mxu0 0.0
    %2655 = vmatpush1.msra.mxu0 0.0
    %2656 = vmatprep.subr.mxu0 0.0
    %2657 = vmatpush1.msra.mxu0 0.0
    %2658 = vmatprep.subr.mxu0 0.0
    %2659 = vmatpush1.msra.mxu0 0.0
    %2660 = vmatprep.subr.mxu0 0.0
    %2661 = vmatpush1.msra.mxu0 0.0
    %2662 = vmatprep.subr.mxu0 0.0
    %2663 = vmatpush1.msra.mxu0 0.0
    %2664 = vmatprep.subr.mxu0 0.0
    %2665 = vmatpush1.msra.mxu0 0.0
    %2666 = vmatprep.subr.mxu0 0.0
    %2667 = vmatpush1.msra.mxu0 0.0
    %2668 = vmatprep.subr.mxu0 0.0
    %2669 = vmatpush1.msra.mxu0 0.0
    %2670 = vmatprep.subr.mxu0 0.0
    %2671 = vmatpush1.msra.mxu0 0.0
    %2672 = vmatprep.subr.mxu0 0.0
    %2673 = vmatpush1.msra.mxu0 0.0
    %2674 = vmatprep.subr.mxu0 0.0
    %2675 = vmatpush1.msra.mxu0 0.0
    %2676 = vmatprep.subr.mxu0 0.0
    %2677 = vmatpush1.msra.mxu0 0.0
    %2678 = vmatprep.subr.mxu0 0.0
    %2679 = vmatpush1.msra.mxu0 0.0
    %2680 = vmatprep.subr.mxu0 0.0
    %2681 = vmatpush1.msra.mxu0 0.0
    %2682 = vmatprep.subr.mxu0 0.0
    %2683 = vmatpush1.msra.mxu0 0.0
    %2684 = vmatprep.subr.mxu0 0.0
    %2685 = vmatpush1.msra.mxu0 0.0
    %2686 = vmatprep.subr.mxu0 0.0
    %2687 = vmatpush1.msra.mxu0 0.0
    %2688 = vmatprep.subr.mxu0 0.0
    %2689 = vmatpush1.msra.mxu0 0.0
    %2690 = vmatprep.subr.mxu0 0.0
    %2691 = vmatpush1.msra.mxu0 0.0
    %2692 = vmatprep.subr.mxu0 0.0
    %2693 = vmatpush1.msra.mxu0 0.0
    %2694 = vmatprep.subr.mxu0 0.0
    %2695 = vmatpush1.msra.mxu0 0.0
    %2696 = vmatprep.mubr.f32.mxu0 0.0
    %2697 = vmatmul.mubr.f32.gmra.mrb[0].mxu0 %v2630
    %v2698 = vpop.f32.mrb[0].mxu0
    %v2699 = vadd.f32 0.0, %v2698
    %v2700 = vpop.f32.mrb[0].mxu0
    %2701 = vdwg.mxu0
    %v2703 = vsel %vm1480, %v2158, 0
    %2705 = vmatprep.subr.mxu0 0.0
    %2706 = vmatpush1.msra.mxu0 %v1479
    %2707 = vmatprep.subr.mxu0 0.0
    %2708 = vmatpush1.msra.mxu0 0.0
    %2709 = vmatprep.subr.mxu0 0.0
    %2710 = vmatpush1.msra.mxu0 0.0
    %2711 = vmatprep.subr.mxu0 0.0
    %2712 = vmatpush1.msra.mxu0 0.0
    %2713 = vmatprep.subr.mxu0 0.0
    %2714 = vmatpush1.msra.mxu0 0.0
    %2715 = vmatprep.subr.mxu0 0.0
    %2716 = vmatpush1.msra.mxu0 0.0
    %2717 = vmatprep.subr.mxu0 0.0
    %2718 = vmatpush1.msra.mxu0 0.0
    %2719 = vmatprep.subr.mxu0 0.0
    %2720 = vmatpush1.msra.mxu0 0.0
    %2721 = vmatprep.subr.mxu0 0.0
    %2722 = vmatpush1.msra.mxu0 0.0
    %2723 = vmatprep.subr.mxu0 0.0
    %2724 = vmatpush1.msra.mxu0 0.0
    %2725 = vmatprep.subr.mxu0 0.0
    %2726 = vmatpush1.msra.mxu0 0.0
    %2727 = vmatprep.subr.mxu0 0.0
    %2728 = vmatpush1.msra.mxu0 0.0
    %2729 = vmatprep.subr.mxu0 0.0
    %2730 = vmatpush1.msra.mxu0 0.0
    %2731 = vmatprep.subr.mxu0 0.0
    %2732 = vmatpush1.msra.mxu0 0.0
    %2733 = vmatprep.subr.mxu0 0.0
    %2734 = vmatpush1.msra.mxu0 0.0
    %2735 = vmatprep.subr.mxu0 0.0
    %2736 = vmatpush1.msra.mxu0 0.0
    %2737 = vmatprep.subr.mxu0 0.0
    %2738 = vmatpush1.msra.mxu0 0.0
    %2739 = vmatprep.subr.mxu0 0.0
    %2740 = vmatpush1.msra.mxu0 0.0
    %2741 = vmatprep.subr.mxu0 0.0
    %2742 = vmatpush1.msra.mxu0 0.0
    %2743 = vmatprep.subr.mxu0 0.0
    %2744 = vmatpush1.msra.mxu0 0.0
    %2745 = vmatprep.subr.mxu0 0.0
    %2746 = vmatpush1.msra.mxu0 0.0
    %2747 = vmatprep.subr.mxu0 0.0
    %2748 = vmatpush1.msra.mxu0 0.0
    %2749 = vmatprep.subr.mxu0 0.0
    %2750 = vmatpush1.msra.mxu0 0.0
    %2751 = vmatprep.subr.mxu0 0.0
    %2752 = vmatpush1.msra.mxu0 0.0
    %2753 = vmatprep.subr.mxu0 0.0
    %2754 = vmatpush1.msra.mxu0 0.0
    %2755 = vmatprep.subr.mxu0 0.0
    %2756 = vmatpush1.msra.mxu0 0.0
    %2757 = vmatprep.subr.mxu0 0.0
    %2758 = vmatpush1.msra.mxu0 0.0
    %2759 = vmatprep.subr.mxu0 0.0
    %2760 = vmatpush1.msra.mxu0 0.0
    %2761 = vmatprep.subr.mxu0 0.0
    %2762 = vmatpush1.msra.mxu0 0.0
    %2763 = vmatprep.subr.mxu0 0.0
    %2764 = vmatpush1.msra.mxu0 0.0
    %2765 = vmatprep.subr.mxu0 0.0
    %2766 = vmatpush1.msra.mxu0 0.0
    %2767 = vmatprep.subr.mxu0 0.0
    %2768 = vmatpush1.msra.mxu0 0.0
    %2769 = vmatprep.mubr.f32.mxu0 0.0
    %2770 = vmatmul.mubr.f32.gmra.mrb[0].mxu0 %v2703
    %v2771 = vpop.f32.mrb[0].mxu0
    %v2772 = vadd.f32 0.0, %v2771
    %v2773 = vpop.f32.mrb[0].mxu0
    %2774 = vdwg.mxu0
    %v2775 = vmul.f32 %v2261, %v2183
    %v2776 = vmul.f32 %v2334, %v2184
    %v2777 = vmul.f32 %v2407, %v2185
    %v2778 = vmul.f32 %v2480, %v2186
    %v2779 = vmul.f32 %v2553, %v2187
    %v2780 = vmul.f32 %v2626, %v2188
    %v2781 = vmul.f32 %v2699, %v2189
    %v2782 = vmul.f32 %v2772, %v2190
    %v2783 = vcombine.low %v2775, %v2779
    %v2784 = vcombine.high %v2775, %v2779
    %v2786 = vunpack.c.l.s4 1983009808
    %v2787 = vunpack.c.0.s8 %v2786
    %v2788 = vlaneseq
    %v2789 = vshrl.u32 %v2788, 7
    %v2790 = vsub.s32 %v2787, %v2789
    %v2791 = vrot.slane %v2783, %v2790
    %v2793 = vunpack.c.l.s4 1983009808
    %v2794 = vunpack.c.0.s8 %v2793
    %v2795 = vlaneseq
    %v2796 = vshrl.u32 %v2795, 7
    %v2797 = vsub.s32 %v2794, %v2796
    %v2798 = vrot.slane %v2784, %v2797
    %v2799 = vcombine.low %v2777, %v2781
    %v2800 = vcombine.high %v2777, %v2781
    %v2802 = vunpack.c.l.s4 1983009808
    %v2803 = vunpack.c.0.s8 %v2802
    %v2804 = vlaneseq
    %v2805 = vshrl.u32 %v2804, 7
    %v2806 = vsub.s32 %v2803, %v2805
    %v2807 = vrot.slane %v2799, %v2806
    %v2809 = vunpack.c.l.s4 1983009808
    %v2810 = vunpack.c.0.s8 %v2809
    %v2811 = vlaneseq
    %v2812 = vshrl.u32 %v2811, 7
    %v2813 = vsub.s32 %v2810, %v2812
    %v2814 = vrot.slane %v2800, %v2813
    %v2815 = vcombine.low %v2791, %v2807
    %v2816 = vcombine.high %v2791, %v2807
    %v2818 = vunpack.c.l.s4 1934713408
    %v2819 = vunpack.c.0.s8 %v2818
    %v2820 = vlaneseq
    %v2821 = vshrl.u32 %v2820, 7
    %v2822 = vsub.s32 %v2819, %v2821
    %v2823 = vrot.slane %v2815, %v2822
    %v2825 = vunpack.c.l.s4 1934713408
    %v2826 = vunpack.c.0.s8 %v2825
    %v2827 = vlaneseq
    %v2828 = vshrl.u32 %v2827, 7
    %v2829 = vsub.s32 %v2826, %v2828
    %v2830 = vrot.slane %v2816, %v2829
    %v2831 = vcombine.low %v2798, %v2814
    %v2832 = vcombine.high %v2798, %v2814
    %v2834 = vunpack.c.l.s4 1934713408
    %v2835 = vunpack.c.0.s8 %v2834
    %v2836 = vlaneseq
    %v2837 = vshrl.u32 %v2836, 7
    %v2838 = vsub.s32 %v2835, %v2837
    %v2839 = vrot.slane %v2831, %v2838
    %v2841 = vunpack.c.l.s4 1934713408
    %v2842 = vunpack.c.0.s8 %v2841
    %v2843 = vlaneseq
    %v2844 = vshrl.u32 %v2843, 7
    %v2845 = vsub.s32 %v2842, %v2844
    %v2846 = vrot.slane %v2832, %v2845
    %v2847 = vcombine.high %v2823, 0.0
    %v2848 = vcombine.high %v2830, 0.0
    %v2849 = vcombine.high %v2839, 0.0
    %v2850 = vcombine.high %v2846, 0.0
    %v2851 = vcombine.low %v2776, %v2780
    %v2852 = vcombine.high %v2776, %v2780
    %v2854 = vunpack.c.l.s4 1983009808
    %v2855 = vunpack.c.0.s8 %v2854
    %v2856 = vlaneseq
    %v2857 = vshrl.u32 %v2856, 7
    %v2858 = vsub.s32 %v2855, %v2857
    %v2859 = vrot.slane %v2851, %v2858
    %v2861 = vunpack.c.l.s4 1983009808
    %v2862 = vunpack.c.0.s8 %v2861
    %v2863 = vlaneseq
    %v2864 = vshrl.u32 %v2863, 7
    %v2865 = vsub.s32 %v2862, %v2864
    %v2866 = vrot.slane %v2852, %v2865
    %v2867 = vcombine.low %v2778, %v2782
    %v2868 = vcombine.high %v2778, %v2782
    %v2870 = vunpack.c.l.s4 1983009808
    %v2871 = vunpack.c.0.s8 %v2870
    %v2872 = vlaneseq
    %v2873 = vshrl.u32 %v2872, 7
    %v2874 = vsub.s32 %v2871, %v2873
    %v2875 = vrot.slane %v2867, %v2874
    %v2877 = vunpack.c.l.s4 1983009808
    %v2878 = vunpack.c.0.s8 %v2877
    %v2879 = vlaneseq
    %v2880 = vshrl.u32 %v2879, 7
    %v2881 = vsub.s32 %v2878, %v2880
    %v2882 = vrot.slane %v2868, %v2881
    %v2883 = vcombine.low %v2859, %v2875
    %v2884 = vcombine.high %v2859, %v2875
    %v2886 = vunpack.c.l.s4 1934713408
    %v2887 = vunpack.c.0.s8 %v2886
    %v2888 = vlaneseq
    %v2889 = vshrl.u32 %v2888, 7
    %v2890 = vsub.s32 %v2887, %v2889
    %v2891 = vrot.slane %v2883, %v2890
    %v2893 = vunpack.c.l.s4 1934713408
    %v2894 = vunpack.c.0.s8 %v2893
    %v2895 = vlaneseq
    %v2896 = vshrl.u32 %v2895, 7
    %v2897 = vsub.s32 %v2894, %v2896
    %v2898 = vrot.slane %v2884, %v2897
    %v2899 = vcombine.low %v2866, %v2882
    %v2900 = vcombine.high %v2866, %v2882
    %v2902 = vunpack.c.l.s4 1934713408
    %v2903 = vunpack.c.0.s8 %v2902
    %v2904 = vlaneseq
    %v2905 = vshrl.u32 %v2904, 7
    %v2906 = vsub.s32 %v2903, %v2905
    %v2907 = vrot.slane %v2899, %v2906
    %v2909 = vunpack.c.l.s4 1934713408
    %v2910 = vunpack.c.0.s8 %v2909
    %v2911 = vlaneseq
    %v2912 = vshrl.u32 %v2911, 7
    %v2913 = vsub.s32 %v2910, %v2912
    %v2914 = vrot.slane %v2900, %v2913
    %v2915 = vcombine.high %v2891, 0.0
    %v2916 = vcombine.high %v2898, 0.0
    %v2917 = vcombine.high %v2907, 0.0
    %v2918 = vcombine.high %v2914, 0.0
    %v2919 = vcombine.low %v2823, %v2830
    %v2921 = vunpack.c.l.s4 1983009808
    %v2922 = vunpack.c.0.s8 %v2921
    %v2923 = vlaneseq
    %v2924 = vshrl.u32 %v2923, 7
    %v2925 = vsub.s32 %v2922, %v2924
    %v2926 = vrot.slane %v2919, %v2925
    %v2927 = vcombine.low %v2847, %v2848
    %v2929 = vunpack.c.l.s4 1983009808
    %v2930 = vunpack.c.0.s8 %v2929
    %v2931 = vlaneseq
    %v2932 = vshrl.u32 %v2931, 7
    %v2933 = vsub.s32 %v2930, %v2932
    %v2934 = vrot.slane %v2927, %v2933
    %v2935 = vcombine.low %v2839, %v2846
    %v2937 = vunpack.c.l.s4 1983009808
    %v2938 = vunpack.c.0.s8 %v2937
    %v2939 = vlaneseq
    %v2940 = vshrl.u32 %v2939, 7
    %v2941 = vsub.s32 %v2938, %v2940
    %v2942 = vrot.slane %v2935, %v2941
    %v2943 = vcombine.low %v2849, %v2850
    %v2945 = vunpack.c.l.s4 1983009808
    %v2946 = vunpack.c.0.s8 %v2945
    %v2947 = vlaneseq
    %v2948 = vshrl.u32 %v2947, 7
    %v2949 = vsub.s32 %v2946, %v2948
    %v2950 = vrot.slane %v2943, %v2949
    %v2951 = vcombine.low %v2926, %v2934
    %v2952 = vcombine.high %v2926, %v2934
    %v2954 = vunpack.c.l.s4 1934713408
    %v2955 = vunpack.c.0.s8 %v2954
    %v2956 = vlaneseq
    %v2957 = vshrl.u32 %v2956, 7
    %v2958 = vsub.s32 %v2955, %v2957
    %v2959 = vrot.slane %v2951, %v2958
    %v2961 = vunpack.c.l.s4 1934713408
    %v2962 = vunpack.c.0.s8 %v2961
    %v2963 = vlaneseq
    %v2964 = vshrl.u32 %v2963, 7
    %v2965 = vsub.s32 %v2962, %v2964
    %v2966 = vrot.slane %v2952, %v2965
    %v2967 = vcombine.low %v2942, %v2950
    %v2968 = vcombine.high %v2942, %v2950
    %v2970 = vunpack.c.l.s4 1934713408
    %v2971 = vunpack.c.0.s8 %v2970
    %v2972 = vlaneseq
    %v2973 = vshrl.u32 %v2972, 7
    %v2974 = vsub.s32 %v2971, %v2973
    %v2975 = vrot.slane %v2967, %v2974
    %v2977 = vunpack.c.l.s4 1934713408
    %v2978 = vunpack.c.0.s8 %v2977
    %v2979 = vlaneseq
    %v2980 = vshrl.u32 %v2979, 7
    %v2981 = vsub.s32 %v2978, %v2980
    %v2982 = vrot.slane %v2968, %v2981
    %v2983 = vcombine.low %v2959, %v2975
    %v2984 = vcombine.high %v2959, %v2975
    %v2985 = vcombine.low %v2966, %v2982
    %v2986 = vcombine.high %v2966, %v2982
    %v2987 = vcombine.low %v2891, %v2898
    %v2989 = vunpack.c.l.s4 1983009808
    %v2990 = vunpack.c.0.s8 %v2989
    %v2991 = vlaneseq
    %v2992 = vshrl.u32 %v2991, 7
    %v2993 = vsub.s32 %v2990, %v2992
    %v2994 = vrot.slane %v2987, %v2993
    %v2995 = vcombine.low %v2915, %v2916
    %v2997 = vunpack.c.l.s4 1983009808
    %v2998 = vunpack.c.0.s8 %v2997
    %v2999 = vlaneseq
    %v3000 = vshrl.u32 %v2999, 7
    %v3001 = vsub.s32 %v2998, %v3000
    %v3002 = vrot.slane %v2995, %v3001
    %v3003 = vcombine.low %v2907, %v2914
    %v3005 = vunpack.c.l.s4 1983009808
    %v3006 = vunpack.c.0.s8 %v3005
    %v3007 = vlaneseq
    %v3008 = vshrl.u32 %v3007, 7
    %v3009 = vsub.s32 %v3006, %v3008
    %v3010 = vrot.slane %v3003, %v3009
    %v3011 = vcombine.low %v2917, %v2918
    %v3013 = vunpack.c.l.s4 1983009808
    %v3014 = vunpack.c.0.s8 %v3013
    %v3015 = vlaneseq
    %v3016 = vshrl.u32 %v3015, 7
    %v3017 = vsub.s32 %v3014, %v3016
    %v3018 = vrot.slane %v3011, %v3017
    %v3019 = vcombine.low %v2994, %v3002
    %v3020 = vcombine.high %v2994, %v3002
    %v3022 = vunpack.c.l.s4 1934713408
    %v3023 = vunpack.c.0.s8 %v3022
    %v3024 = vlaneseq
    %v3025 = vshrl.u32 %v3024, 7
    %v3026 = vsub.s32 %v3023, %v3025
    %v3027 = vrot.slane %v3019, %v3026
    %v3029 = vunpack.c.l.s4 1934713408
    %v3030 = vunpack.c.0.s8 %v3029
    %v3031 = vlaneseq
    %v3032 = vshrl.u32 %v3031, 7
    %v3033 = vsub.s32 %v3030, %v3032
    %v3034 = vrot.slane %v3020, %v3033
    %v3035 = vcombine.low %v3010, %v3018
    %v3036 = vcombine.high %v3010, %v3018
    %v3038 = vunpack.c.l.s4 1934713408
    %v3039 = vunpack.c.0.s8 %v3038
    %v3040 = vlaneseq
    %v3041 = vshrl.u32 %v3040, 7
    %v3042 = vsub.s32 %v3039, %v3041
    %v3043 = vrot.slane %v3035, %v3042
    %v3045 = vunpack.c.l.s4 1934713408
    %v3046 = vunpack.c.0.s8 %v3045
    %v3047 = vlaneseq
    %v3048 = vshrl.u32 %v3047, 7
    %v3049 = vsub.s32 %v3046, %v3048
    %v3050 = vrot.slane %v3036, %v3049
    %v3051 = vcombine.low %v3027, %v3043
    %v3052 = vcombine.high %v3027, %v3043
    %v3053 = vcombine.low %v3034, %v3050
    %v3054 = vcombine.high %v3034, %v3050
    %3057 = vrot.lane.b32.xlu0 %v2984, 8
    %v3058 = vpop.permute.xlu0 %3057
    %3059 = vrot.lane.b32.xlu0 %v3052, 8
    %v3060 = vpop.permute.xlu0 %3059
    %3065 = vrot.lane.b32.xlu0 %v2985, 16
    %v3066 = vpop.permute.xlu0 %3065
    %3067 = vrot.lane.b32.xlu0 %v3053, 16
    %v3068 = vpop.permute.xlu0 %3067
    %3073 = vrot.lane.b32.xlu0 %v2986, 24
    %v3074 = vpop.permute.xlu0 %3073
    %3075 = vrot.lane.b32.xlu0 %v3054, 24
    %v3076 = vpop.permute.xlu0 %3075
    %v3079 = vsel %vm1480, %v2983, %v3058
    %v3080 = vsel %vm1480, %v3051, %v3060
    %vm3081 = vcmask 130048
    %v3082 = vsel %vm3081, %v3079, %v3066
    %v3083 = vsel %vm3081, %v3080, %v3068
    %vm3084 = vcmask 195584
    %v3085 = vsel %vm3084, %v3082, %v3074
    %v3086 = vsel %vm3084, %v3083, %v3076
    %v3087 = vld [vmem:[#allocation19] sm:$0xff]
    %v3088 = vld [vmem:[#allocation19 + $0x8] sm:$0xff]
    %v3089 = vld [vmem:[#allocation19 + $0x10] sm:$0xff]
    %v3090 = vld [vmem:[#allocation19 + $0x18] sm:$0xff]
    %v3091 = vld [vmem:[#allocation20] sm:$0x1]
    %v3093 = vlaneseq
    %v3094 = vshrl.u32 %v3093, 7
    %v3095 = vsub.s32 0, %v3094
    %v3096 = vrot.slane %v3091, %v3095
    %v3099 = vsel %vm336, %v3085, 0
    %v3102 = vsel %vm336, %v3086, 0
    %3104 = vmatprep.subr.mxu0 0.0
    %3105 = vmatpush1.msra.mxu0 %v3087
    %3106 = vmatprep.subr.mxu0 0.0
    %3107 = vmatpush1.msra.mxu0 %v3088
    %3108 = vmatprep.subr.mxu0 0.0
    %3109 = vmatpush1.msra.mxu0 %v3089
    %3110 = vmatprep.subr.mxu0 0.0
    %3111 = vmatpush1.msra.mxu0 %v3090
    %3112 = vmatprep.subr.mxu0 0.0
    %3113 = vmatpush1.msra.mxu0 0.0
    %3114 = vmatprep.subr.mxu0 0.0
    %3115 = vmatpush1.msra.mxu0 0.0
    %3116 = vmatprep.subr.mxu0 0.0
    %3117 = vmatpush1.msra.mxu0 0.0
    %3118 = vmatprep.subr.mxu0 0.0
    %3119 = vmatpush1.msra.mxu0 0.0
    %3120 = vmatprep.subr.mxu0 0.0
    %3121 = vmatpush1.msra.mxu0 0.0
    %3122 = vmatprep.subr.mxu0 0.0
    %3123 = vmatpush1.msra.mxu0 0.0
    %3124 = vmatprep.subr.mxu0 0.0
    %3125 = vmatpush1.msra.mxu0 0.0
    %3126 = vmatprep.subr.mxu0 0.0
    %3127 = vmatpush1.msra.mxu0 0.0
    %3128 = vmatprep.subr.mxu0 0.0
    %3129 = vmatpush1.msra.mxu0 0.0
    %3130 = vmatprep.subr.mxu0 0.0
    %3131 = vmatpush1.msra.mxu0 0.0
    %3132 = vmatprep.subr.mxu0 0.0
    %3133 = vmatpush1.msra.mxu0 0.0
    %3134 = vmatprep.subr.mxu0 0.0
    %3135 = vmatpush1.msra.mxu0 0.0
    %3136 = vmatprep.subr.mxu0 0.0
    %3137 = vmatpush1.msra.mxu0 0.0
    %3138 = vmatprep.subr.mxu0 0.0
    %3139 = vmatpush1.msra.mxu0 0.0
    %3140 = vmatprep.subr.mxu0 0.0
    %3141 = vmatpush1.msra.mxu0 0.0
    %3142 = vmatprep.subr.mxu0 0.0
    %3143 = vmatpush1.msra.mxu0 0.0
    %3144 = vmatprep.subr.mxu0 0.0
    %3145 = vmatpush1.msra.mxu0 0.0
    %3146 = vmatprep.subr.mxu0 0.0
    %3147 = vmatpush1.msra.mxu0 0.0
    %3148 = vmatprep.subr.mxu0 0.0
    %3149 = vmatpush1.msra.mxu0 0.0
    %3150 = vmatprep.subr.mxu0 0.0
    %3151 = vmatpush1.msra.mxu0 0.0
    %3152 = vmatprep.subr.mxu0 0.0
    %3153 = vmatpush1.msra.mxu0 0.0
    %3154 = vmatprep.subr.mxu0 0.0
    %3155 = vmatpush1.msra.mxu0 0.0
    %3156 = vmatprep.subr.mxu0 0.0
    %3157 = vmatpush1.msra.mxu0 0.0
    %3158 = vmatprep.subr.mxu0 0.0
    %3159 = vmatpush1.msra.mxu0 0.0
    %3160 = vmatprep.subr.mxu0 0.0
    %3161 = vmatpush1.msra.mxu0 0.0
    %3162 = vmatprep.subr.mxu0 0.0
    %3163 = vmatpush1.msra.mxu0 0.0
    %3164 = vmatprep.subr.mxu0 0.0
    %3165 = vmatpush1.msra.mxu0 0.0
    %3166 = vmatprep.subr.mxu0 0.0
    %3167 = vmatpush1.msra.mxu0 0.0
    %3168 = vmatprep.mubr.f32.mxu0 0.0
    %3169 = vmatmul.mubr.f32.gmra.mrb[0].mxu0 %v3099
    %v3170 = vpop.f32.mrb[0].mxu0
    %v3171 = vadd.f32 %v3096, %v3170
    %v3172 = vpop.f32.mrb[0].mxu0
    %3173 = vmatprep.mubr.f32.mxu0 0.0
    %3174 = vmatmul.mubr.f32.gmra.mrb[0].mxu0 %v3102
    %v3175 = vpop.f32.mrb[0].mxu0
    %v3176 = vadd.f32 %v3096, %v3175
    %v3177 = vpop.f32.mrb[0].mxu0
    %3178 = vdwg.mxu0
    %v3179 = vadd.f32 %v319, %v3171
    %v3180 = vadd.f32 %v320, %v3176
    %v3181 = vld [vmem:[#allocation22] sm:$0x1]
    %v3182 = vld [vmem:[#allocation23] sm:$0x1]
    %v3183 = vsel %vm336, %v3179, 0.0
    %3184 = vadd.xlane.f32.xlu0 %v3183
    %v3185 = vpop.xlane.xlu0 %3184
    %v3186 = vsel %vm336, %v3180, 0.0
    %3187 = vadd.xlane.f32.xlu0 %v3186
    %v3188 = vpop.xlane.xlu0 %3187
    %v3189 = vrcp.pop 32.0
    %v3190 = vmul.f32 %v3185, %v3189
    %v3191 = vmul.f32 %v3188, %v3189
    %v3192 = vsub.f32 %v3179, %v3190
    %v3193 = vsub.f32 %v3180, %v3191
    %v3194 = vmul.f32 %v3192, %v3192
    %v3195 = vmul.f32 %v3193, %v3193
    %v3196 = vsel %vm336, %v3194, 0.0
    %3197 = vadd.xlane.f32.xlu0 %v3196
    %v3198 = vpop.xlane.xlu0 %3197
    %v3199 = vsel %vm336, %v3195, 0.0
    %3200 = vadd.xlane.f32.xlu0 %v3199
    %v3201 = vpop.xlane.xlu0 %3200
    %v3202 = vmul.f32 %v3198, %v3189
    %v3203 = vmul.f32 %v3201, %v3189
    %v3204 = vadd.f32 %v3202, 1e-06
    %v3205 = vadd.f32 %v3203, 1e-06
    %v3206 = vrsqrt.pop %v3204
    %v3207 = vrsqrt.pop %v3205
    %v3208 = vmul.f32 %v3192, %v3206
    %v3209 = vmul.f32 %v3193, %v3207
    %v3211 = vlaneseq
    %v3212 = vshrl.u32 %v3211, 7
    %v3213 = vsub.s32 0, %v3212
    %v3214 = vrot.slane %v3181, %v3213
    %v3216 = vmul.f32 %v3208, %v3214
    %v3217 = vmul.f32 %v3209, %v3214
    %v3219 = vlaneseq
    %v3220 = vshrl.u32 %v3219, 7
    %v3221 = vsub.s32 0, %v3220
    %v3222 = vrot.slane %v3182, %v3221
    %v3224 = vadd.f32 %v3216, %v3222
    %v3225 = vadd.f32 %v3217, %v3222
    %v3226 = vld [vmem:[#allocation25] sm:$0xff]
    %v3227 = vld [vmem:[#allocation25 + $0x8] sm:$0xff]
    %v3228 = vld [vmem:[#allocation25 + $0x10] sm:$0xff]
    %v3229 = vld [vmem:[#allocation25 + $0x18] sm:$0xff]
    %v3230 = vld [vmem:[#allocation26] sm:$0x1]
    %v3232 = vlaneseq
    %v3233 = vshrl.u32 %v3232, 7
    %v3234 = vsub.s32 0, %v3233
    %v3235 = vrot.slane %v3230, %v3234
    %v3238 = vsel %vm336, %v3224, 0
    %v3241 = vsel %vm336, %v3225, 0
    %3243 = vmatprep.subr.mxu0 0.0
    %3244 = vmatpush1.msra.mxu0 %v3226
    %3245 = vmatprep.subr.mxu0 0.0
    %3246 = vmatpush1.msra.mxu0 %v3227
    %3247 = vmatprep.subr.mxu0 0.0
    %3248 = vmatpush1.msra.mxu0 %v3228
    %3249 = vmatprep.subr.mxu0 0.0
    %3250 = vmatpush1.msra.mxu0 %v3229
    %3251 = vmatprep.subr.mxu0 0.0
    %3252 = vmatpush1.msra.mxu0 0.0
    %3253 = vmatprep.subr.mxu0 0.0
    %3254 = vmatpush1.msra.mxu0 0.0
    %3255 = vmatprep.subr.mxu0 0.0
    %3256 = vmatpush1.msra.mxu0 0.0
    %3257 = vmatprep.subr.mxu0 0.0
    %3258 = vmatpush1.msra.mxu0 0.0
    %3259 = vmatprep.subr.mxu0 0.0
    %3260 = vmatpush1.msra.mxu0 0.0
    %3261 = vmatprep.subr.mxu0 0.0
    %3262 = vmatpush1.msra.mxu0 0.0
    %3263 = vmatprep.subr.mxu0 0.0
    %3264 = vmatpush1.msra.mxu0 0.0
    %3265 = vmatprep.subr.mxu0 0.0
    %3266 = vmatpush1.msra.mxu0 0.0
    %3267 = vmatprep.subr.mxu0 0.0
    %3268 = vmatpush1.msra.mxu0 0.0
    %3269 = vmatprep.subr.mxu0 0.0
    %3270 = vmatpush1.msra.mxu0 0.0
    %3271 = vmatprep.subr.mxu0 0.0
    %3272 = vmatpush1.msra.mxu0 0.0
    %3273 = vmatprep.subr.mxu0 0.0
    %3274 = vmatpush1.msra.mxu0 0.0
    %3275 = vmatprep.subr.mxu0 0.0
    %3276 = vmatpush1.msra.mxu0 0.0
    %3277 = vmatprep.subr.mxu0 0.0
    %3278 = vmatpush1.msra.mxu0 0.0
    %3279 = vmatprep.subr.mxu0 0.0
    %3280 = vmatpush1.msra.mxu0 0.0
    %3281 = vmatprep.subr.mxu0 0.0
    %3282 = vmatpush1.msra.mxu0 0.0
    %3283 = vmatprep.subr.mxu0 0.0
    %3284 = vmatpush1.msra.mxu0 0.0
    %3285 = vmatprep.subr.mxu0 0.0
    %3286 = vmatpush1.msra.mxu0 0.0
    %3287 = vmatprep.subr.mxu0 0.0
    %3288 = vmatpush1.msra.mxu0 0.0
    %3289 = vmatprep.subr.mxu0 0.0
    %3290 = vmatpush1.msra.mxu0 0.0
    %3291 = vmatprep.subr.mxu0 0.0
    %3292 = vmatpush1.msra.mxu0 0.0
    %3293 = vmatprep.subr.mxu0 0.0
    %3294 = vmatpush1.msra.mxu0 0.0
    %3295 = vmatprep.subr.mxu0 0.0
    %3296 = vmatpush1.msra.mxu0 0.0
    %3297 = vmatprep.subr.mxu0 0.0
    %3298 = vmatpush1.msra.mxu0 0.0
    %3299 = vmatprep.subr.mxu0 0.0
    %3300 = vmatpush1.msra.mxu0 0.0
    %3301 = vmatprep.subr.mxu0 0.0
    %3302 = vmatpush1.msra.mxu0 0.0
    %3303 = vmatprep.subr.mxu0 0.0
    %3304 = vmatpush1.msra.mxu0 0.0
    %3305 = vmatprep.subr.mxu0 0.0
    %3306 = vmatpush1.msra.mxu0 0.0
    %3307 = vmatprep.mubr.f32.mxu0 0.0
    %3308 = vmatmul.mubr.f32.gmra.mrb[0].mxu0 %v3238
    %v3309 = vpop.f32.mrb[0].mxu0
    %v3310 = vadd.f32 %v3235, %v3309
    %v3311 = vpop.f32.mrb[0].mxu0
    %3312 = vmatprep.mubr.f32.mxu0 0.0
    %3313 = vmatmul.mubr.f32.gmra.mrb[0].mxu0 %v3241
    %v3314 = vpop.f32.mrb[0].mxu0
    %v3315 = vadd.f32 %v3235, %v3314
    %v3316 = vpop.f32.mrb[0].mxu0
    %3317 = vdwg.mxu0
    %v3318 = vmax.f32 %v3310, 0.0
    %v3319 = vmax.f32 %v3315, 0.0
    %v3320 = vld [vmem:[#allocation28] sm:$0xff]
    %v3321 = vld [vmem:[#allocation28 + $0x8] sm:$0xff]
    %v3322 = vld [vmem:[#allocation28 + $0x10] sm:$0xff]
    %v3323 = vld [vmem:[#allocation28 + $0x18] sm:$0xff]
    %v3324 = vld [vmem:[#allocation28 + $0x20] sm:$0xff]
    %v3325 = vld [vmem:[#allocation28 + $0x28] sm:$0xff]
    %v3326 = vld [vmem:[#allocation28 + $0x30] sm:$0xff]
    %v3327 = vld [vmem:[#allocation28 + $0x38] sm:$0xff]
    %v3328 = vld [vmem:[#allocation29] sm:$0x1]
    %v3330 = vlaneseq
    %v3331 = vshrl.u32 %v3330, 7
    %v3332 = vsub.s32 0, %v3331
    %v3333 = vrot.slane %v3328, %v3332
    %vm3335 = vcmask 523264
    %v3337 = vsel %vm3335, %v3318, 0
    %v3340 = vsel %vm3335, %v3319, 0
    %3342 = vmatprep.subr.mxu0 0.0
    %3343 = vmatpush1.msra.mxu0 %v3320
    %3344 = vmatprep.subr.mxu0 0.0
    %3345 = vmatpush1.msra.mxu0 %v3321
    %3346 = vmatprep.subr.mxu0 0.0
    %3347 = vmatpush1.msra.mxu0 %v3322
    %3348 = vmatprep.subr.mxu0 0.0
    %3349 = vmatpush1.msra.mxu0 %v3323
    %3350 = vmatprep.subr.mxu0 0.0
    %3351 = vmatpush1.msra.mxu0 %v3324
    %3352 = vmatprep.subr.mxu0 0.0
    %3353 = vmatpush1.msra.mxu0 %v3325
    %3354 = vmatprep.subr.mxu0 0.0
    %3355 = vmatpush1.msra.mxu0 %v3326
    %3356 = vmatprep.subr.mxu0 0.0
    %3357 = vmatpush1.msra.mxu0 %v3327
    %3358 = vmatprep.subr.mxu0 0.0
    %3359 = vmatpush1.msra.mxu0 0.0
    %3360 = vmatprep.subr.mxu0 0.0
    %3361 = vmatpush1.msra.mxu0 0.0
    %3362 = vmatprep.subr.mxu0 0.0
    %3363 = vmatpush1.msra.mxu0 0.0
    %3364 = vmatprep.subr.mxu0 0.0
    %3365 = vmatpush1.msra.mxu0 0.0
    %3366 = vmatprep.subr.mxu0 0.0
    %3367 = vmatpush1.msra.mxu0 0.0
    %3368 = vmatprep.subr.mxu0 0.0
    %3369 = vmatpush1.msra.mxu0 0.0
    %3370 = vmatprep.subr.mxu0 0.0
    %3371 = vmatpush1.msra.mxu0 0.0
    %3372 = vmatprep.subr.mxu0 0.0
    %3373 = vmatpush1.msra.mxu0 0.0
    %3374 = vmatprep.subr.mxu0 0.0
    %3375 = vmatpush1.msra.mxu0 0.0
    %3376 = vmatprep.subr.mxu0 0.0
    %3377 = vmatpush1.msra.mxu0 0.0
    %3378 = vmatprep.subr.mxu0 0.0
    %3379 = vmatpush1.msra.mxu0 0.0
    %3380 = vmatprep.subr.mxu0 0.0
    %3381 = vmatpush1.msra.mxu0 0.0
    %3382 = vmatprep.subr.mxu0 0.0
    %3383 = vmatpush1.msra.mxu0 0.0
    %3384 = vmatprep.subr.mxu0 0.0
    %3385 = vmatpush1.msra.mxu0 0.0
    %3386 = vmatprep.subr.mxu0 0.0
    %3387 = vmatpush1.msra.mxu0 0.0
    %3388 = vmatprep.subr.mxu0 0.0
    %3389 = vmatpush1.msra.mxu0 0.0
    %3390 = vmatprep.subr.mxu0 0.0
    %3391 = vmatpush1.msra.mxu0 0.0
    %3392 = vmatprep.subr.mxu0 0.0
    %3393 = vmatpush1.msra.mxu0 0.0
    %3394 = vmatprep.subr.mxu0 0.0
    %3395 = vmatpush1.msra.mxu0 0.0
    %3396 = vmatprep.subr.mxu0 0.0
    %3397 = vmatpush1.msra.mxu0 0.0
    %3398 = vmatprep.subr.mxu0 0.0
    %3399 = vmatpush1.msra.mxu0 0.0
    %3400 = vmatprep.subr.mxu0 0.0
    %3401 = vmatpush1.msra.mxu0 0.0
    %3402 = vmatprep.subr.mxu0 0.0
    %3403 = vmatpush1.msra.mxu0 0.0
    %3404 = vmatprep.subr.mxu0 0.0
    %3405 = vmatpush1.msra.mxu0 0.0
    %3406 = vmatprep.mubr.f32.mxu0 0.0
    %3407 = vmatmul.mubr.f32.gmra.mrb[0].mxu0 %v3337
    %v3408 = vpop.f32.mrb[0].mxu0
    %v3409 = vadd.f32 %v3333, %v3408
    %v3410 = vpop.f32.mrb[0].mxu0
    %3411 = vmatprep.mubr.f32.mxu0 0.0
    %3412 = vmatmul.mubr.f32.gmra.mrb[0].mxu0 %v3340
    %v3413 = vpop.f32.mrb[0].mxu0
    %v3414 = vadd.f32 %v3333, %v3413
    %v3415 = vpop.f32.mrb[0].mxu0
    %3416 = vdwg.mxu0
    %v3417 = vadd.f32 %v3224, %v3409
    %v3418 = vadd.f32 %v3225, %v3414
    %v3419 = vld [vmem:[#allocation31] sm:$0x1]
    %v3420 = vld [vmem:[#allocation32] sm:$0x1]
    %v3421 = vsel %vm336, %v3417, 0.0
    %3422 = vadd.xlane.f32.xlu0 %v3421
    %v3423 = vpop.xlane.xlu0 %3422
    %v3424 = vsel %vm336, %v3418, 0.0
    %3425 = vadd.xlane.f32.xlu0 %v3424
    %v3426 = vpop.xlane.xlu0 %3425
    %v3427 = vmul.f32 %v3423, %v3189
    %v3428 = vmul.f32 %v3426, %v3189
    %v3429 = vsub.f32 %v3417, %v3427
    %v3430 = vsub.f32 %v3418, %v3428
    %v3431 = vmul.f32 %v3429, %v3429
    %v3432 = vmul.f32 %v3430, %v3430
    %v3433 = vsel %vm336, %v3431, 0.0
    %3434 = vadd.xlane.f32.xlu0 %v3433
    %v3435 = vpop.xlane.xlu0 %3434
    %v3436 = vsel %vm336, %v3432, 0.0
    %3437 = vadd.xlane.f32.xlu0 %v3436
    %v3438 = vpop.xlane.xlu0 %3437
    %v3439 = vmul.f32 %v3435, %v3189
    %v3440 = vmul.f32 %v3438, %v3189
    %v3441 = vadd.f32 %v3439, 1e-06
    %v3442 = vadd.f32 %v3440, 1e-06
    %v3443 = vrsqrt.pop %v3441
    %v3444 = vrsqrt.pop %v3442
    %v3445 = vmul.f32 %v3429, %v3443
    %v3446 = vmul.f32 %v3430, %v3444
    %v3448 = vlaneseq
    %v3449 = vshrl.u32 %v3448, 7
    %v3450 = vsub.s32 0, %v3449
    %v3451 = vrot.slane %v3419, %v3450
    %v3453 = vmul.f32 %v3445, %v3451
    %v3454 = vmul.f32 %v3446, %v3451
    %v3456 = vlaneseq
    %v3457 = vshrl.u32 %v3456, 7
    %v3458 = vsub.s32 0, %v3457
    %v3459 = vrot.slane %v3420, %v3458
    %v3461 = vadd.f32 %v3453, %v3459
    %v3462 = vadd.f32 %v3454, %v3459
    %3463 = vst.msk [vmem:[#allocation34] sm:$0xff] %vm336, %v3461
    %3464 = vst.msk [vmem:[#allocation34 + $0x8] sm:$0xff] %vm336, %v3462
    // Predicated region
    $region162: #{tpu_custom_call.1} parent=1 // pred_check
      _
    $region163: #{tpu_custom_call.1} parent=1 // pred_check_branch
      %3466 = sbr.rel (0) target = $region165
    $region164: #{tpu_custom_call.1} parent=1 // pred_region
      %s3468 = ssub.s32 256, 256
      %3469 = vsyncadd [#allocation4], %s3468
      %s3470 = sshll.u32 [#allocation34], 4
      %s3471 = int_to_ptr.vmem [resolvable:$true] %s3470
      %3476 = dma.vmem_to_hbm [thread:$0]  %s3471, 256, %s20, [#allocation4], 128, 128, 8
    $region165: #{tpu_custom_call.1} parent=1 // pred_fallthru
      _
    // Predicated region
    $region166: #{tpu_custom_call.1} parent=1 // pred_check
      _
    $region167: #{tpu_custom_call.1} parent=1 // pred_check_branch
      %3478 = sbr.rel (0) target = $region169
    $region168: #{tpu_custom_call.1} parent=1 // pred_region
      %3479 = dma.done [#allocation4], 256
    $region169: #{tpu_custom_call.1} parent=1 // pred_fallthru
      _
    %3480 = vsyncpa [#allocation3], 1
    %3481 = vsyncpa [#allocation6], 1
    %3482 = vsyncpa [#allocation9], 1
    %3483 = vsyncpa [#allocation12], 1
    %3484 = vsyncpa [#allocation15], 1
    %3485 = vsyncpa [#allocation18], 1
    %3486 = vsyncpa [#allocation21], 1
    %3487 = vsyncpa [#allocation24], 1
    %3488 = vsyncpa [#allocation27], 1
    %3489 = vsyncpa [#allocation30], 1
    %3490 = vsyncpa [#allocation33], 1
    %3491 = vsyncpa [#allocation4], 1

</llo_original>
